<compile_context>
chip_gen: v7x
topology: tpu7x:2x2x1
jax: 0.10.0
libtpu: 0.0.40
codegen_flags: <defaults>
</compile_context>

<pallas_src>
import numpy as np
import jax
import jax.numpy as jnp
from jax.experimental import pallas as pl
from jax.experimental.pallas import tpu as pltpu


def _cdiv(a, b):
    return (a + b - 1) // b


def _pick_tile(batch):
    """Images per grid step: multiple of 8, capped at 32, >=2 steps when possible."""
    b8 = 8 * _cdiv(batch, 8)
    if 8 < b8 <= 32:
        return max(8, (b8 // 2) // 8 * 8)   # split so dual-TC chips get 2+ steps
    return min(32, b8)


# ---------------------------------------------------------------------------
# Fused kernel
# ---------------------------------------------------------------------------
def _convnet_kernel(x1_ref, s1_ref, b1_ref, mask_ref, s2a_ref, s2b_ref,
                    b2_ref, wf1_ref, bf1_ref, wf2_ref, bf2_ref, out_ref):
    tb8 = x1_ref.shape[0]          # 8 rows per image (one per conv2-grid row pair)
    tb = tb8 // 8

    # ---- Stage 1: conv1 (1->16) + bias + ReLU + 2x2 maxpool, one bf16 GEMM.
    # Output column = rl*1024 + q*256 + X*16 + c  (rl: row in pair, q: pool
    # quadrant (py,px), X: conv2-padded grid column 0..15, c: channel).
    g1 = jnp.dot(x1_ref[...], s1_ref[...], preferred_element_type=jnp.float32)
    g1 = jnp.maximum(g1 + b1_ref[...], 0.0)                        # (tb*8, 2048)
    p_lo = jnp.maximum(jnp.maximum(g1[:, 0:256], g1[:, 256:512]),
                       jnp.maximum(g1[:, 512:768], g1[:, 768:1024]))
    p_hi = jnp.maximum(jnp.maximum(g1[:, 1024:1280], g1[:, 1280:1536]),
                       jnp.maximum(g1[:, 1536:1792], g1[:, 1792:2048]))
    p1 = jnp.concatenate([p_lo, p_hi], axis=-1)                    # (tb*8, 512)
    # zero conv2's padding ring (grid rows 0/15 via the pair mask, cols 0/15)
    p1 = p1.reshape(tb, 8, 512) * mask_ref[...]
    pr = p1.astype(jnp.bfloat16).reshape(tb8, 512)                 # pair-row slab

    # ---- Stage 2: conv2 (16->32) + bias + ReLU + 2x2 maxpool as two pair GEMMs.
    ca = jnp.dot(pr, s2a_ref[...], preferred_element_type=jnp.float32)
    cb = jnp.dot(pr, s2b_ref[...], preferred_element_type=jnp.float32)
    ca = ca.reshape(tb, 8, 1024)
    cb = cb.reshape(tb, 8, 1024)
    # pooled output row i2 uses grid-row pairs i2 (ca) and i2+1 (cb)
    pre = jnp.maximum(ca[:, 0:7, :] + cb[:, 1:8, :] + b2_ref[...], 0.0)  # (tb,7,1024)
    p2 = jnp.maximum(jnp.maximum(pre[:, :, 0:256], pre[:, :, 256:512]),
                     jnp.maximum(pre[:, :, 512:768], pre[:, :, 768:1024]))  # (tb,7,256)

    # ---- Head: flatten (i2, j2, c) + fc1 + ReLU + fc2 + softmax.
    flat = jnp.concatenate([p2[:, i, :] for i in range(7)], axis=-1)     # (tb, 1792)
    h = jnp.dot(flat.astype(jnp.bfloat16), wf1_ref[...],
                preferred_element_type=jnp.float32) + bf1_ref[...]
    h = jnp.maximum(h, 0.0)
    # TODO(synk): Dropout(p=0.5) is identity at inference (eval mode); no RNG mask.
    logits = jnp.dot(h, wf2_ref[...], preferred_element_type=jnp.float32) + bf2_ref[...]
    z = logits - jnp.max(logits, axis=-1, keepdims=True)
    e = jnp.exp(z)
    out_ref[...] = (e / jnp.sum(e, axis=-1, keepdims=True)).astype(out_ref.dtype)


# ---------------------------------------------------------------------------
# Trace-time weight / input re-layout (tiny one-off XLA ops)
# ---------------------------------------------------------------------------
def _build_x1(x, bp):
    """(Bp*8, 180) bf16: row (b, pair p) = 6 padded input rows 4p-2 .. 4p+3."""
    xbig = jnp.pad(x, ((0, 0), (3, 3), (1, 1)))              # (Bp, 34, 30)
    pieces = [xbig[:, u:u + 29:4, :] for u in range(6)]      # each (Bp, 8, 30)
    x1 = jnp.concatenate(pieces, axis=-1)                    # (Bp, 8, 180)
    return x1.reshape(bp * 8, 180).astype(jnp.bfloat16)


def _build_s1(w_conv1):
    """(180, 2048) bf16 matrix realizing conv1 + implicit 2x2-pool layout."""
    w = w_conv1.reshape(16, 3, 3)                            # [c, dy, dx]
    u = (jnp.arange(180) // 30)[:, None]
    xin = (jnp.arange(180) % 30)[:, None]
    m = jnp.arange(2048)[None, :]
    rl = m // 1024
    q = (m % 1024) // 256
    xg = (m % 256) // 16
    c = m % 16
    py, px = q // 2, q % 2
    dy = u - 2 * rl - py
    dx = xin - 2 * (xg - 1) - px
    valid = (xg >= 1) & (xg <= 14) & (dy >= 0) & (dy <= 2) & (dx >= 0) & (dx <= 2)
    vals = w[c, jnp.clip(dy, 0, 2), jnp.clip(dx, 0, 2)]
    return jnp.where(valid, vals, 0.0).astype(jnp.bfloat16)


def _build_s2(w_conv2):
    """Two (512, 1024) bf16 matrices: pair p acting as pair i2 (A) / i2+1 (B)."""
    k = jnp.arange(512)[:, None]
    rl = k // 256
    xg = (k % 256) // 16
    ci = k % 16
    m = jnp.arange(1024)[None, :]
    q = m // 256
    j2 = (m % 256) // 32
    co = m % 32
    py, px = q // 2, q % 2
    dx = xg - 2 * j2 - px
    dx_ok = (j2 <= 6) & (dx >= 0) & (dx <= 2)

    def build(dy):
        valid = dx_ok & (dy >= 0) & (dy <= 2)
        vals = w_conv2[co, ci, jnp.clip(dy, 0, 2), jnp.clip(dx, 0, 2)]
        return jnp.where(valid, vals, 0.0).astype(jnp.bfloat16)

    return build(rl - py), build(2 + rl - py)


def _build_ring_mask():
    """(8, 512) f32: zeros on conv2's zero-padding ring rows/cols, ones elsewhere."""
    p = np.arange(8)[:, None]
    col = np.arange(512)[None, :]
    rl = col // 256
    xg = (col % 256) // 16
    ring = ((p == 0) & (rl == 0)) | ((p == 7) & (rl == 1)) | (xg == 0) | (xg == 15)
    return jnp.asarray((~ring).astype(np.float32))


# ---------------------------------------------------------------------------
# Forward pass wrapper
# ---------------------------------------------------------------------------
def convnet_forward(x_nchw, params):
    B = x_nchw.shape[0]
    assert x_nchw.shape[1:] == (1, 28, 28), x_nchw.shape
    TB = _pick_tile(B)
    ntiles = _cdiv(B, TB)
    Bp = TB * ntiles

    x = x_nchw.reshape(B, 28, 28).astype(jnp.float32)
    if Bp != B:
        x = jnp.pad(x, ((0, Bp - B), (0, 0), (0, 0)))
    x1 = _build_x1(x, Bp)

    s1 = _build_s1(params["w_conv1"])
    b1col = jnp.tile(params["b_conv1"], 128).reshape(1, 2048)
    mask = _build_ring_mask()
    s2a, s2b = _build_s2(params["w_conv2"])
    b2col = jnp.tile(params["b_conv2"], 32).reshape(1, 1024)
    # fc1 rows re-ordered from torch's (c, i2, j2) flatten to (i2, j2, c), with
    # a zero block for the dummy j2=7 column group.
    wf1 = params["w_fc1"].reshape(32, 7, 7, 64).transpose(1, 2, 0, 3)
    wf1 = jnp.pad(wf1, ((0, 0), (0, 1), (0, 0), (0, 0)))
    wf1 = wf1.reshape(1792, 64).astype(jnp.bfloat16)
    bf1 = params["b_fc1"].reshape(1, 64)
    wf2 = params["w_fc2"]
    bf2 = params["b_fc2"].reshape(1, 10)

    cost = pl.CostEstimate(
        flops=Bp * (2 * 8 * 180 * 2048 + 2 * 2 * 8 * 512 * 1024
                    + 2 * 1792 * 64 + 2 * 64 * 10),
        transcendentals=Bp * 10,
        bytes_accessed=(Bp * 8 * 180 * 2 + Bp * 10 * 4
                        + (180 * 2048 + 2 * 512 * 1024 + 1792 * 64) * 2
                        + (2048 + 1024 + 8 * 512 + 64 + 640 + 10) * 4),
    )

    out = pl.pallas_call(
        _convnet_kernel,
        out_shape=jax.ShapeDtypeStruct((Bp, 10), jnp.float32),
        grid=(ntiles,),
        in_specs=[
            pl.BlockSpec((TB * 8, 180), lambda i: (i, 0)),   # per-step image rows
            pl.BlockSpec((180, 2048), lambda i: (0, 0)),     # conv1+pool weights
            pl.BlockSpec((1, 2048), lambda i: (0, 0)),       # conv1 bias (tiled)
            pl.BlockSpec((8, 512), lambda i: (0, 0)),        # zero-ring mask
            pl.BlockSpec((512, 1024), lambda i: (0, 0)),     # conv2 pair A
            pl.BlockSpec((512, 1024), lambda i: (0, 0)),     # conv2 pair B
            pl.BlockSpec((1, 1024), lambda i: (0, 0)),       # conv2 bias (tiled)
            pl.BlockSpec((1792, 64), lambda i: (0, 0)),      # fc1
            pl.BlockSpec((1, 64), lambda i: (0, 0)),
            pl.BlockSpec((64, 10), lambda i: (0, 0)),        # fc2
            pl.BlockSpec((1, 10), lambda i: (0, 0)),
        ],
        out_specs=pl.BlockSpec((TB, 10), lambda i: (i, 0)),
        compiler_params=pltpu.CompilerParams(
            dimension_semantics=("parallel",),
            vmem_limit_bytes=32 * 1024 * 1024,
        ),
        cost_estimate=cost,
    )(x1, s1, b1col, mask, s2a, s2b, b2col, wf1, bf1, wf2, bf2)

    return out[:B]


# ---------------------------------------------------------------------------
# Pure-JAX reference (for correctness) + deterministic init
# ---------------------------------------------------------------------------
def _reference_forward(x, params):
    y = jax.lax.conv_general_dilated(
        x, params["w_conv1"], (1, 1), "SAME",
        dimension_numbers=("NCHW", "OIHW", "NCHW"))
    y = jax.nn.relu(y + params["b_conv1"].reshape(1, 16, 1, 1))
    y = jax.lax.reduce_window(y, -jnp.inf, jax.lax.max,
                              (1, 1, 2, 2), (1, 1, 2, 2), "VALID")
    y = jax.lax.conv_general_dilated(
        y, params["w_conv2"], (1, 1), "SAME",
        dimension_numbers=("NCHW", "OIHW", "NCHW"))
    y = jax.nn.relu(y + params["b_conv2"].reshape(1, 32, 1, 1))
    y = jax.lax.reduce_window(y, -jnp.inf, jax.lax.max,
                              (1, 1, 2, 2), (1, 1, 2, 2), "VALID")
    y = y.reshape(y.shape[0], 32 * 7 * 7)
    y = jax.nn.relu(y @ params["w_fc1"] + params["b_fc1"])
    y = y @ params["w_fc2"] + params["b_fc2"]
    return jax.nn.softmax(y, axis=-1)


def init_params(key):
    ks = jax.random.split(key, 8)
    scale = 0.05
    return {
        "w_conv1": scale * jax.random.normal(ks[0], (16, 1, 3, 3), jnp.float32),
        "b_conv1": scale * jax.random.normal(ks[1], (16,), jnp.float32),
        "w_conv2": scale * jax.random.normal(ks[2], (32, 16, 3, 3), jnp.float32),
        "b_conv2": scale * jax.random.normal(ks[3], (32,), jnp.float32),
        "w_fc1": scale * jax.random.normal(ks[4], (32 * 7 * 7, 64), jnp.float32),
        "b_fc1": scale * jax.random.normal(ks[5], (64,), jnp.float32),
        "w_fc2": scale * jax.random.normal(ks[6], (64, 10), jnp.float32),
        "b_fc2": scale * jax.random.normal(ks[7], (10,), jnp.float32),
    }


if __name__ == "__main__":
    key = jax.random.PRNGKey(0)
    pkey, xkey = jax.random.split(key)
    params = init_params(pkey)

    # Batch 2; spatial size 28 is implied by fc1's 32*7*7 (two 2x2 pools).
    x = jax.random.normal(xkey, (2, 1, 28, 28), jnp.float32)

    out = jax.jit(convnet_forward)(x, params)
    out = jax.block_until_ready(out)

    assert out.shape == (2, 10), out.shape
    assert bool(jnp.all(jnp.isfinite(out)))
    # softmax rows must sum to 1
    assert jnp.allclose(jnp.sum(out, axis=1), 1.0, atol=1e-4)
    # match the pure-JAX f32 reference (bf16 GEMM operands -> loose tolerance)
    ref = _reference_forward(x, params)
    err = float(jnp.max(jnp.abs(out - ref)))
    assert err < 5e-3, err
    print("KERNEL_OK")
</pallas_src>

<mosaic_0001>
module attributes {stable_mosaic.version = 11 : i64} {
  func.func @_convnet_kernel(%arg0: i32, %arg1: memref<64x180xbf16, #tpu.memory_space<vmem>>, %arg2: memref<180x2048xbf16, #tpu.memory_space<vmem>>, %arg3: memref<1x2048xf32, #tpu.memory_space<vmem>>, %arg4: memref<8x512xf32, #tpu.memory_space<vmem>>, %arg5: memref<512x1024xbf16, #tpu.memory_space<vmem>>, %arg6: memref<512x1024xbf16, #tpu.memory_space<vmem>>, %arg7: memref<1x1024xf32, #tpu.memory_space<vmem>>, %arg8: memref<1792x64xbf16, #tpu.memory_space<vmem>>, %arg9: memref<1x64xf32, #tpu.memory_space<vmem>>, %arg10: memref<64x10xf32, #tpu.memory_space<vmem>>, %arg11: memref<1x10xf32, #tpu.memory_space<vmem>>, %arg12: memref<8x10xf32, #tpu.memory_space<vmem>>) attributes {dimension_semantics = [#tpu.dimension_semantics<parallel>], iteration_bounds = array<i64: 1>, scalar_prefetch = 0 : i64, scratch_operands = 0 : i64, tpu.core_type = #tpu.core_type<tc>, window_params = [{transform_indices = @transform_0, window_bounds = array<i64: 64, 180>}, {pipeline_mode = #tpu.pipeline_mode<synchronous>, transform_indices = @transform_1, window_bounds = array<i64: 180, 2048>}, {pipeline_mode = #tpu.pipeline_mode<synchronous>, transform_indices = @transform_2, window_bounds = array<i64: 1, 2048>}, {pipeline_mode = #tpu.pipeline_mode<synchronous>, transform_indices = @transform_3, window_bounds = array<i64: 8, 512>}, {pipeline_mode = #tpu.pipeline_mode<synchronous>, transform_indices = @transform_4, window_bounds = array<i64: 512, 1024>}, {pipeline_mode = #tpu.pipeline_mode<synchronous>, transform_indices = @transform_5, window_bounds = array<i64: 512, 1024>}, {pipeline_mode = #tpu.pipeline_mode<synchronous>, transform_indices = @transform_6, window_bounds = array<i64: 1, 1024>}, {pipeline_mode = #tpu.pipeline_mode<synchronous>, transform_indices = @transform_7, window_bounds = array<i64: 1792, 64>}, {pipeline_mode = #tpu.pipeline_mode<synchronous>, transform_indices = @transform_8, window_bounds = array<i64: 1, 64>}, {pipeline_mode = #tpu.pipeline_mode<synchronous>, transform_indices = @transform_9, window_bounds = array<i64: 64, 10>}, {pipeline_mode = #tpu.pipeline_mode<synchronous>, transform_indices = @transform_10, window_bounds = array<i64: 1, 10>}, {transform_indices = @transform_11, window_bounds = array<i64: 8, 10>}]} {
    %c0 = arith.constant 0 : index
    %c0_0 = arith.constant 0 : index
    %0 = vector.load %arg1[%c0, %c0_0] : memref<64x180xbf16, #tpu.memory_space<vmem>>, vector<64x180xbf16>
    %c0_1 = arith.constant 0 : index
    %c0_2 = arith.constant 0 : index
    %1 = vector.load %arg2[%c0_1, %c0_2] : memref<180x2048xbf16, #tpu.memory_space<vmem>>, vector<180x2048xbf16>
    %cst = arith.constant dense<0.000000e+00> : vector<64x2048xf32>
    %2 = tpu.matmul %0, %1, %cst {dimension_numbers = #tpu.dot_dimension_numbers<[1], [0], [0], [1], [0, 0, 1, 1], [], []>} : vector<64x180xbf16>, vector<180x2048xbf16>, vector<64x2048xf32> -> vector<64x2048xf32>
    %c0_3 = arith.constant 0 : index
    %c0_4 = arith.constant 0 : index
    %3 = vector.load %arg3[%c0_3, %c0_4] : memref<1x2048xf32, #tpu.memory_space<vmem>>, vector<1x2048xf32>
    %4 = vector.broadcast %3 : vector<1x2048xf32> to vector<64x2048xf32>
    %5 = arith.addf %2, %4 : vector<64x2048xf32>
    %cst_5 = arith.constant 0.000000e+00 : f32
    %6 = vector.broadcast %cst_5 : f32 to vector<64x2048xf32>
    %7 = arith.maximumf %5, %6 : vector<64x2048xf32>
    %8 = vector.extract_strided_slice %7 {offsets = [0, 0], sizes = [64, 256], strides = [1, 1]} : vector<64x2048xf32> to vector<64x256xf32>
    %9 = vector.extract_strided_slice %7 {offsets = [0, 256], sizes = [64, 256], strides = [1, 1]} : vector<64x2048xf32> to vector<64x256xf32>
    %10 = arith.maximumf %8, %9 : vector<64x256xf32>
    %11 = vector.extract_strided_slice %7 {offsets = [0, 512], sizes = [64, 256], strides = [1, 1]} : vector<64x2048xf32> to vector<64x256xf32>
    %12 = vector.extract_strided_slice %7 {offsets = [0, 768], sizes = [64, 256], strides = [1, 1]} : vector<64x2048xf32> to vector<64x256xf32>
    %13 = arith.maximumf %11, %12 : vector<64x256xf32>
    %14 = arith.maximumf %10, %13 : vector<64x256xf32>
    %15 = vector.extract_strided_slice %7 {offsets = [0, 1024], sizes = [64, 256], strides = [1, 1]} : vector<64x2048xf32> to vector<64x256xf32>
    %16 = vector.extract_strided_slice %7 {offsets = [0, 1280], sizes = [64, 256], strides = [1, 1]} : vector<64x2048xf32> to vector<64x256xf32>
    %17 = arith.maximumf %15, %16 : vector<64x256xf32>
    %18 = vector.extract_strided_slice %7 {offsets = [0, 1536], sizes = [64, 256], strides = [1, 1]} : vector<64x2048xf32> to vector<64x256xf32>
    %19 = vector.extract_strided_slice %7 {offsets = [0, 1792], sizes = [64, 256], strides = [1, 1]} : vector<64x2048xf32> to vector<64x256xf32>
    %20 = arith.maximumf %18, %19 : vector<64x256xf32>
    %21 = arith.maximumf %17, %20 : vector<64x256xf32>
    %22 = tpu.concatenate %14, %21 in 1 : vector<64x256xf32>, vector<64x256xf32> -> vector<64x512xf32>
    %23 = vector.shape_cast %22 : vector<64x512xf32> to vector<8x8x512xf32>
    %c0_6 = arith.constant 0 : index
    %c0_7 = arith.constant 0 : index
    %24 = vector.load %arg4[%c0_6, %c0_7] : memref<8x512xf32, #tpu.memory_space<vmem>>, vector<8x512xf32>
    %25 = vector.shape_cast %24 : vector<8x512xf32> to vector<1x8x512xf32>
    %26 = vector.broadcast %25 : vector<1x8x512xf32> to vector<8x8x512xf32>
    %27 = arith.mulf %23, %26 : vector<8x8x512xf32>
    %28 = arith.truncf %27 : vector<8x8x512xf32> to vector<8x8x512xbf16>
    %29 = vector.shape_cast %28 : vector<8x8x512xbf16> to vector<64x512xbf16>
    %c0_8 = arith.constant 0 : index
    %c0_9 = arith.constant 0 : index
    %30 = vector.load %arg5[%c0_8, %c0_9] : memref<512x1024xbf16, #tpu.memory_space<vmem>>, vector<512x1024xbf16>
    %cst_10 = arith.constant dense<0.000000e+00> : vector<64x1024xf32>
    %31 = tpu.matmul %29, %30, %cst_10 {dimension_numbers = #tpu.dot_dimension_numbers<[1], [0], [0], [1], [0, 0, 1, 1], [], []>} : vector<64x512xbf16>, vector<512x1024xbf16>, vector<64x1024xf32> -> vector<64x1024xf32>
    %c0_11 = arith.constant 0 : index
    %c0_12 = arith.constant 0 : index
    %32 = vector.load %arg6[%c0_11, %c0_12] : memref<512x1024xbf16, #tpu.memory_space<vmem>>, vector<512x1024xbf16>
    %cst_13 = arith.constant dense<0.000000e+00> : vector<64x1024xf32>
    %33 = tpu.matmul %29, %32, %cst_13 {dimension_numbers = #tpu.dot_dimension_numbers<[1], [0], [0], [1], [0, 0, 1, 1], [], []>} : vector<64x512xbf16>, vector<512x1024xbf16>, vector<64x1024xf32> -> vector<64x1024xf32>
    %34 = vector.shape_cast %31 : vector<64x1024xf32> to vector<8x8x1024xf32>
    %35 = vector.shape_cast %33 : vector<64x1024xf32> to vector<8x8x1024xf32>
    %36 = vector.extract_strided_slice %34 {offsets = [0, 0, 0], sizes = [8, 7, 1024], strides = [1, 1, 1]} : vector<8x8x1024xf32> to vector<8x7x1024xf32>
    %37 = vector.extract_strided_slice %35 {offsets = [0, 1, 0], sizes = [8, 7, 1024], strides = [1, 1, 1]} : vector<8x8x1024xf32> to vector<8x7x1024xf32>
    %38 = arith.addf %36, %37 : vector<8x7x1024xf32>
    %c0_14 = arith.constant 0 : index
    %c0_15 = arith.constant 0 : index
    %39 = vector.load %arg7[%c0_14, %c0_15] : memref<1x1024xf32, #tpu.memory_space<vmem>>, vector<1x1024xf32>
    %40 = vector.shape_cast %39 : vector<1x1024xf32> to vector<1x1x1024xf32>
    %41 = vector.broadcast %40 : vector<1x1x1024xf32> to vector<8x7x1024xf32>
    %42 = arith.addf %38, %41 : vector<8x7x1024xf32>
    %cst_16 = arith.constant 0.000000e+00 : f32
    %43 = vector.broadcast %cst_16 : f32 to vector<8x7x1024xf32>
    %44 = arith.maximumf %42, %43 : vector<8x7x1024xf32>
    %45 = vector.extract_strided_slice %44 {offsets = [0, 0, 0], sizes = [8, 7, 256], strides = [1, 1, 1]} : vector<8x7x1024xf32> to vector<8x7x256xf32>
    %46 = vector.extract_strided_slice %44 {offsets = [0, 0, 256], sizes = [8, 7, 256], strides = [1, 1, 1]} : vector<8x7x1024xf32> to vector<8x7x256xf32>
    %47 = arith.maximumf %45, %46 : vector<8x7x256xf32>
    %48 = vector.extract_strided_slice %44 {offsets = [0, 0, 512], sizes = [8, 7, 256], strides = [1, 1, 1]} : vector<8x7x1024xf32> to vector<8x7x256xf32>
    %49 = vector.extract_strided_slice %44 {offsets = [0, 0, 768], sizes = [8, 7, 256], strides = [1, 1, 1]} : vector<8x7x1024xf32> to vector<8x7x256xf32>
    %50 = arith.maximumf %48, %49 : vector<8x7x256xf32>
    %51 = arith.maximumf %47, %50 : vector<8x7x256xf32>
    %52 = vector.extract_strided_slice %51 {offsets = [0, 0, 0], sizes = [8, 1, 256], strides = [1, 1, 1]} : vector<8x7x256xf32> to vector<8x1x256xf32>
    %53 = vector.shape_cast %52 : vector<8x1x256xf32> to vector<8x256xf32>
    %54 = vector.extract_strided_slice %51 {offsets = [0, 1, 0], sizes = [8, 1, 256], strides = [1, 1, 1]} : vector<8x7x256xf32> to vector<8x1x256xf32>
    %55 = vector.shape_cast %54 : vector<8x1x256xf32> to vector<8x256xf32>
    %56 = vector.extract_strided_slice %51 {offsets = [0, 2, 0], sizes = [8, 1, 256], strides = [1, 1, 1]} : vector<8x7x256xf32> to vector<8x1x256xf32>
    %57 = vector.shape_cast %56 : vector<8x1x256xf32> to vector<8x256xf32>
    %58 = vector.extract_strided_slice %51 {offsets = [0, 3, 0], sizes = [8, 1, 256], strides = [1, 1, 1]} : vector<8x7x256xf32> to vector<8x1x256xf32>
    %59 = vector.shape_cast %58 : vector<8x1x256xf32> to vector<8x256xf32>
    %60 = vector.extract_strided_slice %51 {offsets = [0, 4, 0], sizes = [8, 1, 256], strides = [1, 1, 1]} : vector<8x7x256xf32> to vector<8x1x256xf32>
    %61 = vector.shape_cast %60 : vector<8x1x256xf32> to vector<8x256xf32>
    %62 = vector.extract_strided_slice %51 {offsets = [0, 5, 0], sizes = [8, 1, 256], strides = [1, 1, 1]} : vector<8x7x256xf32> to vector<8x1x256xf32>
    %63 = vector.shape_cast %62 : vector<8x1x256xf32> to vector<8x256xf32>
    %64 = vector.extract_strided_slice %51 {offsets = [0, 6, 0], sizes = [8, 1, 256], strides = [1, 1, 1]} : vector<8x7x256xf32> to vector<8x1x256xf32>
    %65 = vector.shape_cast %64 : vector<8x1x256xf32> to vector<8x256xf32>
    %66 = tpu.concatenate %53, %55, %57, %59, %61, %63, %65 in 1 : vector<8x256xf32>, vector<8x256xf32>, vector<8x256xf32>, vector<8x256xf32>, vector<8x256xf32>, vector<8x256xf32>, vector<8x256xf32> -> vector<8x1792xf32>
    %67 = arith.truncf %66 : vector<8x1792xf32> to vector<8x1792xbf16>
    %c0_17 = arith.constant 0 : index
    %c0_18 = arith.constant 0 : index
    %68 = vector.load %arg8[%c0_17, %c0_18] : memref<1792x64xbf16, #tpu.memory_space<vmem>>, vector<1792x64xbf16>
    %cst_19 = arith.constant dense<0.000000e+00> : vector<8x64xf32>
    %69 = tpu.matmul %67, %68, %cst_19 {dimension_numbers = #tpu.dot_dimension_numbers<[1], [0], [0], [1], [0, 0, 1, 1], [], []>} : vector<8x1792xbf16>, vector<1792x64xbf16>, vector<8x64xf32> -> vector<8x64xf32>
    %c0_20 = arith.constant 0 : index
    %c0_21 = arith.constant 0 : index
    %70 = vector.load %arg9[%c0_20, %c0_21] : memref<1x64xf32, #tpu.memory_space<vmem>>, vector<1x64xf32>
    %71 = vector.broadcast %70 : vector<1x64xf32> to vector<8x64xf32>
    %72 = arith.addf %69, %71 : vector<8x64xf32>
    %cst_22 = arith.constant 0.000000e+00 : f32
    %73 = vector.broadcast %cst_22 : f32 to vector<8x64xf32>
    %74 = arith.maximumf %72, %73 : vector<8x64xf32>
    %c0_23 = arith.constant 0 : index
    %c0_24 = arith.constant 0 : index
    %75 = vector.load %arg10[%c0_23, %c0_24] : memref<64x10xf32, #tpu.memory_space<vmem>>, vector<64x10xf32>
    %cst_25 = arith.constant dense<0.000000e+00> : vector<8x10xf32>
    %76 = tpu.matmul %74, %75, %cst_25 {dimension_numbers = #tpu.dot_dimension_numbers<[1], [0], [0], [1], [0, 0, 1, 1], [], []>} : vector<8x64xf32>, vector<64x10xf32>, vector<8x10xf32> -> vector<8x10xf32>
    %c0_26 = arith.constant 0 : index
    %c0_27 = arith.constant 0 : index
    %77 = vector.load %arg11[%c0_26, %c0_27] : memref<1x10xf32, #tpu.memory_space<vmem>>, vector<1x10xf32>
    %78 = vector.broadcast %77 : vector<1x10xf32> to vector<8x10xf32>
    %79 = arith.addf %76, %78 : vector<8x10xf32>
    %cst_28 = arith.constant dense<0xFF800000> : vector<8xf32>
    %80 = vector.multi_reduction <maximumf>, %79, %cst_28 [1] : vector<8x10xf32> to vector<8xf32>
    %81 = vector.shape_cast %80 : vector<8xf32> to vector<8x1xf32>
    %82 = vector.broadcast %81 : vector<8x1xf32> to vector<8x10xf32>
    %83 = arith.subf %79, %82 : vector<8x10xf32>
    %84 = math.exp %83 : vector<8x10xf32>
    %cst_29 = arith.constant dense<0.000000e+00> : vector<8xf32>
    %85 = vector.multi_reduction <add>, %84, %cst_29 [1] : vector<8x10xf32> to vector<8xf32>
    %86 = vector.shape_cast %85 : vector<8xf32> to vector<8x1xf32>
    %87 = vector.broadcast %86 : vector<8x1xf32> to vector<8x10xf32>
    %88 = arith.divf %84, %87 : vector<8x10xf32>
    %c0_30 = arith.constant 0 : index
    %c0_31 = arith.constant 0 : index
    %89 = vector.load %arg12[%c0_30, %c0_31] : memref<8x10xf32, #tpu.memory_space<vmem>>, vector<8x10xf32>
    tpu.vector_store %arg12[%c0_30, %c0_31], %88 {strides = array<i32>} : memref<8x10xf32, #tpu.memory_space<vmem>>, vector<8x10xf32>,
    return
  }
  func.func @transform_0(%arg0: i32) -> (i32, i32) {
    %c0_i32 = arith.constant 0 : i32
    %c0_i32_0 = arith.constant 0 : i32
    return %arg0, %c0_i32 : i32, i32
  }
  func.func @transform_1(%arg0: i32) -> (i32, i32) {
    %c0_i32 = arith.constant 0 : i32
    %c0_i32_0 = arith.constant 0 : i32
    %c0_i32_1 = arith.constant 0 : i32
    return %c0_i32, %c0_i32_0 : i32, i32
  }
  func.func @transform_2(%arg0: i32) -> (i32, i32) {
    %c0_i32 = arith.constant 0 : i32
    %c0_i32_0 = arith.constant 0 : i32
    %c0_i32_1 = arith.constant 0 : i32
    return %c0_i32, %c0_i32_0 : i32, i32
  }
  func.func @transform_3(%arg0: i32) -> (i32, i32) {
    %c0_i32 = arith.constant 0 : i32
    %c0_i32_0 = arith.constant 0 : i32
    %c0_i32_1 = arith.constant 0 : i32
    return %c0_i32, %c0_i32_0 : i32, i32
  }
  func.func @transform_4(%arg0: i32) -> (i32, i32) {
    %c0_i32 = arith.constant 0 : i32
    %c0_i32_0 = arith.constant 0 : i32
    %c0_i32_1 = arith.constant 0 : i32
    return %c0_i32, %c0_i32_0 : i32, i32
  }
  func.func @transform_5(%arg0: i32) -> (i32, i32) {
    %c0_i32 = arith.constant 0 : i32
    %c0_i32_0 = arith.constant 0 : i32
    %c0_i32_1 = arith.constant 0 : i32
    return %c0_i32, %c0_i32_0 : i32, i32
  }
  func.func @transform_6(%arg0: i32) -> (i32, i32) {
    %c0_i32 = arith.constant 0 : i32
    %c0_i32_0 = arith.constant 0 : i32
    %c0_i32_1 = arith.constant 0 : i32
    return %c0_i32, %c0_i32_0 : i32, i32
  }
  func.func @transform_7(%arg0: i32) -> (i32, i32) {
    %c0_i32 = arith.constant 0 : i32
    %c0_i32_0 = arith.constant 0 : i32
    %c0_i32_1 = arith.constant 0 : i32
    return %c0_i32, %c0_i32_0 : i32, i32
  }
  func.func @transform_8(%arg0: i32) -> (i32, i32) {
    %c0_i32 = arith.constant 0 : i32
    %c0_i32_0 = arith.constant 0 : i32
    %c0_i32_1 = arith.constant 0 : i32
    return %c0_i32, %c0_i32_0 : i32, i32
  }
  func.func @transform_9(%arg0: i32) -> (i32, i32) {
    %c0_i32 = arith.constant 0 : i32
    %c0_i32_0 = arith.constant 0 : i32
    %c0_i32_1 = arith.constant 0 : i32
    return %c0_i32, %c0_i32_0 : i32, i32
  }
  func.func @transform_10(%arg0: i32) -> (i32, i32) {
    %c0_i32 = arith.constant 0 : i32
    %c0_i32_0 = arith.constant 0 : i32
    %c0_i32_1 = arith.constant 0 : i32
    return %c0_i32, %c0_i32_0 : i32, i32
  }
  func.func @transform_11(%arg0: i32) -> (i32, i32) {
    %c0_i32 = arith.constant 0 : i32
    %c0_i32_0 = arith.constant 0 : i32
    return %arg0, %c0_i32 : i32, i32
  }
}

</mosaic_0001>

<llo_original>
// kernel: tile.13
$region0: #{tile.13}
  #allocation0 [shape = 's32[1]{0}', space=sflag, size = 0x4, scoped, tag = 'scoped memory for tile.13']
  %s0 = inlined_call_operand.vmem [shape: f32[16], index: 0, kind: input, shape index: {}]
  %s1 = inlined_call_operand.vmem [shape: f32[128,16], index: 1, kind: output, shape index: {}]
  // Predicated region
  $region2: #{tile.13} parent=0 // pred_check
    _
  $region3: #{tile.13} parent=0 // pred_check_branch
    %3 = sbr.rel (0) target = $region5
  $region4: #{tile.13} parent=0 // pred_region
    _
  $region5: #{tile.13} parent=0 // pred_fallthru
    _
  %v4 = vld [vmem:[%s0] ss:$0 sm:$0xff]
  %5 = vst [vmem:[%s1] sm:$0xff] %v4
  %s6 = scalar_lea.vmem %s1, 8
  %7 = vst [vmem:[%s6] sm:$0xff] %v4
  %s8 = scalar_lea.vmem %s1, 16
  %9 = vst [vmem:[%s8] sm:$0xff] %v4
  %s10 = scalar_lea.vmem %s1, 24
  %11 = vst [vmem:[%s10] sm:$0xff] %v4
  %s12 = scalar_lea.vmem %s1, 32
  %13 = vst [vmem:[%s12] sm:$0xff] %v4
  %s14 = scalar_lea.vmem %s1, 40
  %15 = vst [vmem:[%s14] sm:$0xff] %v4
  %s16 = scalar_lea.vmem %s1, 48
  %17 = vst [vmem:[%s16] sm:$0xff] %v4
  %s18 = scalar_lea.vmem %s1, 56
  %19 = vst [vmem:[%s18] sm:$0xff] %v4
  %s20 = scalar_lea.vmem %s1, 64
  %21 = vst [vmem:[%s20] sm:$0xff] %v4
  %s22 = scalar_lea.vmem %s1, 72
  %23 = vst [vmem:[%s22] sm:$0xff] %v4
  %s24 = scalar_lea.vmem %s1, 80
  %25 = vst [vmem:[%s24] sm:$0xff] %v4
  %s26 = scalar_lea.vmem %s1, 88
  %27 = vst [vmem:[%s26] sm:$0xff] %v4
  %s28 = scalar_lea.vmem %s1, 96
  %29 = vst [vmem:[%s28] sm:$0xff] %v4
  %s30 = scalar_lea.vmem %s1, 104
  %31 = vst [vmem:[%s30] sm:$0xff] %v4
  %s32 = scalar_lea.vmem %s1, 112
  %33 = vst [vmem:[%s32] sm:$0xff] %v4
  %s34 = scalar_lea.vmem %s1, 120
  %35 = vst [vmem:[%s34] sm:$0xff] %v4

// kernel: tile.14
$region0: #{tile.14}
  %s0 = inlined_call_operand.vmem [shape: f32[128,16], index: 0, kind: input, shape index: {}]
  %s1 = inlined_call_operand.vmem [shape: f32[1,2048], index: 1, kind: output, shape index: {}]
  $region1: #{tile.14} parent=0
    #allocation0 [shape = 'u8[65536]{0}', space=vmem, size = 0x10000, scoped, tag = 'scoped mem for output reshape']
    %v2 = vld [vmem:[%s0] ss:$8 sm:$0xf]
    %v3 = vld [vmem:[%s0] ss:$8 sm:$0xf0]
    %vm4 = vcmask 1047556
    %v5 = vsel %vm4, %v3, %v2
    %vm6 = vcmask 130048
    %7 = vst.msk [vmem:[#allocation0] ss:$8 sm:$0xf] %vm6, %v5
    %8 = vst.msk [vmem:[#allocation0] ss:$8 sm:$0xf0] %vm6, %v5
    %s9 = scalar_lea.vmem %s0, 64
    %v10 = vld [vmem:[%s9] ss:$8 sm:$0xf]
    %s11 = scalar_lea.vmem %s0, 64
    %v12 = vld [vmem:[%s11] ss:$8 sm:$0xf0]
    %vm13 = vcmask 1047556
    %v14 = vsel %vm13, %v12, %v10
    %vm15 = vcmask 130048
    %s16 = scalar_lea.vmem [#allocation0], 64
    %17 = vst.msk [vmem:[%s16] ss:$8 sm:$0xf] %vm15, %v14
    %s18 = scalar_lea.vmem [#allocation0], 64
    %19 = vst.msk [vmem:[%s18] ss:$8 sm:$0xf0] %vm15, %v14
    %s20 = scalar_lea.vmem %s0, 7
    %v21 = vld [vmem:[%s20] ss:$8 sm:$0xf]
    %s22 = scalar_lea.vmem %s0, 7
    %v23 = vld [vmem:[%s22] ss:$8 sm:$0xf0]
    %vm24 = vcmask 1047556
    %v25 = vsel %vm24, %v23, %v21
    %26 = vrot.lane.b32.xlu0 %v25, 112
    %v27 = vpop.permute.xlu0 %26
    %vm28 = vcmask 1048448
    %29 = vst.msk [vmem:[#allocation0] ss:$8 sm:$0xf] %vm28, %v27
    %30 = vst.msk [vmem:[#allocation0] ss:$8 sm:$0xf0] %vm28, %v27
    %s31 = scalar_lea.vmem %s0, 71
    %v32 = vld [vmem:[%s31] ss:$8 sm:$0xf]
    %s33 = scalar_lea.vmem %s0, 71
    %v34 = vld [vmem:[%s33] ss:$8 sm:$0xf0]
    %vm35 = vcmask 1047556
    %v36 = vsel %vm35, %v34, %v32
    %37 = vrot.lane.b32.xlu0 %v36, 112
    %v38 = vpop.permute.xlu0 %37
    %vm39 = vcmask 1048448
    %s40 = scalar_lea.vmem [#allocation0], 64
    %41 = vst.msk [vmem:[%s40] ss:$8 sm:$0xf] %vm39, %v38
    %s42 = scalar_lea.vmem [#allocation0], 64
    %43 = vst.msk [vmem:[%s42] ss:$8 sm:$0xf0] %vm39, %v38
    %s44 = scalar_lea.vmem %s0, 6
    %v45 = vld [vmem:[%s44] ss:$8 sm:$0xf]
    %s46 = scalar_lea.vmem %s0, 6
    %v47 = vld [vmem:[%s46] ss:$8 sm:$0xf0]
    %vm48 = vcmask 1047556
    %v49 = vsel %vm48, %v47, %v45
    %50 = vrot.lane.b32.xlu0 %v49, 96
    %v51 = vpop.permute.xlu0 %50
    %vm52 = vcmask 917248
    %53 = vst.msk [vmem:[#allocation0] ss:$8 sm:$0xf] %vm52, %v51
    %54 = vst.msk [vmem:[#allocation0] ss:$8 sm:$0xf0] %vm52, %v51
    %s55 = scalar_lea.vmem %s0, 70
    %v56 = vld [vmem:[%s55] ss:$8 sm:$0xf]
    %s57 = scalar_lea.vmem %s0, 70
    %v58 = vld [vmem:[%s57] ss:$8 sm:$0xf0]
    %vm59 = vcmask 1047556
    %v60 = vsel %vm59, %v58, %v56
    %61 = vrot.lane.b32.xlu0 %v60, 96
    %v62 = vpop.permute.xlu0 %61
    %vm63 = vcmask 917248
    %s64 = scalar_lea.vmem [#allocation0], 64
    %65 = vst.msk [vmem:[%s64] ss:$8 sm:$0xf] %vm63, %v62
    %s66 = scalar_lea.vmem [#allocation0], 64
    %67 = vst.msk [vmem:[%s66] ss:$8 sm:$0xf0] %vm63, %v62
    %s68 = scalar_lea.vmem %s0, 5
    %v69 = vld [vmem:[%s68] ss:$8 sm:$0xf]
    %s70 = scalar_lea.vmem %s0, 5
    %v71 = vld [vmem:[%s70] ss:$8 sm:$0xf0]
    %vm72 = vcmask 1047556
    %v73 = vsel %vm72, %v71, %v69
    %74 = vrot.lane.b32.xlu0 %v73, 80
    %v75 = vpop.permute.xlu0 %74
    %vm76 = vcmask 786048
    %77 = vst.msk [vmem:[#allocation0] ss:$8 sm:$0xf] %vm76, %v75
    %78 = vst.msk [vmem:[#allocation0] ss:$8 sm:$0xf0] %vm76, %v75
    %s79 = scalar_lea.vmem %s0, 69
    %v80 = vld [vmem:[%s79] ss:$8 sm:$0xf]
    %s81 = scalar_lea.vmem %s0, 69
    %v82 = vld [vmem:[%s81] ss:$8 sm:$0xf0]
    %vm83 = vcmask 1047556
    %v84 = vsel %vm83, %v82, %v80
    %85 = vrot.lane.b32.xlu0 %v84, 80
    %v86 = vpop.permute.xlu0 %85
    %vm87 = vcmask 786048
    %s88 = scalar_lea.vmem [#allocation0], 64
    %89 = vst.msk [vmem:[%s88] ss:$8 sm:$0xf] %vm87, %v86
    %s90 = scalar_lea.vmem [#allocation0], 64
    %91 = vst.msk [vmem:[%s90] ss:$8 sm:$0xf0] %vm87, %v86
    %s92 = scalar_lea.vmem %s0, 4
    %v93 = vld [vmem:[%s92] ss:$8 sm:$0xf]
    %s94 = scalar_lea.vmem %s0, 4
    %v95 = vld [vmem:[%s94] ss:$8 sm:$0xf0]
    %vm96 = vcmask 1047556
    %v97 = vsel %vm96, %v95, %v93
    %98 = vrot.lane.b32.xlu0 %v97, 64
    %v99 = vpop.permute.xlu0 %98
    %vm100 = vcmask 654848
    %101 = vst.msk [vmem:[#allocation0] ss:$8 sm:$0xf] %vm100, %v99
    %102 = vst.msk [vmem:[#allocation0] ss:$8 sm:$0xf0] %vm100, %v99
    %s103 = scalar_lea.vmem %s0, 68
    %v104 = vld [vmem:[%s103] ss:$8 sm:$0xf]
    %s105 = scalar_lea.vmem %s0, 68
    %v106 = vld [vmem:[%s105] ss:$8 sm:$0xf0]
    %vm107 = vcmask 1047556
    %v108 = vsel %vm107, %v106, %v104
    %109 = vrot.lane.b32.xlu0 %v108, 64
    %v110 = vpop.permute.xlu0 %109
    %vm111 = vcmask 654848
    %s112 = scalar_lea.vmem [#allocation0], 64
    %113 = vst.msk [vmem:[%s112] ss:$8 sm:$0xf] %vm111, %v110
    %s114 = scalar_lea.vmem [#allocation0], 64
    %115 = vst.msk [vmem:[%s114] ss:$8 sm:$0xf0] %vm111, %v110
    %s116 = scalar_lea.vmem %s0, 3
    %v117 = vld [vmem:[%s116] ss:$8 sm:$0xf]
    %s118 = scalar_lea.vmem %s0, 3
    %v119 = vld [vmem:[%s118] ss:$8 sm:$0xf0]
    %vm120 = vcmask 1047556
    %v121 = vsel %vm120, %v119, %v117
    %122 = vrot.lane.b32.xlu0 %v121, 48
    %v123 = vpop.permute.xlu0 %122
    %vm124 = vcmask 523648
    %125 = vst.msk [vmem:[#allocation0] ss:$8 sm:$0xf] %vm124, %v123
    %126 = vst.msk [vmem:[#allocation0] ss:$8 sm:$0xf0] %vm124, %v123
    %s127 = scalar_lea.vmem %s0, 67
    %v128 = vld [vmem:[%s127] ss:$8 sm:$0xf]
    %s129 = scalar_lea.vmem %s0, 67
    %v130 = vld [vmem:[%s129] ss:$8 sm:$0xf0]
    %vm131 = vcmask 1047556
    %v132 = vsel %vm131, %v130, %v128
    %133 = vrot.lane.b32.xlu0 %v132, 48
    %v134 = vpop.permute.xlu0 %133
    %vm135 = vcmask 523648
    %s136 = scalar_lea.vmem [#allocation0], 64
    %137 = vst.msk [vmem:[%s136] ss:$8 sm:$0xf] %vm135, %v134
    %s138 = scalar_lea.vmem [#allocation0], 64
    %139 = vst.msk [vmem:[%s138] ss:$8 sm:$0xf0] %vm135, %v134
    %s140 = scalar_lea.vmem %s0, 2
    %v141 = vld [vmem:[%s140] ss:$8 sm:$0xf]
    %s142 = scalar_lea.vmem %s0, 2
    %v143 = vld [vmem:[%s142] ss:$8 sm:$0xf0]
    %vm144 = vcmask 1047556
    %v145 = vsel %vm144, %v143, %v141
    %146 = vrot.lane.b32.xlu0 %v145, 32
    %v147 = vpop.permute.xlu0 %146
    %vm148 = vcmask 392448
    %149 = vst.msk [vmem:[#allocation0] ss:$8 sm:$0xf] %vm148, %v147
    %150 = vst.msk [vmem:[#allocation0] ss:$8 sm:$0xf0] %vm148, %v147
    %s151 = scalar_lea.vmem %s0, 66
    %v152 = vld [vmem:[%s151] ss:$8 sm:$0xf]
    %s153 = scalar_lea.vmem %s0, 66
    %v154 = vld [vmem:[%s153] ss:$8 sm:$0xf0]
    %vm155 = vcmask 1047556
    %v156 = vsel %vm155, %v154, %v152
    %157 = vrot.lane.b32.xlu0 %v156, 32
    %v158 = vpop.permute.xlu0 %157
    %vm159 = vcmask 392448
    %s160 = scalar_lea.vmem [#allocation0], 64
    %161 = vst.msk [vmem:[%s160] ss:$8 sm:$0xf] %vm159, %v158
    %s162 = scalar_lea.vmem [#allocation0], 64
    %163 = vst.msk [vmem:[%s162] ss:$8 sm:$0xf0] %vm159, %v158
    %s164 = scalar_lea.vmem %s0, 1
    %v165 = vld [vmem:[%s164] ss:$8 sm:$0xf]
    %s166 = scalar_lea.vmem %s0, 1
    %v167 = vld [vmem:[%s166] ss:$8 sm:$0xf0]
    %vm168 = vcmask 1047556
    %v169 = vsel %vm168, %v167, %v165
    %170 = vrot.lane.b32.xlu0 %v169, 16
    %v171 = vpop.permute.xlu0 %170
    %vm172 = vcmask 261248
    %173 = vst.msk [vmem:[#allocation0] ss:$8 sm:$0xf] %vm172, %v171
    %174 = vst.msk [vmem:[#allocation0] ss:$8 sm:$0xf0] %vm172, %v171
    %s175 = scalar_lea.vmem %s0, 65
    %v176 = vld [vmem:[%s175] ss:$8 sm:$0xf]
    %s177 = scalar_lea.vmem %s0, 65
    %v178 = vld [vmem:[%s177] ss:$8 sm:$0xf0]
    %vm179 = vcmask 1047556
    %v180 = vsel %vm179, %v178, %v176
    %181 = vrot.lane.b32.xlu0 %v180, 16
    %v182 = vpop.permute.xlu0 %181
    %vm183 = vcmask 261248
    %s184 = scalar_lea.vmem [#allocation0], 64
    %185 = vst.msk [vmem:[%s184] ss:$8 sm:$0xf] %vm183, %v182
    %s186 = scalar_lea.vmem [#allocation0], 64
    %187 = vst.msk [vmem:[%s186] ss:$8 sm:$0xf0] %vm183, %v182
    %s189 = sshllo.u32 0, 1
    %v191 = vld [vmem:[#allocation0] sm:%s189]
    %s192 = sshllo.u32 0, 1
    %193 = vst [vmem:[%s1] sm:%s192] %v191
    %s194 = scalar_lea.vmem [#allocation0], 8
    %v195 = vld [vmem:[%s194] sm:%s189]
    %s196 = sshllo.u32 0, 1
    %s197 = scalar_lea.vmem %s1, 1
    %198 = vst [vmem:[%s197] sm:%s196] %v195
    %s199 = scalar_lea.vmem [#allocation0], 16
    %v200 = vld [vmem:[%s199] sm:%s189]
    %s201 = sshllo.u32 0, 1
    %s202 = smul.addr 1, 2
    %s203 = scalar_lea.vmem %s1, %s202
    %204 = vst [vmem:[%s203] sm:%s201] %v200
    %s205 = scalar_lea.vmem [#allocation0], 24
    %v206 = vld [vmem:[%s205] sm:%s189]
    %s207 = sshllo.u32 0, 1
    %s208 = smul.addr 1, 3
    %s209 = scalar_lea.vmem %s1, %s208
    %210 = vst [vmem:[%s209] sm:%s207] %v206
    %s211 = scalar_lea.vmem [#allocation0], 32
    %v212 = vld [vmem:[%s211] sm:%s189]
    %s213 = sshllo.u32 0, 1
    %s214 = smul.addr 1, 4
    %s215 = scalar_lea.vmem %s1, %s214
    %216 = vst [vmem:[%s215] sm:%s213] %v212
    %s217 = scalar_lea.vmem [#allocation0], 40
    %v218 = vld [vmem:[%s217] sm:%s189]
    %s219 = sshllo.u32 0, 1
    %s220 = smul.addr 1, 5
    %s221 = scalar_lea.vmem %s1, %s220
    %222 = vst [vmem:[%s221] sm:%s219] %v218
    %s223 = scalar_lea.vmem [#allocation0], 48
    %v224 = vld [vmem:[%s223] sm:%s189]
    %s225 = sshllo.u32 0, 1
    %s226 = smul.addr 1, 6
    %s227 = scalar_lea.vmem %s1, %s226
    %228 = vst [vmem:[%s227] sm:%s225] %v224
    %s229 = scalar_lea.vmem [#allocation0], 56
    %v230 = vld [vmem:[%s229] sm:%s189]
    %s231 = sshllo.u32 0, 1
    %s232 = smul.addr 1, 7
    %s233 = scalar_lea.vmem %s1, %s232
    %234 = vst [vmem:[%s233] sm:%s231] %v230
    %s235 = scalar_lea.vmem [#allocation0], 64
    %v236 = vld [vmem:[%s235] sm:%s189]
    %s237 = sshllo.u32 0, 1
    %s238 = smul.addr 1, 8
    %s239 = scalar_lea.vmem %s1, %s238
    %240 = vst [vmem:[%s239] sm:%s237] %v236
    %s241 = scalar_lea.vmem [#allocation0], 72
    %v242 = vld [vmem:[%s241] sm:%s189]
    %s243 = sshllo.u32 0, 1
    %s244 = smul.addr 1, 9
    %s245 = scalar_lea.vmem %s1, %s244
    %246 = vst [vmem:[%s245] sm:%s243] %v242
    %s247 = scalar_lea.vmem [#allocation0], 80
    %v248 = vld [vmem:[%s247] sm:%s189]
    %s249 = sshllo.u32 0, 1
    %s250 = smul.addr 1, 10
    %s251 = scalar_lea.vmem %s1, %s250
    %252 = vst [vmem:[%s251] sm:%s249] %v248
    %s253 = scalar_lea.vmem [#allocation0], 88
    %v254 = vld [vmem:[%s253] sm:%s189]
    %s255 = sshllo.u32 0, 1
    %s256 = smul.addr 1, 11
    %s257 = scalar_lea.vmem %s1, %s256
    %258 = vst [vmem:[%s257] sm:%s255] %v254
    %s259 = scalar_lea.vmem [#allocation0], 96
    %v260 = vld [vmem:[%s259] sm:%s189]
    %s261 = sshllo.u32 0, 1
    %s262 = smul.addr 1, 12
    %s263 = scalar_lea.vmem %s1, %s262
    %264 = vst [vmem:[%s263] sm:%s261] %v260
    %s265 = scalar_lea.vmem [#allocation0], 104
    %v266 = vld [vmem:[%s265] sm:%s189]
    %s267 = sshllo.u32 0, 1
    %s268 = smul.addr 1, 13
    %s269 = scalar_lea.vmem %s1, %s268
    %270 = vst [vmem:[%s269] sm:%s267] %v266
    %s271 = scalar_lea.vmem [#allocation0], 112
    %v272 = vld [vmem:[%s271] sm:%s189]
    %s273 = sshllo.u32 0, 1
    %s274 = smul.addr 1, 14
    %s275 = scalar_lea.vmem %s1, %s274
    %276 = vst [vmem:[%s275] sm:%s273] %v272
    %s277 = scalar_lea.vmem [#allocation0], 120
    %v278 = vld [vmem:[%s277] sm:%s189]
    %s279 = sshllo.u32 0, 1
    %s280 = smul.addr 1, 15
    %s281 = scalar_lea.vmem %s1, %s280
    %282 = vst [vmem:[%s281] sm:%s279] %v278

// kernel: tile.18
$region0: #{tile.18}
  #allocation0 [shape = 's32[1]{0}', space=sflag, size = 0x4, scoped, tag = 'scoped memory for tile.18']
  %s0 = inlined_call_operand.vmem [shape: f32[32], index: 0, kind: input, shape index: {}]
  %s1 = inlined_call_operand.vmem [shape: f32[32,32], index: 1, kind: output, shape index: {}]
  // Predicated region
  $region2: #{tile.18} parent=0 // pred_check
    _
  $region3: #{tile.18} parent=0 // pred_check_branch
    %3 = sbr.rel (0) target = $region5
  $region4: #{tile.18} parent=0 // pred_region
    _
  $region5: #{tile.18} parent=0 // pred_fallthru
    _
  %v4 = vld [vmem:[%s0] ss:$0 sm:$0xff]
  %5 = vst [vmem:[%s1] sm:$0xff] %v4
  %s6 = scalar_lea.vmem %s1, 8
  %7 = vst [vmem:[%s6] sm:$0xff] %v4
  %s8 = scalar_lea.vmem %s1, 16
  %9 = vst [vmem:[%s8] sm:$0xff] %v4
  %s10 = scalar_lea.vmem %s1, 24
  %11 = vst [vmem:[%s10] sm:$0xff] %v4

// kernel: tile.19
$region0: #{tile.19}
  %s0 = inlined_call_operand.vmem [shape: f32[32,32], index: 0, kind: input, shape index: {}]
  %s1 = inlined_call_operand.vmem [shape: f32[1,1024], index: 1, kind: output, shape index: {}]
  $region1: #{tile.19} parent=0
    #allocation0 [shape = 'u8[32768]{0}', space=vmem, size = 0x8000, scoped, tag = 'scoped mem for output reshape']
    %v2 = vld [vmem:[%s0] ss:$4 sm:$0xff]
    %vm3 = vcmask 261120
    %4 = vst.msk [vmem:[#allocation0] ss:$8 sm:$0xf] %vm3, %v2
    %5 = vst.msk [vmem:[#allocation0] ss:$8 sm:$0xf0] %vm3, %v2
    %s6 = scalar_lea.vmem %s0, 3
    %v7 = vld [vmem:[%s6] ss:$4 sm:$0xff]
    %8 = vrot.lane.b32.xlu0 %v7, 96
    %v9 = vpop.permute.xlu0 %8
    %vm10 = vcmask 1048320
    %11 = vst.msk [vmem:[#allocation0] ss:$8 sm:$0xf] %vm10, %v9
    %12 = vst.msk [vmem:[#allocation0] ss:$8 sm:$0xf0] %vm10, %v9
    %s13 = scalar_lea.vmem %s0, 2
    %v14 = vld [vmem:[%s13] ss:$4 sm:$0xff]
    %15 = vrot.lane.b32.xlu0 %v14, 64
    %v16 = vpop.permute.xlu0 %15
    %vm17 = vcmask 785920
    %18 = vst.msk [vmem:[#allocation0] ss:$8 sm:$0xf] %vm17, %v16
    %19 = vst.msk [vmem:[#allocation0] ss:$8 sm:$0xf0] %vm17, %v16
    %s20 = scalar_lea.vmem %s0, 1
    %v21 = vld [vmem:[%s20] ss:$4 sm:$0xff]
    %22 = vrot.lane.b32.xlu0 %v21, 32
    %v23 = vpop.permute.xlu0 %22
    %vm24 = vcmask 523520
    %25 = vst.msk [vmem:[#allocation0] ss:$8 sm:$0xf] %vm24, %v23
    %26 = vst.msk [vmem:[#allocation0] ss:$8 sm:$0xf0] %vm24, %v23
    %s28 = sshllo.u32 0, 1
    %v30 = vld [vmem:[#allocation0] sm:%s28]
    %s31 = sshllo.u32 0, 1
    %32 = vst [vmem:[%s1] sm:%s31] %v30
    %s33 = scalar_lea.vmem [#allocation0], 8
    %v34 = vld [vmem:[%s33] sm:%s28]
    %s35 = sshllo.u32 0, 1
    %s36 = scalar_lea.vmem %s1, 1
    %37 = vst [vmem:[%s36] sm:%s35] %v34
    %s38 = scalar_lea.vmem [#allocation0], 16
    %v39 = vld [vmem:[%s38] sm:%s28]
    %s40 = sshllo.u32 0, 1
    %s41 = smul.addr 1, 2
    %s42 = scalar_lea.vmem %s1, %s41
    %43 = vst [vmem:[%s42] sm:%s40] %v39
    %s44 = scalar_lea.vmem [#allocation0], 24
    %v45 = vld [vmem:[%s44] sm:%s28]
    %s46 = sshllo.u32 0, 1
    %s47 = smul.addr 1, 3
    %s48 = scalar_lea.vmem %s1, %s47
    %49 = vst [vmem:[%s48] sm:%s46] %v45
    %s50 = scalar_lea.vmem [#allocation0], 32
    %v51 = vld [vmem:[%s50] sm:%s28]
    %s52 = sshllo.u32 0, 1
    %s53 = smul.addr 1, 4
    %s54 = scalar_lea.vmem %s1, %s53
    %55 = vst [vmem:[%s54] sm:%s52] %v51
    %s56 = scalar_lea.vmem [#allocation0], 40
    %v57 = vld [vmem:[%s56] sm:%s28]
    %s58 = sshllo.u32 0, 1
    %s59 = smul.addr 1, 5
    %s60 = scalar_lea.vmem %s1, %s59
    %61 = vst [vmem:[%s60] sm:%s58] %v57
    %s62 = scalar_lea.vmem [#allocation0], 48
    %v63 = vld [vmem:[%s62] sm:%s28]
    %s64 = sshllo.u32 0, 1
    %s65 = smul.addr 1, 6
    %s66 = scalar_lea.vmem %s1, %s65
    %67 = vst [vmem:[%s66] sm:%s64] %v63
    %s68 = scalar_lea.vmem [#allocation0], 56
    %v69 = vld [vmem:[%s68] sm:%s28]
    %s70 = sshllo.u32 0, 1
    %s71 = smul.addr 1, 7
    %s72 = scalar_lea.vmem %s1, %s71
    %73 = vst [vmem:[%s72] sm:%s70] %v69

// kernel: convnet_forward.1
$region0: #{convnet_forward.1}
  #allocation0 [shape = 'u32[]', space=smem, size = 0x4, offset = 0x4, fixed_abs, tag = 'smem constant byte address 0x4 - core index']
  #allocation1 [shape = 'u32[144,128]{1,0:T(1,128)}', space=vmem, size = 0x12000, scoped, tag = 'internal scratch']
  %s0 = inlined_call_operand.vmem [shape: bf16[64,180], index: 0, kind: input, shape index: {}]
  %s1 = inlined_call_operand.vmem [shape: bf16[180,2048], index: 1, kind: input, shape index: {}]
  %s2 = inlined_call_operand.vmem [shape: f32[1,2048], index: 2, kind: input, shape index: {}]
  %s3 = inlined_call_operand.vmem [shape: f32[8,512], index: 3, kind: input, shape index: {}]
  %s4 = inlined_call_operand.vmem [shape: bf16[512,1024], index: 4, kind: input, shape index: {}]
  %s5 = inlined_call_operand.vmem [shape: bf16[512,1024], index: 5, kind: input, shape index: {}]
  %s6 = inlined_call_operand.vmem [shape: f32[1,1024], index: 6, kind: input, shape index: {}]
  %s7 = inlined_call_operand.vmem [shape: bf16[1792,64], index: 7, kind: input, shape index: {}]
  %s8 = inlined_call_operand.vmem [shape: f32[1,64], index: 8, kind: input, shape index: {}]
  %s9 = inlined_call_operand.vmem [shape: f32[64,10], index: 9, kind: input, shape index: {}]
  %s10 = inlined_call_operand.vmem [shape: f32[1,10], index: 10, kind: input, shape index: {}]
  %s11 = inlined_call_operand.vmem [shape: f32[8,10], index: 11, kind: output, shape index: {}]
  %s12 = sld [smem:[#allocation0]]
  $region54: #{convnet_forward.1} parent=0
    _
  %s14 = ssub.s32 1, %s12
  %s15 = scalar_select 0, %s14, %s12
  // Predicated region
  $region2: #{convnet_forward.1} parent=0 // pred_check
    _
  $region3: #{convnet_forward.1} parent=0 // pred_check_branch
    %17 = sbr.rel (0) target = $region5
  $region4: #{convnet_forward.1} parent=0 // pred_region
    _
  $region5: #{convnet_forward.1} parent=0 // pred_fallthru
    _
  // Predicated region
  $region6: #{convnet_forward.1} parent=0 // pred_check
    _
  $region7: #{convnet_forward.1} parent=0 // pred_check_branch
    %19 = sbr.rel (0) target = $region9
  $region8: #{convnet_forward.1} parent=0 // pred_region
    _
  $region9: #{convnet_forward.1} parent=0 // pred_fallthru
    _
  // Predicated region
  $region10: #{convnet_forward.1} parent=0 // pred_check
    _
  $region11: #{convnet_forward.1} parent=0 // pred_check_branch
    %21 = sbr.rel (0) target = $region13
  $region12: #{convnet_forward.1} parent=0 // pred_region
    _
  $region13: #{convnet_forward.1} parent=0 // pred_fallthru
    _
  // Predicated region
  $region14: #{convnet_forward.1} parent=0 // pred_check
    _
  $region15: #{convnet_forward.1} parent=0 // pred_check_branch
    %23 = sbr.rel (0) target = $region17
  $region16: #{convnet_forward.1} parent=0 // pred_region
    _
  $region17: #{convnet_forward.1} parent=0 // pred_fallthru
    _
  // Predicated region
  $region18: #{convnet_forward.1} parent=0 // pred_check
    _
  $region19: #{convnet_forward.1} parent=0 // pred_check_branch
    %25 = sbr.rel (0) target = $region21
  $region20: #{convnet_forward.1} parent=0 // pred_region
    _
  $region21: #{convnet_forward.1} parent=0 // pred_fallthru
    _
  // Predicated region
  $region22: #{convnet_forward.1} parent=0 // pred_check
    _
  $region23: #{convnet_forward.1} parent=0 // pred_check_branch
    %27 = sbr.rel (0) target = $region25
  $region24: #{convnet_forward.1} parent=0 // pred_region
    _
  $region25: #{convnet_forward.1} parent=0 // pred_fallthru
    _
  // Predicated region
  $region26: #{convnet_forward.1} parent=0 // pred_check
    _
  $region27: #{convnet_forward.1} parent=0 // pred_check_branch
    %29 = sbr.rel (0) target = $region29
  $region28: #{convnet_forward.1} parent=0 // pred_region
    _
  $region29: #{convnet_forward.1} parent=0 // pred_fallthru
    _
  // Predicated region
  $region30: #{convnet_forward.1} parent=0 // pred_check
    _
  $region31: #{convnet_forward.1} parent=0 // pred_check_branch
    %31 = sbr.rel (0) target = $region33
  $region32: #{convnet_forward.1} parent=0 // pred_region
    _
  $region33: #{convnet_forward.1} parent=0 // pred_fallthru
    _
  // Predicated region
  $region34: #{convnet_forward.1} parent=0 // pred_check
    _
  $region35: #{convnet_forward.1} parent=0 // pred_check_branch
    %33 = sbr.rel (0) target = $region37
  $region36: #{convnet_forward.1} parent=0 // pred_region
    _
  $region37: #{convnet_forward.1} parent=0 // pred_fallthru
    _
  // Predicated region
  $region38: #{convnet_forward.1} parent=0 // pred_check
    _
  $region39: #{convnet_forward.1} parent=0 // pred_check_branch
    %35 = sbr.rel (0) target = $region41
  $region40: #{convnet_forward.1} parent=0 // pred_region
    _
  $region41: #{convnet_forward.1} parent=0 // pred_fallthru
    _
  // Predicated region
  $region42: #{convnet_forward.1} parent=0 // pred_check
    _
  $region43: #{convnet_forward.1} parent=0 // pred_check_branch
    %37 = sbr.rel (0) target = $region45
  $region44: #{convnet_forward.1} parent=0 // pred_region
    _
  $region45: #{convnet_forward.1} parent=0 // pred_fallthru
    _
  %v39 = vld [vmem:[%s0] sm:$0xff]
  %v40 = vld [vmem:[%s0 + $0x8] sm:$0xff]
  %v41 = vld [vmem:[%s0 + $0x10] sm:$0xff]
  %v42 = vld [vmem:[%s0 + $0x18] sm:$0xff]
  %v43 = vld [vmem:[%s0 + $0x20] sm:$0xff]
  %v44 = vld [vmem:[%s0 + $0x28] sm:$0xff]
  %v45 = vld [vmem:[%s0 + $0x30] sm:$0xff]
  %v46 = vld [vmem:[%s0 + $0x38] sm:$0xff]
  %v47 = vld [vmem:[%s1] sm:$0xff]
  %v48 = vld [vmem:[%s1 + $0x8] sm:$0xff]
  %v49 = vld [vmem:[%s1 + $0x10] sm:$0xff]
  %v50 = vld [vmem:[%s1 + $0x18] sm:$0xff]
  %v51 = vld [vmem:[%s1 + $0x20] sm:$0xff]
  %v52 = vld [vmem:[%s1 + $0x28] sm:$0xff]
  %v53 = vld [vmem:[%s1 + $0x30] sm:$0xff]
  %v54 = vld [vmem:[%s1 + $0x38] sm:$0xff]
  %v55 = vld [vmem:[%s1 + $0x40] sm:$0xff]
  %v56 = vld [vmem:[%s1 + $0x48] sm:$0xff]
  %v57 = vld [vmem:[%s1 + $0x50] sm:$0xff]
  %v58 = vld [vmem:[%s1 + $0x58] sm:$0xff]
  %v59 = vld [vmem:[%s1 + $0x60] sm:$0xff]
  %v60 = vld [vmem:[%s1 + $0x68] sm:$0xff]
  %v61 = vld [vmem:[%s1 + $0x70] sm:$0xff]
  %v62 = vld [vmem:[%s1 + $0x78] sm:$0xff]
  %v63 = vld [vmem:[%s1 + $0x80] sm:$0xff]
  %v64 = vld [vmem:[%s1 + $0x88] sm:$0xff]
  %v65 = vld [vmem:[%s1 + $0x90] sm:$0xff]
  %v66 = vld [vmem:[%s1 + $0x98] sm:$0xff]
  %v67 = vld [vmem:[%s1 + $0xa0] sm:$0xff]
  %v68 = vld [vmem:[%s1 + $0xa8] sm:$0xff]
  %v69 = vld [vmem:[%s1 + $0xb0] sm:$0xff]
  %v70 = vld [vmem:[%s1 + $0xb8] sm:$0xff]
  %v71 = vld [vmem:[%s1 + $0xc0] sm:$0xff]
  %v72 = vld [vmem:[%s1 + $0xc8] sm:$0xff]
  %v73 = vld [vmem:[%s1 + $0xd0] sm:$0xff]
  %v74 = vld [vmem:[%s1 + $0xd8] sm:$0xff]
  %v75 = vld [vmem:[%s1 + $0xe0] sm:$0xff]
  %v76 = vld [vmem:[%s1 + $0xe8] sm:$0xff]
  %v77 = vld [vmem:[%s1 + $0xf0] sm:$0xff]
  %v78 = vld [vmem:[%s1 + $0xf8] sm:$0xff]
  %v79 = vld [vmem:[%s1 + $0x100] sm:$0xff]
  %v80 = vld [vmem:[%s1 + $0x108] sm:$0xff]
  %v81 = vld [vmem:[%s1 + $0x110] sm:$0xff]
  %v82 = vld [vmem:[%s1 + $0x118] sm:$0xff]
  %v83 = vld [vmem:[%s1 + $0x120] sm:$0xff]
  %v84 = vld [vmem:[%s1 + $0x128] sm:$0xff]
  %v85 = vld [vmem:[%s1 + $0x130] sm:$0xff]
  %v86 = vld [vmem:[%s1 + $0x138] sm:$0xff]
  %v87 = vld [vmem:[%s1 + $0x140] sm:$0xff]
  %v88 = vld [vmem:[%s1 + $0x148] sm:$0xff]
  %v89 = vld [vmem:[%s1 + $0x150] sm:$0xff]
  %v90 = vld [vmem:[%s1 + $0x158] sm:$0xff]
  %v91 = vld [vmem:[%s1 + $0x160] sm:$0xff]
  %v92 = vld [vmem:[%s1 + $0x168] sm:$0xff]
  %v93 = vld [vmem:[%s1 + $0x170] sm:$0xff]
  %v94 = vld [vmem:[%s1 + $0x178] sm:$0xff]
  %v95 = vld [vmem:[%s1 + $0x180] sm:$0xff]
  %v96 = vld [vmem:[%s1 + $0x188] sm:$0xff]
  %v97 = vld [vmem:[%s1 + $0x190] sm:$0xff]
  %v98 = vld [vmem:[%s1 + $0x198] sm:$0xff]
  %v99 = vld [vmem:[%s1 + $0x1a0] sm:$0xff]
  %v100 = vld [vmem:[%s1 + $0x1a8] sm:$0xff]
  %v101 = vld [vmem:[%s1 + $0x1b0] sm:$0xff]
  %v102 = vld [vmem:[%s1 + $0x1b8] sm:$0xff]
  %v103 = vld [vmem:[%s1 + $0x1c0] sm:$0xff]
  %v104 = vld [vmem:[%s1 + $0x1c8] sm:$0xff]
  %v105 = vld [vmem:[%s1 + $0x1d0] sm:$0xff]
  %v106 = vld [vmem:[%s1 + $0x1d8] sm:$0xff]
  %v107 = vld [vmem:[%s1 + $0x1e0] sm:$0xff]
  %v108 = vld [vmem:[%s1 + $0x1e8] sm:$0xff]
  %v109 = vld [vmem:[%s1 + $0x1f0] sm:$0xff]
  %v110 = vld [vmem:[%s1 + $0x1f8] sm:$0xff]
  %v111 = vld [vmem:[%s1 + $0x200] sm:$0xff]
  %v112 = vld [vmem:[%s1 + $0x208] sm:$0xff]
  %v113 = vld [vmem:[%s1 + $0x210] sm:$0xff]
  %v114 = vld [vmem:[%s1 + $0x218] sm:$0xff]
  %v115 = vld [vmem:[%s1 + $0x220] sm:$0xff]
  %v116 = vld [vmem:[%s1 + $0x228] sm:$0xff]
  %v117 = vld [vmem:[%s1 + $0x230] sm:$0xff]
  %v118 = vld [vmem:[%s1 + $0x238] sm:$0xff]
  %v119 = vld [vmem:[%s1 + $0x240] sm:$0xff]
  %v120 = vld [vmem:[%s1 + $0x248] sm:$0xff]
  %v121 = vld [vmem:[%s1 + $0x250] sm:$0xff]
  %v122 = vld [vmem:[%s1 + $0x258] sm:$0xff]
  %v123 = vld [vmem:[%s1 + $0x260] sm:$0xff]
  %v124 = vld [vmem:[%s1 + $0x268] sm:$0xff]
  %v125 = vld [vmem:[%s1 + $0x270] sm:$0xff]
  %v126 = vld [vmem:[%s1 + $0x278] sm:$0xff]
  %v127 = vld [vmem:[%s1 + $0x280] sm:$0xff]
  %v128 = vld [vmem:[%s1 + $0x288] sm:$0xff]
  %v129 = vld [vmem:[%s1 + $0x290] sm:$0xff]
  %v130 = vld [vmem:[%s1 + $0x298] sm:$0xff]
  %v131 = vld [vmem:[%s1 + $0x2a0] sm:$0xff]
  %v132 = vld [vmem:[%s1 + $0x2a8] sm:$0xff]
  %v133 = vld [vmem:[%s1 + $0x2b0] sm:$0xff]
  %v134 = vld [vmem:[%s1 + $0x2b8] sm:$0xff]
  %v135 = vld [vmem:[%s1 + $0x2c0] sm:$0xff]
  %v136 = vld [vmem:[%s1 + $0x2c8] sm:$0xff]
  %v137 = vld [vmem:[%s1 + $0x2d0] sm:$0xff]
  %v138 = vld [vmem:[%s1 + $0x2d8] sm:$0xff]
  %v139 = vld [vmem:[%s1 + $0x2e0] sm:$0xff]
  %v140 = vld [vmem:[%s1 + $0x2e8] sm:$0xff]
  %v141 = vld [vmem:[%s1 + $0x2f0] sm:$0xff]
  %v142 = vld [vmem:[%s1 + $0x2f8] sm:$0xff]
  %v143 = vld [vmem:[%s1 + $0x300] sm:$0xff]
  %v144 = vld [vmem:[%s1 + $0x308] sm:$0xff]
  %v145 = vld [vmem:[%s1 + $0x310] sm:$0xff]
  %v146 = vld [vmem:[%s1 + $0x318] sm:$0xff]
  %v147 = vld [vmem:[%s1 + $0x320] sm:$0xff]
  %v148 = vld [vmem:[%s1 + $0x328] sm:$0xff]
  %v149 = vld [vmem:[%s1 + $0x330] sm:$0xff]
  %v150 = vld [vmem:[%s1 + $0x338] sm:$0xff]
  %v151 = vld [vmem:[%s1 + $0x340] sm:$0xff]
  %v152 = vld [vmem:[%s1 + $0x348] sm:$0xff]
  %v153 = vld [vmem:[%s1 + $0x350] sm:$0xff]
  %v154 = vld [vmem:[%s1 + $0x358] sm:$0xff]
  %v155 = vld [vmem:[%s1 + $0x360] sm:$0xff]
  %v156 = vld [vmem:[%s1 + $0x368] sm:$0xff]
  %v157 = vld [vmem:[%s1 + $0x370] sm:$0xff]
  %v158 = vld [vmem:[%s1 + $0x378] sm:$0xff]
  %v159 = vld [vmem:[%s1 + $0x380] sm:$0xff]
  %v160 = vld [vmem:[%s1 + $0x388] sm:$0xff]
  %v161 = vld [vmem:[%s1 + $0x390] sm:$0xff]
  %v162 = vld [vmem:[%s1 + $0x398] sm:$0xff]
  %v163 = vld [vmem:[%s1 + $0x3a0] sm:$0xff]
  %v164 = vld [vmem:[%s1 + $0x3a8] sm:$0xff]
  %v165 = vld [vmem:[%s1 + $0x3b0] sm:$0xff]
  %v166 = vld [vmem:[%s1 + $0x3b8] sm:$0xff]
  %v167 = vld [vmem:[%s1 + $0x3c0] sm:$0xff]
  %v168 = vld [vmem:[%s1 + $0x3c8] sm:$0xff]
  %v169 = vld [vmem:[%s1 + $0x3d0] sm:$0xff]
  %v170 = vld [vmem:[%s1 + $0x3d8] sm:$0xff]
  %v171 = vld [vmem:[%s1 + $0x3e0] sm:$0xff]
  %v172 = vld [vmem:[%s1 + $0x3e8] sm:$0xff]
  %v173 = vld [vmem:[%s1 + $0x3f0] sm:$0xff]
  %v174 = vld [vmem:[%s1 + $0x3f8] sm:$0xff]
  %v175 = vld [vmem:[%s1 + $0x400] sm:$0xff]
  %v176 = vld [vmem:[%s1 + $0x408] sm:$0xff]
  %v177 = vld [vmem:[%s1 + $0x410] sm:$0xff]
  %v178 = vld [vmem:[%s1 + $0x418] sm:$0xff]
  %v179 = vld [vmem:[%s1 + $0x420] sm:$0xff]
  %v180 = vld [vmem:[%s1 + $0x428] sm:$0xff]
  %v181 = vld [vmem:[%s1 + $0x430] sm:$0xff]
  %v182 = vld [vmem:[%s1 + $0x438] sm:$0xff]
  %v183 = vld [vmem:[%s1 + $0x440] sm:$0xff]
  %v184 = vld [vmem:[%s1 + $0x448] sm:$0xff]
  %v185 = vld [vmem:[%s1 + $0x450] sm:$0xff]
  %v186 = vld [vmem:[%s1 + $0x458] sm:$0xff]
  %v187 = vld [vmem:[%s1 + $0x460] sm:$0xff]
  %v188 = vld [vmem:[%s1 + $0x468] sm:$0xff]
  %v189 = vld [vmem:[%s1 + $0x470] sm:$0xff]
  %v190 = vld [vmem:[%s1 + $0x478] sm:$0xff]
  %v191 = vld [vmem:[%s1 + $0x480] sm:$0xff]
  %v192 = vld [vmem:[%s1 + $0x488] sm:$0xff]
  %v193 = vld [vmem:[%s1 + $0x490] sm:$0xff]
  %v194 = vld [vmem:[%s1 + $0x498] sm:$0xff]
  %v195 = vld [vmem:[%s1 + $0x4a0] sm:$0xff]
  %v196 = vld [vmem:[%s1 + $0x4a8] sm:$0xff]
  %v197 = vld [vmem:[%s1 + $0x4b0] sm:$0xff]
  %v198 = vld [vmem:[%s1 + $0x4b8] sm:$0xff]
  %v199 = vld [vmem:[%s1 + $0x4c0] sm:$0xff]
  %v200 = vld [vmem:[%s1 + $0x4c8] sm:$0xff]
  %v201 = vld [vmem:[%s1 + $0x4d0] sm:$0xff]
  %v202 = vld [vmem:[%s1 + $0x4d8] sm:$0xff]
  %v203 = vld [vmem:[%s1 + $0x4e0] sm:$0xff]
  %v204 = vld [vmem:[%s1 + $0x4e8] sm:$0xff]
  %v205 = vld [vmem:[%s1 + $0x4f0] sm:$0xff]
  %v206 = vld [vmem:[%s1 + $0x4f8] sm:$0xff]
  %v207 = vld [vmem:[%s1 + $0x500] sm:$0xff]
  %v208 = vld [vmem:[%s1 + $0x508] sm:$0xff]
  %v209 = vld [vmem:[%s1 + $0x510] sm:$0xff]
  %v210 = vld [vmem:[%s1 + $0x518] sm:$0xff]
  %v211 = vld [vmem:[%s1 + $0x520] sm:$0xff]
  %v212 = vld [vmem:[%s1 + $0x528] sm:$0xff]
  %v213 = vld [vmem:[%s1 + $0x530] sm:$0xff]
  %v214 = vld [vmem:[%s1 + $0x538] sm:$0xff]
  %v215 = vld [vmem:[%s1 + $0x540] sm:$0xff]
  %v216 = vld [vmem:[%s1 + $0x548] sm:$0xff]
  %v217 = vld [vmem:[%s1 + $0x550] sm:$0xff]
  %v218 = vld [vmem:[%s1 + $0x558] sm:$0xff]
  %v219 = vld [vmem:[%s1 + $0x560] sm:$0xff]
  %v220 = vld [vmem:[%s1 + $0x568] sm:$0xff]
  %v221 = vld [vmem:[%s1 + $0x570] sm:$0xff]
  %v222 = vld [vmem:[%s1 + $0x578] sm:$0xff]
  %v223 = vld [vmem:[%s1 + $0x580] sm:$0x33]
  %v224 = vld [vmem:[%s1 + $0x588] sm:$0x33]
  %v225 = vld [vmem:[%s1 + $0x590] sm:$0x33]
  %v226 = vld [vmem:[%s1 + $0x598] sm:$0x33]
  %v227 = vld [vmem:[%s1 + $0x5a0] sm:$0x33]
  %v228 = vld [vmem:[%s1 + $0x5a8] sm:$0x33]
  %v229 = vld [vmem:[%s1 + $0x5b0] sm:$0x33]
  %v230 = vld [vmem:[%s1 + $0x5b8] sm:$0x33]
  %v231 = vld [vmem:[%s2] sm:$0xff]
  %v232 = vld [vmem:[%s2 + $0x8] sm:$0xff]
  %v235 = vlaneseq
  %v236 = vshrl.u32 %v235, 7
  %v237 = vsub.s32 0, %v236
  %v238 = vrot.slane %v231, %v237
  %v239 = vlaneseq
  %v240 = vshrl.u32 %v239, 7
  %v241 = vsub.s32 1, %v240
  %v242 = vrot.slane %v231, %v241
  %v243 = vlaneseq
  %v244 = vshrl.u32 %v243, 7
  %v245 = vsub.s32 2, %v244
  %v246 = vrot.slane %v231, %v245
  %v247 = vlaneseq
  %v248 = vshrl.u32 %v247, 7
  %v249 = vsub.s32 3, %v248
  %v250 = vrot.slane %v231, %v249
  %v251 = vlaneseq
  %v252 = vshrl.u32 %v251, 7
  %v253 = vsub.s32 4, %v252
  %v254 = vrot.slane %v231, %v253
  %v255 = vlaneseq
  %v256 = vshrl.u32 %v255, 7
  %v257 = vsub.s32 5, %v256
  %v258 = vrot.slane %v231, %v257
  %v259 = vlaneseq
  %v260 = vshrl.u32 %v259, 7
  %v261 = vsub.s32 6, %v260
  %v262 = vrot.slane %v231, %v261
  %v263 = vlaneseq
  %v264 = vshrl.u32 %v263, 7
  %v265 = vsub.s32 7, %v264
  %v266 = vrot.slane %v231, %v265
  %v267 = vlaneseq
  %v268 = vshrl.u32 %v267, 7
  %v269 = vsub.s32 0, %v268
  %v270 = vrot.slane %v232, %v269
  %v271 = vlaneseq
  %v272 = vshrl.u32 %v271, 7
  %v273 = vsub.s32 1, %v272
  %v274 = vrot.slane %v232, %v273
  %v275 = vlaneseq
  %v276 = vshrl.u32 %v275, 7
  %v277 = vsub.s32 2, %v276
  %v278 = vrot.slane %v232, %v277
  %v279 = vlaneseq
  %v280 = vshrl.u32 %v279, 7
  %v281 = vsub.s32 3, %v280
  %v282 = vrot.slane %v232, %v281
  %v283 = vlaneseq
  %v284 = vshrl.u32 %v283, 7
  %v285 = vsub.s32 4, %v284
  %v286 = vrot.slane %v232, %v285
  %v287 = vlaneseq
  %v288 = vshrl.u32 %v287, 7
  %v289 = vsub.s32 5, %v288
  %v290 = vrot.slane %v232, %v289
  %v291 = vlaneseq
  %v292 = vshrl.u32 %v291, 7
  %v293 = vsub.s32 6, %v292
  %v294 = vrot.slane %v232, %v293
  %v295 = vlaneseq
  %v296 = vshrl.u32 %v295, 7
  %v297 = vsub.s32 7, %v296
  %v298 = vrot.slane %v232, %v297
  %v323 = vunpack.c.l.b16 %v39
  %v324 = vunpack.c.h.b16 %v39
  %v325 = vunpack.c.l.b16 %v40
  %v326 = vunpack.c.h.b16 %v40
  %v327 = vunpack.c.l.b16 %v41
  %v328 = vunpack.c.h.b16 %v41
  %v329 = vunpack.c.l.b16 %v42
  %v330 = vunpack.c.h.b16 %v42
  %v331 = vunpack.c.l.b16 %v43
  %v332 = vunpack.c.h.b16 %v43
  %v333 = vunpack.c.l.b16 %v44
  %v334 = vunpack.c.h.b16 %v44
  %v335 = vunpack.c.l.b16 %v45
  %v336 = vunpack.c.h.b16 %v45
  %v337 = vunpack.c.l.b16 %v46
  %v338 = vunpack.c.h.b16 %v46
  %v339 = vpack.c.b16 %v325, %v323
  %v340 = vpack.c.b16 %v326, %v324
  %v341 = vpack.c.b16 %v329, %v327
  %v342 = vpack.c.b16 %v330, %v328
  %v343 = vpack.c.b16 %v333, %v331
  %v344 = vpack.c.b16 %v334, %v332
  %v345 = vpack.c.b16 %v337, %v335
  %v346 = vpack.c.b16 %v338, %v336
  %v535 = vunpack.c.l.b16 %v47
  %v536 = vunpack.c.h.b16 %v47
  %v537 = vunpack.c.l.b16 %v48
  %v538 = vunpack.c.h.b16 %v48
  %v539 = vunpack.c.l.b16 %v49
  %v540 = vunpack.c.h.b16 %v49
  %v541 = vunpack.c.l.b16 %v50
  %v542 = vunpack.c.h.b16 %v50
  %v543 = vunpack.c.l.b16 %v51
  %v544 = vunpack.c.h.b16 %v51
  %v545 = vunpack.c.l.b16 %v52
  %v546 = vunpack.c.h.b16 %v52
  %v547 = vunpack.c.l.b16 %v53
  %v548 = vunpack.c.h.b16 %v53
  %v549 = vunpack.c.l.b16 %v54
  %v550 = vunpack.c.h.b16 %v54
  %v551 = vunpack.c.l.b16 %v55
  %v552 = vunpack.c.h.b16 %v55
  %v553 = vunpack.c.l.b16 %v56
  %v554 = vunpack.c.h.b16 %v56
  %v555 = vunpack.c.l.b16 %v57
  %v556 = vunpack.c.h.b16 %v57
  %v557 = vunpack.c.l.b16 %v58
  %v558 = vunpack.c.h.b16 %v58
  %v559 = vunpack.c.l.b16 %v59
  %v560 = vunpack.c.h.b16 %v59
  %v561 = vunpack.c.l.b16 %v60
  %v562 = vunpack.c.h.b16 %v60
  %v563 = vunpack.c.l.b16 %v61
  %v564 = vunpack.c.h.b16 %v61
  %v565 = vunpack.c.l.b16 %v62
  %v566 = vunpack.c.h.b16 %v62
  %v567 = vunpack.c.l.b16 %v63
  %v568 = vunpack.c.h.b16 %v63
  %v569 = vunpack.c.l.b16 %v64
  %v570 = vunpack.c.h.b16 %v64
  %v571 = vunpack.c.l.b16 %v65
  %v572 = vunpack.c.h.b16 %v65
  %v573 = vunpack.c.l.b16 %v66
  %v574 = vunpack.c.h.b16 %v66
  %v575 = vunpack.c.l.b16 %v67
  %v576 = vunpack.c.h.b16 %v67
  %v577 = vunpack.c.l.b16 %v68
  %v578 = vunpack.c.h.b16 %v68
  %v579 = vunpack.c.l.b16 %v69
  %v580 = vunpack.c.h.b16 %v69
  %v581 = vunpack.c.l.b16 %v70
  %v582 = vunpack.c.h.b16 %v70
  %v583 = vunpack.c.l.b16 %v71
  %v584 = vunpack.c.h.b16 %v71
  %v585 = vunpack.c.l.b16 %v72
  %v586 = vunpack.c.h.b16 %v72
  %v587 = vunpack.c.l.b16 %v73
  %v588 = vunpack.c.h.b16 %v73
  %v589 = vunpack.c.l.b16 %v74
  %v590 = vunpack.c.h.b16 %v74
  %v591 = vunpack.c.l.b16 %v75
  %v592 = vunpack.c.h.b16 %v75
  %v593 = vunpack.c.l.b16 %v76
  %v594 = vunpack.c.h.b16 %v76
  %v595 = vunpack.c.l.b16 %v77
  %v596 = vunpack.c.h.b16 %v77
  %v597 = vunpack.c.l.b16 %v78
  %v598 = vunpack.c.h.b16 %v78
  %v599 = vunpack.c.l.b16 %v79
  %v600 = vunpack.c.h.b16 %v79
  %v601 = vunpack.c.l.b16 %v80
  %v602 = vunpack.c.h.b16 %v80
  %v603 = vunpack.c.l.b16 %v81
  %v604 = vunpack.c.h.b16 %v81
  %v605 = vunpack.c.l.b16 %v82
  %v606 = vunpack.c.h.b16 %v82
  %v607 = vunpack.c.l.b16 %v83
  %v608 = vunpack.c.h.b16 %v83
  %v609 = vunpack.c.l.b16 %v84
  %v610 = vunpack.c.h.b16 %v84
  %v611 = vunpack.c.l.b16 %v85
  %v612 = vunpack.c.h.b16 %v85
  %v613 = vunpack.c.l.b16 %v86
  %v614 = vunpack.c.h.b16 %v86
  %v615 = vunpack.c.l.b16 %v87
  %v616 = vunpack.c.h.b16 %v87
  %v617 = vunpack.c.l.b16 %v88
  %v618 = vunpack.c.h.b16 %v88
  %v619 = vunpack.c.l.b16 %v89
  %v620 = vunpack.c.h.b16 %v89
  %v621 = vunpack.c.l.b16 %v90
  %v622 = vunpack.c.h.b16 %v90
  %v623 = vunpack.c.l.b16 %v91
  %v624 = vunpack.c.h.b16 %v91
  %v625 = vunpack.c.l.b16 %v92
  %v626 = vunpack.c.h.b16 %v92
  %v627 = vunpack.c.l.b16 %v93
  %v628 = vunpack.c.h.b16 %v93
  %v629 = vunpack.c.l.b16 %v94
  %v630 = vunpack.c.h.b16 %v94
  %v631 = vunpack.c.l.b16 %v95
  %v632 = vunpack.c.h.b16 %v95
  %v633 = vunpack.c.l.b16 %v96
  %v634 = vunpack.c.h.b16 %v96
  %v635 = vunpack.c.l.b16 %v97
  %v636 = vunpack.c.h.b16 %v97
  %v637 = vunpack.c.l.b16 %v98
  %v638 = vunpack.c.h.b16 %v98
  %v639 = vunpack.c.l.b16 %v99
  %v640 = vunpack.c.h.b16 %v99
  %v641 = vunpack.c.l.b16 %v100
  %v642 = vunpack.c.h.b16 %v100
  %v643 = vunpack.c.l.b16 %v101
  %v644 = vunpack.c.h.b16 %v101
  %v645 = vunpack.c.l.b16 %v102
  %v646 = vunpack.c.h.b16 %v102
  %v647 = vunpack.c.l.b16 %v103
  %v648 = vunpack.c.h.b16 %v103
  %v649 = vunpack.c.l.b16 %v104
  %v650 = vunpack.c.h.b16 %v104
  %v651 = vunpack.c.l.b16 %v105
  %v652 = vunpack.c.h.b16 %v105
  %v653 = vunpack.c.l.b16 %v106
  %v654 = vunpack.c.h.b16 %v106
  %v655 = vunpack.c.l.b16 %v107
  %v656 = vunpack.c.h.b16 %v107
  %v657 = vunpack.c.l.b16 %v108
  %v658 = vunpack.c.h.b16 %v108
  %v659 = vunpack.c.l.b16 %v109
  %v660 = vunpack.c.h.b16 %v109
  %v661 = vunpack.c.l.b16 %v110
  %v662 = vunpack.c.h.b16 %v110
  %v663 = vunpack.c.l.b16 %v111
  %v664 = vunpack.c.h.b16 %v111
  %v665 = vunpack.c.l.b16 %v112
  %v666 = vunpack.c.h.b16 %v112
  %v667 = vunpack.c.l.b16 %v113
  %v668 = vunpack.c.h.b16 %v113
  %v669 = vunpack.c.l.b16 %v114
  %v670 = vunpack.c.h.b16 %v114
  %v671 = vunpack.c.l.b16 %v115
  %v672 = vunpack.c.h.b16 %v115
  %v673 = vunpack.c.l.b16 %v116
  %v674 = vunpack.c.h.b16 %v116
  %v675 = vunpack.c.l.b16 %v117
  %v676 = vunpack.c.h.b16 %v117
  %v677 = vunpack.c.l.b16 %v118
  %v678 = vunpack.c.h.b16 %v118
  %v679 = vunpack.c.l.b16 %v119
  %v680 = vunpack.c.h.b16 %v119
  %v681 = vunpack.c.l.b16 %v120
  %v682 = vunpack.c.h.b16 %v120
  %v683 = vunpack.c.l.b16 %v121
  %v684 = vunpack.c.h.b16 %v121
  %v685 = vunpack.c.l.b16 %v122
  %v686 = vunpack.c.h.b16 %v122
  %v687 = vunpack.c.l.b16 %v123
  %v688 = vunpack.c.h.b16 %v123
  %v689 = vunpack.c.l.b16 %v124
  %v690 = vunpack.c.h.b16 %v124
  %v691 = vunpack.c.l.b16 %v125
  %v692 = vunpack.c.h.b16 %v125
  %v693 = vunpack.c.l.b16 %v126
  %v694 = vunpack.c.h.b16 %v126
  %v695 = vunpack.c.l.b16 %v127
  %v696 = vunpack.c.h.b16 %v127
  %v697 = vunpack.c.l.b16 %v128
  %v698 = vunpack.c.h.b16 %v128
  %v699 = vunpack.c.l.b16 %v129
  %v700 = vunpack.c.h.b16 %v129
  %v701 = vunpack.c.l.b16 %v130
  %v702 = vunpack.c.h.b16 %v130
  %v703 = vunpack.c.l.b16 %v131
  %v704 = vunpack.c.h.b16 %v131
  %v705 = vunpack.c.l.b16 %v132
  %v706 = vunpack.c.h.b16 %v132
  %v707 = vunpack.c.l.b16 %v133
  %v708 = vunpack.c.h.b16 %v133
  %v709 = vunpack.c.l.b16 %v134
  %v710 = vunpack.c.h.b16 %v134
  %v711 = vunpack.c.l.b16 %v135
  %v712 = vunpack.c.h.b16 %v135
  %v713 = vunpack.c.l.b16 %v136
  %v714 = vunpack.c.h.b16 %v136
  %v715 = vunpack.c.l.b16 %v137
  %v716 = vunpack.c.h.b16 %v137
  %v717 = vunpack.c.l.b16 %v138
  %v718 = vunpack.c.h.b16 %v138
  %v719 = vunpack.c.l.b16 %v139
  %v720 = vunpack.c.h.b16 %v139
  %v721 = vunpack.c.l.b16 %v140
  %v722 = vunpack.c.h.b16 %v140
  %v723 = vunpack.c.l.b16 %v141
  %v724 = vunpack.c.h.b16 %v141
  %v725 = vunpack.c.l.b16 %v142
  %v726 = vunpack.c.h.b16 %v142
  %v727 = vunpack.c.l.b16 %v143
  %v728 = vunpack.c.h.b16 %v143
  %v729 = vunpack.c.l.b16 %v144
  %v730 = vunpack.c.h.b16 %v144
  %v731 = vunpack.c.l.b16 %v145
  %v732 = vunpack.c.h.b16 %v145
  %v733 = vunpack.c.l.b16 %v146
  %v734 = vunpack.c.h.b16 %v146
  %v735 = vunpack.c.l.b16 %v147
  %v736 = vunpack.c.h.b16 %v147
  %v737 = vunpack.c.l.b16 %v148
  %v738 = vunpack.c.h.b16 %v148
  %v739 = vunpack.c.l.b16 %v149
  %v740 = vunpack.c.h.b16 %v149
  %v741 = vunpack.c.l.b16 %v150
  %v742 = vunpack.c.h.b16 %v150
  %v743 = vunpack.c.l.b16 %v151
  %v744 = vunpack.c.h.b16 %v151
  %v745 = vunpack.c.l.b16 %v152
  %v746 = vunpack.c.h.b16 %v152
  %v747 = vunpack.c.l.b16 %v153
  %v748 = vunpack.c.h.b16 %v153
  %v749 = vunpack.c.l.b16 %v154
  %v750 = vunpack.c.h.b16 %v154
  %v751 = vunpack.c.l.b16 %v155
  %v752 = vunpack.c.h.b16 %v155
  %v753 = vunpack.c.l.b16 %v156
  %v754 = vunpack.c.h.b16 %v156
  %v755 = vunpack.c.l.b16 %v157
  %v756 = vunpack.c.h.b16 %v157
  %v757 = vunpack.c.l.b16 %v158
  %v758 = vunpack.c.h.b16 %v158
  %v759 = vunpack.c.l.b16 %v159
  %v760 = vunpack.c.h.b16 %v159
  %v761 = vunpack.c.l.b16 %v160
  %v762 = vunpack.c.h.b16 %v160
  %v763 = vunpack.c.l.b16 %v161
  %v764 = vunpack.c.h.b16 %v161
  %v765 = vunpack.c.l.b16 %v162
  %v766 = vunpack.c.h.b16 %v162
  %v767 = vunpack.c.l.b16 %v163
  %v768 = vunpack.c.h.b16 %v163
  %v769 = vunpack.c.l.b16 %v164
  %v770 = vunpack.c.h.b16 %v164
  %v771 = vunpack.c.l.b16 %v165
  %v772 = vunpack.c.h.b16 %v165
  %v773 = vunpack.c.l.b16 %v166
  %v774 = vunpack.c.h.b16 %v166
  %v775 = vunpack.c.l.b16 %v167
  %v776 = vunpack.c.h.b16 %v167
  %v777 = vunpack.c.l.b16 %v168
  %v778 = vunpack.c.h.b16 %v168
  %v779 = vunpack.c.l.b16 %v169
  %v780 = vunpack.c.h.b16 %v169
  %v781 = vunpack.c.l.b16 %v170
  %v782 = vunpack.c.h.b16 %v170
  %v783 = vunpack.c.l.b16 %v171
  %v784 = vunpack.c.h.b16 %v171
  %v785 = vunpack.c.l.b16 %v172
  %v786 = vunpack.c.h.b16 %v172
  %v787 = vunpack.c.l.b16 %v173
  %v788 = vunpack.c.h.b16 %v173
  %v789 = vunpack.c.l.b16 %v174
  %v790 = vunpack.c.h.b16 %v174
  %v791 = vunpack.c.l.b16 %v175
  %v792 = vunpack.c.h.b16 %v175
  %v793 = vunpack.c.l.b16 %v176
  %v794 = vunpack.c.h.b16 %v176
  %v795 = vunpack.c.l.b16 %v177
  %v796 = vunpack.c.h.b16 %v177
  %v797 = vunpack.c.l.b16 %v178
  %v798 = vunpack.c.h.b16 %v178
  %v799 = vunpack.c.l.b16 %v179
  %v800 = vunpack.c.h.b16 %v179
  %v801 = vunpack.c.l.b16 %v180
  %v802 = vunpack.c.h.b16 %v180
  %v803 = vunpack.c.l.b16 %v181
  %v804 = vunpack.c.h.b16 %v181
  %v805 = vunpack.c.l.b16 %v182
  %v806 = vunpack.c.h.b16 %v182
  %v807 = vunpack.c.l.b16 %v183
  %v808 = vunpack.c.h.b16 %v183
  %v809 = vunpack.c.l.b16 %v184
  %v810 = vunpack.c.h.b16 %v184
  %v811 = vunpack.c.l.b16 %v185
  %v812 = vunpack.c.h.b16 %v185
  %v813 = vunpack.c.l.b16 %v186
  %v814 = vunpack.c.h.b16 %v186
  %v815 = vunpack.c.l.b16 %v187
  %v816 = vunpack.c.h.b16 %v187
  %v817 = vunpack.c.l.b16 %v188
  %v818 = vunpack.c.h.b16 %v188
  %v819 = vunpack.c.l.b16 %v189
  %v820 = vunpack.c.h.b16 %v189
  %v821 = vunpack.c.l.b16 %v190
  %v822 = vunpack.c.h.b16 %v190
  %v823 = vunpack.c.l.b16 %v191
  %v824 = vunpack.c.h.b16 %v191
  %v825 = vunpack.c.l.b16 %v192
  %v826 = vunpack.c.h.b16 %v192
  %v827 = vunpack.c.l.b16 %v193
  %v828 = vunpack.c.h.b16 %v193
  %v829 = vunpack.c.l.b16 %v194
  %v830 = vunpack.c.h.b16 %v194
  %v831 = vunpack.c.l.b16 %v195
  %v832 = vunpack.c.h.b16 %v195
  %v833 = vunpack.c.l.b16 %v196
  %v834 = vunpack.c.h.b16 %v196
  %v835 = vunpack.c.l.b16 %v197
  %v836 = vunpack.c.h.b16 %v197
  %v837 = vunpack.c.l.b16 %v198
  %v838 = vunpack.c.h.b16 %v198
  %v839 = vunpack.c.l.b16 %v199
  %v840 = vunpack.c.h.b16 %v199
  %v841 = vunpack.c.l.b16 %v200
  %v842 = vunpack.c.h.b16 %v200
  %v843 = vunpack.c.l.b16 %v201
  %v844 = vunpack.c.h.b16 %v201
  %v845 = vunpack.c.l.b16 %v202
  %v846 = vunpack.c.h.b16 %v202
  %v847 = vunpack.c.l.b16 %v203
  %v848 = vunpack.c.h.b16 %v203
  %v849 = vunpack.c.l.b16 %v204
  %v850 = vunpack.c.h.b16 %v204
  %v851 = vunpack.c.l.b16 %v205
  %v852 = vunpack.c.h.b16 %v205
  %v853 = vunpack.c.l.b16 %v206
  %v854 = vunpack.c.h.b16 %v206
  %v855 = vunpack.c.l.b16 %v207
  %v856 = vunpack.c.h.b16 %v207
  %v857 = vunpack.c.l.b16 %v208
  %v858 = vunpack.c.h.b16 %v208
  %v859 = vunpack.c.l.b16 %v209
  %v860 = vunpack.c.h.b16 %v209
  %v861 = vunpack.c.l.b16 %v210
  %v862 = vunpack.c.h.b16 %v210
  %v863 = vunpack.c.l.b16 %v211
  %v864 = vunpack.c.h.b16 %v211
  %v865 = vunpack.c.l.b16 %v212
  %v866 = vunpack.c.h.b16 %v212
  %v867 = vunpack.c.l.b16 %v213
  %v868 = vunpack.c.h.b16 %v213
  %v869 = vunpack.c.l.b16 %v214
  %v870 = vunpack.c.h.b16 %v214
  %v871 = vunpack.c.l.b16 %v215
  %v872 = vunpack.c.h.b16 %v215
  %v873 = vunpack.c.l.b16 %v216
  %v874 = vunpack.c.h.b16 %v216
  %v875 = vunpack.c.l.b16 %v217
  %v876 = vunpack.c.h.b16 %v217
  %v877 = vunpack.c.l.b16 %v218
  %v878 = vunpack.c.h.b16 %v218
  %v879 = vunpack.c.l.b16 %v219
  %v880 = vunpack.c.h.b16 %v219
  %v881 = vunpack.c.l.b16 %v220
  %v882 = vunpack.c.h.b16 %v220
  %v883 = vunpack.c.l.b16 %v221
  %v884 = vunpack.c.h.b16 %v221
  %v885 = vunpack.c.l.b16 %v222
  %v886 = vunpack.c.h.b16 %v222
  %v887 = vunpack.c.l.b16 %v223
  %v888 = vunpack.c.h.b16 %v223
  %v889 = vunpack.c.l.b16 %v224
  %v890 = vunpack.c.h.b16 %v224
  %v891 = vunpack.c.l.b16 %v225
  %v892 = vunpack.c.h.b16 %v225
  %v893 = vunpack.c.l.b16 %v226
  %v894 = vunpack.c.h.b16 %v226
  %v895 = vunpack.c.l.b16 %v227
  %v896 = vunpack.c.h.b16 %v227
  %v897 = vunpack.c.l.b16 %v228
  %v898 = vunpack.c.h.b16 %v228
  %v899 = vunpack.c.l.b16 %v229
  %v900 = vunpack.c.h.b16 %v229
  %v901 = vunpack.c.l.b16 %v230
  %v902 = vunpack.c.h.b16 %v230
  %v903 = vpack.c.b16 %v551, %v535
  %v904 = vpack.c.b16 %v552, %v536
  %v905 = vpack.c.b16 %v553, %v537
  %v906 = vpack.c.b16 %v554, %v538
  %v907 = vpack.c.b16 %v555, %v539
  %v908 = vpack.c.b16 %v556, %v540
  %v909 = vpack.c.b16 %v557, %v541
  %v910 = vpack.c.b16 %v558, %v542
  %v911 = vpack.c.b16 %v559, %v543
  %v912 = vpack.c.b16 %v560, %v544
  %v913 = vpack.c.b16 %v561, %v545
  %v914 = vpack.c.b16 %v562, %v546
  %v915 = vpack.c.b16 %v563, %v547
  %v916 = vpack.c.b16 %v564, %v548
  %v917 = vpack.c.b16 %v565, %v549
  %v918 = vpack.c.b16 %v566, %v550
  %v919 = vpack.c.b16 %v583, %v567
  %v920 = vpack.c.b16 %v584, %v568
  %v921 = vpack.c.b16 %v585, %v569
  %v922 = vpack.c.b16 %v586, %v570
  %v923 = vpack.c.b16 %v587, %v571
  %v924 = vpack.c.b16 %v588, %v572
  %v925 = vpack.c.b16 %v589, %v573
  %v926 = vpack.c.b16 %v590, %v574
  %v927 = vpack.c.b16 %v591, %v575
  %v928 = vpack.c.b16 %v592, %v576
  %v929 = vpack.c.b16 %v593, %v577
  %v930 = vpack.c.b16 %v594, %v578
  %v931 = vpack.c.b16 %v595, %v579
  %v932 = vpack.c.b16 %v596, %v580
  %v933 = vpack.c.b16 %v597, %v581
  %v934 = vpack.c.b16 %v598, %v582
  %v935 = vpack.c.b16 %v615, %v599
  %v936 = vpack.c.b16 %v616, %v600
  %v937 = vpack.c.b16 %v617, %v601
  %v938 = vpack.c.b16 %v618, %v602
  %v939 = vpack.c.b16 %v619, %v603
  %v940 = vpack.c.b16 %v620, %v604
  %v941 = vpack.c.b16 %v621, %v605
  %v942 = vpack.c.b16 %v622, %v606
  %v943 = vpack.c.b16 %v623, %v607
  %v944 = vpack.c.b16 %v624, %v608
  %v945 = vpack.c.b16 %v625, %v609
  %v946 = vpack.c.b16 %v626, %v610
  %v947 = vpack.c.b16 %v627, %v611
  %v948 = vpack.c.b16 %v628, %v612
  %v949 = vpack.c.b16 %v629, %v613
  %v950 = vpack.c.b16 %v630, %v614
  %v951 = vpack.c.b16 %v647, %v631
  %v952 = vpack.c.b16 %v648, %v632
  %v953 = vpack.c.b16 %v649, %v633
  %v954 = vpack.c.b16 %v650, %v634
  %v955 = vpack.c.b16 %v651, %v635
  %v956 = vpack.c.b16 %v652, %v636
  %v957 = vpack.c.b16 %v653, %v637
  %v958 = vpack.c.b16 %v654, %v638
  %v959 = vpack.c.b16 %v655, %v639
  %v960 = vpack.c.b16 %v656, %v640
  %v961 = vpack.c.b16 %v657, %v641
  %v962 = vpack.c.b16 %v658, %v642
  %v963 = vpack.c.b16 %v659, %v643
  %v964 = vpack.c.b16 %v660, %v644
  %v965 = vpack.c.b16 %v661, %v645
  %v966 = vpack.c.b16 %v662, %v646
  %v967 = vpack.c.b16 %v679, %v663
  %v968 = vpack.c.b16 %v680, %v664
  %v969 = vpack.c.b16 %v681, %v665
  %v970 = vpack.c.b16 %v682, %v666
  %v971 = vpack.c.b16 %v683, %v667
  %v972 = vpack.c.b16 %v684, %v668
  %v973 = vpack.c.b16 %v685, %v669
  %v974 = vpack.c.b16 %v686, %v670
  %v975 = vpack.c.b16 %v687, %v671
  %v976 = vpack.c.b16 %v688, %v672
  %v977 = vpack.c.b16 %v689, %v673
  %v978 = vpack.c.b16 %v690, %v674
  %v979 = vpack.c.b16 %v691, %v675
  %v980 = vpack.c.b16 %v692, %v676
  %v981 = vpack.c.b16 %v693, %v677
  %v982 = vpack.c.b16 %v694, %v678
  %v983 = vpack.c.b16 %v711, %v695
  %v984 = vpack.c.b16 %v712, %v696
  %v985 = vpack.c.b16 %v713, %v697
  %v986 = vpack.c.b16 %v714, %v698
  %v987 = vpack.c.b16 %v715, %v699
  %v988 = vpack.c.b16 %v716, %v700
  %v989 = vpack.c.b16 %v717, %v701
  %v990 = vpack.c.b16 %v718, %v702
  %v991 = vpack.c.b16 %v719, %v703
  %v992 = vpack.c.b16 %v720, %v704
  %v993 = vpack.c.b16 %v721, %v705
  %v994 = vpack.c.b16 %v722, %v706
  %v995 = vpack.c.b16 %v723, %v707
  %v996 = vpack.c.b16 %v724, %v708
  %v997 = vpack.c.b16 %v725, %v709
  %v998 = vpack.c.b16 %v726, %v710
  %v999 = vpack.c.b16 %v743, %v727
  %v1000 = vpack.c.b16 %v744, %v728
  %v1001 = vpack.c.b16 %v745, %v729
  %v1002 = vpack.c.b16 %v746, %v730
  %v1003 = vpack.c.b16 %v747, %v731
  %v1004 = vpack.c.b16 %v748, %v732
  %v1005 = vpack.c.b16 %v749, %v733
  %v1006 = vpack.c.b16 %v750, %v734
  %v1007 = vpack.c.b16 %v751, %v735
  %v1008 = vpack.c.b16 %v752, %v736
  %v1009 = vpack.c.b16 %v753, %v737
  %v1010 = vpack.c.b16 %v754, %v738
  %v1011 = vpack.c.b16 %v755, %v739
  %v1012 = vpack.c.b16 %v756, %v740
  %v1013 = vpack.c.b16 %v757, %v741
  %v1014 = vpack.c.b16 %v758, %v742
  %v1015 = vpack.c.b16 %v775, %v759
  %v1016 = vpack.c.b16 %v776, %v760
  %v1017 = vpack.c.b16 %v777, %v761
  %v1018 = vpack.c.b16 %v778, %v762
  %v1019 = vpack.c.b16 %v779, %v763
  %v1020 = vpack.c.b16 %v780, %v764
  %v1021 = vpack.c.b16 %v781, %v765
  %v1022 = vpack.c.b16 %v782, %v766
  %v1023 = vpack.c.b16 %v783, %v767
  %v1024 = vpack.c.b16 %v784, %v768
  %v1025 = vpack.c.b16 %v785, %v769
  %v1026 = vpack.c.b16 %v786, %v770
  %v1027 = vpack.c.b16 %v787, %v771
  %v1028 = vpack.c.b16 %v788, %v772
  %v1029 = vpack.c.b16 %v789, %v773
  %v1030 = vpack.c.b16 %v790, %v774
  %v1031 = vpack.c.b16 %v807, %v791
  %v1032 = vpack.c.b16 %v808, %v792
  %v1033 = vpack.c.b16 %v809, %v793
  %v1034 = vpack.c.b16 %v810, %v794
  %v1035 = vpack.c.b16 %v811, %v795
  %v1036 = vpack.c.b16 %v812, %v796
  %v1037 = vpack.c.b16 %v813, %v797
  %v1038 = vpack.c.b16 %v814, %v798
  %v1039 = vpack.c.b16 %v815, %v799
  %v1040 = vpack.c.b16 %v816, %v800
  %v1041 = vpack.c.b16 %v817, %v801
  %v1042 = vpack.c.b16 %v818, %v802
  %v1043 = vpack.c.b16 %v819, %v803
  %v1044 = vpack.c.b16 %v820, %v804
  %v1045 = vpack.c.b16 %v821, %v805
  %v1046 = vpack.c.b16 %v822, %v806
  %v1047 = vpack.c.b16 %v839, %v823
  %v1048 = vpack.c.b16 %v840, %v824
  %v1049 = vpack.c.b16 %v841, %v825
  %v1050 = vpack.c.b16 %v842, %v826
  %v1051 = vpack.c.b16 %v843, %v827
  %v1052 = vpack.c.b16 %v844, %v828
  %v1053 = vpack.c.b16 %v845, %v829
  %v1054 = vpack.c.b16 %v846, %v830
  %v1055 = vpack.c.b16 %v847, %v831
  %v1056 = vpack.c.b16 %v848, %v832
  %v1057 = vpack.c.b16 %v849, %v833
  %v1058 = vpack.c.b16 %v850, %v834
  %v1059 = vpack.c.b16 %v851, %v835
  %v1060 = vpack.c.b16 %v852, %v836
  %v1061 = vpack.c.b16 %v853, %v837
  %v1062 = vpack.c.b16 %v854, %v838
  %v1063 = vpack.c.b16 %v871, %v855
  %v1064 = vpack.c.b16 %v872, %v856
  %v1065 = vpack.c.b16 %v873, %v857
  %v1066 = vpack.c.b16 %v874, %v858
  %v1067 = vpack.c.b16 %v875, %v859
  %v1068 = vpack.c.b16 %v876, %v860
  %v1069 = vpack.c.b16 %v877, %v861
  %v1070 = vpack.c.b16 %v878, %v862
  %v1071 = vpack.c.b16 %v879, %v863
  %v1072 = vpack.c.b16 %v880, %v864
  %v1073 = vpack.c.b16 %v881, %v865
  %v1074 = vpack.c.b16 %v882, %v866
  %v1075 = vpack.c.b16 %v883, %v867
  %v1076 = vpack.c.b16 %v884, %v868
  %v1077 = vpack.c.b16 %v885, %v869
  %v1078 = vpack.c.b16 %v886, %v870
  %v1079 = vpack.c.b16 %v887, %v887
  %v1080 = vpack.c.b16 %v888, %v888
  %v1081 = vpack.c.b16 %v889, %v889
  %v1082 = vpack.c.b16 %v890, %v890
  %v1083 = vpack.c.b16 %v891, %v891
  %v1084 = vpack.c.b16 %v892, %v892
  %v1085 = vpack.c.b16 %v893, %v893
  %v1086 = vpack.c.b16 %v894, %v894
  %v1087 = vpack.c.b16 %v895, %v895
  %v1088 = vpack.c.b16 %v896, %v896
  %v1089 = vpack.c.b16 %v897, %v897
  %v1090 = vpack.c.b16 %v898, %v898
  %v1091 = vpack.c.b16 %v899, %v899
  %v1092 = vpack.c.b16 %v900, %v900
  %v1093 = vpack.c.b16 %v901, %v901
  %v1094 = vpack.c.b16 %v902, %v902
  %vm1271 = vcmask 424960
  %v1273 = vsel %vm1271, %v340, 0
  %v1276 = vsel %vm1271, %v342, 0
  %v1279 = vsel %vm1271, %v344, 0
  %v1282 = vsel %vm1271, %v346, 0
  %vm1284 = vcmask 1041408
  %v1286 = vsel %vm1284, %v1079, 0
  %v1289 = vsel %vm1284, %v1080, 0
  %v1292 = vsel %vm1284, %v1081, 0
  %v1295 = vsel %vm1284, %v1082, 0
  %v1298 = vsel %vm1284, %v1083, 0
  %v1301 = vsel %vm1284, %v1084, 0
  %v1304 = vsel %vm1284, %v1085, 0
  %v1307 = vsel %vm1284, %v1086, 0
  %v1310 = vsel %vm1284, %v1087, 0
  %v1313 = vsel %vm1284, %v1088, 0
  %v1316 = vsel %vm1284, %v1089, 0
  %v1319 = vsel %vm1284, %v1090, 0
  %v1322 = vsel %vm1284, %v1091, 0
  %v1325 = vsel %vm1284, %v1092, 0
  %v1328 = vsel %vm1284, %v1093, 0
  %v1331 = vsel %vm1284, %v1094, 0
  %1333 = vmatprep.subr.bf16.mxu0 %v904
  %1334 = vmatpush1.bf16.msra.mxu0 %v903
  %1335 = vmatprep.subr.bf16.mxu0 %v920
  %1336 = vmatpush1.bf16.msra.mxu0 %v919
  %1337 = vmatprep.subr.bf16.mxu0 %v936
  %1338 = vmatpush1.bf16.msra.mxu0 %v935
  %1339 = vmatprep.subr.bf16.mxu0 %v952
  %1340 = vmatpush1.bf16.msra.mxu0 %v951
  %1341 = vmatprep.subr.bf16.mxu0 %v968
  %1342 = vmatpush1.bf16.msra.mxu0 %v967
  %1343 = vmatprep.subr.bf16.mxu0 %v984
  %1344 = vmatpush1.bf16.msra.mxu0 %v983
  %1345 = vmatprep.subr.bf16.mxu0 %v1000
  %1346 = vmatpush1.bf16.msra.mxu0 %v999
  %1347 = vmatprep.subr.bf16.mxu0 %v1016
  %1348 = vmatpush1.bf16.msra.mxu0 %v1015
  %1349 = vmatprep.subr.bf16.mxu0 %v1032
  %1350 = vmatpush1.bf16.msra.mxu0 %v1031
  %1351 = vmatprep.subr.bf16.mxu0 %v1048
  %1352 = vmatpush1.bf16.msra.mxu0 %v1047
  %1353 = vmatprep.subr.bf16.mxu0 %v1064
  %1354 = vmatpush1.bf16.msra.mxu0 %v1063
  %1355 = vmatprep.subr.bf16.mxu0 %v1289
  %1356 = vmatpush1.bf16.msra.mxu0 %v1286
  %1357 = vmatprep.subr.bf16.mxu0 0
  %1358 = vmatpush1.bf16.msra.mxu0 0
  %1359 = vmatprep.subr.bf16.mxu0 0
  %1360 = vmatpush1.bf16.msra.mxu0 0
  %1361 = vmatprep.subr.bf16.mxu0 0
  %1362 = vmatpush1.bf16.msra.mxu0 0
  %1363 = vmatprep.subr.bf16.mxu0 0
  %1364 = vmatpush1.bf16.msra.mxu0 0
  %1365 = vmatprep.mubr.bf16.mxu0 %v1273
  %1366 = vmatmul.mubr.bf16.gmra.mrb[0].mxu0 %v339
  %v1367 = vpop.f32.mrb[0].mxu0
  %v1368 = vadd.f32 %v238, %v1367
  %v1369 = vpop.f32.mrb[0].mxu0
  %v1370 = vadd.f32 %v242, %v1369
  %v1371 = vpop.f32.mrb[0].mxu0
  %v1372 = vadd.f32 %v238, %v1371
  %v1373 = vpop.f32.mrb[0].mxu0
  %v1374 = vadd.f32 %v242, %v1373
  %1375 = vmatprep.mubr.bf16.mxu0 %v1276
  %1376 = vmatmul.mubr.bf16.gmra.mrb[0].mxu0 %v341
  %v1377 = vpop.f32.mrb[0].mxu0
  %v1378 = vadd.f32 %v238, %v1377
  %v1379 = vpop.f32.mrb[0].mxu0
  %v1380 = vadd.f32 %v242, %v1379
  %v1381 = vpop.f32.mrb[0].mxu0
  %v1382 = vadd.f32 %v238, %v1381
  %v1383 = vpop.f32.mrb[0].mxu0
  %v1384 = vadd.f32 %v242, %v1383
  %1385 = vmatprep.mubr.bf16.mxu0 %v1279
  %1386 = vmatmul.mubr.bf16.gmra.mrb[0].mxu0 %v343
  %v1387 = vpop.f32.mrb[0].mxu0
  %v1388 = vadd.f32 %v238, %v1387
  %v1389 = vpop.f32.mrb[0].mxu0
  %v1390 = vadd.f32 %v242, %v1389
  %v1391 = vpop.f32.mrb[0].mxu0
  %v1392 = vadd.f32 %v238, %v1391
  %v1393 = vpop.f32.mrb[0].mxu0
  %v1394 = vadd.f32 %v242, %v1393
  %1395 = vmatprep.mubr.bf16.mxu0 %v1282
  %1396 = vmatmul.mubr.bf16.gmra.mrb[0].mxu0 %v345
  %v1397 = vpop.f32.mrb[0].mxu0
  %v1398 = vadd.f32 %v238, %v1397
  %v1399 = vpop.f32.mrb[0].mxu0
  %v1400 = vadd.f32 %v242, %v1399
  %v1401 = vpop.f32.mrb[0].mxu0
  %v1402 = vadd.f32 %v238, %v1401
  %v1403 = vpop.f32.mrb[0].mxu0
  %v1404 = vadd.f32 %v242, %v1403
  %1405 = vdwg.mxu0
  %1406 = vmatprep.subr.bf16.mxu0 %v906
  %1407 = vmatpush1.bf16.msra.mxu0 %v905
  %1408 = vmatprep.subr.bf16.mxu0 %v922
  %1409 = vmatpush1.bf16.msra.mxu0 %v921
  %1410 = vmatprep.subr.bf16.mxu0 %v938
  %1411 = vmatpush1.bf16.msra.mxu0 %v937
  %1412 = vmatprep.subr.bf16.mxu0 %v954
  %1413 = vmatpush1.bf16.msra.mxu0 %v953
  %1414 = vmatprep.subr.bf16.mxu0 %v970
  %1415 = vmatpush1.bf16.msra.mxu0 %v969
  %1416 = vmatprep.subr.bf16.mxu0 %v986
  %1417 = vmatpush1.bf16.msra.mxu0 %v985
  %1418 = vmatprep.subr.bf16.mxu0 %v1002
  %1419 = vmatpush1.bf16.msra.mxu0 %v1001
  %1420 = vmatprep.subr.bf16.mxu0 %v1018
  %1421 = vmatpush1.bf16.msra.mxu0 %v1017
  %1422 = vmatprep.subr.bf16.mxu0 %v1034
  %1423 = vmatpush1.bf16.msra.mxu0 %v1033
  %1424 = vmatprep.subr.bf16.mxu0 %v1050
  %1425 = vmatpush1.bf16.msra.mxu0 %v1049
  %1426 = vmatprep.subr.bf16.mxu0 %v1066
  %1427 = vmatpush1.bf16.msra.mxu0 %v1065
  %1428 = vmatprep.subr.bf16.mxu0 %v1295
  %1429 = vmatpush1.bf16.msra.mxu0 %v1292
  %1430 = vmatprep.subr.bf16.mxu0 0
  %1431 = vmatpush1.bf16.msra.mxu0 0
  %1432 = vmatprep.subr.bf16.mxu0 0
  %1433 = vmatpush1.bf16.msra.mxu0 0
  %1434 = vmatprep.subr.bf16.mxu0 0
  %1435 = vmatpush1.bf16.msra.mxu0 0
  %1436 = vmatprep.subr.bf16.mxu0 0
  %1437 = vmatpush1.bf16.msra.mxu0 0
  %1438 = vmatprep.mubr.bf16.mxu0 %v1273
  %1439 = vmatmul.mubr.bf16.gmra.mrb[0].mxu0 %v339
  %v1440 = vpop.f32.mrb[0].mxu0
  %v1441 = vadd.f32 %v246, %v1440
  %v1442 = vpop.f32.mrb[0].mxu0
  %v1443 = vadd.f32 %v250, %v1442
  %v1444 = vpop.f32.mrb[0].mxu0
  %v1445 = vadd.f32 %v246, %v1444
  %v1446 = vpop.f32.mrb[0].mxu0
  %v1447 = vadd.f32 %v250, %v1446
  %1448 = vmatprep.mubr.bf16.mxu0 %v1276
  %1449 = vmatmul.mubr.bf16.gmra.mrb[0].mxu0 %v341
  %v1450 = vpop.f32.mrb[0].mxu0
  %v1451 = vadd.f32 %v246, %v1450
  %v1452 = vpop.f32.mrb[0].mxu0
  %v1453 = vadd.f32 %v250, %v1452
  %v1454 = vpop.f32.mrb[0].mxu0
  %v1455 = vadd.f32 %v246, %v1454
  %v1456 = vpop.f32.mrb[0].mxu0
  %v1457 = vadd.f32 %v250, %v1456
  %1458 = vmatprep.mubr.bf16.mxu0 %v1279
  %1459 = vmatmul.mubr.bf16.gmra.mrb[0].mxu0 %v343
  %v1460 = vpop.f32.mrb[0].mxu0
  %v1461 = vadd.f32 %v246, %v1460
  %v1462 = vpop.f32.mrb[0].mxu0
  %v1463 = vadd.f32 %v250, %v1462
  %v1464 = vpop.f32.mrb[0].mxu0
  %v1465 = vadd.f32 %v246, %v1464
  %v1466 = vpop.f32.mrb[0].mxu0
  %v1467 = vadd.f32 %v250, %v1466
  %1468 = vmatprep.mubr.bf16.mxu0 %v1282
  %1469 = vmatmul.mubr.bf16.gmra.mrb[0].mxu0 %v345
  %v1470 = vpop.f32.mrb[0].mxu0
  %v1471 = vadd.f32 %v246, %v1470
  %v1472 = vpop.f32.mrb[0].mxu0
  %v1473 = vadd.f32 %v250, %v1472
  %v1474 = vpop.f32.mrb[0].mxu0
  %v1475 = vadd.f32 %v246, %v1474
  %v1476 = vpop.f32.mrb[0].mxu0
  %v1477 = vadd.f32 %v250, %v1476
  %1478 = vdwg.mxu0
  %1479 = vmatprep.subr.bf16.mxu0 %v908
  %1480 = vmatpush1.bf16.msra.mxu0 %v907
  %1481 = vmatprep.subr.bf16.mxu0 %v924
  %1482 = vmatpush1.bf16.msra.mxu0 %v923
  %1483 = vmatprep.subr.bf16.mxu0 %v940
  %1484 = vmatpush1.bf16.msra.mxu0 %v939
  %1485 = vmatprep.subr.bf16.mxu0 %v956
  %1486 = vmatpush1.bf16.msra.mxu0 %v955
  %1487 = vmatprep.subr.bf16.mxu0 %v972
  %1488 = vmatpush1.bf16.msra.mxu0 %v971
  %1489 = vmatprep.subr.bf16.mxu0 %v988
  %1490 = vmatpush1.bf16.msra.mxu0 %v987
  %1491 = vmatprep.subr.bf16.mxu0 %v1004
  %1492 = vmatpush1.bf16.msra.mxu0 %v1003
  %1493 = vmatprep.subr.bf16.mxu0 %v1020
  %1494 = vmatpush1.bf16.msra.mxu0 %v1019
  %1495 = vmatprep.subr.bf16.mxu0 %v1036
  %1496 = vmatpush1.bf16.msra.mxu0 %v1035
  %1497 = vmatprep.subr.bf16.mxu0 %v1052
  %1498 = vmatpush1.bf16.msra.mxu0 %v1051
  %1499 = vmatprep.subr.bf16.mxu0 %v1068
  %1500 = vmatpush1.bf16.msra.mxu0 %v1067
  %1501 = vmatprep.subr.bf16.mxu0 %v1301
  %1502 = vmatpush1.bf16.msra.mxu0 %v1298
  %1503 = vmatprep.subr.bf16.mxu0 0
  %1504 = vmatpush1.bf16.msra.mxu0 0
  %1505 = vmatprep.subr.bf16.mxu0 0
  %1506 = vmatpush1.bf16.msra.mxu0 0
  %1507 = vmatprep.subr.bf16.mxu0 0
  %1508 = vmatpush1.bf16.msra.mxu0 0
  %1509 = vmatprep.subr.bf16.mxu0 0
  %1510 = vmatpush1.bf16.msra.mxu0 0
  %1511 = vmatprep.mubr.bf16.mxu0 %v1273
  %1512 = vmatmul.mubr.bf16.gmra.mrb[0].mxu0 %v339
  %v1513 = vpop.f32.mrb[0].mxu0
  %v1514 = vadd.f32 %v254, %v1513
  %v1515 = vpop.f32.mrb[0].mxu0
  %v1516 = vadd.f32 %v258, %v1515
  %v1517 = vpop.f32.mrb[0].mxu0
  %v1518 = vadd.f32 %v254, %v1517
  %v1519 = vpop.f32.mrb[0].mxu0
  %v1520 = vadd.f32 %v258, %v1519
  %1521 = vmatprep.mubr.bf16.mxu0 %v1276
  %1522 = vmatmul.mubr.bf16.gmra.mrb[0].mxu0 %v341
  %v1523 = vpop.f32.mrb[0].mxu0
  %v1524 = vadd.f32 %v254, %v1523
  %v1525 = vpop.f32.mrb[0].mxu0
  %v1526 = vadd.f32 %v258, %v1525
  %v1527 = vpop.f32.mrb[0].mxu0
  %v1528 = vadd.f32 %v254, %v1527
  %v1529 = vpop.f32.mrb[0].mxu0
  %v1530 = vadd.f32 %v258, %v1529
  %1531 = vmatprep.mubr.bf16.mxu0 %v1279
  %1532 = vmatmul.mubr.bf16.gmra.mrb[0].mxu0 %v343
  %v1533 = vpop.f32.mrb[0].mxu0
  %v1534 = vadd.f32 %v254, %v1533
  %v1535 = vpop.f32.mrb[0].mxu0
  %v1536 = vadd.f32 %v258, %v1535
  %v1537 = vpop.f32.mrb[0].mxu0
  %v1538 = vadd.f32 %v254, %v1537
  %v1539 = vpop.f32.mrb[0].mxu0
  %v1540 = vadd.f32 %v258, %v1539
  %1541 = vmatprep.mubr.bf16.mxu0 %v1282
  %1542 = vmatmul.mubr.bf16.gmra.mrb[0].mxu0 %v345
  %v1543 = vpop.f32.mrb[0].mxu0
  %v1544 = vadd.f32 %v254, %v1543
  %v1545 = vpop.f32.mrb[0].mxu0
  %v1546 = vadd.f32 %v258, %v1545
  %v1547 = vpop.f32.mrb[0].mxu0
  %v1548 = vadd.f32 %v254, %v1547
  %v1549 = vpop.f32.mrb[0].mxu0
  %v1550 = vadd.f32 %v258, %v1549
  %1551 = vdwg.mxu0
  %1552 = vmatprep.subr.bf16.mxu0 %v910
  %1553 = vmatpush1.bf16.msra.mxu0 %v909
  %1554 = vmatprep.subr.bf16.mxu0 %v926
  %1555 = vmatpush1.bf16.msra.mxu0 %v925
  %1556 = vmatprep.subr.bf16.mxu0 %v942
  %1557 = vmatpush1.bf16.msra.mxu0 %v941
  %1558 = vmatprep.subr.bf16.mxu0 %v958
  %1559 = vmatpush1.bf16.msra.mxu0 %v957
  %1560 = vmatprep.subr.bf16.mxu0 %v974
  %1561 = vmatpush1.bf16.msra.mxu0 %v973
  %1562 = vmatprep.subr.bf16.mxu0 %v990
  %1563 = vmatpush1.bf16.msra.mxu0 %v989
  %1564 = vmatprep.subr.bf16.mxu0 %v1006
  %1565 = vmatpush1.bf16.msra.mxu0 %v1005
  %1566 = vmatprep.subr.bf16.mxu0 %v1022
  %1567 = vmatpush1.bf16.msra.mxu0 %v1021
  %1568 = vmatprep.subr.bf16.mxu0 %v1038
  %1569 = vmatpush1.bf16.msra.mxu0 %v1037
  %1570 = vmatprep.subr.bf16.mxu0 %v1054
  %1571 = vmatpush1.bf16.msra.mxu0 %v1053
  %1572 = vmatprep.subr.bf16.mxu0 %v1070
  %1573 = vmatpush1.bf16.msra.mxu0 %v1069
  %1574 = vmatprep.subr.bf16.mxu0 %v1307
  %1575 = vmatpush1.bf16.msra.mxu0 %v1304
  %1576 = vmatprep.subr.bf16.mxu0 0
  %1577 = vmatpush1.bf16.msra.mxu0 0
  %1578 = vmatprep.subr.bf16.mxu0 0
  %1579 = vmatpush1.bf16.msra.mxu0 0
  %1580 = vmatprep.subr.bf16.mxu0 0
  %1581 = vmatpush1.bf16.msra.mxu0 0
  %1582 = vmatprep.subr.bf16.mxu0 0
  %1583 = vmatpush1.bf16.msra.mxu0 0
  %1584 = vmatprep.mubr.bf16.mxu0 %v1273
  %1585 = vmatmul.mubr.bf16.gmra.mrb[0].mxu0 %v339
  %v1586 = vpop.f32.mrb[0].mxu0
  %v1587 = vadd.f32 %v262, %v1586
  %v1588 = vpop.f32.mrb[0].mxu0
  %v1589 = vadd.f32 %v266, %v1588
  %v1590 = vpop.f32.mrb[0].mxu0
  %v1591 = vadd.f32 %v262, %v1590
  %v1592 = vpop.f32.mrb[0].mxu0
  %v1593 = vadd.f32 %v266, %v1592
  %1594 = vmatprep.mubr.bf16.mxu0 %v1276
  %1595 = vmatmul.mubr.bf16.gmra.mrb[0].mxu0 %v341
  %v1596 = vpop.f32.mrb[0].mxu0
  %v1597 = vadd.f32 %v262, %v1596
  %v1598 = vpop.f32.mrb[0].mxu0
  %v1599 = vadd.f32 %v266, %v1598
  %v1600 = vpop.f32.mrb[0].mxu0
  %v1601 = vadd.f32 %v262, %v1600
  %v1602 = vpop.f32.mrb[0].mxu0
  %v1603 = vadd.f32 %v266, %v1602
  %1604 = vmatprep.mubr.bf16.mxu0 %v1279
  %1605 = vmatmul.mubr.bf16.gmra.mrb[0].mxu0 %v343
  %v1606 = vpop.f32.mrb[0].mxu0
  %v1607 = vadd.f32 %v262, %v1606
  %v1608 = vpop.f32.mrb[0].mxu0
  %v1609 = vadd.f32 %v266, %v1608
  %v1610 = vpop.f32.mrb[0].mxu0
  %v1611 = vadd.f32 %v262, %v1610
  %v1612 = vpop.f32.mrb[0].mxu0
  %v1613 = vadd.f32 %v266, %v1612
  %1614 = vmatprep.mubr.bf16.mxu0 %v1282
  %1615 = vmatmul.mubr.bf16.gmra.mrb[0].mxu0 %v345
  %v1616 = vpop.f32.mrb[0].mxu0
  %v1617 = vadd.f32 %v262, %v1616
  %v1618 = vpop.f32.mrb[0].mxu0
  %v1619 = vadd.f32 %v266, %v1618
  %v1620 = vpop.f32.mrb[0].mxu0
  %v1621 = vadd.f32 %v262, %v1620
  %v1622 = vpop.f32.mrb[0].mxu0
  %v1623 = vadd.f32 %v266, %v1622
  %1624 = vdwg.mxu0
  %1625 = vmatprep.subr.bf16.mxu0 %v912
  %1626 = vmatpush1.bf16.msra.mxu0 %v911
  %1627 = vmatprep.subr.bf16.mxu0 %v928
  %1628 = vmatpush1.bf16.msra.mxu0 %v927
  %1629 = vmatprep.subr.bf16.mxu0 %v944
  %1630 = vmatpush1.bf16.msra.mxu0 %v943
  %1631 = vmatprep.subr.bf16.mxu0 %v960
  %1632 = vmatpush1.bf16.msra.mxu0 %v959
  %1633 = vmatprep.subr.bf16.mxu0 %v976
  %1634 = vmatpush1.bf16.msra.mxu0 %v975
  %1635 = vmatprep.subr.bf16.mxu0 %v992
  %1636 = vmatpush1.bf16.msra.mxu0 %v991
  %1637 = vmatprep.subr.bf16.mxu0 %v1008
  %1638 = vmatpush1.bf16.msra.mxu0 %v1007
  %1639 = vmatprep.subr.bf16.mxu0 %v1024
  %1640 = vmatpush1.bf16.msra.mxu0 %v1023
  %1641 = vmatprep.subr.bf16.mxu0 %v1040
  %1642 = vmatpush1.bf16.msra.mxu0 %v1039
  %1643 = vmatprep.subr.bf16.mxu0 %v1056
  %1644 = vmatpush1.bf16.msra.mxu0 %v1055
  %1645 = vmatprep.subr.bf16.mxu0 %v1072
  %1646 = vmatpush1.bf16.msra.mxu0 %v1071
  %1647 = vmatprep.subr.bf16.mxu0 %v1313
  %1648 = vmatpush1.bf16.msra.mxu0 %v1310
  %1649 = vmatprep.subr.bf16.mxu0 0
  %1650 = vmatpush1.bf16.msra.mxu0 0
  %1651 = vmatprep.subr.bf16.mxu0 0
  %1652 = vmatpush1.bf16.msra.mxu0 0
  %1653 = vmatprep.subr.bf16.mxu0 0
  %1654 = vmatpush1.bf16.msra.mxu0 0
  %1655 = vmatprep.subr.bf16.mxu0 0
  %1656 = vmatpush1.bf16.msra.mxu0 0
  %1657 = vmatprep.mubr.bf16.mxu0 %v1273
  %1658 = vmatmul.mubr.bf16.gmra.mrb[0].mxu0 %v339
  %v1659 = vpop.f32.mrb[0].mxu0
  %v1660 = vadd.f32 %v270, %v1659
  %v1661 = vpop.f32.mrb[0].mxu0
  %v1662 = vadd.f32 %v274, %v1661
  %v1663 = vpop.f32.mrb[0].mxu0
  %v1664 = vadd.f32 %v270, %v1663
  %v1665 = vpop.f32.mrb[0].mxu0
  %v1666 = vadd.f32 %v274, %v1665
  %1667 = vmatprep.mubr.bf16.mxu0 %v1276
  %1668 = vmatmul.mubr.bf16.gmra.mrb[0].mxu0 %v341
  %v1669 = vpop.f32.mrb[0].mxu0
  %v1670 = vadd.f32 %v270, %v1669
  %v1671 = vpop.f32.mrb[0].mxu0
  %v1672 = vadd.f32 %v274, %v1671
  %v1673 = vpop.f32.mrb[0].mxu0
  %v1674 = vadd.f32 %v270, %v1673
  %v1675 = vpop.f32.mrb[0].mxu0
  %v1676 = vadd.f32 %v274, %v1675
  %1677 = vmatprep.mubr.bf16.mxu0 %v1279
  %1678 = vmatmul.mubr.bf16.gmra.mrb[0].mxu0 %v343
  %v1679 = vpop.f32.mrb[0].mxu0
  %v1680 = vadd.f32 %v270, %v1679
  %v1681 = vpop.f32.mrb[0].mxu0
  %v1682 = vadd.f32 %v274, %v1681
  %v1683 = vpop.f32.mrb[0].mxu0
  %v1684 = vadd.f32 %v270, %v1683
  %v1685 = vpop.f32.mrb[0].mxu0
  %v1686 = vadd.f32 %v274, %v1685
  %1687 = vmatprep.mubr.bf16.mxu0 %v1282
  %1688 = vmatmul.mubr.bf16.gmra.mrb[0].mxu0 %v345
  %v1689 = vpop.f32.mrb[0].mxu0
  %v1690 = vadd.f32 %v270, %v1689
  %v1691 = vpop.f32.mrb[0].mxu0
  %v1692 = vadd.f32 %v274, %v1691
  %v1693 = vpop.f32.mrb[0].mxu0
  %v1694 = vadd.f32 %v270, %v1693
  %v1695 = vpop.f32.mrb[0].mxu0
  %v1696 = vadd.f32 %v274, %v1695
  %1697 = vdwg.mxu0
  %1698 = vmatprep.subr.bf16.mxu0 %v914
  %1699 = vmatpush1.bf16.msra.mxu0 %v913
  %1700 = vmatprep.subr.bf16.mxu0 %v930
  %1701 = vmatpush1.bf16.msra.mxu0 %v929
  %1702 = vmatprep.subr.bf16.mxu0 %v946
  %1703 = vmatpush1.bf16.msra.mxu0 %v945
  %1704 = vmatprep.subr.bf16.mxu0 %v962
  %1705 = vmatpush1.bf16.msra.mxu0 %v961
  %1706 = vmatprep.subr.bf16.mxu0 %v978
  %1707 = vmatpush1.bf16.msra.mxu0 %v977
  %1708 = vmatprep.subr.bf16.mxu0 %v994
  %1709 = vmatpush1.bf16.msra.mxu0 %v993
  %1710 = vmatprep.subr.bf16.mxu0 %v1010
  %1711 = vmatpush1.bf16.msra.mxu0 %v1009
  %1712 = vmatprep.subr.bf16.mxu0 %v1026
  %1713 = vmatpush1.bf16.msra.mxu0 %v1025
  %1714 = vmatprep.subr.bf16.mxu0 %v1042
  %1715 = vmatpush1.bf16.msra.mxu0 %v1041
  %1716 = vmatprep.subr.bf16.mxu0 %v1058
  %1717 = vmatpush1.bf16.msra.mxu0 %v1057
  %1718 = vmatprep.subr.bf16.mxu0 %v1074
  %1719 = vmatpush1.bf16.msra.mxu0 %v1073
  %1720 = vmatprep.subr.bf16.mxu0 %v1319
  %1721 = vmatpush1.bf16.msra.mxu0 %v1316
  %1722 = vmatprep.subr.bf16.mxu0 0
  %1723 = vmatpush1.bf16.msra.mxu0 0
  %1724 = vmatprep.subr.bf16.mxu0 0
  %1725 = vmatpush1.bf16.msra.mxu0 0
  %1726 = vmatprep.subr.bf16.mxu0 0
  %1727 = vmatpush1.bf16.msra.mxu0 0
  %1728 = vmatprep.subr.bf16.mxu0 0
  %1729 = vmatpush1.bf16.msra.mxu0 0
  %1730 = vmatprep.mubr.bf16.mxu0 %v1273
  %1731 = vmatmul.mubr.bf16.gmra.mrb[0].mxu0 %v339
  %v1732 = vpop.f32.mrb[0].mxu0
  %v1733 = vadd.f32 %v278, %v1732
  %v1734 = vpop.f32.mrb[0].mxu0
  %v1735 = vadd.f32 %v282, %v1734
  %v1736 = vpop.f32.mrb[0].mxu0
  %v1737 = vadd.f32 %v278, %v1736
  %v1738 = vpop.f32.mrb[0].mxu0
  %v1739 = vadd.f32 %v282, %v1738
  %1740 = vmatprep.mubr.bf16.mxu0 %v1276
  %1741 = vmatmul.mubr.bf16.gmra.mrb[0].mxu0 %v341
  %v1742 = vpop.f32.mrb[0].mxu0
  %v1743 = vadd.f32 %v278, %v1742
  %v1744 = vpop.f32.mrb[0].mxu0
  %v1745 = vadd.f32 %v282, %v1744
  %v1746 = vpop.f32.mrb[0].mxu0
  %v1747 = vadd.f32 %v278, %v1746
  %v1748 = vpop.f32.mrb[0].mxu0
  %v1749 = vadd.f32 %v282, %v1748
  %1750 = vmatprep.mubr.bf16.mxu0 %v1279
  %1751 = vmatmul.mubr.bf16.gmra.mrb[0].mxu0 %v343
  %v1752 = vpop.f32.mrb[0].mxu0
  %v1753 = vadd.f32 %v278, %v1752
  %v1754 = vpop.f32.mrb[0].mxu0
  %v1755 = vadd.f32 %v282, %v1754
  %v1756 = vpop.f32.mrb[0].mxu0
  %v1757 = vadd.f32 %v278, %v1756
  %v1758 = vpop.f32.mrb[0].mxu0
  %v1759 = vadd.f32 %v282, %v1758
  %1760 = vmatprep.mubr.bf16.mxu0 %v1282
  %1761 = vmatmul.mubr.bf16.gmra.mrb[0].mxu0 %v345
  %v1762 = vpop.f32.mrb[0].mxu0
  %v1763 = vadd.f32 %v278, %v1762
  %v1764 = vpop.f32.mrb[0].mxu0
  %v1765 = vadd.f32 %v282, %v1764
  %v1766 = vpop.f32.mrb[0].mxu0
  %v1767 = vadd.f32 %v278, %v1766
  %v1768 = vpop.f32.mrb[0].mxu0
  %v1769 = vadd.f32 %v282, %v1768
  %1770 = vdwg.mxu0
  %1771 = vmatprep.subr.bf16.mxu0 %v916
  %1772 = vmatpush1.bf16.msra.mxu0 %v915
  %1773 = vmatprep.subr.bf16.mxu0 %v932
  %1774 = vmatpush1.bf16.msra.mxu0 %v931
  %1775 = vmatprep.subr.bf16.mxu0 %v948
  %1776 = vmatpush1.bf16.msra.mxu0 %v947
  %1777 = vmatprep.subr.bf16.mxu0 %v964
  %1778 = vmatpush1.bf16.msra.mxu0 %v963
  %1779 = vmatprep.subr.bf16.mxu0 %v980
  %1780 = vmatpush1.bf16.msra.mxu0 %v979
  %1781 = vmatprep.subr.bf16.mxu0 %v996
  %1782 = vmatpush1.bf16.msra.mxu0 %v995
  %1783 = vmatprep.subr.bf16.mxu0 %v1012
  %1784 = vmatpush1.bf16.msra.mxu0 %v1011
  %1785 = vmatprep.subr.bf16.mxu0 %v1028
  %1786 = vmatpush1.bf16.msra.mxu0 %v1027
  %1787 = vmatprep.subr.bf16.mxu0 %v1044
  %1788 = vmatpush1.bf16.msra.mxu0 %v1043
  %1789 = vmatprep.subr.bf16.mxu0 %v1060
  %1790 = vmatpush1.bf16.msra.mxu0 %v1059
  %1791 = vmatprep.subr.bf16.mxu0 %v1076
  %1792 = vmatpush1.bf16.msra.mxu0 %v1075
  %1793 = vmatprep.subr.bf16.mxu0 %v1325
  %1794 = vmatpush1.bf16.msra.mxu0 %v1322
  %1795 = vmatprep.subr.bf16.mxu0 0
  %1796 = vmatpush1.bf16.msra.mxu0 0
  %1797 = vmatprep.subr.bf16.mxu0 0
  %1798 = vmatpush1.bf16.msra.mxu0 0
  %1799 = vmatprep.subr.bf16.mxu0 0
  %1800 = vmatpush1.bf16.msra.mxu0 0
  %1801 = vmatprep.subr.bf16.mxu0 0
  %1802 = vmatpush1.bf16.msra.mxu0 0
  %1803 = vmatprep.mubr.bf16.mxu0 %v1273
  %1804 = vmatmul.mubr.bf16.gmra.mrb[0].mxu0 %v339
  %v1805 = vpop.f32.mrb[0].mxu0
  %v1806 = vadd.f32 %v286, %v1805
  %v1807 = vpop.f32.mrb[0].mxu0
  %v1808 = vadd.f32 %v290, %v1807
  %v1809 = vpop.f32.mrb[0].mxu0
  %v1810 = vadd.f32 %v286, %v1809
  %v1811 = vpop.f32.mrb[0].mxu0
  %v1812 = vadd.f32 %v290, %v1811
  %1813 = vmatprep.mubr.bf16.mxu0 %v1276
  %1814 = vmatmul.mubr.bf16.gmra.mrb[0].mxu0 %v341
  %v1815 = vpop.f32.mrb[0].mxu0
  %v1816 = vadd.f32 %v286, %v1815
  %v1817 = vpop.f32.mrb[0].mxu0
  %v1818 = vadd.f32 %v290, %v1817
  %v1819 = vpop.f32.mrb[0].mxu0
  %v1820 = vadd.f32 %v286, %v1819
  %v1821 = vpop.f32.mrb[0].mxu0
  %v1822 = vadd.f32 %v290, %v1821
  %1823 = vmatprep.mubr.bf16.mxu0 %v1279
  %1824 = vmatmul.mubr.bf16.gmra.mrb[0].mxu0 %v343
  %v1825 = vpop.f32.mrb[0].mxu0
  %v1826 = vadd.f32 %v286, %v1825
  %v1827 = vpop.f32.mrb[0].mxu0
  %v1828 = vadd.f32 %v290, %v1827
  %v1829 = vpop.f32.mrb[0].mxu0
  %v1830 = vadd.f32 %v286, %v1829
  %v1831 = vpop.f32.mrb[0].mxu0
  %v1832 = vadd.f32 %v290, %v1831
  %1833 = vmatprep.mubr.bf16.mxu0 %v1282
  %1834 = vmatmul.mubr.bf16.gmra.mrb[0].mxu0 %v345
  %v1835 = vpop.f32.mrb[0].mxu0
  %v1836 = vadd.f32 %v286, %v1835
  %v1837 = vpop.f32.mrb[0].mxu0
  %v1838 = vadd.f32 %v290, %v1837
  %v1839 = vpop.f32.mrb[0].mxu0
  %v1840 = vadd.f32 %v286, %v1839
  %v1841 = vpop.f32.mrb[0].mxu0
  %v1842 = vadd.f32 %v290, %v1841
  %1843 = vdwg.mxu0
  %1844 = vmatprep.subr.bf16.mxu0 %v918
  %1845 = vmatpush1.bf16.msra.mxu0 %v917
  %1846 = vmatprep.subr.bf16.mxu0 %v934
  %1847 = vmatpush1.bf16.msra.mxu0 %v933
  %1848 = vmatprep.subr.bf16.mxu0 %v950
  %1849 = vmatpush1.bf16.msra.mxu0 %v949
  %1850 = vmatprep.subr.bf16.mxu0 %v966
  %1851 = vmatpush1.bf16.msra.mxu0 %v965
  %1852 = vmatprep.subr.bf16.mxu0 %v982
  %1853 = vmatpush1.bf16.msra.mxu0 %v981
  %1854 = vmatprep.subr.bf16.mxu0 %v998
  %1855 = vmatpush1.bf16.msra.mxu0 %v997
  %1856 = vmatprep.subr.bf16.mxu0 %v1014
  %1857 = vmatpush1.bf16.msra.mxu0 %v1013
  %1858 = vmatprep.subr.bf16.mxu0 %v1030
  %1859 = vmatpush1.bf16.msra.mxu0 %v1029
  %1860 = vmatprep.subr.bf16.mxu0 %v1046
  %1861 = vmatpush1.bf16.msra.mxu0 %v1045
  %1862 = vmatprep.subr.bf16.mxu0 %v1062
  %1863 = vmatpush1.bf16.msra.mxu0 %v1061
  %1864 = vmatprep.subr.bf16.mxu0 %v1078
  %1865 = vmatpush1.bf16.msra.mxu0 %v1077
  %1866 = vmatprep.subr.bf16.mxu0 %v1331
  %1867 = vmatpush1.bf16.msra.mxu0 %v1328
  %1868 = vmatprep.subr.bf16.mxu0 0
  %1869 = vmatpush1.bf16.msra.mxu0 0
  %1870 = vmatprep.subr.bf16.mxu0 0
  %1871 = vmatpush1.bf16.msra.mxu0 0
  %1872 = vmatprep.subr.bf16.mxu0 0
  %1873 = vmatpush1.bf16.msra.mxu0 0
  %1874 = vmatprep.subr.bf16.mxu0 0
  %1875 = vmatpush1.bf16.msra.mxu0 0
  %1876 = vmatprep.mubr.bf16.mxu0 %v1273
  %1877 = vmatmul.mubr.bf16.gmra.mrb[0].mxu0 %v339
  %v1878 = vpop.f32.mrb[0].mxu0
  %v1879 = vadd.f32 %v294, %v1878
  %v1880 = vpop.f32.mrb[0].mxu0
  %v1881 = vadd.f32 %v298, %v1880
  %v1882 = vpop.f32.mrb[0].mxu0
  %v1883 = vadd.f32 %v294, %v1882
  %v1884 = vpop.f32.mrb[0].mxu0
  %v1885 = vadd.f32 %v298, %v1884
  %1886 = vmatprep.mubr.bf16.mxu0 %v1276
  %1887 = vmatmul.mubr.bf16.gmra.mrb[0].mxu0 %v341
  %v1888 = vpop.f32.mrb[0].mxu0
  %v1889 = vadd.f32 %v294, %v1888
  %v1890 = vpop.f32.mrb[0].mxu0
  %v1891 = vadd.f32 %v298, %v1890
  %v1892 = vpop.f32.mrb[0].mxu0
  %v1893 = vadd.f32 %v294, %v1892
  %v1894 = vpop.f32.mrb[0].mxu0
  %v1895 = vadd.f32 %v298, %v1894
  %1896 = vmatprep.mubr.bf16.mxu0 %v1279
  %1897 = vmatmul.mubr.bf16.gmra.mrb[0].mxu0 %v343
  %v1898 = vpop.f32.mrb[0].mxu0
  %v1899 = vadd.f32 %v294, %v1898
  %v1900 = vpop.f32.mrb[0].mxu0
  %v1901 = vadd.f32 %v298, %v1900
  %v1902 = vpop.f32.mrb[0].mxu0
  %v1903 = vadd.f32 %v294, %v1902
  %v1904 = vpop.f32.mrb[0].mxu0
  %v1905 = vadd.f32 %v298, %v1904
  %1906 = vmatprep.mubr.bf16.mxu0 %v1282
  %1907 = vmatmul.mubr.bf16.gmra.mrb[0].mxu0 %v345
  %v1908 = vpop.f32.mrb[0].mxu0
  %v1909 = vadd.f32 %v294, %v1908
  %v1910 = vpop.f32.mrb[0].mxu0
  %v1911 = vadd.f32 %v298, %v1910
  %v1912 = vpop.f32.mrb[0].mxu0
  %v1913 = vadd.f32 %v294, %v1912
  %v1914 = vpop.f32.mrb[0].mxu0
  %v1915 = vadd.f32 %v298, %v1914
  %1916 = vdwg.mxu0
  %v1917 = vmax.f32 %v1368, 0.0
  %v1918 = vmax.f32 %v1370, 0.0
  %v1919 = vmax.f32 %v1441, 0.0
  %v1920 = vmax.f32 %v1443, 0.0
  %v1921 = vmax.f32 %v1514, 0.0
  %v1922 = vmax.f32 %v1516, 0.0
  %v1923 = vmax.f32 %v1587, 0.0
  %v1924 = vmax.f32 %v1589, 0.0
  %v1925 = vmax.f32 %v1660, 0.0
  %v1926 = vmax.f32 %v1662, 0.0
  %v1927 = vmax.f32 %v1733, 0.0
  %v1928 = vmax.f32 %v1735, 0.0
  %v1929 = vmax.f32 %v1806, 0.0
  %v1930 = vmax.f32 %v1808, 0.0
  %v1931 = vmax.f32 %v1879, 0.0
  %v1932 = vmax.f32 %v1881, 0.0
  %v1933 = vmax.f32 %v1372, 0.0
  %v1934 = vmax.f32 %v1374, 0.0
  %v1935 = vmax.f32 %v1445, 0.0
  %v1936 = vmax.f32 %v1447, 0.0
  %v1937 = vmax.f32 %v1518, 0.0
  %v1938 = vmax.f32 %v1520, 0.0
  %v1939 = vmax.f32 %v1591, 0.0
  %v1940 = vmax.f32 %v1593, 0.0
  %v1941 = vmax.f32 %v1664, 0.0
  %v1942 = vmax.f32 %v1666, 0.0
  %v1943 = vmax.f32 %v1737, 0.0
  %v1944 = vmax.f32 %v1739, 0.0
  %v1945 = vmax.f32 %v1810, 0.0
  %v1946 = vmax.f32 %v1812, 0.0
  %v1947 = vmax.f32 %v1883, 0.0
  %v1948 = vmax.f32 %v1885, 0.0
  %v1949 = vmax.f32 %v1378, 0.0
  %v1950 = vmax.f32 %v1380, 0.0
  %v1951 = vmax.f32 %v1451, 0.0
  %v1952 = vmax.f32 %v1453, 0.0
  %v1953 = vmax.f32 %v1524, 0.0
  %v1954 = vmax.f32 %v1526, 0.0
  %v1955 = vmax.f32 %v1597, 0.0
  %v1956 = vmax.f32 %v1599, 0.0
  %v1957 = vmax.f32 %v1670, 0.0
  %v1958 = vmax.f32 %v1672, 0.0
  %v1959 = vmax.f32 %v1743, 0.0
  %v1960 = vmax.f32 %v1745, 0.0
  %v1961 = vmax.f32 %v1816, 0.0
  %v1962 = vmax.f32 %v1818, 0.0
  %v1963 = vmax.f32 %v1889, 0.0
  %v1964 = vmax.f32 %v1891, 0.0
  %v1965 = vmax.f32 %v1382, 0.0
  %v1966 = vmax.f32 %v1384, 0.0
  %v1967 = vmax.f32 %v1455, 0.0
  %v1968 = vmax.f32 %v1457, 0.0
  %v1969 = vmax.f32 %v1528, 0.0
  %v1970 = vmax.f32 %v1530, 0.0
  %v1971 = vmax.f32 %v1601, 0.0
  %v1972 = vmax.f32 %v1603, 0.0
  %v1973 = vmax.f32 %v1674, 0.0
  %v1974 = vmax.f32 %v1676, 0.0
  %v1975 = vmax.f32 %v1747, 0.0
  %v1976 = vmax.f32 %v1749, 0.0
  %v1977 = vmax.f32 %v1820, 0.0
  %v1978 = vmax.f32 %v1822, 0.0
  %v1979 = vmax.f32 %v1893, 0.0
  %v1980 = vmax.f32 %v1895, 0.0
  %v1981 = vmax.f32 %v1388, 0.0
  %v1982 = vmax.f32 %v1390, 0.0
  %v1983 = vmax.f32 %v1461, 0.0
  %v1984 = vmax.f32 %v1463, 0.0
  %v1985 = vmax.f32 %v1534, 0.0
  %v1986 = vmax.f32 %v1536, 0.0
  %v1987 = vmax.f32 %v1607, 0.0
  %v1988 = vmax.f32 %v1609, 0.0
  %v1989 = vmax.f32 %v1680, 0.0
  %v1990 = vmax.f32 %v1682, 0.0
  %v1991 = vmax.f32 %v1753, 0.0
  %v1992 = vmax.f32 %v1755, 0.0
  %v1993 = vmax.f32 %v1826, 0.0
  %v1994 = vmax.f32 %v1828, 0.0
  %v1995 = vmax.f32 %v1899, 0.0
  %v1996 = vmax.f32 %v1901, 0.0
  %v1997 = vmax.f32 %v1392, 0.0
  %v1998 = vmax.f32 %v1394, 0.0
  %v1999 = vmax.f32 %v1465, 0.0
  %v2000 = vmax.f32 %v1467, 0.0
  %v2001 = vmax.f32 %v1538, 0.0
  %v2002 = vmax.f32 %v1540, 0.0
  %v2003 = vmax.f32 %v1611, 0.0
  %v2004 = vmax.f32 %v1613, 0.0
  %v2005 = vmax.f32 %v1684, 0.0
  %v2006 = vmax.f32 %v1686, 0.0
  %v2007 = vmax.f32 %v1757, 0.0
  %v2008 = vmax.f32 %v1759, 0.0
  %v2009 = vmax.f32 %v1830, 0.0
  %v2010 = vmax.f32 %v1832, 0.0
  %v2011 = vmax.f32 %v1903, 0.0
  %v2012 = vmax.f32 %v1905, 0.0
  %v2013 = vmax.f32 %v1398, 0.0
  %v2014 = vmax.f32 %v1400, 0.0
  %v2015 = vmax.f32 %v1471, 0.0
  %v2016 = vmax.f32 %v1473, 0.0
  %v2017 = vmax.f32 %v1544, 0.0
  %v2018 = vmax.f32 %v1546, 0.0
  %v2019 = vmax.f32 %v1617, 0.0
  %v2020 = vmax.f32 %v1619, 0.0
  %v2021 = vmax.f32 %v1690, 0.0
  %v2022 = vmax.f32 %v1692, 0.0
  %v2023 = vmax.f32 %v1763, 0.0
  %v2024 = vmax.f32 %v1765, 0.0
  %v2025 = vmax.f32 %v1836, 0.0
  %v2026 = vmax.f32 %v1838, 0.0
  %v2027 = vmax.f32 %v1909, 0.0
  %v2028 = vmax.f32 %v1911, 0.0
  %v2029 = vmax.f32 %v1402, 0.0
  %v2030 = vmax.f32 %v1404, 0.0
  %v2031 = vmax.f32 %v1475, 0.0
  %v2032 = vmax.f32 %v1477, 0.0
  %v2033 = vmax.f32 %v1548, 0.0
  %v2034 = vmax.f32 %v1550, 0.0
  %v2035 = vmax.f32 %v1621, 0.0
  %v2036 = vmax.f32 %v1623, 0.0
  %v2037 = vmax.f32 %v1694, 0.0
  %v2038 = vmax.f32 %v1696, 0.0
  %v2039 = vmax.f32 %v1767, 0.0
  %v2040 = vmax.f32 %v1769, 0.0
  %v2041 = vmax.f32 %v1840, 0.0
  %v2042 = vmax.f32 %v1842, 0.0
  %v2043 = vmax.f32 %v1913, 0.0
  %v2044 = vmax.f32 %v1915, 0.0
  %v2045 = vmax.f32 %v1917, %v1919
  %v2046 = vmax.f32 %v1918, %v1920
  %v2047 = vmax.f32 %v1933, %v1935
  %v2048 = vmax.f32 %v1934, %v1936
  %v2049 = vmax.f32 %v1949, %v1951
  %v2050 = vmax.f32 %v1950, %v1952
  %v2051 = vmax.f32 %v1965, %v1967
  %v2052 = vmax.f32 %v1966, %v1968
  %v2053 = vmax.f32 %v1981, %v1983
  %v2054 = vmax.f32 %v1982, %v1984
  %v2055 = vmax.f32 %v1997, %v1999
  %v2056 = vmax.f32 %v1998, %v2000
  %v2057 = vmax.f32 %v2013, %v2015
  %v2058 = vmax.f32 %v2014, %v2016
  %v2059 = vmax.f32 %v2029, %v2031
  %v2060 = vmax.f32 %v2030, %v2032
  %v2061 = vmax.f32 %v1921, %v1923
  %v2062 = vmax.f32 %v1922, %v1924
  %v2063 = vmax.f32 %v1937, %v1939
  %v2064 = vmax.f32 %v1938, %v1940
  %v2065 = vmax.f32 %v1953, %v1955
  %v2066 = vmax.f32 %v1954, %v1956
  %v2067 = vmax.f32 %v1969, %v1971
  %v2068 = vmax.f32 %v1970, %v1972
  %v2069 = vmax.f32 %v1985, %v1987
  %v2070 = vmax.f32 %v1986, %v1988
  %v2071 = vmax.f32 %v2001, %v2003
  %v2072 = vmax.f32 %v2002, %v2004
  %v2073 = vmax.f32 %v2017, %v2019
  %v2074 = vmax.f32 %v2018, %v2020
  %v2075 = vmax.f32 %v2033, %v2035
  %v2076 = vmax.f32 %v2034, %v2036
  %v2077 = vmax.f32 %v2045, %v2061
  %v2078 = vmax.f32 %v2046, %v2062
  %v2079 = vmax.f32 %v2047, %v2063
  %v2080 = vmax.f32 %v2048, %v2064
  %v2081 = vmax.f32 %v2049, %v2065
  %v2082 = vmax.f32 %v2050, %v2066
  %v2083 = vmax.f32 %v2051, %v2067
  %v2084 = vmax.f32 %v2052, %v2068
  %v2085 = vmax.f32 %v2053, %v2069
  %v2086 = vmax.f32 %v2054, %v2070
  %v2087 = vmax.f32 %v2055, %v2071
  %v2088 = vmax.f32 %v2056, %v2072
  %v2089 = vmax.f32 %v2057, %v2073
  %v2090 = vmax.f32 %v2058, %v2074
  %v2091 = vmax.f32 %v2059, %v2075
  %v2092 = vmax.f32 %v2060, %v2076
  %v2093 = vmax.f32 %v1925, %v1927
  %v2094 = vmax.f32 %v1926, %v1928
  %v2095 = vmax.f32 %v1941, %v1943
  %v2096 = vmax.f32 %v1942, %v1944
  %v2097 = vmax.f32 %v1957, %v1959
  %v2098 = vmax.f32 %v1958, %v1960
  %v2099 = vmax.f32 %v1973, %v1975
  %v2100 = vmax.f32 %v1974, %v1976
  %v2101 = vmax.f32 %v1989, %v1991
  %v2102 = vmax.f32 %v1990, %v1992
  %v2103 = vmax.f32 %v2005, %v2007
  %v2104 = vmax.f32 %v2006, %v2008
  %v2105 = vmax.f32 %v2021, %v2023
  %v2106 = vmax.f32 %v2022, %v2024
  %v2107 = vmax.f32 %v2037, %v2039
  %v2108 = vmax.f32 %v2038, %v2040
  %v2109 = vmax.f32 %v1929, %v1931
  %v2110 = vmax.f32 %v1930, %v1932
  %v2111 = vmax.f32 %v1945, %v1947
  %v2112 = vmax.f32 %v1946, %v1948
  %v2113 = vmax.f32 %v1961, %v1963
  %v2114 = vmax.f32 %v1962, %v1964
  %v2115 = vmax.f32 %v1977, %v1979
  %v2116 = vmax.f32 %v1978, %v1980
  %v2117 = vmax.f32 %v1993, %v1995
  %v2118 = vmax.f32 %v1994, %v1996
  %v2119 = vmax.f32 %v2009, %v2011
  %v2120 = vmax.f32 %v2010, %v2012
  %v2121 = vmax.f32 %v2025, %v2027
  %v2122 = vmax.f32 %v2026, %v2028
  %v2123 = vmax.f32 %v2041, %v2043
  %v2124 = vmax.f32 %v2042, %v2044
  %v2125 = vmax.f32 %v2093, %v2109
  %v2126 = vmax.f32 %v2094, %v2110
  %v2127 = vmax.f32 %v2095, %v2111
  %v2128 = vmax.f32 %v2096, %v2112
  %v2129 = vmax.f32 %v2097, %v2113
  %v2130 = vmax.f32 %v2098, %v2114
  %v2131 = vmax.f32 %v2099, %v2115
  %v2132 = vmax.f32 %v2100, %v2116
  %v2133 = vmax.f32 %v2101, %v2117
  %v2134 = vmax.f32 %v2102, %v2118
  %v2135 = vmax.f32 %v2103, %v2119
  %v2136 = vmax.f32 %v2104, %v2120
  %v2137 = vmax.f32 %v2105, %v2121
  %v2138 = vmax.f32 %v2106, %v2122
  %v2139 = vmax.f32 %v2107, %v2123
  %v2140 = vmax.f32 %v2108, %v2124
  %v2141 = vld [vmem:[%s3] sm:$0xff]
  %v2142 = vld [vmem:[%s3 + $0x8] sm:$0xff]
  %v2143 = vld [vmem:[%s3 + $0x10] sm:$0xff]
  %v2144 = vld [vmem:[%s3 + $0x18] sm:$0xff]
  %v2145 = vmul.f32 %v2077, %v2141
  %v2146 = vmul.f32 %v2078, %v2142
  %v2147 = vmul.f32 %v2125, %v2143
  %v2148 = vmul.f32 %v2126, %v2144
  %v2149 = vmul.f32 %v2079, %v2141
  %v2150 = vmul.f32 %v2080, %v2142
  %v2151 = vmul.f32 %v2127, %v2143
  %v2152 = vmul.f32 %v2128, %v2144
  %v2153 = vmul.f32 %v2081, %v2141
  %v2154 = vmul.f32 %v2082, %v2142
  %v2155 = vmul.f32 %v2129, %v2143
  %v2156 = vmul.f32 %v2130, %v2144
  %v2157 = vmul.f32 %v2083, %v2141
  %v2158 = vmul.f32 %v2084, %v2142
  %v2159 = vmul.f32 %v2131, %v2143
  %v2160 = vmul.f32 %v2132, %v2144
  %v2161 = vmul.f32 %v2085, %v2141
  %v2162 = vmul.f32 %v2086, %v2142
  %v2163 = vmul.f32 %v2133, %v2143
  %v2164 = vmul.f32 %v2134, %v2144
  %v2165 = vmul.f32 %v2087, %v2141
  %v2166 = vmul.f32 %v2088, %v2142
  %v2167 = vmul.f32 %v2135, %v2143
  %v2168 = vmul.f32 %v2136, %v2144
  %v2169 = vmul.f32 %v2089, %v2141
  %v2170 = vmul.f32 %v2090, %v2142
  %v2171 = vmul.f32 %v2137, %v2143
  %v2172 = vmul.f32 %v2138, %v2144
  %v2173 = vmul.f32 %v2091, %v2141
  %v2174 = vmul.f32 %v2092, %v2142
  %v2175 = vmul.f32 %v2139, %v2143
  %v2176 = vmul.f32 %v2140, %v2144
  %v2177 = vpack.c.bf16 %v2145, %v2145
  %v2178 = vpack.c.bf16 %v2146, %v2146
  %v2179 = vpack.c.bf16 %v2147, %v2147
  %v2180 = vpack.c.bf16 %v2148, %v2148
  %v2181 = vpack.c.bf16 %v2149, %v2149
  %v2182 = vpack.c.bf16 %v2150, %v2150
  %v2183 = vpack.c.bf16 %v2151, %v2151
  %v2184 = vpack.c.bf16 %v2152, %v2152
  %v2185 = vpack.c.bf16 %v2153, %v2153
  %v2186 = vpack.c.bf16 %v2154, %v2154
  %v2187 = vpack.c.bf16 %v2155, %v2155
  %v2188 = vpack.c.bf16 %v2156, %v2156
  %v2189 = vpack.c.bf16 %v2157, %v2157
  %v2190 = vpack.c.bf16 %v2158, %v2158
  %v2191 = vpack.c.bf16 %v2159, %v2159
  %v2192 = vpack.c.bf16 %v2160, %v2160
  %v2193 = vpack.c.bf16 %v2161, %v2161
  %v2194 = vpack.c.bf16 %v2162, %v2162
  %v2195 = vpack.c.bf16 %v2163, %v2163
  %v2196 = vpack.c.bf16 %v2164, %v2164
  %v2197 = vpack.c.bf16 %v2165, %v2165
  %v2198 = vpack.c.bf16 %v2166, %v2166
  %v2199 = vpack.c.bf16 %v2167, %v2167
  %v2200 = vpack.c.bf16 %v2168, %v2168
  %v2201 = vpack.c.bf16 %v2169, %v2169
  %v2202 = vpack.c.bf16 %v2170, %v2170
  %v2203 = vpack.c.bf16 %v2171, %v2171
  %v2204 = vpack.c.bf16 %v2172, %v2172
  %v2205 = vpack.c.bf16 %v2173, %v2173
  %v2206 = vpack.c.bf16 %v2174, %v2174
  %v2207 = vpack.c.bf16 %v2175, %v2175
  %v2208 = vpack.c.bf16 %v2176, %v2176
  %v2241 = vunpack.c.l.b16 %v2177
  %v2242 = vunpack.c.l.b16 %v2178
  %v2243 = vunpack.c.l.b16 %v2179
  %v2244 = vunpack.c.l.b16 %v2180
  %v2245 = vunpack.c.l.b16 %v2181
  %v2246 = vunpack.c.l.b16 %v2182
  %v2247 = vunpack.c.l.b16 %v2183
  %v2248 = vunpack.c.l.b16 %v2184
  %v2249 = vunpack.c.l.b16 %v2185
  %v2250 = vunpack.c.l.b16 %v2186
  %v2251 = vunpack.c.l.b16 %v2187
  %v2252 = vunpack.c.l.b16 %v2188
  %v2253 = vunpack.c.l.b16 %v2189
  %v2254 = vunpack.c.l.b16 %v2190
  %v2255 = vunpack.c.l.b16 %v2191
  %v2256 = vunpack.c.l.b16 %v2192
  %v2257 = vunpack.c.l.b16 %v2193
  %v2258 = vunpack.c.l.b16 %v2194
  %v2259 = vunpack.c.l.b16 %v2195
  %v2260 = vunpack.c.l.b16 %v2196
  %v2261 = vunpack.c.l.b16 %v2197
  %v2262 = vunpack.c.l.b16 %v2198
  %v2263 = vunpack.c.l.b16 %v2199
  %v2264 = vunpack.c.l.b16 %v2200
  %v2265 = vunpack.c.l.b16 %v2201
  %v2266 = vunpack.c.l.b16 %v2202
  %v2267 = vunpack.c.l.b16 %v2203
  %v2268 = vunpack.c.l.b16 %v2204
  %v2269 = vunpack.c.l.b16 %v2205
  %v2270 = vunpack.c.l.b16 %v2206
  %v2271 = vunpack.c.l.b16 %v2207
  %v2272 = vunpack.c.l.b16 %v2208
  %v2273 = vld [vmem:[%s4] sm:$0xff]
  %v2274 = vld [vmem:[%s4 + $0x8] sm:$0xff]
  %v2275 = vld [vmem:[%s4 + $0x10] sm:$0xff]
  %v2276 = vld [vmem:[%s4 + $0x18] sm:$0xff]
  %v2277 = vld [vmem:[%s4 + $0x20] sm:$0xff]
  %v2278 = vld [vmem:[%s4 + $0x28] sm:$0xff]
  %v2279 = vld [vmem:[%s4 + $0x30] sm:$0xff]
  %v2280 = vld [vmem:[%s4 + $0x38] sm:$0xff]
  %v2281 = vld [vmem:[%s4 + $0x40] sm:$0xff]
  %v2282 = vld [vmem:[%s4 + $0x48] sm:$0xff]
  %v2283 = vld [vmem:[%s4 + $0x50] sm:$0xff]
  %v2284 = vld [vmem:[%s4 + $0x58] sm:$0xff]
  %v2285 = vld [vmem:[%s4 + $0x60] sm:$0xff]
  %v2286 = vld [vmem:[%s4 + $0x68] sm:$0xff]
  %v2287 = vld [vmem:[%s4 + $0x70] sm:$0xff]
  %v2288 = vld [vmem:[%s4 + $0x78] sm:$0xff]
  %v2289 = vld [vmem:[%s4 + $0x80] sm:$0xff]
  %v2290 = vld [vmem:[%s4 + $0x88] sm:$0xff]
  %v2291 = vld [vmem:[%s4 + $0x90] sm:$0xff]
  %v2292 = vld [vmem:[%s4 + $0x98] sm:$0xff]
  %v2293 = vld [vmem:[%s4 + $0xa0] sm:$0xff]
  %v2294 = vld [vmem:[%s4 + $0xa8] sm:$0xff]
  %v2295 = vld [vmem:[%s4 + $0xb0] sm:$0xff]
  %v2296 = vld [vmem:[%s4 + $0xb8] sm:$0xff]
  %v2297 = vld [vmem:[%s4 + $0xc0] sm:$0xff]
  %v2298 = vld [vmem:[%s4 + $0xc8] sm:$0xff]
  %v2299 = vld [vmem:[%s4 + $0xd0] sm:$0xff]
  %v2300 = vld [vmem:[%s4 + $0xd8] sm:$0xff]
  %v2301 = vld [vmem:[%s4 + $0xe0] sm:$0xff]
  %v2302 = vld [vmem:[%s4 + $0xe8] sm:$0xff]
  %v2303 = vld [vmem:[%s4 + $0xf0] sm:$0xff]
  %v2304 = vld [vmem:[%s4 + $0xf8] sm:$0xff]
  %v2305 = vld [vmem:[%s4 + $0x100] sm:$0xff]
  %v2306 = vld [vmem:[%s4 + $0x108] sm:$0xff]
  %v2307 = vld [vmem:[%s4 + $0x110] sm:$0xff]
  %v2308 = vld [vmem:[%s4 + $0x118] sm:$0xff]
  %v2309 = vld [vmem:[%s4 + $0x120] sm:$0xff]
  %v2310 = vld [vmem:[%s4 + $0x128] sm:$0xff]
  %v2311 = vld [vmem:[%s4 + $0x130] sm:$0xff]
  %v2312 = vld [vmem:[%s4 + $0x138] sm:$0xff]
  %v2313 = vld [vmem:[%s4 + $0x140] sm:$0xff]
  %v2314 = vld [vmem:[%s4 + $0x148] sm:$0xff]
  %v2315 = vld [vmem:[%s4 + $0x150] sm:$0xff]
  %v2316 = vld [vmem:[%s4 + $0x158] sm:$0xff]
  %v2317 = vld [vmem:[%s4 + $0x160] sm:$0xff]
  %v2318 = vld [vmem:[%s4 + $0x168] sm:$0xff]
  %v2319 = vld [vmem:[%s4 + $0x170] sm:$0xff]
  %v2320 = vld [vmem:[%s4 + $0x178] sm:$0xff]
  %v2321 = vld [vmem:[%s4 + $0x180] sm:$0xff]
  %v2322 = vld [vmem:[%s4 + $0x188] sm:$0xff]
  %v2323 = vld [vmem:[%s4 + $0x190] sm:$0xff]
  %v2324 = vld [vmem:[%s4 + $0x198] sm:$0xff]
  %v2325 = vld [vmem:[%s4 + $0x1a0] sm:$0xff]
  %v2326 = vld [vmem:[%s4 + $0x1a8] sm:$0xff]
  %v2327 = vld [vmem:[%s4 + $0x1b0] sm:$0xff]
  %v2328 = vld [vmem:[%s4 + $0x1b8] sm:$0xff]
  %v2329 = vld [vmem:[%s4 + $0x1c0] sm:$0xff]
  %v2330 = vld [vmem:[%s4 + $0x1c8] sm:$0xff]
  %v2331 = vld [vmem:[%s4 + $0x1d0] sm:$0xff]
  %v2332 = vld [vmem:[%s4 + $0x1d8] sm:$0xff]
  %v2333 = vld [vmem:[%s4 + $0x1e0] sm:$0xff]
  %v2334 = vld [vmem:[%s4 + $0x1e8] sm:$0xff]
  %v2335 = vld [vmem:[%s4 + $0x1f0] sm:$0xff]
  %v2336 = vld [vmem:[%s4 + $0x1f8] sm:$0xff]
  %v2337 = vld [vmem:[%s4 + $0x200] sm:$0xff]
  %v2338 = vld [vmem:[%s4 + $0x208] sm:$0xff]
  %v2339 = vld [vmem:[%s4 + $0x210] sm:$0xff]
  %v2340 = vld [vmem:[%s4 + $0x218] sm:$0xff]
  %v2341 = vld [vmem:[%s4 + $0x220] sm:$0xff]
  %v2342 = vld [vmem:[%s4 + $0x228] sm:$0xff]
  %v2343 = vld [vmem:[%s4 + $0x230] sm:$0xff]
  %v2344 = vld [vmem:[%s4 + $0x238] sm:$0xff]
  %v2345 = vld [vmem:[%s4 + $0x240] sm:$0xff]
  %v2346 = vld [vmem:[%s4 + $0x248] sm:$0xff]
  %v2347 = vld [vmem:[%s4 + $0x250] sm:$0xff]
  %v2348 = vld [vmem:[%s4 + $0x258] sm:$0xff]
  %v2349 = vld [vmem:[%s4 + $0x260] sm:$0xff]
  %v2350 = vld [vmem:[%s4 + $0x268] sm:$0xff]
  %v2351 = vld [vmem:[%s4 + $0x270] sm:$0xff]
  %v2352 = vld [vmem:[%s4 + $0x278] sm:$0xff]
  %v2353 = vld [vmem:[%s4 + $0x280] sm:$0xff]
  %v2354 = vld [vmem:[%s4 + $0x288] sm:$0xff]
  %v2355 = vld [vmem:[%s4 + $0x290] sm:$0xff]
  %v2356 = vld [vmem:[%s4 + $0x298] sm:$0xff]
  %v2357 = vld [vmem:[%s4 + $0x2a0] sm:$0xff]
  %v2358 = vld [vmem:[%s4 + $0x2a8] sm:$0xff]
  %v2359 = vld [vmem:[%s4 + $0x2b0] sm:$0xff]
  %v2360 = vld [vmem:[%s4 + $0x2b8] sm:$0xff]
  %v2361 = vld [vmem:[%s4 + $0x2c0] sm:$0xff]
  %v2362 = vld [vmem:[%s4 + $0x2c8] sm:$0xff]
  %v2363 = vld [vmem:[%s4 + $0x2d0] sm:$0xff]
  %v2364 = vld [vmem:[%s4 + $0x2d8] sm:$0xff]
  %v2365 = vld [vmem:[%s4 + $0x2e0] sm:$0xff]
  %v2366 = vld [vmem:[%s4 + $0x2e8] sm:$0xff]
  %v2367 = vld [vmem:[%s4 + $0x2f0] sm:$0xff]
  %v2368 = vld [vmem:[%s4 + $0x2f8] sm:$0xff]
  %v2369 = vld [vmem:[%s4 + $0x300] sm:$0xff]
  %v2370 = vld [vmem:[%s4 + $0x308] sm:$0xff]
  %v2371 = vld [vmem:[%s4 + $0x310] sm:$0xff]
  %v2372 = vld [vmem:[%s4 + $0x318] sm:$0xff]
  %v2373 = vld [vmem:[%s4 + $0x320] sm:$0xff]
  %v2374 = vld [vmem:[%s4 + $0x328] sm:$0xff]
  %v2375 = vld [vmem:[%s4 + $0x330] sm:$0xff]
  %v2376 = vld [vmem:[%s4 + $0x338] sm:$0xff]
  %v2377 = vld [vmem:[%s4 + $0x340] sm:$0xff]
  %v2378 = vld [vmem:[%s4 + $0x348] sm:$0xff]
  %v2379 = vld [vmem:[%s4 + $0x350] sm:$0xff]
  %v2380 = vld [vmem:[%s4 + $0x358] sm:$0xff]
  %v2381 = vld [vmem:[%s4 + $0x360] sm:$0xff]
  %v2382 = vld [vmem:[%s4 + $0x368] sm:$0xff]
  %v2383 = vld [vmem:[%s4 + $0x370] sm:$0xff]
  %v2384 = vld [vmem:[%s4 + $0x378] sm:$0xff]
  %v2385 = vld [vmem:[%s4 + $0x380] sm:$0xff]
  %v2386 = vld [vmem:[%s4 + $0x388] sm:$0xff]
  %v2387 = vld [vmem:[%s4 + $0x390] sm:$0xff]
  %v2388 = vld [vmem:[%s4 + $0x398] sm:$0xff]
  %v2389 = vld [vmem:[%s4 + $0x3a0] sm:$0xff]
  %v2390 = vld [vmem:[%s4 + $0x3a8] sm:$0xff]
  %v2391 = vld [vmem:[%s4 + $0x3b0] sm:$0xff]
  %v2392 = vld [vmem:[%s4 + $0x3b8] sm:$0xff]
  %v2393 = vld [vmem:[%s4 + $0x3c0] sm:$0xff]
  %v2394 = vld [vmem:[%s4 + $0x3c8] sm:$0xff]
  %v2395 = vld [vmem:[%s4 + $0x3d0] sm:$0xff]
  %v2396 = vld [vmem:[%s4 + $0x3d8] sm:$0xff]
  %v2397 = vld [vmem:[%s4 + $0x3e0] sm:$0xff]
  %v2398 = vld [vmem:[%s4 + $0x3e8] sm:$0xff]
  %v2399 = vld [vmem:[%s4 + $0x3f0] sm:$0xff]
  %v2400 = vld [vmem:[%s4 + $0x3f8] sm:$0xff]
  %v2401 = vld [vmem:[%s4 + $0x400] sm:$0xff]
  %v2402 = vld [vmem:[%s4 + $0x408] sm:$0xff]
  %v2403 = vld [vmem:[%s4 + $0x410] sm:$0xff]
  %v2404 = vld [vmem:[%s4 + $0x418] sm:$0xff]
  %v2405 = vld [vmem:[%s4 + $0x420] sm:$0xff]
  %v2406 = vld [vmem:[%s4 + $0x428] sm:$0xff]
  %v2407 = vld [vmem:[%s4 + $0x430] sm:$0xff]
  %v2408 = vld [vmem:[%s4 + $0x438] sm:$0xff]
  %v2409 = vld [vmem:[%s4 + $0x440] sm:$0xff]
  %v2410 = vld [vmem:[%s4 + $0x448] sm:$0xff]
  %v2411 = vld [vmem:[%s4 + $0x450] sm:$0xff]
  %v2412 = vld [vmem:[%s4 + $0x458] sm:$0xff]
  %v2413 = vld [vmem:[%s4 + $0x460] sm:$0xff]
  %v2414 = vld [vmem:[%s4 + $0x468] sm:$0xff]
  %v2415 = vld [vmem:[%s4 + $0x470] sm:$0xff]
  %v2416 = vld [vmem:[%s4 + $0x478] sm:$0xff]
  %v2417 = vld [vmem:[%s4 + $0x480] sm:$0xff]
  %v2418 = vld [vmem:[%s4 + $0x488] sm:$0xff]
  %v2419 = vld [vmem:[%s4 + $0x490] sm:$0xff]
  %v2420 = vld [vmem:[%s4 + $0x498] sm:$0xff]
  %v2421 = vld [vmem:[%s4 + $0x4a0] sm:$0xff]
  %v2422 = vld [vmem:[%s4 + $0x4a8] sm:$0xff]
  %v2423 = vld [vmem:[%s4 + $0x4b0] sm:$0xff]
  %v2424 = vld [vmem:[%s4 + $0x4b8] sm:$0xff]
  %v2425 = vld [vmem:[%s4 + $0x4c0] sm:$0xff]
  %v2426 = vld [vmem:[%s4 + $0x4c8] sm:$0xff]
  %v2427 = vld [vmem:[%s4 + $0x4d0] sm:$0xff]
  %v2428 = vld [vmem:[%s4 + $0x4d8] sm:$0xff]
  %v2429 = vld [vmem:[%s4 + $0x4e0] sm:$0xff]
  %v2430 = vld [vmem:[%s4 + $0x4e8] sm:$0xff]
  %v2431 = vld [vmem:[%s4 + $0x4f0] sm:$0xff]
  %v2432 = vld [vmem:[%s4 + $0x4f8] sm:$0xff]
  %v2433 = vld [vmem:[%s4 + $0x500] sm:$0xff]
  %v2434 = vld [vmem:[%s4 + $0x508] sm:$0xff]
  %v2435 = vld [vmem:[%s4 + $0x510] sm:$0xff]
  %v2436 = vld [vmem:[%s4 + $0x518] sm:$0xff]
  %v2437 = vld [vmem:[%s4 + $0x520] sm:$0xff]
  %v2438 = vld [vmem:[%s4 + $0x528] sm:$0xff]
  %v2439 = vld [vmem:[%s4 + $0x530] sm:$0xff]
  %v2440 = vld [vmem:[%s4 + $0x538] sm:$0xff]
  %v2441 = vld [vmem:[%s4 + $0x540] sm:$0xff]
  %v2442 = vld [vmem:[%s4 + $0x548] sm:$0xff]
  %v2443 = vld [vmem:[%s4 + $0x550] sm:$0xff]
  %v2444 = vld [vmem:[%s4 + $0x558] sm:$0xff]
  %v2445 = vld [vmem:[%s4 + $0x560] sm:$0xff]
  %v2446 = vld [vmem:[%s4 + $0x568] sm:$0xff]
  %v2447 = vld [vmem:[%s4 + $0x570] sm:$0xff]
  %v2448 = vld [vmem:[%s4 + $0x578] sm:$0xff]
  %v2449 = vld [vmem:[%s4 + $0x580] sm:$0xff]
  %v2450 = vld [vmem:[%s4 + $0x588] sm:$0xff]
  %v2451 = vld [vmem:[%s4 + $0x590] sm:$0xff]
  %v2452 = vld [vmem:[%s4 + $0x598] sm:$0xff]
  %v2453 = vld [vmem:[%s4 + $0x5a0] sm:$0xff]
  %v2454 = vld [vmem:[%s4 + $0x5a8] sm:$0xff]
  %v2455 = vld [vmem:[%s4 + $0x5b0] sm:$0xff]
  %v2456 = vld [vmem:[%s4 + $0x5b8] sm:$0xff]
  %v2457 = vld [vmem:[%s4 + $0x5c0] sm:$0xff]
  %v2458 = vld [vmem:[%s4 + $0x5c8] sm:$0xff]
  %v2459 = vld [vmem:[%s4 + $0x5d0] sm:$0xff]
  %v2460 = vld [vmem:[%s4 + $0x5d8] sm:$0xff]
  %v2461 = vld [vmem:[%s4 + $0x5e0] sm:$0xff]
  %v2462 = vld [vmem:[%s4 + $0x5e8] sm:$0xff]
  %v2463 = vld [vmem:[%s4 + $0x5f0] sm:$0xff]
  %v2464 = vld [vmem:[%s4 + $0x5f8] sm:$0xff]
  %v2465 = vld [vmem:[%s4 + $0x600] sm:$0xff]
  %v2466 = vld [vmem:[%s4 + $0x608] sm:$0xff]
  %v2467 = vld [vmem:[%s4 + $0x610] sm:$0xff]
  %v2468 = vld [vmem:[%s4 + $0x618] sm:$0xff]
  %v2469 = vld [vmem:[%s4 + $0x620] sm:$0xff]
  %v2470 = vld [vmem:[%s4 + $0x628] sm:$0xff]
  %v2471 = vld [vmem:[%s4 + $0x630] sm:$0xff]
  %v2472 = vld [vmem:[%s4 + $0x638] sm:$0xff]
  %v2473 = vld [vmem:[%s4 + $0x640] sm:$0xff]
  %v2474 = vld [vmem:[%s4 + $0x648] sm:$0xff]
  %v2475 = vld [vmem:[%s4 + $0x650] sm:$0xff]
  %v2476 = vld [vmem:[%s4 + $0x658] sm:$0xff]
  %v2477 = vld [vmem:[%s4 + $0x660] sm:$0xff]
  %v2478 = vld [vmem:[%s4 + $0x668] sm:$0xff]
  %v2479 = vld [vmem:[%s4 + $0x670] sm:$0xff]
  %v2480 = vld [vmem:[%s4 + $0x678] sm:$0xff]
  %v2481 = vld [vmem:[%s4 + $0x680] sm:$0xff]
  %v2482 = vld [vmem:[%s4 + $0x688] sm:$0xff]
  %v2483 = vld [vmem:[%s4 + $0x690] sm:$0xff]
  %v2484 = vld [vmem:[%s4 + $0x698] sm:$0xff]
  %v2485 = vld [vmem:[%s4 + $0x6a0] sm:$0xff]
  %v2486 = vld [vmem:[%s4 + $0x6a8] sm:$0xff]
  %v2487 = vld [vmem:[%s4 + $0x6b0] sm:$0xff]
  %v2488 = vld [vmem:[%s4 + $0x6b8] sm:$0xff]
  %v2489 = vld [vmem:[%s4 + $0x6c0] sm:$0xff]
  %v2490 = vld [vmem:[%s4 + $0x6c8] sm:$0xff]
  %v2491 = vld [vmem:[%s4 + $0x6d0] sm:$0xff]
  %v2492 = vld [vmem:[%s4 + $0x6d8] sm:$0xff]
  %v2493 = vld [vmem:[%s4 + $0x6e0] sm:$0xff]
  %v2494 = vld [vmem:[%s4 + $0x6e8] sm:$0xff]
  %v2495 = vld [vmem:[%s4 + $0x6f0] sm:$0xff]
  %v2496 = vld [vmem:[%s4 + $0x6f8] sm:$0xff]
  %v2497 = vld [vmem:[%s4 + $0x700] sm:$0xff]
  %v2498 = vld [vmem:[%s4 + $0x708] sm:$0xff]
  %v2499 = vld [vmem:[%s4 + $0x710] sm:$0xff]
  %v2500 = vld [vmem:[%s4 + $0x718] sm:$0xff]
  %v2501 = vld [vmem:[%s4 + $0x720] sm:$0xff]
  %v2502 = vld [vmem:[%s4 + $0x728] sm:$0xff]
  %v2503 = vld [vmem:[%s4 + $0x730] sm:$0xff]
  %v2504 = vld [vmem:[%s4 + $0x738] sm:$0xff]
  %v2505 = vld [vmem:[%s4 + $0x740] sm:$0xff]
  %v2506 = vld [vmem:[%s4 + $0x748] sm:$0xff]
  %v2507 = vld [vmem:[%s4 + $0x750] sm:$0xff]
  %v2508 = vld [vmem:[%s4 + $0x758] sm:$0xff]
  %v2509 = vld [vmem:[%s4 + $0x760] sm:$0xff]
  %v2510 = vld [vmem:[%s4 + $0x768] sm:$0xff]
  %v2511 = vld [vmem:[%s4 + $0x770] sm:$0xff]
  %v2512 = vld [vmem:[%s4 + $0x778] sm:$0xff]
  %v2513 = vld [vmem:[%s4 + $0x780] sm:$0xff]
  %v2514 = vld [vmem:[%s4 + $0x788] sm:$0xff]
  %v2515 = vld [vmem:[%s4 + $0x790] sm:$0xff]
  %v2516 = vld [vmem:[%s4 + $0x798] sm:$0xff]
  %v2517 = vld [vmem:[%s4 + $0x7a0] sm:$0xff]
  %v2518 = vld [vmem:[%s4 + $0x7a8] sm:$0xff]
  %v2519 = vld [vmem:[%s4 + $0x7b0] sm:$0xff]
  %v2520 = vld [vmem:[%s4 + $0x7b8] sm:$0xff]
  %v2521 = vld [vmem:[%s4 + $0x7c0] sm:$0xff]
  %v2522 = vld [vmem:[%s4 + $0x7c8] sm:$0xff]
  %v2523 = vld [vmem:[%s4 + $0x7d0] sm:$0xff]
  %v2524 = vld [vmem:[%s4 + $0x7d8] sm:$0xff]
  %v2525 = vld [vmem:[%s4 + $0x7e0] sm:$0xff]
  %v2526 = vld [vmem:[%s4 + $0x7e8] sm:$0xff]
  %v2527 = vld [vmem:[%s4 + $0x7f0] sm:$0xff]
  %v2528 = vld [vmem:[%s4 + $0x7f8] sm:$0xff]
  %v2529 = vpack.c.b16 %v2245, %v2241
  %v2530 = vpack.c.b16 %v2246, %v2242
  %v2531 = vpack.c.b16 %v2247, %v2243
  %v2532 = vpack.c.b16 %v2248, %v2244
  %v2533 = vpack.c.b16 %v2253, %v2249
  %v2534 = vpack.c.b16 %v2254, %v2250
  %v2535 = vpack.c.b16 %v2255, %v2251
  %v2536 = vpack.c.b16 %v2256, %v2252
  %v2537 = vpack.c.b16 %v2261, %v2257
  %v2538 = vpack.c.b16 %v2262, %v2258
  %v2539 = vpack.c.b16 %v2263, %v2259
  %v2540 = vpack.c.b16 %v2264, %v2260
  %v2541 = vpack.c.b16 %v2269, %v2265
  %v2542 = vpack.c.b16 %v2270, %v2266
  %v2543 = vpack.c.b16 %v2271, %v2267
  %v2544 = vpack.c.b16 %v2272, %v2268
  %v2817 = vunpack.c.l.b16 %v2273
  %v2818 = vunpack.c.h.b16 %v2273
  %v2819 = vunpack.c.l.b16 %v2274
  %v2820 = vunpack.c.h.b16 %v2274
  %v2821 = vunpack.c.l.b16 %v2275
  %v2822 = vunpack.c.h.b16 %v2275
  %v2823 = vunpack.c.l.b16 %v2276
  %v2824 = vunpack.c.h.b16 %v2276
  %v2825 = vunpack.c.l.b16 %v2277
  %v2826 = vunpack.c.h.b16 %v2277
  %v2827 = vunpack.c.l.b16 %v2278
  %v2828 = vunpack.c.h.b16 %v2278
  %v2829 = vunpack.c.l.b16 %v2279
  %v2830 = vunpack.c.h.b16 %v2279
  %v2831 = vunpack.c.l.b16 %v2280
  %v2832 = vunpack.c.h.b16 %v2280
  %v2833 = vunpack.c.l.b16 %v2281
  %v2834 = vunpack.c.h.b16 %v2281
  %v2835 = vunpack.c.l.b16 %v2282
  %v2836 = vunpack.c.h.b16 %v2282
  %v2837 = vunpack.c.l.b16 %v2283
  %v2838 = vunpack.c.h.b16 %v2283
  %v2839 = vunpack.c.l.b16 %v2284
  %v2840 = vunpack.c.h.b16 %v2284
  %v2841 = vunpack.c.l.b16 %v2285
  %v2842 = vunpack.c.h.b16 %v2285
  %v2843 = vunpack.c.l.b16 %v2286
  %v2844 = vunpack.c.h.b16 %v2286
  %v2845 = vunpack.c.l.b16 %v2287
  %v2846 = vunpack.c.h.b16 %v2287
  %v2847 = vunpack.c.l.b16 %v2288
  %v2848 = vunpack.c.h.b16 %v2288
  %v2849 = vunpack.c.l.b16 %v2289
  %v2850 = vunpack.c.h.b16 %v2289
  %v2851 = vunpack.c.l.b16 %v2290
  %v2852 = vunpack.c.h.b16 %v2290
  %v2853 = vunpack.c.l.b16 %v2291
  %v2854 = vunpack.c.h.b16 %v2291
  %v2855 = vunpack.c.l.b16 %v2292
  %v2856 = vunpack.c.h.b16 %v2292
  %v2857 = vunpack.c.l.b16 %v2293
  %v2858 = vunpack.c.h.b16 %v2293
  %v2859 = vunpack.c.l.b16 %v2294
  %v2860 = vunpack.c.h.b16 %v2294
  %v2861 = vunpack.c.l.b16 %v2295
  %v2862 = vunpack.c.h.b16 %v2295
  %v2863 = vunpack.c.l.b16 %v2296
  %v2864 = vunpack.c.h.b16 %v2296
  %v2865 = vunpack.c.l.b16 %v2297
  %v2866 = vunpack.c.h.b16 %v2297
  %v2867 = vunpack.c.l.b16 %v2298
  %v2868 = vunpack.c.h.b16 %v2298
  %v2869 = vunpack.c.l.b16 %v2299
  %v2870 = vunpack.c.h.b16 %v2299
  %v2871 = vunpack.c.l.b16 %v2300
  %v2872 = vunpack.c.h.b16 %v2300
  %v2873 = vunpack.c.l.b16 %v2301
  %v2874 = vunpack.c.h.b16 %v2301
  %v2875 = vunpack.c.l.b16 %v2302
  %v2876 = vunpack.c.h.b16 %v2302
  %v2877 = vunpack.c.l.b16 %v2303
  %v2878 = vunpack.c.h.b16 %v2303
  %v2879 = vunpack.c.l.b16 %v2304
  %v2880 = vunpack.c.h.b16 %v2304
  %v2881 = vunpack.c.l.b16 %v2305
  %v2882 = vunpack.c.h.b16 %v2305
  %v2883 = vunpack.c.l.b16 %v2306
  %v2884 = vunpack.c.h.b16 %v2306
  %v2885 = vunpack.c.l.b16 %v2307
  %v2886 = vunpack.c.h.b16 %v2307
  %v2887 = vunpack.c.l.b16 %v2308
  %v2888 = vunpack.c.h.b16 %v2308
  %v2889 = vunpack.c.l.b16 %v2309
  %v2890 = vunpack.c.h.b16 %v2309
  %v2891 = vunpack.c.l.b16 %v2310
  %v2892 = vunpack.c.h.b16 %v2310
  %v2893 = vunpack.c.l.b16 %v2311
  %v2894 = vunpack.c.h.b16 %v2311
  %v2895 = vunpack.c.l.b16 %v2312
  %v2896 = vunpack.c.h.b16 %v2312
  %v2897 = vunpack.c.l.b16 %v2313
  %v2898 = vunpack.c.h.b16 %v2313
  %v2899 = vunpack.c.l.b16 %v2314
  %v2900 = vunpack.c.h.b16 %v2314
  %v2901 = vunpack.c.l.b16 %v2315
  %v2902 = vunpack.c.h.b16 %v2315
  %v2903 = vunpack.c.l.b16 %v2316
  %v2904 = vunpack.c.h.b16 %v2316
  %v2905 = vunpack.c.l.b16 %v2317
  %v2906 = vunpack.c.h.b16 %v2317
  %v2907 = vunpack.c.l.b16 %v2318
  %v2908 = vunpack.c.h.b16 %v2318
  %v2909 = vunpack.c.l.b16 %v2319
  %v2910 = vunpack.c.h.b16 %v2319
  %v2911 = vunpack.c.l.b16 %v2320
  %v2912 = vunpack.c.h.b16 %v2320
  %v2913 = vunpack.c.l.b16 %v2321
  %v2914 = vunpack.c.h.b16 %v2321
  %v2915 = vunpack.c.l.b16 %v2322
  %v2916 = vunpack.c.h.b16 %v2322
  %v2917 = vunpack.c.l.b16 %v2323
  %v2918 = vunpack.c.h.b16 %v2323
  %v2919 = vunpack.c.l.b16 %v2324
  %v2920 = vunpack.c.h.b16 %v2324
  %v2921 = vunpack.c.l.b16 %v2325
  %v2922 = vunpack.c.h.b16 %v2325
  %v2923 = vunpack.c.l.b16 %v2326
  %v2924 = vunpack.c.h.b16 %v2326
  %v2925 = vunpack.c.l.b16 %v2327
  %v2926 = vunpack.c.h.b16 %v2327
  %v2927 = vunpack.c.l.b16 %v2328
  %v2928 = vunpack.c.h.b16 %v2328
  %v2929 = vunpack.c.l.b16 %v2329
  %v2930 = vunpack.c.h.b16 %v2329
  %v2931 = vunpack.c.l.b16 %v2330
  %v2932 = vunpack.c.h.b16 %v2330
  %v2933 = vunpack.c.l.b16 %v2331
  %v2934 = vunpack.c.h.b16 %v2331
  %v2935 = vunpack.c.l.b16 %v2332
  %v2936 = vunpack.c.h.b16 %v2332
  %v2937 = vunpack.c.l.b16 %v2333
  %v2938 = vunpack.c.h.b16 %v2333
  %v2939 = vunpack.c.l.b16 %v2334
  %v2940 = vunpack.c.h.b16 %v2334
  %v2941 = vunpack.c.l.b16 %v2335
  %v2942 = vunpack.c.h.b16 %v2335
  %v2943 = vunpack.c.l.b16 %v2336
  %v2944 = vunpack.c.h.b16 %v2336
  %v2945 = vunpack.c.l.b16 %v2337
  %v2946 = vunpack.c.h.b16 %v2337
  %v2947 = vunpack.c.l.b16 %v2338
  %v2948 = vunpack.c.h.b16 %v2338
  %v2949 = vunpack.c.l.b16 %v2339
  %v2950 = vunpack.c.h.b16 %v2339
  %v2951 = vunpack.c.l.b16 %v2340
  %v2952 = vunpack.c.h.b16 %v2340
  %v2953 = vunpack.c.l.b16 %v2341
  %v2954 = vunpack.c.h.b16 %v2341
  %v2955 = vunpack.c.l.b16 %v2342
  %v2956 = vunpack.c.h.b16 %v2342
  %v2957 = vunpack.c.l.b16 %v2343
  %v2958 = vunpack.c.h.b16 %v2343
  %v2959 = vunpack.c.l.b16 %v2344
  %v2960 = vunpack.c.h.b16 %v2344
  %v2961 = vunpack.c.l.b16 %v2345
  %v2962 = vunpack.c.h.b16 %v2345
  %v2963 = vunpack.c.l.b16 %v2346
  %v2964 = vunpack.c.h.b16 %v2346
  %v2965 = vunpack.c.l.b16 %v2347
  %v2966 = vunpack.c.h.b16 %v2347
  %v2967 = vunpack.c.l.b16 %v2348
  %v2968 = vunpack.c.h.b16 %v2348
  %v2969 = vunpack.c.l.b16 %v2349
  %v2970 = vunpack.c.h.b16 %v2349
  %v2971 = vunpack.c.l.b16 %v2350
  %v2972 = vunpack.c.h.b16 %v2350
  %v2973 = vunpack.c.l.b16 %v2351
  %v2974 = vunpack.c.h.b16 %v2351
  %v2975 = vunpack.c.l.b16 %v2352
  %v2976 = vunpack.c.h.b16 %v2352
  %v2977 = vunpack.c.l.b16 %v2353
  %v2978 = vunpack.c.h.b16 %v2353
  %v2979 = vunpack.c.l.b16 %v2354
  %v2980 = vunpack.c.h.b16 %v2354
  %v2981 = vunpack.c.l.b16 %v2355
  %v2982 = vunpack.c.h.b16 %v2355
  %v2983 = vunpack.c.l.b16 %v2356
  %v2984 = vunpack.c.h.b16 %v2356
  %v2985 = vunpack.c.l.b16 %v2357
  %v2986 = vunpack.c.h.b16 %v2357
  %v2987 = vunpack.c.l.b16 %v2358
  %v2988 = vunpack.c.h.b16 %v2358
  %v2989 = vunpack.c.l.b16 %v2359
  %v2990 = vunpack.c.h.b16 %v2359
  %v2991 = vunpack.c.l.b16 %v2360
  %v2992 = vunpack.c.h.b16 %v2360
  %v2993 = vunpack.c.l.b16 %v2361
  %v2994 = vunpack.c.h.b16 %v2361
  %v2995 = vunpack.c.l.b16 %v2362
  %v2996 = vunpack.c.h.b16 %v2362
  %v2997 = vunpack.c.l.b16 %v2363
  %v2998 = vunpack.c.h.b16 %v2363
  %v2999 = vunpack.c.l.b16 %v2364
  %v3000 = vunpack.c.h.b16 %v2364
  %v3001 = vunpack.c.l.b16 %v2365
  %v3002 = vunpack.c.h.b16 %v2365
  %v3003 = vunpack.c.l.b16 %v2366
  %v3004 = vunpack.c.h.b16 %v2366
  %v3005 = vunpack.c.l.b16 %v2367
  %v3006 = vunpack.c.h.b16 %v2367
  %v3007 = vunpack.c.l.b16 %v2368
  %v3008 = vunpack.c.h.b16 %v2368
  %v3009 = vunpack.c.l.b16 %v2369
  %v3010 = vunpack.c.h.b16 %v2369
  %v3011 = vunpack.c.l.b16 %v2370
  %v3012 = vunpack.c.h.b16 %v2370
  %v3013 = vunpack.c.l.b16 %v2371
  %v3014 = vunpack.c.h.b16 %v2371
  %v3015 = vunpack.c.l.b16 %v2372
  %v3016 = vunpack.c.h.b16 %v2372
  %v3017 = vunpack.c.l.b16 %v2373
  %v3018 = vunpack.c.h.b16 %v2373
  %v3019 = vunpack.c.l.b16 %v2374
  %v3020 = vunpack.c.h.b16 %v2374
  %v3021 = vunpack.c.l.b16 %v2375
  %v3022 = vunpack.c.h.b16 %v2375
  %v3023 = vunpack.c.l.b16 %v2376
  %v3024 = vunpack.c.h.b16 %v2376
  %v3025 = vunpack.c.l.b16 %v2377
  %v3026 = vunpack.c.h.b16 %v2377
  %v3027 = vunpack.c.l.b16 %v2378
  %v3028 = vunpack.c.h.b16 %v2378
  %v3029 = vunpack.c.l.b16 %v2379
  %v3030 = vunpack.c.h.b16 %v2379
  %v3031 = vunpack.c.l.b16 %v2380
  %v3032 = vunpack.c.h.b16 %v2380
  %v3033 = vunpack.c.l.b16 %v2381
  %v3034 = vunpack.c.h.b16 %v2381
  %v3035 = vunpack.c.l.b16 %v2382
  %v3036 = vunpack.c.h.b16 %v2382
  %v3037 = vunpack.c.l.b16 %v2383
  %v3038 = vunpack.c.h.b16 %v2383
  %v3039 = vunpack.c.l.b16 %v2384
  %v3040 = vunpack.c.h.b16 %v2384
  %v3041 = vunpack.c.l.b16 %v2385
  %v3042 = vunpack.c.h.b16 %v2385
  %v3043 = vunpack.c.l.b16 %v2386
  %v3044 = vunpack.c.h.b16 %v2386
  %v3045 = vunpack.c.l.b16 %v2387
  %v3046 = vunpack.c.h.b16 %v2387
  %v3047 = vunpack.c.l.b16 %v2388
  %v3048 = vunpack.c.h.b16 %v2388
  %v3049 = vunpack.c.l.b16 %v2389
  %v3050 = vunpack.c.h.b16 %v2389
  %v3051 = vunpack.c.l.b16 %v2390
  %v3052 = vunpack.c.h.b16 %v2390
  %v3053 = vunpack.c.l.b16 %v2391
  %v3054 = vunpack.c.h.b16 %v2391
  %v3055 = vunpack.c.l.b16 %v2392
  %v3056 = vunpack.c.h.b16 %v2392
  %v3057 = vunpack.c.l.b16 %v2393
  %v3058 = vunpack.c.h.b16 %v2393
  %v3059 = vunpack.c.l.b16 %v2394
  %v3060 = vunpack.c.h.b16 %v2394
  %v3061 = vunpack.c.l.b16 %v2395
  %v3062 = vunpack.c.h.b16 %v2395
  %v3063 = vunpack.c.l.b16 %v2396
  %v3064 = vunpack.c.h.b16 %v2396
  %v3065 = vunpack.c.l.b16 %v2397
  %v3066 = vunpack.c.h.b16 %v2397
  %v3067 = vunpack.c.l.b16 %v2398
  %v3068 = vunpack.c.h.b16 %v2398
  %v3069 = vunpack.c.l.b16 %v2399
  %v3070 = vunpack.c.h.b16 %v2399
  %v3071 = vunpack.c.l.b16 %v2400
  %v3072 = vunpack.c.h.b16 %v2400
  %v3073 = vunpack.c.l.b16 %v2401
  %v3074 = vunpack.c.h.b16 %v2401
  %v3075 = vunpack.c.l.b16 %v2402
  %v3076 = vunpack.c.h.b16 %v2402
  %v3077 = vunpack.c.l.b16 %v2403
  %v3078 = vunpack.c.h.b16 %v2403
  %v3079 = vunpack.c.l.b16 %v2404
  %v3080 = vunpack.c.h.b16 %v2404
  %v3081 = vunpack.c.l.b16 %v2405
  %v3082 = vunpack.c.h.b16 %v2405
  %v3083 = vunpack.c.l.b16 %v2406
  %v3084 = vunpack.c.h.b16 %v2406
  %v3085 = vunpack.c.l.b16 %v2407
  %v3086 = vunpack.c.h.b16 %v2407
  %v3087 = vunpack.c.l.b16 %v2408
  %v3088 = vunpack.c.h.b16 %v2408
  %v3089 = vunpack.c.l.b16 %v2409
  %v3090 = vunpack.c.h.b16 %v2409
  %v3091 = vunpack.c.l.b16 %v2410
  %v3092 = vunpack.c.h.b16 %v2410
  %v3093 = vunpack.c.l.b16 %v2411
  %v3094 = vunpack.c.h.b16 %v2411
  %v3095 = vunpack.c.l.b16 %v2412
  %v3096 = vunpack.c.h.b16 %v2412
  %v3097 = vunpack.c.l.b16 %v2413
  %v3098 = vunpack.c.h.b16 %v2413
  %v3099 = vunpack.c.l.b16 %v2414
  %v3100 = vunpack.c.h.b16 %v2414
  %v3101 = vunpack.c.l.b16 %v2415
  %v3102 = vunpack.c.h.b16 %v2415
  %v3103 = vunpack.c.l.b16 %v2416
  %v3104 = vunpack.c.h.b16 %v2416
  %v3105 = vunpack.c.l.b16 %v2417
  %v3106 = vunpack.c.h.b16 %v2417
  %v3107 = vunpack.c.l.b16 %v2418
  %v3108 = vunpack.c.h.b16 %v2418
  %v3109 = vunpack.c.l.b16 %v2419
  %v3110 = vunpack.c.h.b16 %v2419
  %v3111 = vunpack.c.l.b16 %v2420
  %v3112 = vunpack.c.h.b16 %v2420
  %v3113 = vunpack.c.l.b16 %v2421
  %v3114 = vunpack.c.h.b16 %v2421
  %v3115 = vunpack.c.l.b16 %v2422
  %v3116 = vunpack.c.h.b16 %v2422
  %v3117 = vunpack.c.l.b16 %v2423
  %v3118 = vunpack.c.h.b16 %v2423
  %v3119 = vunpack.c.l.b16 %v2424
  %v3120 = vunpack.c.h.b16 %v2424
  %v3121 = vunpack.c.l.b16 %v2425
  %v3122 = vunpack.c.h.b16 %v2425
  %v3123 = vunpack.c.l.b16 %v2426
  %v3124 = vunpack.c.h.b16 %v2426
  %v3125 = vunpack.c.l.b16 %v2427
  %v3126 = vunpack.c.h.b16 %v2427
  %v3127 = vunpack.c.l.b16 %v2428
  %v3128 = vunpack.c.h.b16 %v2428
  %v3129 = vunpack.c.l.b16 %v2429
  %v3130 = vunpack.c.h.b16 %v2429
  %v3131 = vunpack.c.l.b16 %v2430
  %v3132 = vunpack.c.h.b16 %v2430
  %v3133 = vunpack.c.l.b16 %v2431
  %v3134 = vunpack.c.h.b16 %v2431
  %v3135 = vunpack.c.l.b16 %v2432
  %v3136 = vunpack.c.h.b16 %v2432
  %v3137 = vunpack.c.l.b16 %v2433
  %v3138 = vunpack.c.h.b16 %v2433
  %v3139 = vunpack.c.l.b16 %v2434
  %v3140 = vunpack.c.h.b16 %v2434
  %v3141 = vunpack.c.l.b16 %v2435
  %v3142 = vunpack.c.h.b16 %v2435
  %v3143 = vunpack.c.l.b16 %v2436
  %v3144 = vunpack.c.h.b16 %v2436
  %v3145 = vunpack.c.l.b16 %v2437
  %v3146 = vunpack.c.h.b16 %v2437
  %v3147 = vunpack.c.l.b16 %v2438
  %v3148 = vunpack.c.h.b16 %v2438
  %v3149 = vunpack.c.l.b16 %v2439
  %v3150 = vunpack.c.h.b16 %v2439
  %v3151 = vunpack.c.l.b16 %v2440
  %v3152 = vunpack.c.h.b16 %v2440
  %v3153 = vunpack.c.l.b16 %v2441
  %v3154 = vunpack.c.h.b16 %v2441
  %v3155 = vunpack.c.l.b16 %v2442
  %v3156 = vunpack.c.h.b16 %v2442
  %v3157 = vunpack.c.l.b16 %v2443
  %v3158 = vunpack.c.h.b16 %v2443
  %v3159 = vunpack.c.l.b16 %v2444
  %v3160 = vunpack.c.h.b16 %v2444
  %v3161 = vunpack.c.l.b16 %v2445
  %v3162 = vunpack.c.h.b16 %v2445
  %v3163 = vunpack.c.l.b16 %v2446
  %v3164 = vunpack.c.h.b16 %v2446
  %v3165 = vunpack.c.l.b16 %v2447
  %v3166 = vunpack.c.h.b16 %v2447
  %v3167 = vunpack.c.l.b16 %v2448
  %v3168 = vunpack.c.h.b16 %v2448
  %v3169 = vunpack.c.l.b16 %v2449
  %v3170 = vunpack.c.h.b16 %v2449
  %v3171 = vunpack.c.l.b16 %v2450
  %v3172 = vunpack.c.h.b16 %v2450
  %v3173 = vunpack.c.l.b16 %v2451
  %v3174 = vunpack.c.h.b16 %v2451
  %v3175 = vunpack.c.l.b16 %v2452
  %v3176 = vunpack.c.h.b16 %v2452
  %v3177 = vunpack.c.l.b16 %v2453
  %v3178 = vunpack.c.h.b16 %v2453
  %v3179 = vunpack.c.l.b16 %v2454
  %v3180 = vunpack.c.h.b16 %v2454
  %v3181 = vunpack.c.l.b16 %v2455
  %v3182 = vunpack.c.h.b16 %v2455
  %v3183 = vunpack.c.l.b16 %v2456
  %v3184 = vunpack.c.h.b16 %v2456
  %v3185 = vunpack.c.l.b16 %v2457
  %v3186 = vunpack.c.h.b16 %v2457
  %v3187 = vunpack.c.l.b16 %v2458
  %v3188 = vunpack.c.h.b16 %v2458
  %v3189 = vunpack.c.l.b16 %v2459
  %v3190 = vunpack.c.h.b16 %v2459
  %v3191 = vunpack.c.l.b16 %v2460
  %v3192 = vunpack.c.h.b16 %v2460
  %v3193 = vunpack.c.l.b16 %v2461
  %v3194 = vunpack.c.h.b16 %v2461
  %v3195 = vunpack.c.l.b16 %v2462
  %v3196 = vunpack.c.h.b16 %v2462
  %v3197 = vunpack.c.l.b16 %v2463
  %v3198 = vunpack.c.h.b16 %v2463
  %v3199 = vunpack.c.l.b16 %v2464
  %v3200 = vunpack.c.h.b16 %v2464
  %v3201 = vunpack.c.l.b16 %v2465
  %v3202 = vunpack.c.h.b16 %v2465
  %v3203 = vunpack.c.l.b16 %v2466
  %v3204 = vunpack.c.h.b16 %v2466
  %v3205 = vunpack.c.l.b16 %v2467
  %v3206 = vunpack.c.h.b16 %v2467
  %v3207 = vunpack.c.l.b16 %v2468
  %v3208 = vunpack.c.h.b16 %v2468
  %v3209 = vunpack.c.l.b16 %v2469
  %v3210 = vunpack.c.h.b16 %v2469
  %v3211 = vunpack.c.l.b16 %v2470
  %v3212 = vunpack.c.h.b16 %v2470
  %v3213 = vunpack.c.l.b16 %v2471
  %v3214 = vunpack.c.h.b16 %v2471
  %v3215 = vunpack.c.l.b16 %v2472
  %v3216 = vunpack.c.h.b16 %v2472
  %v3217 = vunpack.c.l.b16 %v2473
  %v3218 = vunpack.c.h.b16 %v2473
  %v3219 = vunpack.c.l.b16 %v2474
  %v3220 = vunpack.c.h.b16 %v2474
  %v3221 = vunpack.c.l.b16 %v2475
  %v3222 = vunpack.c.h.b16 %v2475
  %v3223 = vunpack.c.l.b16 %v2476
  %v3224 = vunpack.c.h.b16 %v2476
  %v3225 = vunpack.c.l.b16 %v2477
  %v3226 = vunpack.c.h.b16 %v2477
  %v3227 = vunpack.c.l.b16 %v2478
  %v3228 = vunpack.c.h.b16 %v2478
  %v3229 = vunpack.c.l.b16 %v2479
  %v3230 = vunpack.c.h.b16 %v2479
  %v3231 = vunpack.c.l.b16 %v2480
  %v3232 = vunpack.c.h.b16 %v2480
  %v3233 = vunpack.c.l.b16 %v2481
  %v3234 = vunpack.c.h.b16 %v2481
  %v3235 = vunpack.c.l.b16 %v2482
  %v3236 = vunpack.c.h.b16 %v2482
  %v3237 = vunpack.c.l.b16 %v2483
  %v3238 = vunpack.c.h.b16 %v2483
  %v3239 = vunpack.c.l.b16 %v2484
  %v3240 = vunpack.c.h.b16 %v2484
  %v3241 = vunpack.c.l.b16 %v2485
  %v3242 = vunpack.c.h.b16 %v2485
  %v3243 = vunpack.c.l.b16 %v2486
  %v3244 = vunpack.c.h.b16 %v2486
  %v3245 = vunpack.c.l.b16 %v2487
  %v3246 = vunpack.c.h.b16 %v2487
  %v3247 = vunpack.c.l.b16 %v2488
  %v3248 = vunpack.c.h.b16 %v2488
  %v3249 = vunpack.c.l.b16 %v2489
  %v3250 = vunpack.c.h.b16 %v2489
  %v3251 = vunpack.c.l.b16 %v2490
  %v3252 = vunpack.c.h.b16 %v2490
  %v3253 = vunpack.c.l.b16 %v2491
  %v3254 = vunpack.c.h.b16 %v2491
  %v3255 = vunpack.c.l.b16 %v2492
  %v3256 = vunpack.c.h.b16 %v2492
  %v3257 = vunpack.c.l.b16 %v2493
  %v3258 = vunpack.c.h.b16 %v2493
  %v3259 = vunpack.c.l.b16 %v2494
  %v3260 = vunpack.c.h.b16 %v2494
  %v3261 = vunpack.c.l.b16 %v2495
  %v3262 = vunpack.c.h.b16 %v2495
  %v3263 = vunpack.c.l.b16 %v2496
  %v3264 = vunpack.c.h.b16 %v2496
  %v3265 = vunpack.c.l.b16 %v2497
  %v3266 = vunpack.c.h.b16 %v2497
  %v3267 = vunpack.c.l.b16 %v2498
  %v3268 = vunpack.c.h.b16 %v2498
  %v3269 = vunpack.c.l.b16 %v2499
  %v3270 = vunpack.c.h.b16 %v2499
  %v3271 = vunpack.c.l.b16 %v2500
  %v3272 = vunpack.c.h.b16 %v2500
  %v3273 = vunpack.c.l.b16 %v2501
  %v3274 = vunpack.c.h.b16 %v2501
  %v3275 = vunpack.c.l.b16 %v2502
  %v3276 = vunpack.c.h.b16 %v2502
  %v3277 = vunpack.c.l.b16 %v2503
  %v3278 = vunpack.c.h.b16 %v2503
  %v3279 = vunpack.c.l.b16 %v2504
  %v3280 = vunpack.c.h.b16 %v2504
  %v3281 = vunpack.c.l.b16 %v2505
  %v3282 = vunpack.c.h.b16 %v2505
  %v3283 = vunpack.c.l.b16 %v2506
  %v3284 = vunpack.c.h.b16 %v2506
  %v3285 = vunpack.c.l.b16 %v2507
  %v3286 = vunpack.c.h.b16 %v2507
  %v3287 = vunpack.c.l.b16 %v2508
  %v3288 = vunpack.c.h.b16 %v2508
  %v3289 = vunpack.c.l.b16 %v2509
  %v3290 = vunpack.c.h.b16 %v2509
  %v3291 = vunpack.c.l.b16 %v2510
  %v3292 = vunpack.c.h.b16 %v2510
  %v3293 = vunpack.c.l.b16 %v2511
  %v3294 = vunpack.c.h.b16 %v2511
  %v3295 = vunpack.c.l.b16 %v2512
  %v3296 = vunpack.c.h.b16 %v2512
  %v3297 = vunpack.c.l.b16 %v2513
  %v3298 = vunpack.c.h.b16 %v2513
  %v3299 = vunpack.c.l.b16 %v2514
  %v3300 = vunpack.c.h.b16 %v2514
  %v3301 = vunpack.c.l.b16 %v2515
  %v3302 = vunpack.c.h.b16 %v2515
  %v3303 = vunpack.c.l.b16 %v2516
  %v3304 = vunpack.c.h.b16 %v2516
  %v3305 = vunpack.c.l.b16 %v2517
  %v3306 = vunpack.c.h.b16 %v2517
  %v3307 = vunpack.c.l.b16 %v2518
  %v3308 = vunpack.c.h.b16 %v2518
  %v3309 = vunpack.c.l.b16 %v2519
  %v3310 = vunpack.c.h.b16 %v2519
  %v3311 = vunpack.c.l.b16 %v2520
  %v3312 = vunpack.c.h.b16 %v2520
  %v3313 = vunpack.c.l.b16 %v2521
  %v3314 = vunpack.c.h.b16 %v2521
  %v3315 = vunpack.c.l.b16 %v2522
  %v3316 = vunpack.c.h.b16 %v2522
  %v3317 = vunpack.c.l.b16 %v2523
  %v3318 = vunpack.c.h.b16 %v2523
  %v3319 = vunpack.c.l.b16 %v2524
  %v3320 = vunpack.c.h.b16 %v2524
  %v3321 = vunpack.c.l.b16 %v2525
  %v3322 = vunpack.c.h.b16 %v2525
  %v3323 = vunpack.c.l.b16 %v2526
  %v3324 = vunpack.c.h.b16 %v2526
  %v3325 = vunpack.c.l.b16 %v2527
  %v3326 = vunpack.c.h.b16 %v2527
  %v3327 = vunpack.c.l.b16 %v2528
  %v3328 = vunpack.c.h.b16 %v2528
  %v3329 = vpack.c.b16 %v2825, %v2817
  %v3330 = vpack.c.b16 %v2826, %v2818
  %v3331 = vpack.c.b16 %v2827, %v2819
  %v3332 = vpack.c.b16 %v2828, %v2820
  %v3333 = vpack.c.b16 %v2829, %v2821
  %v3334 = vpack.c.b16 %v2830, %v2822
  %v3335 = vpack.c.b16 %v2831, %v2823
  %v3336 = vpack.c.b16 %v2832, %v2824
  %v3337 = vpack.c.b16 %v2841, %v2833
  %v3338 = vpack.c.b16 %v2842, %v2834
  %v3339 = vpack.c.b16 %v2843, %v2835
  %v3340 = vpack.c.b16 %v2844, %v2836
  %v3341 = vpack.c.b16 %v2845, %v2837
  %v3342 = vpack.c.b16 %v2846, %v2838
  %v3343 = vpack.c.b16 %v2847, %v2839
  %v3344 = vpack.c.b16 %v2848, %v2840
  %v3345 = vpack.c.b16 %v2857, %v2849
  %v3346 = vpack.c.b16 %v2858, %v2850
  %v3347 = vpack.c.b16 %v2859, %v2851
  %v3348 = vpack.c.b16 %v2860, %v2852
  %v3349 = vpack.c.b16 %v2861, %v2853
  %v3350 = vpack.c.b16 %v2862, %v2854
  %v3351 = vpack.c.b16 %v2863, %v2855
  %v3352 = vpack.c.b16 %v2864, %v2856
  %v3353 = vpack.c.b16 %v2873, %v2865
  %v3354 = vpack.c.b16 %v2874, %v2866
  %v3355 = vpack.c.b16 %v2875, %v2867
  %v3356 = vpack.c.b16 %v2876, %v2868
  %v3357 = vpack.c.b16 %v2877, %v2869
  %v3358 = vpack.c.b16 %v2878, %v2870
  %v3359 = vpack.c.b16 %v2879, %v2871
  %v3360 = vpack.c.b16 %v2880, %v2872
  %v3361 = vpack.c.b16 %v2889, %v2881
  %v3362 = vpack.c.b16 %v2890, %v2882
  %v3363 = vpack.c.b16 %v2891, %v2883
  %v3364 = vpack.c.b16 %v2892, %v2884
  %v3365 = vpack.c.b16 %v2893, %v2885
  %v3366 = vpack.c.b16 %v2894, %v2886
  %v3367 = vpack.c.b16 %v2895, %v2887
  %v3368 = vpack.c.b16 %v2896, %v2888
  %v3369 = vpack.c.b16 %v2905, %v2897
  %v3370 = vpack.c.b16 %v2906, %v2898
  %v3371 = vpack.c.b16 %v2907, %v2899
  %v3372 = vpack.c.b16 %v2908, %v2900
  %v3373 = vpack.c.b16 %v2909, %v2901
  %v3374 = vpack.c.b16 %v2910, %v2902
  %v3375 = vpack.c.b16 %v2911, %v2903
  %v3376 = vpack.c.b16 %v2912, %v2904
  %v3377 = vpack.c.b16 %v2921, %v2913
  %v3378 = vpack.c.b16 %v2922, %v2914
  %v3379 = vpack.c.b16 %v2923, %v2915
  %v3380 = vpack.c.b16 %v2924, %v2916
  %v3381 = vpack.c.b16 %v2925, %v2917
  %v3382 = vpack.c.b16 %v2926, %v2918
  %v3383 = vpack.c.b16 %v2927, %v2919
  %v3384 = vpack.c.b16 %v2928, %v2920
  %v3385 = vpack.c.b16 %v2937, %v2929
  %v3386 = vpack.c.b16 %v2938, %v2930
  %v3387 = vpack.c.b16 %v2939, %v2931
  %v3388 = vpack.c.b16 %v2940, %v2932
  %v3389 = vpack.c.b16 %v2941, %v2933
  %v3390 = vpack.c.b16 %v2942, %v2934
  %v3391 = vpack.c.b16 %v2943, %v2935
  %v3392 = vpack.c.b16 %v2944, %v2936
  %v3393 = vpack.c.b16 %v2953, %v2945
  %v3394 = vpack.c.b16 %v2954, %v2946
  %v3395 = vpack.c.b16 %v2955, %v2947
  %v3396 = vpack.c.b16 %v2956, %v2948
  %v3397 = vpack.c.b16 %v2957, %v2949
  %v3398 = vpack.c.b16 %v2958, %v2950
  %v3399 = vpack.c.b16 %v2959, %v2951
  %v3400 = vpack.c.b16 %v2960, %v2952
  %v3401 = vpack.c.b16 %v2969, %v2961
  %v3402 = vpack.c.b16 %v2970, %v2962
  %v3403 = vpack.c.b16 %v2971, %v2963
  %v3404 = vpack.c.b16 %v2972, %v2964
  %v3405 = vpack.c.b16 %v2973, %v2965
  %v3406 = vpack.c.b16 %v2974, %v2966
  %v3407 = vpack.c.b16 %v2975, %v2967
  %v3408 = vpack.c.b16 %v2976, %v2968
  %v3409 = vpack.c.b16 %v2985, %v2977
  %v3410 = vpack.c.b16 %v2986, %v2978
  %v3411 = vpack.c.b16 %v2987, %v2979
  %v3412 = vpack.c.b16 %v2988, %v2980
  %v3413 = vpack.c.b16 %v2989, %v2981
  %v3414 = vpack.c.b16 %v2990, %v2982
  %v3415 = vpack.c.b16 %v2991, %v2983
  %v3416 = vpack.c.b16 %v2992, %v2984
  %v3417 = vpack.c.b16 %v3001, %v2993
  %v3418 = vpack.c.b16 %v3002, %v2994
  %v3419 = vpack.c.b16 %v3003, %v2995
  %v3420 = vpack.c.b16 %v3004, %v2996
  %v3421 = vpack.c.b16 %v3005, %v2997
  %v3422 = vpack.c.b16 %v3006, %v2998
  %v3423 = vpack.c.b16 %v3007, %v2999
  %v3424 = vpack.c.b16 %v3008, %v3000
  %v3425 = vpack.c.b16 %v3017, %v3009
  %v3426 = vpack.c.b16 %v3018, %v3010
  %v3427 = vpack.c.b16 %v3019, %v3011
  %v3428 = vpack.c.b16 %v3020, %v3012
  %v3429 = vpack.c.b16 %v3021, %v3013
  %v3430 = vpack.c.b16 %v3022, %v3014
  %v3431 = vpack.c.b16 %v3023, %v3015
  %v3432 = vpack.c.b16 %v3024, %v3016
  %v3433 = vpack.c.b16 %v3033, %v3025
  %v3434 = vpack.c.b16 %v3034, %v3026
  %v3435 = vpack.c.b16 %v3035, %v3027
  %v3436 = vpack.c.b16 %v3036, %v3028
  %v3437 = vpack.c.b16 %v3037, %v3029
  %v3438 = vpack.c.b16 %v3038, %v3030
  %v3439 = vpack.c.b16 %v3039, %v3031
  %v3440 = vpack.c.b16 %v3040, %v3032
  %v3441 = vpack.c.b16 %v3049, %v3041
  %v3442 = vpack.c.b16 %v3050, %v3042
  %v3443 = vpack.c.b16 %v3051, %v3043
  %v3444 = vpack.c.b16 %v3052, %v3044
  %v3445 = vpack.c.b16 %v3053, %v3045
  %v3446 = vpack.c.b16 %v3054, %v3046
  %v3447 = vpack.c.b16 %v3055, %v3047
  %v3448 = vpack.c.b16 %v3056, %v3048
  %v3449 = vpack.c.b16 %v3065, %v3057
  %v3450 = vpack.c.b16 %v3066, %v3058
  %v3451 = vpack.c.b16 %v3067, %v3059
  %v3452 = vpack.c.b16 %v3068, %v3060
  %v3453 = vpack.c.b16 %v3069, %v3061
  %v3454 = vpack.c.b16 %v3070, %v3062
  %v3455 = vpack.c.b16 %v3071, %v3063
  %v3456 = vpack.c.b16 %v3072, %v3064
  %v3457 = vpack.c.b16 %v3081, %v3073
  %v3458 = vpack.c.b16 %v3082, %v3074
  %v3459 = vpack.c.b16 %v3083, %v3075
  %v3460 = vpack.c.b16 %v3084, %v3076
  %v3461 = vpack.c.b16 %v3085, %v3077
  %v3462 = vpack.c.b16 %v3086, %v3078
  %v3463 = vpack.c.b16 %v3087, %v3079
  %v3464 = vpack.c.b16 %v3088, %v3080
  %v3465 = vpack.c.b16 %v3097, %v3089
  %v3466 = vpack.c.b16 %v3098, %v3090
  %v3467 = vpack.c.b16 %v3099, %v3091
  %v3468 = vpack.c.b16 %v3100, %v3092
  %v3469 = vpack.c.b16 %v3101, %v3093
  %v3470 = vpack.c.b16 %v3102, %v3094
  %v3471 = vpack.c.b16 %v3103, %v3095
  %v3472 = vpack.c.b16 %v3104, %v3096
  %v3473 = vpack.c.b16 %v3113, %v3105
  %v3474 = vpack.c.b16 %v3114, %v3106
  %v3475 = vpack.c.b16 %v3115, %v3107
  %v3476 = vpack.c.b16 %v3116, %v3108
  %v3477 = vpack.c.b16 %v3117, %v3109
  %v3478 = vpack.c.b16 %v3118, %v3110
  %v3479 = vpack.c.b16 %v3119, %v3111
  %v3480 = vpack.c.b16 %v3120, %v3112
  %v3481 = vpack.c.b16 %v3129, %v3121
  %v3482 = vpack.c.b16 %v3130, %v3122
  %v3483 = vpack.c.b16 %v3131, %v3123
  %v3484 = vpack.c.b16 %v3132, %v3124
  %v3485 = vpack.c.b16 %v3133, %v3125
  %v3486 = vpack.c.b16 %v3134, %v3126
  %v3487 = vpack.c.b16 %v3135, %v3127
  %v3488 = vpack.c.b16 %v3136, %v3128
  %v3489 = vpack.c.b16 %v3145, %v3137
  %v3490 = vpack.c.b16 %v3146, %v3138
  %v3491 = vpack.c.b16 %v3147, %v3139
  %v3492 = vpack.c.b16 %v3148, %v3140
  %v3493 = vpack.c.b16 %v3149, %v3141
  %v3494 = vpack.c.b16 %v3150, %v3142
  %v3495 = vpack.c.b16 %v3151, %v3143
  %v3496 = vpack.c.b16 %v3152, %v3144
  %v3497 = vpack.c.b16 %v3161, %v3153
  %v3498 = vpack.c.b16 %v3162, %v3154
  %v3499 = vpack.c.b16 %v3163, %v3155
  %v3500 = vpack.c.b16 %v3164, %v3156
  %v3501 = vpack.c.b16 %v3165, %v3157
  %v3502 = vpack.c.b16 %v3166, %v3158
  %v3503 = vpack.c.b16 %v3167, %v3159
  %v3504 = vpack.c.b16 %v3168, %v3160
  %v3505 = vpack.c.b16 %v3177, %v3169
  %v3506 = vpack.c.b16 %v3178, %v3170
  %v3507 = vpack.c.b16 %v3179, %v3171
  %v3508 = vpack.c.b16 %v3180, %v3172
  %v3509 = vpack.c.b16 %v3181, %v3173
  %v3510 = vpack.c.b16 %v3182, %v3174
  %v3511 = vpack.c.b16 %v3183, %v3175
  %v3512 = vpack.c.b16 %v3184, %v3176
  %v3513 = vpack.c.b16 %v3193, %v3185
  %v3514 = vpack.c.b16 %v3194, %v3186
  %v3515 = vpack.c.b16 %v3195, %v3187
  %v3516 = vpack.c.b16 %v3196, %v3188
  %v3517 = vpack.c.b16 %v3197, %v3189
  %v3518 = vpack.c.b16 %v3198, %v3190
  %v3519 = vpack.c.b16 %v3199, %v3191
  %v3520 = vpack.c.b16 %v3200, %v3192
  %v3521 = vpack.c.b16 %v3209, %v3201
  %v3522 = vpack.c.b16 %v3210, %v3202
  %v3523 = vpack.c.b16 %v3211, %v3203
  %v3524 = vpack.c.b16 %v3212, %v3204
  %v3525 = vpack.c.b16 %v3213, %v3205
  %v3526 = vpack.c.b16 %v3214, %v3206
  %v3527 = vpack.c.b16 %v3215, %v3207
  %v3528 = vpack.c.b16 %v3216, %v3208
  %v3529 = vpack.c.b16 %v3225, %v3217
  %v3530 = vpack.c.b16 %v3226, %v3218
  %v3531 = vpack.c.b16 %v3227, %v3219
  %v3532 = vpack.c.b16 %v3228, %v3220
  %v3533 = vpack.c.b16 %v3229, %v3221
  %v3534 = vpack.c.b16 %v3230, %v3222
  %v3535 = vpack.c.b16 %v3231, %v3223
  %v3536 = vpack.c.b16 %v3232, %v3224
  %v3537 = vpack.c.b16 %v3241, %v3233
  %v3538 = vpack.c.b16 %v3242, %v3234
  %v3539 = vpack.c.b16 %v3243, %v3235
  %v3540 = vpack.c.b16 %v3244, %v3236
  %v3541 = vpack.c.b16 %v3245, %v3237
  %v3542 = vpack.c.b16 %v3246, %v3238
  %v3543 = vpack.c.b16 %v3247, %v3239
  %v3544 = vpack.c.b16 %v3248, %v3240
  %v3545 = vpack.c.b16 %v3257, %v3249
  %v3546 = vpack.c.b16 %v3258, %v3250
  %v3547 = vpack.c.b16 %v3259, %v3251
  %v3548 = vpack.c.b16 %v3260, %v3252
  %v3549 = vpack.c.b16 %v3261, %v3253
  %v3550 = vpack.c.b16 %v3262, %v3254
  %v3551 = vpack.c.b16 %v3263, %v3255
  %v3552 = vpack.c.b16 %v3264, %v3256
  %v3553 = vpack.c.b16 %v3273, %v3265
  %v3554 = vpack.c.b16 %v3274, %v3266
  %v3555 = vpack.c.b16 %v3275, %v3267
  %v3556 = vpack.c.b16 %v3276, %v3268
  %v3557 = vpack.c.b16 %v3277, %v3269
  %v3558 = vpack.c.b16 %v3278, %v3270
  %v3559 = vpack.c.b16 %v3279, %v3271
  %v3560 = vpack.c.b16 %v3280, %v3272
  %v3561 = vpack.c.b16 %v3289, %v3281
  %v3562 = vpack.c.b16 %v3290, %v3282
  %v3563 = vpack.c.b16 %v3291, %v3283
  %v3564 = vpack.c.b16 %v3292, %v3284
  %v3565 = vpack.c.b16 %v3293, %v3285
  %v3566 = vpack.c.b16 %v3294, %v3286
  %v3567 = vpack.c.b16 %v3295, %v3287
  %v3568 = vpack.c.b16 %v3296, %v3288
  %v3569 = vpack.c.b16 %v3305, %v3297
  %v3570 = vpack.c.b16 %v3306, %v3298
  %v3571 = vpack.c.b16 %v3307, %v3299
  %v3572 = vpack.c.b16 %v3308, %v3300
  %v3573 = vpack.c.b16 %v3309, %v3301
  %v3574 = vpack.c.b16 %v3310, %v3302
  %v3575 = vpack.c.b16 %v3311, %v3303
  %v3576 = vpack.c.b16 %v3312, %v3304
  %v3577 = vpack.c.b16 %v3321, %v3313
  %v3578 = vpack.c.b16 %v3322, %v3314
  %v3579 = vpack.c.b16 %v3323, %v3315
  %v3580 = vpack.c.b16 %v3324, %v3316
  %v3581 = vpack.c.b16 %v3325, %v3317
  %v3582 = vpack.c.b16 %v3326, %v3318
  %v3583 = vpack.c.b16 %v3327, %v3319
  %v3584 = vpack.c.b16 %v3328, %v3320
  %3841 = vmatprep.subr.bf16.mxu0 %v3330
  %3842 = vmatpush1.bf16.msra.mxu0 %v3329
  %3843 = vmatprep.subr.bf16.mxu0 %v3338
  %3844 = vmatpush1.bf16.msra.mxu0 %v3337
  %3845 = vmatprep.subr.bf16.mxu0 %v3346
  %3846 = vmatpush1.bf16.msra.mxu0 %v3345
  %3847 = vmatprep.subr.bf16.mxu0 %v3354
  %3848 = vmatpush1.bf16.msra.mxu0 %v3353
  %3849 = vmatprep.subr.bf16.mxu0 %v3362
  %3850 = vmatpush1.bf16.msra.mxu0 %v3361
  %3851 = vmatprep.subr.bf16.mxu0 %v3370
  %3852 = vmatpush1.bf16.msra.mxu0 %v3369
  %3853 = vmatprep.subr.bf16.mxu0 %v3378
  %3854 = vmatpush1.bf16.msra.mxu0 %v3377
  %3855 = vmatprep.subr.bf16.mxu0 %v3386
  %3856 = vmatpush1.bf16.msra.mxu0 %v3385
  %3857 = vmatprep.subr.bf16.mxu0 %v3394
  %3858 = vmatpush1.bf16.msra.mxu0 %v3393
  %3859 = vmatprep.subr.bf16.mxu0 %v3402
  %3860 = vmatpush1.bf16.msra.mxu0 %v3401
  %3861 = vmatprep.subr.bf16.mxu0 %v3410
  %3862 = vmatpush1.bf16.msra.mxu0 %v3409
  %3863 = vmatprep.subr.bf16.mxu0 %v3418
  %3864 = vmatpush1.bf16.msra.mxu0 %v3417
  %3865 = vmatprep.subr.bf16.mxu0 %v3426
  %3866 = vmatpush1.bf16.msra.mxu0 %v3425
  %3867 = vmatprep.subr.bf16.mxu0 %v3434
  %3868 = vmatpush1.bf16.msra.mxu0 %v3433
  %3869 = vmatprep.subr.bf16.mxu0 %v3442
  %3870 = vmatpush1.bf16.msra.mxu0 %v3441
  %3871 = vmatprep.subr.bf16.mxu0 %v3450
  %3872 = vmatpush1.bf16.msra.mxu0 %v3449
  %3873 = vmatprep.mubr.bf16.mxu0 %v2530
  %3874 = vmatmul.mubr.bf16.gmra.mrb[0].mxu0 %v2529
  %v3875 = vpop.f32.mrb[0].mxu0
  %v3876 = vadd.f32 0.0, %v3875
  %v3877 = vpop.f32.mrb[0].mxu0
  %v3878 = vadd.f32 0.0, %v3877
  %v3879 = vpop.f32.mrb[0].mxu0
  %v3880 = vadd.f32 0.0, %v3879
  %v3881 = vpop.f32.mrb[0].mxu0
  %v3882 = vadd.f32 0.0, %v3881
  %3883 = vmatprep.mubr.bf16.mxu0 %v2534
  %3884 = vmatmul.mubr.bf16.gmra.mrb[0].mxu0 %v2533
  %v3885 = vpop.f32.mrb[0].mxu0
  %v3886 = vadd.f32 0.0, %v3885
  %v3887 = vpop.f32.mrb[0].mxu0
  %v3888 = vadd.f32 0.0, %v3887
  %v3889 = vpop.f32.mrb[0].mxu0
  %v3890 = vadd.f32 0.0, %v3889
  %v3891 = vpop.f32.mrb[0].mxu0
  %v3892 = vadd.f32 0.0, %v3891
  %3893 = vmatprep.mubr.bf16.mxu0 %v2538
  %3894 = vmatmul.mubr.bf16.gmra.mrb[0].mxu0 %v2537
  %v3895 = vpop.f32.mrb[0].mxu0
  %v3896 = vadd.f32 0.0, %v3895
  %v3897 = vpop.f32.mrb[0].mxu0
  %v3898 = vadd.f32 0.0, %v3897
  %v3899 = vpop.f32.mrb[0].mxu0
  %v3900 = vadd.f32 0.0, %v3899
  %v3901 = vpop.f32.mrb[0].mxu0
  %v3902 = vadd.f32 0.0, %v3901
  %3903 = vmatprep.mubr.bf16.mxu0 %v2542
  %3904 = vmatmul.mubr.bf16.gmra.mrb[0].mxu0 %v2541
  %v3905 = vpop.f32.mrb[0].mxu0
  %v3906 = vadd.f32 0.0, %v3905
  %v3907 = vpop.f32.mrb[0].mxu0
  %v3908 = vadd.f32 0.0, %v3907
  %v3909 = vpop.f32.mrb[0].mxu0
  %v3910 = vadd.f32 0.0, %v3909
  %v3911 = vpop.f32.mrb[0].mxu0
  %v3912 = vadd.f32 0.0, %v3911
  %3913 = vdwg.mxu0
  %3914 = vmatprep.subr.bf16.mxu0 %v3458
  %3915 = vmatpush1.bf16.msra.mxu0 %v3457
  %3916 = vmatprep.subr.bf16.mxu0 %v3466
  %3917 = vmatpush1.bf16.msra.mxu0 %v3465
  %3918 = vmatprep.subr.bf16.mxu0 %v3474
  %3919 = vmatpush1.bf16.msra.mxu0 %v3473
  %3920 = vmatprep.subr.bf16.mxu0 %v3482
  %3921 = vmatpush1.bf16.msra.mxu0 %v3481
  %3922 = vmatprep.subr.bf16.mxu0 %v3490
  %3923 = vmatpush1.bf16.msra.mxu0 %v3489
  %3924 = vmatprep.subr.bf16.mxu0 %v3498
  %3925 = vmatpush1.bf16.msra.mxu0 %v3497
  %3926 = vmatprep.subr.bf16.mxu0 %v3506
  %3927 = vmatpush1.bf16.msra.mxu0 %v3505
  %3928 = vmatprep.subr.bf16.mxu0 %v3514
  %3929 = vmatpush1.bf16.msra.mxu0 %v3513
  %3930 = vmatprep.subr.bf16.mxu0 %v3522
  %3931 = vmatpush1.bf16.msra.mxu0 %v3521
  %3932 = vmatprep.subr.bf16.mxu0 %v3530
  %3933 = vmatpush1.bf16.msra.mxu0 %v3529
  %3934 = vmatprep.subr.bf16.mxu0 %v3538
  %3935 = vmatpush1.bf16.msra.mxu0 %v3537
  %3936 = vmatprep.subr.bf16.mxu0 %v3546
  %3937 = vmatpush1.bf16.msra.mxu0 %v3545
  %3938 = vmatprep.subr.bf16.mxu0 %v3554
  %3939 = vmatpush1.bf16.msra.mxu0 %v3553
  %3940 = vmatprep.subr.bf16.mxu0 %v3562
  %3941 = vmatpush1.bf16.msra.mxu0 %v3561
  %3942 = vmatprep.subr.bf16.mxu0 %v3570
  %3943 = vmatpush1.bf16.msra.mxu0 %v3569
  %3944 = vmatprep.subr.bf16.mxu0 %v3578
  %3945 = vmatpush1.bf16.msra.mxu0 %v3577
  %3946 = vmatprep.mubr.bf16.mxu0 %v2532
  %3947 = vmatmul.mubr.bf16.gmra.mrb[0].mxu0 %v2531
  %v3948 = vpop.f32.mrb[0].mxu0
  %v3949 = vadd.f32 %v3876, %v3948
  %v3950 = vpop.f32.mrb[0].mxu0
  %v3951 = vadd.f32 %v3878, %v3950
  %v3952 = vpop.f32.mrb[0].mxu0
  %v3953 = vadd.f32 %v3880, %v3952
  %v3954 = vpop.f32.mrb[0].mxu0
  %v3955 = vadd.f32 %v3882, %v3954
  %3956 = vmatprep.mubr.bf16.mxu0 %v2536
  %3957 = vmatmul.mubr.bf16.gmra.mrb[0].mxu0 %v2535
  %v3958 = vpop.f32.mrb[0].mxu0
  %v3959 = vadd.f32 %v3886, %v3958
  %v3960 = vpop.f32.mrb[0].mxu0
  %v3961 = vadd.f32 %v3888, %v3960
  %v3962 = vpop.f32.mrb[0].mxu0
  %v3963 = vadd.f32 %v3890, %v3962
  %v3964 = vpop.f32.mrb[0].mxu0
  %v3965 = vadd.f32 %v3892, %v3964
  %3966 = vmatprep.mubr.bf16.mxu0 %v2540
  %3967 = vmatmul.mubr.bf16.gmra.mrb[0].mxu0 %v2539
  %v3968 = vpop.f32.mrb[0].mxu0
  %v3969 = vadd.f32 %v3896, %v3968
  %v3970 = vpop.f32.mrb[0].mxu0
  %v3971 = vadd.f32 %v3898, %v3970
  %v3972 = vpop.f32.mrb[0].mxu0
  %v3973 = vadd.f32 %v3900, %v3972
  %v3974 = vpop.f32.mrb[0].mxu0
  %v3975 = vadd.f32 %v3902, %v3974
  %3976 = vmatprep.mubr.bf16.mxu0 %v2544
  %3977 = vmatmul.mubr.bf16.gmra.mrb[0].mxu0 %v2543
  %v3978 = vpop.f32.mrb[0].mxu0
  %v3979 = vadd.f32 %v3906, %v3978
  %v3980 = vpop.f32.mrb[0].mxu0
  %v3981 = vadd.f32 %v3908, %v3980
  %v3982 = vpop.f32.mrb[0].mxu0
  %v3983 = vadd.f32 %v3910, %v3982
  %v3984 = vpop.f32.mrb[0].mxu0
  %v3985 = vadd.f32 %v3912, %v3984
  %3986 = vdwg.mxu0
  %3987 = vmatprep.subr.bf16.mxu0 %v3332
  %3988 = vmatpush1.bf16.msra.mxu0 %v3331
  %3989 = vmatprep.subr.bf16.mxu0 %v3340
  %3990 = vmatpush1.bf16.msra.mxu0 %v3339
  %3991 = vmatprep.subr.bf16.mxu0 %v3348
  %3992 = vmatpush1.bf16.msra.mxu0 %v3347
  %3993 = vmatprep.subr.bf16.mxu0 %v3356
  %3994 = vmatpush1.bf16.msra.mxu0 %v3355
  %3995 = vmatprep.subr.bf16.mxu0 %v3364
  %3996 = vmatpush1.bf16.msra.mxu0 %v3363
  %3997 = vmatprep.subr.bf16.mxu0 %v3372
  %3998 = vmatpush1.bf16.msra.mxu0 %v3371
  %3999 = vmatprep.subr.bf16.mxu0 %v3380
  %4000 = vmatpush1.bf16.msra.mxu0 %v3379
  %4001 = vmatprep.subr.bf16.mxu0 %v3388
  %4002 = vmatpush1.bf16.msra.mxu0 %v3387
  %4003 = vmatprep.subr.bf16.mxu0 %v3396
  %4004 = vmatpush1.bf16.msra.mxu0 %v3395
  %4005 = vmatprep.subr.bf16.mxu0 %v3404
  %4006 = vmatpush1.bf16.msra.mxu0 %v3403
  %4007 = vmatprep.subr.bf16.mxu0 %v3412
  %4008 = vmatpush1.bf16.msra.mxu0 %v3411
  %4009 = vmatprep.subr.bf16.mxu0 %v3420
  %4010 = vmatpush1.bf16.msra.mxu0 %v3419
  %4011 = vmatprep.subr.bf16.mxu0 %v3428
  %4012 = vmatpush1.bf16.msra.mxu0 %v3427
  %4013 = vmatprep.subr.bf16.mxu0 %v3436
  %4014 = vmatpush1.bf16.msra.mxu0 %v3435
  %4015 = vmatprep.subr.bf16.mxu0 %v3444
  %4016 = vmatpush1.bf16.msra.mxu0 %v3443
  %4017 = vmatprep.subr.bf16.mxu0 %v3452
  %4018 = vmatpush1.bf16.msra.mxu0 %v3451
  %4019 = vmatprep.mubr.bf16.mxu0 %v2530
  %4020 = vmatmul.mubr.bf16.gmra.mrb[0].mxu0 %v2529
  %v4021 = vpop.f32.mrb[0].mxu0
  %v4022 = vadd.f32 0.0, %v4021
  %v4023 = vpop.f32.mrb[0].mxu0
  %v4024 = vadd.f32 0.0, %v4023
  %v4025 = vpop.f32.mrb[0].mxu0
  %v4026 = vadd.f32 0.0, %v4025
  %v4027 = vpop.f32.mrb[0].mxu0
  %v4028 = vadd.f32 0.0, %v4027
  %4029 = vmatprep.mubr.bf16.mxu0 %v2534
  %4030 = vmatmul.mubr.bf16.gmra.mrb[0].mxu0 %v2533
  %v4031 = vpop.f32.mrb[0].mxu0
  %v4032 = vadd.f32 0.0, %v4031
  %v4033 = vpop.f32.mrb[0].mxu0
  %v4034 = vadd.f32 0.0, %v4033
  %v4035 = vpop.f32.mrb[0].mxu0
  %v4036 = vadd.f32 0.0, %v4035
  %v4037 = vpop.f32.mrb[0].mxu0
  %v4038 = vadd.f32 0.0, %v4037
  %4039 = vmatprep.mubr.bf16.mxu0 %v2538
  %4040 = vmatmul.mubr.bf16.gmra.mrb[0].mxu0 %v2537
  %v4041 = vpop.f32.mrb[0].mxu0
  %v4042 = vadd.f32 0.0, %v4041
  %v4043 = vpop.f32.mrb[0].mxu0
  %v4044 = vadd.f32 0.0, %v4043
  %v4045 = vpop.f32.mrb[0].mxu0
  %v4046 = vadd.f32 0.0, %v4045
  %v4047 = vpop.f32.mrb[0].mxu0
  %v4048 = vadd.f32 0.0, %v4047
  %4049 = vmatprep.mubr.bf16.mxu0 %v2542
  %4050 = vmatmul.mubr.bf16.gmra.mrb[0].mxu0 %v2541
  %v4051 = vpop.f32.mrb[0].mxu0
  %v4052 = vadd.f32 0.0, %v4051
  %v4053 = vpop.f32.mrb[0].mxu0
  %v4054 = vadd.f32 0.0, %v4053
  %v4055 = vpop.f32.mrb[0].mxu0
  %v4056 = vadd.f32 0.0, %v4055
  %v4057 = vpop.f32.mrb[0].mxu0
  %v4058 = vadd.f32 0.0, %v4057
  %4059 = vdwg.mxu0
  %4060 = vmatprep.subr.bf16.mxu0 %v3460
  %4061 = vmatpush1.bf16.msra.mxu0 %v3459
  %4062 = vmatprep.subr.bf16.mxu0 %v3468
  %4063 = vmatpush1.bf16.msra.mxu0 %v3467
  %4064 = vmatprep.subr.bf16.mxu0 %v3476
  %4065 = vmatpush1.bf16.msra.mxu0 %v3475
  %4066 = vmatprep.subr.bf16.mxu0 %v3484
  %4067 = vmatpush1.bf16.msra.mxu0 %v3483
  %4068 = vmatprep.subr.bf16.mxu0 %v3492
  %4069 = vmatpush1.bf16.msra.mxu0 %v3491
  %4070 = vmatprep.subr.bf16.mxu0 %v3500
  %4071 = vmatpush1.bf16.msra.mxu0 %v3499
  %4072 = vmatprep.subr.bf16.mxu0 %v3508
  %4073 = vmatpush1.bf16.msra.mxu0 %v3507
  %4074 = vmatprep.subr.bf16.mxu0 %v3516
  %4075 = vmatpush1.bf16.msra.mxu0 %v3515
  %4076 = vmatprep.subr.bf16.mxu0 %v3524
  %4077 = vmatpush1.bf16.msra.mxu0 %v3523
  %4078 = vmatprep.subr.bf16.mxu0 %v3532
  %4079 = vmatpush1.bf16.msra.mxu0 %v3531
  %4080 = vmatprep.subr.bf16.mxu0 %v3540
  %4081 = vmatpush1.bf16.msra.mxu0 %v3539
  %4082 = vmatprep.subr.bf16.mxu0 %v3548
  %4083 = vmatpush1.bf16.msra.mxu0 %v3547
  %4084 = vmatprep.subr.bf16.mxu0 %v3556
  %4085 = vmatpush1.bf16.msra.mxu0 %v3555
  %4086 = vmatprep.subr.bf16.mxu0 %v3564
  %4087 = vmatpush1.bf16.msra.mxu0 %v3563
  %4088 = vmatprep.subr.bf16.mxu0 %v3572
  %4089 = vmatpush1.bf16.msra.mxu0 %v3571
  %4090 = vmatprep.subr.bf16.mxu0 %v3580
  %4091 = vmatpush1.bf16.msra.mxu0 %v3579
  %4092 = vmatprep.mubr.bf16.mxu0 %v2532
  %4093 = vmatmul.mubr.bf16.gmra.mrb[0].mxu0 %v2531
  %v4094 = vpop.f32.mrb[0].mxu0
  %v4095 = vadd.f32 %v4022, %v4094
  %v4096 = vpop.f32.mrb[0].mxu0
  %v4097 = vadd.f32 %v4024, %v4096
  %v4098 = vpop.f32.mrb[0].mxu0
  %v4099 = vadd.f32 %v4026, %v4098
  %v4100 = vpop.f32.mrb[0].mxu0
  %v4101 = vadd.f32 %v4028, %v4100
  %4102 = vmatprep.mubr.bf16.mxu0 %v2536
  %4103 = vmatmul.mubr.bf16.gmra.mrb[0].mxu0 %v2535
  %v4104 = vpop.f32.mrb[0].mxu0
  %v4105 = vadd.f32 %v4032, %v4104
  %v4106 = vpop.f32.mrb[0].mxu0
  %v4107 = vadd.f32 %v4034, %v4106
  %v4108 = vpop.f32.mrb[0].mxu0
  %v4109 = vadd.f32 %v4036, %v4108
  %v4110 = vpop.f32.mrb[0].mxu0
  %v4111 = vadd.f32 %v4038, %v4110
  %4112 = vmatprep.mubr.bf16.mxu0 %v2540
  %4113 = vmatmul.mubr.bf16.gmra.mrb[0].mxu0 %v2539
  %v4114 = vpop.f32.mrb[0].mxu0
  %v4115 = vadd.f32 %v4042, %v4114
  %v4116 = vpop.f32.mrb[0].mxu0
  %v4117 = vadd.f32 %v4044, %v4116
  %v4118 = vpop.f32.mrb[0].mxu0
  %v4119 = vadd.f32 %v4046, %v4118
  %v4120 = vpop.f32.mrb[0].mxu0
  %v4121 = vadd.f32 %v4048, %v4120
  %4122 = vmatprep.mubr.bf16.mxu0 %v2544
  %4123 = vmatmul.mubr.bf16.gmra.mrb[0].mxu0 %v2543
  %v4124 = vpop.f32.mrb[0].mxu0
  %v4125 = vadd.f32 %v4052, %v4124
  %v4126 = vpop.f32.mrb[0].mxu0
  %v4127 = vadd.f32 %v4054, %v4126
  %v4128 = vpop.f32.mrb[0].mxu0
  %v4129 = vadd.f32 %v4056, %v4128
  %v4130 = vpop.f32.mrb[0].mxu0
  %v4131 = vadd.f32 %v4058, %v4130
  %4132 = vdwg.mxu0
  %4133 = vmatprep.subr.bf16.mxu0 %v3334
  %4134 = vmatpush1.bf16.msra.mxu0 %v3333
  %4135 = vmatprep.subr.bf16.mxu0 %v3342
  %4136 = vmatpush1.bf16.msra.mxu0 %v3341
  %4137 = vmatprep.subr.bf16.mxu0 %v3350
  %4138 = vmatpush1.bf16.msra.mxu0 %v3349
  %4139 = vmatprep.subr.bf16.mxu0 %v3358
  %4140 = vmatpush1.bf16.msra.mxu0 %v3357
  %4141 = vmatprep.subr.bf16.mxu0 %v3366
  %4142 = vmatpush1.bf16.msra.mxu0 %v3365
  %4143 = vmatprep.subr.bf16.mxu0 %v3374
  %4144 = vmatpush1.bf16.msra.mxu0 %v3373
  %4145 = vmatprep.subr.bf16.mxu0 %v3382
  %4146 = vmatpush1.bf16.msra.mxu0 %v3381
  %4147 = vmatprep.subr.bf16.mxu0 %v3390
  %4148 = vmatpush1.bf16.msra.mxu0 %v3389
  %4149 = vmatprep.subr.bf16.mxu0 %v3398
  %4150 = vmatpush1.bf16.msra.mxu0 %v3397
  %4151 = vmatprep.subr.bf16.mxu0 %v3406
  %4152 = vmatpush1.bf16.msra.mxu0 %v3405
  %4153 = vmatprep.subr.bf16.mxu0 %v3414
  %4154 = vmatpush1.bf16.msra.mxu0 %v3413
  %4155 = vmatprep.subr.bf16.mxu0 %v3422
  %4156 = vmatpush1.bf16.msra.mxu0 %v3421
  %4157 = vmatprep.subr.bf16.mxu0 %v3430
  %4158 = vmatpush1.bf16.msra.mxu0 %v3429
  %4159 = vmatprep.subr.bf16.mxu0 %v3438
  %4160 = vmatpush1.bf16.msra.mxu0 %v3437
  %4161 = vmatprep.subr.bf16.mxu0 %v3446
  %4162 = vmatpush1.bf16.msra.mxu0 %v3445
  %4163 = vmatprep.subr.bf16.mxu0 %v3454
  %4164 = vmatpush1.bf16.msra.mxu0 %v3453
  %4165 = vmatprep.mubr.bf16.mxu0 %v2530
  %4166 = vmatmul.mubr.bf16.gmra.mrb[0].mxu0 %v2529
  %v4167 = vpop.f32.mrb[0].mxu0
  %v4168 = vadd.f32 0.0, %v4167
  %v4169 = vpop.f32.mrb[0].mxu0
  %v4170 = vadd.f32 0.0, %v4169
  %v4171 = vpop.f32.mrb[0].mxu0
  %v4172 = vadd.f32 0.0, %v4171
  %v4173 = vpop.f32.mrb[0].mxu0
  %v4174 = vadd.f32 0.0, %v4173
  %4175 = vmatprep.mubr.bf16.mxu0 %v2534
  %4176 = vmatmul.mubr.bf16.gmra.mrb[0].mxu0 %v2533
  %v4177 = vpop.f32.mrb[0].mxu0
  %v4178 = vadd.f32 0.0, %v4177
  %v4179 = vpop.f32.mrb[0].mxu0
  %v4180 = vadd.f32 0.0, %v4179
  %v4181 = vpop.f32.mrb[0].mxu0
  %v4182 = vadd.f32 0.0, %v4181
  %v4183 = vpop.f32.mrb[0].mxu0
  %v4184 = vadd.f32 0.0, %v4183
  %4185 = vmatprep.mubr.bf16.mxu0 %v2538
  %4186 = vmatmul.mubr.bf16.gmra.mrb[0].mxu0 %v2537
  %v4187 = vpop.f32.mrb[0].mxu0
  %v4188 = vadd.f32 0.0, %v4187
  %v4189 = vpop.f32.mrb[0].mxu0
  %v4190 = vadd.f32 0.0, %v4189
  %v4191 = vpop.f32.mrb[0].mxu0
  %v4192 = vadd.f32 0.0, %v4191
  %v4193 = vpop.f32.mrb[0].mxu0
  %v4194 = vadd.f32 0.0, %v4193
  %4195 = vmatprep.mubr.bf16.mxu0 %v2542
  %4196 = vmatmul.mubr.bf16.gmra.mrb[0].mxu0 %v2541
  %v4197 = vpop.f32.mrb[0].mxu0
  %v4198 = vadd.f32 0.0, %v4197
  %v4199 = vpop.f32.mrb[0].mxu0
  %v4200 = vadd.f32 0.0, %v4199
  %v4201 = vpop.f32.mrb[0].mxu0
  %v4202 = vadd.f32 0.0, %v4201
  %v4203 = vpop.f32.mrb[0].mxu0
  %v4204 = vadd.f32 0.0, %v4203
  %4205 = vdwg.mxu0
  %4206 = vmatprep.subr.bf16.mxu0 %v3462
  %4207 = vmatpush1.bf16.msra.mxu0 %v3461
  %4208 = vmatprep.subr.bf16.mxu0 %v3470
  %4209 = vmatpush1.bf16.msra.mxu0 %v3469
  %4210 = vmatprep.subr.bf16.mxu0 %v3478
  %4211 = vmatpush1.bf16.msra.mxu0 %v3477
  %4212 = vmatprep.subr.bf16.mxu0 %v3486
  %4213 = vmatpush1.bf16.msra.mxu0 %v3485
  %4214 = vmatprep.subr.bf16.mxu0 %v3494
  %4215 = vmatpush1.bf16.msra.mxu0 %v3493
  %4216 = vmatprep.subr.bf16.mxu0 %v3502
  %4217 = vmatpush1.bf16.msra.mxu0 %v3501
  %4218 = vmatprep.subr.bf16.mxu0 %v3510
  %4219 = vmatpush1.bf16.msra.mxu0 %v3509
  %4220 = vmatprep.subr.bf16.mxu0 %v3518
  %4221 = vmatpush1.bf16.msra.mxu0 %v3517
  %4222 = vmatprep.subr.bf16.mxu0 %v3526
  %4223 = vmatpush1.bf16.msra.mxu0 %v3525
  %4224 = vmatprep.subr.bf16.mxu0 %v3534
  %4225 = vmatpush1.bf16.msra.mxu0 %v3533
  %4226 = vmatprep.subr.bf16.mxu0 %v3542
  %4227 = vmatpush1.bf16.msra.mxu0 %v3541
  %4228 = vmatprep.subr.bf16.mxu0 %v3550
  %4229 = vmatpush1.bf16.msra.mxu0 %v3549
  %4230 = vmatprep.subr.bf16.mxu0 %v3558
  %4231 = vmatpush1.bf16.msra.mxu0 %v3557
  %4232 = vmatprep.subr.bf16.mxu0 %v3566
  %4233 = vmatpush1.bf16.msra.mxu0 %v3565
  %4234 = vmatprep.subr.bf16.mxu0 %v3574
  %4235 = vmatpush1.bf16.msra.mxu0 %v3573
  %4236 = vmatprep.subr.bf16.mxu0 %v3582
  %4237 = vmatpush1.bf16.msra.mxu0 %v3581
  %4238 = vmatprep.mubr.bf16.mxu0 %v2532
  %4239 = vmatmul.mubr.bf16.gmra.mrb[0].mxu0 %v2531
  %v4240 = vpop.f32.mrb[0].mxu0
  %v4241 = vadd.f32 %v4168, %v4240
  %v4242 = vpop.f32.mrb[0].mxu0
  %v4243 = vadd.f32 %v4170, %v4242
  %v4244 = vpop.f32.mrb[0].mxu0
  %v4245 = vadd.f32 %v4172, %v4244
  %v4246 = vpop.f32.mrb[0].mxu0
  %v4247 = vadd.f32 %v4174, %v4246
  %4248 = vmatprep.mubr.bf16.mxu0 %v2536
  %4249 = vmatmul.mubr.bf16.gmra.mrb[0].mxu0 %v2535
  %v4250 = vpop.f32.mrb[0].mxu0
  %v4251 = vadd.f32 %v4178, %v4250
  %v4252 = vpop.f32.mrb[0].mxu0
  %v4253 = vadd.f32 %v4180, %v4252
  %v4254 = vpop.f32.mrb[0].mxu0
  %v4255 = vadd.f32 %v4182, %v4254
  %v4256 = vpop.f32.mrb[0].mxu0
  %v4257 = vadd.f32 %v4184, %v4256
  %4258 = vmatprep.mubr.bf16.mxu0 %v2540
  %4259 = vmatmul.mubr.bf16.gmra.mrb[0].mxu0 %v2539
  %v4260 = vpop.f32.mrb[0].mxu0
  %v4261 = vadd.f32 %v4188, %v4260
  %v4262 = vpop.f32.mrb[0].mxu0
  %v4263 = vadd.f32 %v4190, %v4262
  %v4264 = vpop.f32.mrb[0].mxu0
  %v4265 = vadd.f32 %v4192, %v4264
  %v4266 = vpop.f32.mrb[0].mxu0
  %v4267 = vadd.f32 %v4194, %v4266
  %4268 = vmatprep.mubr.bf16.mxu0 %v2544
  %4269 = vmatmul.mubr.bf16.gmra.mrb[0].mxu0 %v2543
  %v4270 = vpop.f32.mrb[0].mxu0
  %v4271 = vadd.f32 %v4198, %v4270
  %v4272 = vpop.f32.mrb[0].mxu0
  %v4273 = vadd.f32 %v4200, %v4272
  %v4274 = vpop.f32.mrb[0].mxu0
  %v4275 = vadd.f32 %v4202, %v4274
  %v4276 = vpop.f32.mrb[0].mxu0
  %v4277 = vadd.f32 %v4204, %v4276
  %4278 = vdwg.mxu0
  %4279 = vmatprep.subr.bf16.mxu0 %v3336
  %4280 = vmatpush1.bf16.msra.mxu0 %v3335
  %4281 = vmatprep.subr.bf16.mxu0 %v3344
  %4282 = vmatpush1.bf16.msra.mxu0 %v3343
  %4283 = vmatprep.subr.bf16.mxu0 %v3352
  %4284 = vmatpush1.bf16.msra.mxu0 %v3351
  %4285 = vmatprep.subr.bf16.mxu0 %v3360
  %4286 = vmatpush1.bf16.msra.mxu0 %v3359
  %4287 = vmatprep.subr.bf16.mxu0 %v3368
  %4288 = vmatpush1.bf16.msra.mxu0 %v3367
  %4289 = vmatprep.subr.bf16.mxu0 %v3376
  %4290 = vmatpush1.bf16.msra.mxu0 %v3375
  %4291 = vmatprep.subr.bf16.mxu0 %v3384
  %4292 = vmatpush1.bf16.msra.mxu0 %v3383
  %4293 = vmatprep.subr.bf16.mxu0 %v3392
  %4294 = vmatpush1.bf16.msra.mxu0 %v3391
  %4295 = vmatprep.subr.bf16.mxu0 %v3400
  %4296 = vmatpush1.bf16.msra.mxu0 %v3399
  %4297 = vmatprep.subr.bf16.mxu0 %v3408
  %4298 = vmatpush1.bf16.msra.mxu0 %v3407
  %4299 = vmatprep.subr.bf16.mxu0 %v3416
  %4300 = vmatpush1.bf16.msra.mxu0 %v3415
  %4301 = vmatprep.subr.bf16.mxu0 %v3424
  %4302 = vmatpush1.bf16.msra.mxu0 %v3423
  %4303 = vmatprep.subr.bf16.mxu0 %v3432
  %4304 = vmatpush1.bf16.msra.mxu0 %v3431
  %4305 = vmatprep.subr.bf16.mxu0 %v3440
  %4306 = vmatpush1.bf16.msra.mxu0 %v3439
  %4307 = vmatprep.subr.bf16.mxu0 %v3448
  %4308 = vmatpush1.bf16.msra.mxu0 %v3447
  %4309 = vmatprep.subr.bf16.mxu0 %v3456
  %4310 = vmatpush1.bf16.msra.mxu0 %v3455
  %4311 = vmatprep.mubr.bf16.mxu0 %v2530
  %4312 = vmatmul.mubr.bf16.gmra.mrb[0].mxu0 %v2529
  %v4313 = vpop.f32.mrb[0].mxu0
  %v4314 = vadd.f32 0.0, %v4313
  %v4315 = vpop.f32.mrb[0].mxu0
  %v4316 = vadd.f32 0.0, %v4315
  %v4317 = vpop.f32.mrb[0].mxu0
  %v4318 = vadd.f32 0.0, %v4317
  %v4319 = vpop.f32.mrb[0].mxu0
  %v4320 = vadd.f32 0.0, %v4319
  %4321 = vmatprep.mubr.bf16.mxu0 %v2534
  %4322 = vmatmul.mubr.bf16.gmra.mrb[0].mxu0 %v2533
  %v4323 = vpop.f32.mrb[0].mxu0
  %v4324 = vadd.f32 0.0, %v4323
  %v4325 = vpop.f32.mrb[0].mxu0
  %v4326 = vadd.f32 0.0, %v4325
  %v4327 = vpop.f32.mrb[0].mxu0
  %v4328 = vadd.f32 0.0, %v4327
  %v4329 = vpop.f32.mrb[0].mxu0
  %v4330 = vadd.f32 0.0, %v4329
  %4331 = vmatprep.mubr.bf16.mxu0 %v2538
  %4332 = vmatmul.mubr.bf16.gmra.mrb[0].mxu0 %v2537
  %v4333 = vpop.f32.mrb[0].mxu0
  %v4334 = vadd.f32 0.0, %v4333
  %v4335 = vpop.f32.mrb[0].mxu0
  %v4336 = vadd.f32 0.0, %v4335
  %v4337 = vpop.f32.mrb[0].mxu0
  %v4338 = vadd.f32 0.0, %v4337
  %v4339 = vpop.f32.mrb[0].mxu0
  %v4340 = vadd.f32 0.0, %v4339
  %4341 = vmatprep.mubr.bf16.mxu0 %v2542
  %4342 = vmatmul.mubr.bf16.gmra.mrb[0].mxu0 %v2541
  %v4343 = vpop.f32.mrb[0].mxu0
  %v4344 = vadd.f32 0.0, %v4343
  %v4345 = vpop.f32.mrb[0].mxu0
  %v4346 = vadd.f32 0.0, %v4345
  %v4347 = vpop.f32.mrb[0].mxu0
  %v4348 = vadd.f32 0.0, %v4347
  %v4349 = vpop.f32.mrb[0].mxu0
  %v4350 = vadd.f32 0.0, %v4349
  %4351 = vdwg.mxu0
  %4352 = vmatprep.subr.bf16.mxu0 %v3464
  %4353 = vmatpush1.bf16.msra.mxu0 %v3463
  %4354 = vmatprep.subr.bf16.mxu0 %v3472
  %4355 = vmatpush1.bf16.msra.mxu0 %v3471
  %4356 = vmatprep.subr.bf16.mxu0 %v3480
  %4357 = vmatpush1.bf16.msra.mxu0 %v3479
  %4358 = vmatprep.subr.bf16.mxu0 %v3488
  %4359 = vmatpush1.bf16.msra.mxu0 %v3487
  %4360 = vmatprep.subr.bf16.mxu0 %v3496
  %4361 = vmatpush1.bf16.msra.mxu0 %v3495
  %4362 = vmatprep.subr.bf16.mxu0 %v3504
  %4363 = vmatpush1.bf16.msra.mxu0 %v3503
  %4364 = vmatprep.subr.bf16.mxu0 %v3512
  %4365 = vmatpush1.bf16.msra.mxu0 %v3511
  %4366 = vmatprep.subr.bf16.mxu0 %v3520
  %4367 = vmatpush1.bf16.msra.mxu0 %v3519
  %4368 = vmatprep.subr.bf16.mxu0 %v3528
  %4369 = vmatpush1.bf16.msra.mxu0 %v3527
  %4370 = vmatprep.subr.bf16.mxu0 %v3536
  %4371 = vmatpush1.bf16.msra.mxu0 %v3535
  %4372 = vmatprep.subr.bf16.mxu0 %v3544
  %4373 = vmatpush1.bf16.msra.mxu0 %v3543
  %4374 = vmatprep.subr.bf16.mxu0 %v3552
  %4375 = vmatpush1.bf16.msra.mxu0 %v3551
  %4376 = vmatprep.subr.bf16.mxu0 %v3560
  %4377 = vmatpush1.bf16.msra.mxu0 %v3559
  %4378 = vmatprep.subr.bf16.mxu0 %v3568
  %4379 = vmatpush1.bf16.msra.mxu0 %v3567
  %4380 = vmatprep.subr.bf16.mxu0 %v3576
  %4381 = vmatpush1.bf16.msra.mxu0 %v3575
  %4382 = vmatprep.subr.bf16.mxu0 %v3584
  %4383 = vmatpush1.bf16.msra.mxu0 %v3583
  %4384 = vmatprep.mubr.bf16.mxu0 %v2532
  %4385 = vmatmul.mubr.bf16.gmra.mrb[0].mxu0 %v2531
  %v4386 = vpop.f32.mrb[0].mxu0
  %v4387 = vadd.f32 %v4314, %v4386
  %v4388 = vpop.f32.mrb[0].mxu0
  %v4389 = vadd.f32 %v4316, %v4388
  %v4390 = vpop.f32.mrb[0].mxu0
  %v4391 = vadd.f32 %v4318, %v4390
  %v4392 = vpop.f32.mrb[0].mxu0
  %v4393 = vadd.f32 %v4320, %v4392
  %4394 = vmatprep.mubr.bf16.mxu0 %v2536
  %4395 = vmatmul.mubr.bf16.gmra.mrb[0].mxu0 %v2535
  %v4396 = vpop.f32.mrb[0].mxu0
  %v4397 = vadd.f32 %v4324, %v4396
  %v4398 = vpop.f32.mrb[0].mxu0
  %v4399 = vadd.f32 %v4326, %v4398
  %v4400 = vpop.f32.mrb[0].mxu0
  %v4401 = vadd.f32 %v4328, %v4400
  %v4402 = vpop.f32.mrb[0].mxu0
  %v4403 = vadd.f32 %v4330, %v4402
  %4404 = vmatprep.mubr.bf16.mxu0 %v2540
  %4405 = vmatmul.mubr.bf16.gmra.mrb[0].mxu0 %v2539
  %v4406 = vpop.f32.mrb[0].mxu0
  %v4407 = vadd.f32 %v4334, %v4406
  %v4408 = vpop.f32.mrb[0].mxu0
  %v4409 = vadd.f32 %v4336, %v4408
  %v4410 = vpop.f32.mrb[0].mxu0
  %v4411 = vadd.f32 %v4338, %v4410
  %v4412 = vpop.f32.mrb[0].mxu0
  %v4413 = vadd.f32 %v4340, %v4412
  %4414 = vmatprep.mubr.bf16.mxu0 %v2544
  %4415 = vmatmul.mubr.bf16.gmra.mrb[0].mxu0 %v2543
  %v4416 = vpop.f32.mrb[0].mxu0
  %v4417 = vadd.f32 %v4344, %v4416
  %v4418 = vpop.f32.mrb[0].mxu0
  %v4419 = vadd.f32 %v4346, %v4418
  %v4420 = vpop.f32.mrb[0].mxu0
  %v4421 = vadd.f32 %v4348, %v4420
  %v4422 = vpop.f32.mrb[0].mxu0
  %v4423 = vadd.f32 %v4350, %v4422
  %4424 = vdwg.mxu0
  %v4425 = vld [vmem:[%s5] sm:$0xff]
  %v4426 = vld [vmem:[%s5 + $0x8] sm:$0xff]
  %v4427 = vld [vmem:[%s5 + $0x10] sm:$0xff]
  %v4428 = vld [vmem:[%s5 + $0x18] sm:$0xff]
  %v4429 = vld [vmem:[%s5 + $0x20] sm:$0xff]
  %v4430 = vld [vmem:[%s5 + $0x28] sm:$0xff]
  %v4431 = vld [vmem:[%s5 + $0x30] sm:$0xff]
  %v4432 = vld [vmem:[%s5 + $0x38] sm:$0xff]
  %v4433 = vld [vmem:[%s5 + $0x40] sm:$0xff]
  %v4434 = vld [vmem:[%s5 + $0x48] sm:$0xff]
  %v4435 = vld [vmem:[%s5 + $0x50] sm:$0xff]
  %v4436 = vld [vmem:[%s5 + $0x58] sm:$0xff]
  %v4437 = vld [vmem:[%s5 + $0x60] sm:$0xff]
  %v4438 = vld [vmem:[%s5 + $0x68] sm:$0xff]
  %v4439 = vld [vmem:[%s5 + $0x70] sm:$0xff]
  %v4440 = vld [vmem:[%s5 + $0x78] sm:$0xff]
  %v4441 = vld [vmem:[%s5 + $0x80] sm:$0xff]
  %v4442 = vld [vmem:[%s5 + $0x88] sm:$0xff]
  %v4443 = vld [vmem:[%s5 + $0x90] sm:$0xff]
  %v4444 = vld [vmem:[%s5 + $0x98] sm:$0xff]
  %v4445 = vld [vmem:[%s5 + $0xa0] sm:$0xff]
  %v4446 = vld [vmem:[%s5 + $0xa8] sm:$0xff]
  %v4447 = vld [vmem:[%s5 + $0xb0] sm:$0xff]
  %v4448 = vld [vmem:[%s5 + $0xb8] sm:$0xff]
  %v4449 = vld [vmem:[%s5 + $0xc0] sm:$0xff]
  %v4450 = vld [vmem:[%s5 + $0xc8] sm:$0xff]
  %v4451 = vld [vmem:[%s5 + $0xd0] sm:$0xff]
  %v4452 = vld [vmem:[%s5 + $0xd8] sm:$0xff]
  %v4453 = vld [vmem:[%s5 + $0xe0] sm:$0xff]
  %v4454 = vld [vmem:[%s5 + $0xe8] sm:$0xff]
  %v4455 = vld [vmem:[%s5 + $0xf0] sm:$0xff]
  %v4456 = vld [vmem:[%s5 + $0xf8] sm:$0xff]
  %v4457 = vld [vmem:[%s5 + $0x100] sm:$0xff]
  %v4458 = vld [vmem:[%s5 + $0x108] sm:$0xff]
  %v4459 = vld [vmem:[%s5 + $0x110] sm:$0xff]
  %v4460 = vld [vmem:[%s5 + $0x118] sm:$0xff]
  %v4461 = vld [vmem:[%s5 + $0x120] sm:$0xff]
  %v4462 = vld [vmem:[%s5 + $0x128] sm:$0xff]
  %v4463 = vld [vmem:[%s5 + $0x130] sm:$0xff]
  %v4464 = vld [vmem:[%s5 + $0x138] sm:$0xff]
  %v4465 = vld [vmem:[%s5 + $0x140] sm:$0xff]
  %v4466 = vld [vmem:[%s5 + $0x148] sm:$0xff]
  %v4467 = vld [vmem:[%s5 + $0x150] sm:$0xff]
  %v4468 = vld [vmem:[%s5 + $0x158] sm:$0xff]
  %v4469 = vld [vmem:[%s5 + $0x160] sm:$0xff]
  %v4470 = vld [vmem:[%s5 + $0x168] sm:$0xff]
  %v4471 = vld [vmem:[%s5 + $0x170] sm:$0xff]
  %v4472 = vld [vmem:[%s5 + $0x178] sm:$0xff]
  %v4473 = vld [vmem:[%s5 + $0x180] sm:$0xff]
  %v4474 = vld [vmem:[%s5 + $0x188] sm:$0xff]
  %v4475 = vld [vmem:[%s5 + $0x190] sm:$0xff]
  %v4476 = vld [vmem:[%s5 + $0x198] sm:$0xff]
  %v4477 = vld [vmem:[%s5 + $0x1a0] sm:$0xff]
  %v4478 = vld [vmem:[%s5 + $0x1a8] sm:$0xff]
  %v4479 = vld [vmem:[%s5 + $0x1b0] sm:$0xff]
  %v4480 = vld [vmem:[%s5 + $0x1b8] sm:$0xff]
  %v4481 = vld [vmem:[%s5 + $0x1c0] sm:$0xff]
  %v4482 = vld [vmem:[%s5 + $0x1c8] sm:$0xff]
  %v4483 = vld [vmem:[%s5 + $0x1d0] sm:$0xff]
  %v4484 = vld [vmem:[%s5 + $0x1d8] sm:$0xff]
  %v4485 = vld [vmem:[%s5 + $0x1e0] sm:$0xff]
  %v4486 = vld [vmem:[%s5 + $0x1e8] sm:$0xff]
  %v4487 = vld [vmem:[%s5 + $0x1f0] sm:$0xff]
  %v4488 = vld [vmem:[%s5 + $0x1f8] sm:$0xff]
  %v4489 = vld [vmem:[%s5 + $0x200] sm:$0xff]
  %v4490 = vld [vmem:[%s5 + $0x208] sm:$0xff]
  %v4491 = vld [vmem:[%s5 + $0x210] sm:$0xff]
  %v4492 = vld [vmem:[%s5 + $0x218] sm:$0xff]
  %v4493 = vld [vmem:[%s5 + $0x220] sm:$0xff]
  %v4494 = vld [vmem:[%s5 + $0x228] sm:$0xff]
  %v4495 = vld [vmem:[%s5 + $0x230] sm:$0xff]
  %v4496 = vld [vmem:[%s5 + $0x238] sm:$0xff]
  %v4497 = vld [vmem:[%s5 + $0x240] sm:$0xff]
  %v4498 = vld [vmem:[%s5 + $0x248] sm:$0xff]
  %v4499 = vld [vmem:[%s5 + $0x250] sm:$0xff]
  %v4500 = vld [vmem:[%s5 + $0x258] sm:$0xff]
  %v4501 = vld [vmem:[%s5 + $0x260] sm:$0xff]
  %v4502 = vld [vmem:[%s5 + $0x268] sm:$0xff]
  %v4503 = vld [vmem:[%s5 + $0x270] sm:$0xff]
  %v4504 = vld [vmem:[%s5 + $0x278] sm:$0xff]
  %v4505 = vld [vmem:[%s5 + $0x280] sm:$0xff]
  %v4506 = vld [vmem:[%s5 + $0x288] sm:$0xff]
  %v4507 = vld [vmem:[%s5 + $0x290] sm:$0xff]
  %v4508 = vld [vmem:[%s5 + $0x298] sm:$0xff]
  %v4509 = vld [vmem:[%s5 + $0x2a0] sm:$0xff]
  %v4510 = vld [vmem:[%s5 + $0x2a8] sm:$0xff]
  %v4511 = vld [vmem:[%s5 + $0x2b0] sm:$0xff]
  %v4512 = vld [vmem:[%s5 + $0x2b8] sm:$0xff]
  %v4513 = vld [vmem:[%s5 + $0x2c0] sm:$0xff]
  %v4514 = vld [vmem:[%s5 + $0x2c8] sm:$0xff]
  %v4515 = vld [vmem:[%s5 + $0x2d0] sm:$0xff]
  %v4516 = vld [vmem:[%s5 + $0x2d8] sm:$0xff]
  %v4517 = vld [vmem:[%s5 + $0x2e0] sm:$0xff]
  %v4518 = vld [vmem:[%s5 + $0x2e8] sm:$0xff]
  %v4519 = vld [vmem:[%s5 + $0x2f0] sm:$0xff]
  %v4520 = vld [vmem:[%s5 + $0x2f8] sm:$0xff]
  %v4521 = vld [vmem:[%s5 + $0x300] sm:$0xff]
  %v4522 = vld [vmem:[%s5 + $0x308] sm:$0xff]
  %v4523 = vld [vmem:[%s5 + $0x310] sm:$0xff]
  %v4524 = vld [vmem:[%s5 + $0x318] sm:$0xff]
  %v4525 = vld [vmem:[%s5 + $0x320] sm:$0xff]
  %v4526 = vld [vmem:[%s5 + $0x328] sm:$0xff]
  %v4527 = vld [vmem:[%s5 + $0x330] sm:$0xff]
  %v4528 = vld [vmem:[%s5 + $0x338] sm:$0xff]
  %v4529 = vld [vmem:[%s5 + $0x340] sm:$0xff]
  %v4530 = vld [vmem:[%s5 + $0x348] sm:$0xff]
  %v4531 = vld [vmem:[%s5 + $0x350] sm:$0xff]
  %v4532 = vld [vmem:[%s5 + $0x358] sm:$0xff]
  %v4533 = vld [vmem:[%s5 + $0x360] sm:$0xff]
  %v4534 = vld [vmem:[%s5 + $0x368] sm:$0xff]
  %v4535 = vld [vmem:[%s5 + $0x370] sm:$0xff]
  %v4536 = vld [vmem:[%s5 + $0x378] sm:$0xff]
  %v4537 = vld [vmem:[%s5 + $0x380] sm:$0xff]
  %v4538 = vld [vmem:[%s5 + $0x388] sm:$0xff]
  %v4539 = vld [vmem:[%s5 + $0x390] sm:$0xff]
  %v4540 = vld [vmem:[%s5 + $0x398] sm:$0xff]
  %v4541 = vld [vmem:[%s5 + $0x3a0] sm:$0xff]
  %v4542 = vld [vmem:[%s5 + $0x3a8] sm:$0xff]
  %v4543 = vld [vmem:[%s5 + $0x3b0] sm:$0xff]
  %v4544 = vld [vmem:[%s5 + $0x3b8] sm:$0xff]
  %v4545 = vld [vmem:[%s5 + $0x3c0] sm:$0xff]
  %v4546 = vld [vmem:[%s5 + $0x3c8] sm:$0xff]
  %v4547 = vld [vmem:[%s5 + $0x3d0] sm:$0xff]
  %v4548 = vld [vmem:[%s5 + $0x3d8] sm:$0xff]
  %v4549 = vld [vmem:[%s5 + $0x3e0] sm:$0xff]
  %v4550 = vld [vmem:[%s5 + $0x3e8] sm:$0xff]
  %v4551 = vld [vmem:[%s5 + $0x3f0] sm:$0xff]
  %v4552 = vld [vmem:[%s5 + $0x3f8] sm:$0xff]
  %v4553 = vld [vmem:[%s5 + $0x400] sm:$0xff]
  %v4554 = vld [vmem:[%s5 + $0x408] sm:$0xff]
  %v4555 = vld [vmem:[%s5 + $0x410] sm:$0xff]
  %v4556 = vld [vmem:[%s5 + $0x418] sm:$0xff]
  %v4557 = vld [vmem:[%s5 + $0x420] sm:$0xff]
  %v4558 = vld [vmem:[%s5 + $0x428] sm:$0xff]
  %v4559 = vld [vmem:[%s5 + $0x430] sm:$0xff]
  %v4560 = vld [vmem:[%s5 + $0x438] sm:$0xff]
  %v4561 = vld [vmem:[%s5 + $0x440] sm:$0xff]
  %v4562 = vld [vmem:[%s5 + $0x448] sm:$0xff]
  %v4563 = vld [vmem:[%s5 + $0x450] sm:$0xff]
  %v4564 = vld [vmem:[%s5 + $0x458] sm:$0xff]
  %v4565 = vld [vmem:[%s5 + $0x460] sm:$0xff]
  %v4566 = vld [vmem:[%s5 + $0x468] sm:$0xff]
  %v4567 = vld [vmem:[%s5 + $0x470] sm:$0xff]
  %v4568 = vld [vmem:[%s5 + $0x478] sm:$0xff]
  %v4569 = vld [vmem:[%s5 + $0x480] sm:$0xff]
  %v4570 = vld [vmem:[%s5 + $0x488] sm:$0xff]
  %v4571 = vld [vmem:[%s5 + $0x490] sm:$0xff]
  %v4572 = vld [vmem:[%s5 + $0x498] sm:$0xff]
  %v4573 = vld [vmem:[%s5 + $0x4a0] sm:$0xff]
  %v4574 = vld [vmem:[%s5 + $0x4a8] sm:$0xff]
  %v4575 = vld [vmem:[%s5 + $0x4b0] sm:$0xff]
  %v4576 = vld [vmem:[%s5 + $0x4b8] sm:$0xff]
  %v4577 = vld [vmem:[%s5 + $0x4c0] sm:$0xff]
  %v4578 = vld [vmem:[%s5 + $0x4c8] sm:$0xff]
  %v4579 = vld [vmem:[%s5 + $0x4d0] sm:$0xff]
  %v4580 = vld [vmem:[%s5 + $0x4d8] sm:$0xff]
  %v4581 = vld [vmem:[%s5 + $0x4e0] sm:$0xff]
  %v4582 = vld [vmem:[%s5 + $0x4e8] sm:$0xff]
  %v4583 = vld [vmem:[%s5 + $0x4f0] sm:$0xff]
  %v4584 = vld [vmem:[%s5 + $0x4f8] sm:$0xff]
  %v4585 = vld [vmem:[%s5 + $0x500] sm:$0xff]
  %v4586 = vld [vmem:[%s5 + $0x508] sm:$0xff]
  %v4587 = vld [vmem:[%s5 + $0x510] sm:$0xff]
  %v4588 = vld [vmem:[%s5 + $0x518] sm:$0xff]
  %v4589 = vld [vmem:[%s5 + $0x520] sm:$0xff]
  %v4590 = vld [vmem:[%s5 + $0x528] sm:$0xff]
  %v4591 = vld [vmem:[%s5 + $0x530] sm:$0xff]
  %v4592 = vld [vmem:[%s5 + $0x538] sm:$0xff]
  %v4593 = vld [vmem:[%s5 + $0x540] sm:$0xff]
  %v4594 = vld [vmem:[%s5 + $0x548] sm:$0xff]
  %v4595 = vld [vmem:[%s5 + $0x550] sm:$0xff]
  %v4596 = vld [vmem:[%s5 + $0x558] sm:$0xff]
  %v4597 = vld [vmem:[%s5 + $0x560] sm:$0xff]
  %v4598 = vld [vmem:[%s5 + $0x568] sm:$0xff]
  %v4599 = vld [vmem:[%s5 + $0x570] sm:$0xff]
  %v4600 = vld [vmem:[%s5 + $0x578] sm:$0xff]
  %v4601 = vld [vmem:[%s5 + $0x580] sm:$0xff]
  %v4602 = vld [vmem:[%s5 + $0x588] sm:$0xff]
  %v4603 = vld [vmem:[%s5 + $0x590] sm:$0xff]
  %v4604 = vld [vmem:[%s5 + $0x598] sm:$0xff]
  %v4605 = vld [vmem:[%s5 + $0x5a0] sm:$0xff]
  %v4606 = vld [vmem:[%s5 + $0x5a8] sm:$0xff]
  %v4607 = vld [vmem:[%s5 + $0x5b0] sm:$0xff]
  %v4608 = vld [vmem:[%s5 + $0x5b8] sm:$0xff]
  %v4609 = vld [vmem:[%s5 + $0x5c0] sm:$0xff]
  %v4610 = vld [vmem:[%s5 + $0x5c8] sm:$0xff]
  %v4611 = vld [vmem:[%s5 + $0x5d0] sm:$0xff]
  %v4612 = vld [vmem:[%s5 + $0x5d8] sm:$0xff]
  %v4613 = vld [vmem:[%s5 + $0x5e0] sm:$0xff]
  %v4614 = vld [vmem:[%s5 + $0x5e8] sm:$0xff]
  %v4615 = vld [vmem:[%s5 + $0x5f0] sm:$0xff]
  %v4616 = vld [vmem:[%s5 + $0x5f8] sm:$0xff]
  %v4617 = vld [vmem:[%s5 + $0x600] sm:$0xff]
  %v4618 = vld [vmem:[%s5 + $0x608] sm:$0xff]
  %v4619 = vld [vmem:[%s5 + $0x610] sm:$0xff]
  %v4620 = vld [vmem:[%s5 + $0x618] sm:$0xff]
  %v4621 = vld [vmem:[%s5 + $0x620] sm:$0xff]
  %v4622 = vld [vmem:[%s5 + $0x628] sm:$0xff]
  %v4623 = vld [vmem:[%s5 + $0x630] sm:$0xff]
  %v4624 = vld [vmem:[%s5 + $0x638] sm:$0xff]
  %v4625 = vld [vmem:[%s5 + $0x640] sm:$0xff]
  %v4626 = vld [vmem:[%s5 + $0x648] sm:$0xff]
  %v4627 = vld [vmem:[%s5 + $0x650] sm:$0xff]
  %v4628 = vld [vmem:[%s5 + $0x658] sm:$0xff]
  %v4629 = vld [vmem:[%s5 + $0x660] sm:$0xff]
  %v4630 = vld [vmem:[%s5 + $0x668] sm:$0xff]
  %v4631 = vld [vmem:[%s5 + $0x670] sm:$0xff]
  %v4632 = vld [vmem:[%s5 + $0x678] sm:$0xff]
  %v4633 = vld [vmem:[%s5 + $0x680] sm:$0xff]
  %v4634 = vld [vmem:[%s5 + $0x688] sm:$0xff]
  %v4635 = vld [vmem:[%s5 + $0x690] sm:$0xff]
  %v4636 = vld [vmem:[%s5 + $0x698] sm:$0xff]
  %v4637 = vld [vmem:[%s5 + $0x6a0] sm:$0xff]
  %v4638 = vld [vmem:[%s5 + $0x6a8] sm:$0xff]
  %v4639 = vld [vmem:[%s5 + $0x6b0] sm:$0xff]
  %v4640 = vld [vmem:[%s5 + $0x6b8] sm:$0xff]
  %v4641 = vld [vmem:[%s5 + $0x6c0] sm:$0xff]
  %v4642 = vld [vmem:[%s5 + $0x6c8] sm:$0xff]
  %v4643 = vld [vmem:[%s5 + $0x6d0] sm:$0xff]
  %v4644 = vld [vmem:[%s5 + $0x6d8] sm:$0xff]
  %v4645 = vld [vmem:[%s5 + $0x6e0] sm:$0xff]
  %v4646 = vld [vmem:[%s5 + $0x6e8] sm:$0xff]
  %v4647 = vld [vmem:[%s5 + $0x6f0] sm:$0xff]
  %v4648 = vld [vmem:[%s5 + $0x6f8] sm:$0xff]
  %v4649 = vld [vmem:[%s5 + $0x700] sm:$0xff]
  %v4650 = vld [vmem:[%s5 + $0x708] sm:$0xff]
  %v4651 = vld [vmem:[%s5 + $0x710] sm:$0xff]
  %v4652 = vld [vmem:[%s5 + $0x718] sm:$0xff]
  %v4653 = vld [vmem:[%s5 + $0x720] sm:$0xff]
  %v4654 = vld [vmem:[%s5 + $0x728] sm:$0xff]
  %v4655 = vld [vmem:[%s5 + $0x730] sm:$0xff]
  %v4656 = vld [vmem:[%s5 + $0x738] sm:$0xff]
  %v4657 = vld [vmem:[%s5 + $0x740] sm:$0xff]
  %v4658 = vld [vmem:[%s5 + $0x748] sm:$0xff]
  %v4659 = vld [vmem:[%s5 + $0x750] sm:$0xff]
  %v4660 = vld [vmem:[%s5 + $0x758] sm:$0xff]
  %v4661 = vld [vmem:[%s5 + $0x760] sm:$0xff]
  %v4662 = vld [vmem:[%s5 + $0x768] sm:$0xff]
  %v4663 = vld [vmem:[%s5 + $0x770] sm:$0xff]
  %v4664 = vld [vmem:[%s5 + $0x778] sm:$0xff]
  %v4665 = vld [vmem:[%s5 + $0x780] sm:$0xff]
  %v4666 = vld [vmem:[%s5 + $0x788] sm:$0xff]
  %v4667 = vld [vmem:[%s5 + $0x790] sm:$0xff]
  %v4668 = vld [vmem:[%s5 + $0x798] sm:$0xff]
  %v4669 = vld [vmem:[%s5 + $0x7a0] sm:$0xff]
  %v4670 = vld [vmem:[%s5 + $0x7a8] sm:$0xff]
  %v4671 = vld [vmem:[%s5 + $0x7b0] sm:$0xff]
  %v4672 = vld [vmem:[%s5 + $0x7b8] sm:$0xff]
  %v4673 = vld [vmem:[%s5 + $0x7c0] sm:$0xff]
  %v4674 = vld [vmem:[%s5 + $0x7c8] sm:$0xff]
  %v4675 = vld [vmem:[%s5 + $0x7d0] sm:$0xff]
  %v4676 = vld [vmem:[%s5 + $0x7d8] sm:$0xff]
  %v4677 = vld [vmem:[%s5 + $0x7e0] sm:$0xff]
  %v4678 = vld [vmem:[%s5 + $0x7e8] sm:$0xff]
  %v4679 = vld [vmem:[%s5 + $0x7f0] sm:$0xff]
  %v4680 = vld [vmem:[%s5 + $0x7f8] sm:$0xff]
  %v4937 = vunpack.c.l.b16 %v4425
  %v4938 = vunpack.c.h.b16 %v4425
  %v4939 = vunpack.c.l.b16 %v4426
  %v4940 = vunpack.c.h.b16 %v4426
  %v4941 = vunpack.c.l.b16 %v4427
  %v4942 = vunpack.c.h.b16 %v4427
  %v4943 = vunpack.c.l.b16 %v4428
  %v4944 = vunpack.c.h.b16 %v4428
  %v4945 = vunpack.c.l.b16 %v4429
  %v4946 = vunpack.c.h.b16 %v4429
  %v4947 = vunpack.c.l.b16 %v4430
  %v4948 = vunpack.c.h.b16 %v4430
  %v4949 = vunpack.c.l.b16 %v4431
  %v4950 = vunpack.c.h.b16 %v4431
  %v4951 = vunpack.c.l.b16 %v4432
  %v4952 = vunpack.c.h.b16 %v4432
  %v4953 = vunpack.c.l.b16 %v4433
  %v4954 = vunpack.c.h.b16 %v4433
  %v4955 = vunpack.c.l.b16 %v4434
  %v4956 = vunpack.c.h.b16 %v4434
  %v4957 = vunpack.c.l.b16 %v4435
  %v4958 = vunpack.c.h.b16 %v4435
  %v4959 = vunpack.c.l.b16 %v4436
  %v4960 = vunpack.c.h.b16 %v4436
  %v4961 = vunpack.c.l.b16 %v4437
  %v4962 = vunpack.c.h.b16 %v4437
  %v4963 = vunpack.c.l.b16 %v4438
  %v4964 = vunpack.c.h.b16 %v4438
  %v4965 = vunpack.c.l.b16 %v4439
  %v4966 = vunpack.c.h.b16 %v4439
  %v4967 = vunpack.c.l.b16 %v4440
  %v4968 = vunpack.c.h.b16 %v4440
  %v4969 = vunpack.c.l.b16 %v4441
  %v4970 = vunpack.c.h.b16 %v4441
  %v4971 = vunpack.c.l.b16 %v4442
  %v4972 = vunpack.c.h.b16 %v4442
  %v4973 = vunpack.c.l.b16 %v4443
  %v4974 = vunpack.c.h.b16 %v4443
  %v4975 = vunpack.c.l.b16 %v4444
  %v4976 = vunpack.c.h.b16 %v4444
  %v4977 = vunpack.c.l.b16 %v4445
  %v4978 = vunpack.c.h.b16 %v4445
  %v4979 = vunpack.c.l.b16 %v4446
  %v4980 = vunpack.c.h.b16 %v4446
  %v4981 = vunpack.c.l.b16 %v4447
  %v4982 = vunpack.c.h.b16 %v4447
  %v4983 = vunpack.c.l.b16 %v4448
  %v4984 = vunpack.c.h.b16 %v4448
  %v4985 = vunpack.c.l.b16 %v4449
  %v4986 = vunpack.c.h.b16 %v4449
  %v4987 = vunpack.c.l.b16 %v4450
  %v4988 = vunpack.c.h.b16 %v4450
  %v4989 = vunpack.c.l.b16 %v4451
  %v4990 = vunpack.c.h.b16 %v4451
  %v4991 = vunpack.c.l.b16 %v4452
  %v4992 = vunpack.c.h.b16 %v4452
  %v4993 = vunpack.c.l.b16 %v4453
  %v4994 = vunpack.c.h.b16 %v4453
  %v4995 = vunpack.c.l.b16 %v4454
  %v4996 = vunpack.c.h.b16 %v4454
  %v4997 = vunpack.c.l.b16 %v4455
  %v4998 = vunpack.c.h.b16 %v4455
  %v4999 = vunpack.c.l.b16 %v4456
  %v5000 = vunpack.c.h.b16 %v4456
  %v5001 = vunpack.c.l.b16 %v4457
  %v5002 = vunpack.c.h.b16 %v4457
  %v5003 = vunpack.c.l.b16 %v4458
  %v5004 = vunpack.c.h.b16 %v4458
  %v5005 = vunpack.c.l.b16 %v4459
  %v5006 = vunpack.c.h.b16 %v4459
  %v5007 = vunpack.c.l.b16 %v4460
  %v5008 = vunpack.c.h.b16 %v4460
  %v5009 = vunpack.c.l.b16 %v4461
  %v5010 = vunpack.c.h.b16 %v4461
  %v5011 = vunpack.c.l.b16 %v4462
  %v5012 = vunpack.c.h.b16 %v4462
  %v5013 = vunpack.c.l.b16 %v4463
  %v5014 = vunpack.c.h.b16 %v4463
  %v5015 = vunpack.c.l.b16 %v4464
  %v5016 = vunpack.c.h.b16 %v4464
  %v5017 = vunpack.c.l.b16 %v4465
  %v5018 = vunpack.c.h.b16 %v4465
  %v5019 = vunpack.c.l.b16 %v4466
  %v5020 = vunpack.c.h.b16 %v4466
  %v5021 = vunpack.c.l.b16 %v4467
  %v5022 = vunpack.c.h.b16 %v4467
  %v5023 = vunpack.c.l.b16 %v4468
  %v5024 = vunpack.c.h.b16 %v4468
  %v5025 = vunpack.c.l.b16 %v4469
  %v5026 = vunpack.c.h.b16 %v4469
  %v5027 = vunpack.c.l.b16 %v4470
  %v5028 = vunpack.c.h.b16 %v4470
  %v5029 = vunpack.c.l.b16 %v4471
  %v5030 = vunpack.c.h.b16 %v4471
  %v5031 = vunpack.c.l.b16 %v4472
  %v5032 = vunpack.c.h.b16 %v4472
  %v5033 = vunpack.c.l.b16 %v4473
  %v5034 = vunpack.c.h.b16 %v4473
  %v5035 = vunpack.c.l.b16 %v4474
  %v5036 = vunpack.c.h.b16 %v4474
  %v5037 = vunpack.c.l.b16 %v4475
  %v5038 = vunpack.c.h.b16 %v4475
  %v5039 = vunpack.c.l.b16 %v4476
  %v5040 = vunpack.c.h.b16 %v4476
  %v5041 = vunpack.c.l.b16 %v4477
  %v5042 = vunpack.c.h.b16 %v4477
  %v5043 = vunpack.c.l.b16 %v4478
  %v5044 = vunpack.c.h.b16 %v4478
  %v5045 = vunpack.c.l.b16 %v4479
  %v5046 = vunpack.c.h.b16 %v4479
  %v5047 = vunpack.c.l.b16 %v4480
  %v5048 = vunpack.c.h.b16 %v4480
  %v5049 = vunpack.c.l.b16 %v4481
  %v5050 = vunpack.c.h.b16 %v4481
  %v5051 = vunpack.c.l.b16 %v4482
  %v5052 = vunpack.c.h.b16 %v4482
  %v5053 = vunpack.c.l.b16 %v4483
  %v5054 = vunpack.c.h.b16 %v4483
  %v5055 = vunpack.c.l.b16 %v4484
  %v5056 = vunpack.c.h.b16 %v4484
  %v5057 = vunpack.c.l.b16 %v4485
  %v5058 = vunpack.c.h.b16 %v4485
  %v5059 = vunpack.c.l.b16 %v4486
  %v5060 = vunpack.c.h.b16 %v4486
  %v5061 = vunpack.c.l.b16 %v4487
  %v5062 = vunpack.c.h.b16 %v4487
  %v5063 = vunpack.c.l.b16 %v4488
  %v5064 = vunpack.c.h.b16 %v4488
  %v5065 = vunpack.c.l.b16 %v4489
  %v5066 = vunpack.c.h.b16 %v4489
  %v5067 = vunpack.c.l.b16 %v4490
  %v5068 = vunpack.c.h.b16 %v4490
  %v5069 = vunpack.c.l.b16 %v4491
  %v5070 = vunpack.c.h.b16 %v4491
  %v5071 = vunpack.c.l.b16 %v4492
  %v5072 = vunpack.c.h.b16 %v4492
  %v5073 = vunpack.c.l.b16 %v4493
  %v5074 = vunpack.c.h.b16 %v4493
  %v5075 = vunpack.c.l.b16 %v4494
  %v5076 = vunpack.c.h.b16 %v4494
  %v5077 = vunpack.c.l.b16 %v4495
  %v5078 = vunpack.c.h.b16 %v4495
  %v5079 = vunpack.c.l.b16 %v4496
  %v5080 = vunpack.c.h.b16 %v4496
  %v5081 = vunpack.c.l.b16 %v4497
  %v5082 = vunpack.c.h.b16 %v4497
  %v5083 = vunpack.c.l.b16 %v4498
  %v5084 = vunpack.c.h.b16 %v4498
  %v5085 = vunpack.c.l.b16 %v4499
  %v5086 = vunpack.c.h.b16 %v4499
  %v5087 = vunpack.c.l.b16 %v4500
  %v5088 = vunpack.c.h.b16 %v4500
  %v5089 = vunpack.c.l.b16 %v4501
  %v5090 = vunpack.c.h.b16 %v4501
  %v5091 = vunpack.c.l.b16 %v4502
  %v5092 = vunpack.c.h.b16 %v4502
  %v5093 = vunpack.c.l.b16 %v4503
  %v5094 = vunpack.c.h.b16 %v4503
  %v5095 = vunpack.c.l.b16 %v4504
  %v5096 = vunpack.c.h.b16 %v4504
  %v5097 = vunpack.c.l.b16 %v4505
  %v5098 = vunpack.c.h.b16 %v4505
  %v5099 = vunpack.c.l.b16 %v4506
  %v5100 = vunpack.c.h.b16 %v4506
  %v5101 = vunpack.c.l.b16 %v4507
  %v5102 = vunpack.c.h.b16 %v4507
  %v5103 = vunpack.c.l.b16 %v4508
  %v5104 = vunpack.c.h.b16 %v4508
  %v5105 = vunpack.c.l.b16 %v4509
  %v5106 = vunpack.c.h.b16 %v4509
  %v5107 = vunpack.c.l.b16 %v4510
  %v5108 = vunpack.c.h.b16 %v4510
  %v5109 = vunpack.c.l.b16 %v4511
  %v5110 = vunpack.c.h.b16 %v4511
  %v5111 = vunpack.c.l.b16 %v4512
  %v5112 = vunpack.c.h.b16 %v4512
  %v5113 = vunpack.c.l.b16 %v4513
  %v5114 = vunpack.c.h.b16 %v4513
  %v5115 = vunpack.c.l.b16 %v4514
  %v5116 = vunpack.c.h.b16 %v4514
  %v5117 = vunpack.c.l.b16 %v4515
  %v5118 = vunpack.c.h.b16 %v4515
  %v5119 = vunpack.c.l.b16 %v4516
  %v5120 = vunpack.c.h.b16 %v4516
  %v5121 = vunpack.c.l.b16 %v4517
  %v5122 = vunpack.c.h.b16 %v4517
  %v5123 = vunpack.c.l.b16 %v4518
  %v5124 = vunpack.c.h.b16 %v4518
  %v5125 = vunpack.c.l.b16 %v4519
  %v5126 = vunpack.c.h.b16 %v4519
  %v5127 = vunpack.c.l.b16 %v4520
  %v5128 = vunpack.c.h.b16 %v4520
  %v5129 = vunpack.c.l.b16 %v4521
  %v5130 = vunpack.c.h.b16 %v4521
  %v5131 = vunpack.c.l.b16 %v4522
  %v5132 = vunpack.c.h.b16 %v4522
  %v5133 = vunpack.c.l.b16 %v4523
  %v5134 = vunpack.c.h.b16 %v4523
  %v5135 = vunpack.c.l.b16 %v4524
  %v5136 = vunpack.c.h.b16 %v4524
  %v5137 = vunpack.c.l.b16 %v4525
  %v5138 = vunpack.c.h.b16 %v4525
  %v5139 = vunpack.c.l.b16 %v4526
  %v5140 = vunpack.c.h.b16 %v4526
  %v5141 = vunpack.c.l.b16 %v4527
  %v5142 = vunpack.c.h.b16 %v4527
  %v5143 = vunpack.c.l.b16 %v4528
  %v5144 = vunpack.c.h.b16 %v4528
  %v5145 = vunpack.c.l.b16 %v4529
  %v5146 = vunpack.c.h.b16 %v4529
  %v5147 = vunpack.c.l.b16 %v4530
  %v5148 = vunpack.c.h.b16 %v4530
  %v5149 = vunpack.c.l.b16 %v4531
  %v5150 = vunpack.c.h.b16 %v4531
  %v5151 = vunpack.c.l.b16 %v4532
  %v5152 = vunpack.c.h.b16 %v4532
  %v5153 = vunpack.c.l.b16 %v4533
  %v5154 = vunpack.c.h.b16 %v4533
  %v5155 = vunpack.c.l.b16 %v4534
  %v5156 = vunpack.c.h.b16 %v4534
  %v5157 = vunpack.c.l.b16 %v4535
  %v5158 = vunpack.c.h.b16 %v4535
  %v5159 = vunpack.c.l.b16 %v4536
  %v5160 = vunpack.c.h.b16 %v4536
  %v5161 = vunpack.c.l.b16 %v4537
  %v5162 = vunpack.c.h.b16 %v4537
  %v5163 = vunpack.c.l.b16 %v4538
  %v5164 = vunpack.c.h.b16 %v4538
  %v5165 = vunpack.c.l.b16 %v4539
  %v5166 = vunpack.c.h.b16 %v4539
  %v5167 = vunpack.c.l.b16 %v4540
  %v5168 = vunpack.c.h.b16 %v4540
  %v5169 = vunpack.c.l.b16 %v4541
  %v5170 = vunpack.c.h.b16 %v4541
  %v5171 = vunpack.c.l.b16 %v4542
  %v5172 = vunpack.c.h.b16 %v4542
  %v5173 = vunpack.c.l.b16 %v4543
  %v5174 = vunpack.c.h.b16 %v4543
  %v5175 = vunpack.c.l.b16 %v4544
  %v5176 = vunpack.c.h.b16 %v4544
  %v5177 = vunpack.c.l.b16 %v4545
  %v5178 = vunpack.c.h.b16 %v4545
  %v5179 = vunpack.c.l.b16 %v4546
  %v5180 = vunpack.c.h.b16 %v4546
  %v5181 = vunpack.c.l.b16 %v4547
  %v5182 = vunpack.c.h.b16 %v4547
  %v5183 = vunpack.c.l.b16 %v4548
  %v5184 = vunpack.c.h.b16 %v4548
  %v5185 = vunpack.c.l.b16 %v4549
  %v5186 = vunpack.c.h.b16 %v4549
  %v5187 = vunpack.c.l.b16 %v4550
  %v5188 = vunpack.c.h.b16 %v4550
  %v5189 = vunpack.c.l.b16 %v4551
  %v5190 = vunpack.c.h.b16 %v4551
  %v5191 = vunpack.c.l.b16 %v4552
  %v5192 = vunpack.c.h.b16 %v4552
  %v5193 = vunpack.c.l.b16 %v4553
  %v5194 = vunpack.c.h.b16 %v4553
  %v5195 = vunpack.c.l.b16 %v4554
  %v5196 = vunpack.c.h.b16 %v4554
  %v5197 = vunpack.c.l.b16 %v4555
  %v5198 = vunpack.c.h.b16 %v4555
  %v5199 = vunpack.c.l.b16 %v4556
  %v5200 = vunpack.c.h.b16 %v4556
  %v5201 = vunpack.c.l.b16 %v4557
  %v5202 = vunpack.c.h.b16 %v4557
  %v5203 = vunpack.c.l.b16 %v4558
  %v5204 = vunpack.c.h.b16 %v4558
  %v5205 = vunpack.c.l.b16 %v4559
  %v5206 = vunpack.c.h.b16 %v4559
  %v5207 = vunpack.c.l.b16 %v4560
  %v5208 = vunpack.c.h.b16 %v4560
  %v5209 = vunpack.c.l.b16 %v4561
  %v5210 = vunpack.c.h.b16 %v4561
  %v5211 = vunpack.c.l.b16 %v4562
  %v5212 = vunpack.c.h.b16 %v4562
  %v5213 = vunpack.c.l.b16 %v4563
  %v5214 = vunpack.c.h.b16 %v4563
  %v5215 = vunpack.c.l.b16 %v4564
  %v5216 = vunpack.c.h.b16 %v4564
  %v5217 = vunpack.c.l.b16 %v4565
  %v5218 = vunpack.c.h.b16 %v4565
  %v5219 = vunpack.c.l.b16 %v4566
  %v5220 = vunpack.c.h.b16 %v4566
  %v5221 = vunpack.c.l.b16 %v4567
  %v5222 = vunpack.c.h.b16 %v4567
  %v5223 = vunpack.c.l.b16 %v4568
  %v5224 = vunpack.c.h.b16 %v4568
  %v5225 = vunpack.c.l.b16 %v4569
  %v5226 = vunpack.c.h.b16 %v4569
  %v5227 = vunpack.c.l.b16 %v4570
  %v5228 = vunpack.c.h.b16 %v4570
  %v5229 = vunpack.c.l.b16 %v4571
  %v5230 = vunpack.c.h.b16 %v4571
  %v5231 = vunpack.c.l.b16 %v4572
  %v5232 = vunpack.c.h.b16 %v4572
  %v5233 = vunpack.c.l.b16 %v4573
  %v5234 = vunpack.c.h.b16 %v4573
  %v5235 = vunpack.c.l.b16 %v4574
  %v5236 = vunpack.c.h.b16 %v4574
  %v5237 = vunpack.c.l.b16 %v4575
  %v5238 = vunpack.c.h.b16 %v4575
  %v5239 = vunpack.c.l.b16 %v4576
  %v5240 = vunpack.c.h.b16 %v4576
  %v5241 = vunpack.c.l.b16 %v4577
  %v5242 = vunpack.c.h.b16 %v4577
  %v5243 = vunpack.c.l.b16 %v4578
  %v5244 = vunpack.c.h.b16 %v4578
  %v5245 = vunpack.c.l.b16 %v4579
  %v5246 = vunpack.c.h.b16 %v4579
  %v5247 = vunpack.c.l.b16 %v4580
  %v5248 = vunpack.c.h.b16 %v4580
  %v5249 = vunpack.c.l.b16 %v4581
  %v5250 = vunpack.c.h.b16 %v4581
  %v5251 = vunpack.c.l.b16 %v4582
  %v5252 = vunpack.c.h.b16 %v4582
  %v5253 = vunpack.c.l.b16 %v4583
  %v5254 = vunpack.c.h.b16 %v4583
  %v5255 = vunpack.c.l.b16 %v4584
  %v5256 = vunpack.c.h.b16 %v4584
  %v5257 = vunpack.c.l.b16 %v4585
  %v5258 = vunpack.c.h.b16 %v4585
  %v5259 = vunpack.c.l.b16 %v4586
  %v5260 = vunpack.c.h.b16 %v4586
  %v5261 = vunpack.c.l.b16 %v4587
  %v5262 = vunpack.c.h.b16 %v4587
  %v5263 = vunpack.c.l.b16 %v4588
  %v5264 = vunpack.c.h.b16 %v4588
  %v5265 = vunpack.c.l.b16 %v4589
  %v5266 = vunpack.c.h.b16 %v4589
  %v5267 = vunpack.c.l.b16 %v4590
  %v5268 = vunpack.c.h.b16 %v4590
  %v5269 = vunpack.c.l.b16 %v4591
  %v5270 = vunpack.c.h.b16 %v4591
  %v5271 = vunpack.c.l.b16 %v4592
  %v5272 = vunpack.c.h.b16 %v4592
  %v5273 = vunpack.c.l.b16 %v4593
  %v5274 = vunpack.c.h.b16 %v4593
  %v5275 = vunpack.c.l.b16 %v4594
  %v5276 = vunpack.c.h.b16 %v4594
  %v5277 = vunpack.c.l.b16 %v4595
  %v5278 = vunpack.c.h.b16 %v4595
  %v5279 = vunpack.c.l.b16 %v4596
  %v5280 = vunpack.c.h.b16 %v4596
  %v5281 = vunpack.c.l.b16 %v4597
  %v5282 = vunpack.c.h.b16 %v4597
  %v5283 = vunpack.c.l.b16 %v4598
  %v5284 = vunpack.c.h.b16 %v4598
  %v5285 = vunpack.c.l.b16 %v4599
  %v5286 = vunpack.c.h.b16 %v4599
  %v5287 = vunpack.c.l.b16 %v4600
  %v5288 = vunpack.c.h.b16 %v4600
  %v5289 = vunpack.c.l.b16 %v4601
  %v5290 = vunpack.c.h.b16 %v4601
  %v5291 = vunpack.c.l.b16 %v4602
  %v5292 = vunpack.c.h.b16 %v4602
  %v5293 = vunpack.c.l.b16 %v4603
  %v5294 = vunpack.c.h.b16 %v4603
  %v5295 = vunpack.c.l.b16 %v4604
  %v5296 = vunpack.c.h.b16 %v4604
  %v5297 = vunpack.c.l.b16 %v4605
  %v5298 = vunpack.c.h.b16 %v4605
  %v5299 = vunpack.c.l.b16 %v4606
  %v5300 = vunpack.c.h.b16 %v4606
  %v5301 = vunpack.c.l.b16 %v4607
  %v5302 = vunpack.c.h.b16 %v4607
  %v5303 = vunpack.c.l.b16 %v4608
  %v5304 = vunpack.c.h.b16 %v4608
  %v5305 = vunpack.c.l.b16 %v4609
  %v5306 = vunpack.c.h.b16 %v4609
  %v5307 = vunpack.c.l.b16 %v4610
  %v5308 = vunpack.c.h.b16 %v4610
  %v5309 = vunpack.c.l.b16 %v4611
  %v5310 = vunpack.c.h.b16 %v4611
  %v5311 = vunpack.c.l.b16 %v4612
  %v5312 = vunpack.c.h.b16 %v4612
  %v5313 = vunpack.c.l.b16 %v4613
  %v5314 = vunpack.c.h.b16 %v4613
  %v5315 = vunpack.c.l.b16 %v4614
  %v5316 = vunpack.c.h.b16 %v4614
  %v5317 = vunpack.c.l.b16 %v4615
  %v5318 = vunpack.c.h.b16 %v4615
  %v5319 = vunpack.c.l.b16 %v4616
  %v5320 = vunpack.c.h.b16 %v4616
  %v5321 = vunpack.c.l.b16 %v4617
  %v5322 = vunpack.c.h.b16 %v4617
  %v5323 = vunpack.c.l.b16 %v4618
  %v5324 = vunpack.c.h.b16 %v4618
  %v5325 = vunpack.c.l.b16 %v4619
  %v5326 = vunpack.c.h.b16 %v4619
  %v5327 = vunpack.c.l.b16 %v4620
  %v5328 = vunpack.c.h.b16 %v4620
  %v5329 = vunpack.c.l.b16 %v4621
  %v5330 = vunpack.c.h.b16 %v4621
  %v5331 = vunpack.c.l.b16 %v4622
  %v5332 = vunpack.c.h.b16 %v4622
  %v5333 = vunpack.c.l.b16 %v4623
  %v5334 = vunpack.c.h.b16 %v4623
  %v5335 = vunpack.c.l.b16 %v4624
  %v5336 = vunpack.c.h.b16 %v4624
  %v5337 = vunpack.c.l.b16 %v4625
  %v5338 = vunpack.c.h.b16 %v4625
  %v5339 = vunpack.c.l.b16 %v4626
  %v5340 = vunpack.c.h.b16 %v4626
  %v5341 = vunpack.c.l.b16 %v4627
  %v5342 = vunpack.c.h.b16 %v4627
  %v5343 = vunpack.c.l.b16 %v4628
  %v5344 = vunpack.c.h.b16 %v4628
  %v5345 = vunpack.c.l.b16 %v4629
  %v5346 = vunpack.c.h.b16 %v4629
  %v5347 = vunpack.c.l.b16 %v4630
  %v5348 = vunpack.c.h.b16 %v4630
  %v5349 = vunpack.c.l.b16 %v4631
  %v5350 = vunpack.c.h.b16 %v4631
  %v5351 = vunpack.c.l.b16 %v4632
  %v5352 = vunpack.c.h.b16 %v4632
  %v5353 = vunpack.c.l.b16 %v4633
  %v5354 = vunpack.c.h.b16 %v4633
  %v5355 = vunpack.c.l.b16 %v4634
  %v5356 = vunpack.c.h.b16 %v4634
  %v5357 = vunpack.c.l.b16 %v4635
  %v5358 = vunpack.c.h.b16 %v4635
  %v5359 = vunpack.c.l.b16 %v4636
  %v5360 = vunpack.c.h.b16 %v4636
  %v5361 = vunpack.c.l.b16 %v4637
  %v5362 = vunpack.c.h.b16 %v4637
  %v5363 = vunpack.c.l.b16 %v4638
  %v5364 = vunpack.c.h.b16 %v4638
  %v5365 = vunpack.c.l.b16 %v4639
  %v5366 = vunpack.c.h.b16 %v4639
  %v5367 = vunpack.c.l.b16 %v4640
  %v5368 = vunpack.c.h.b16 %v4640
  %v5369 = vunpack.c.l.b16 %v4641
  %v5370 = vunpack.c.h.b16 %v4641
  %v5371 = vunpack.c.l.b16 %v4642
  %v5372 = vunpack.c.h.b16 %v4642
  %v5373 = vunpack.c.l.b16 %v4643
  %v5374 = vunpack.c.h.b16 %v4643
  %v5375 = vunpack.c.l.b16 %v4644
  %v5376 = vunpack.c.h.b16 %v4644
  %v5377 = vunpack.c.l.b16 %v4645
  %v5378 = vunpack.c.h.b16 %v4645
  %v5379 = vunpack.c.l.b16 %v4646
  %v5380 = vunpack.c.h.b16 %v4646
  %v5381 = vunpack.c.l.b16 %v4647
  %v5382 = vunpack.c.h.b16 %v4647
  %v5383 = vunpack.c.l.b16 %v4648
  %v5384 = vunpack.c.h.b16 %v4648
  %v5385 = vunpack.c.l.b16 %v4649
  %v5386 = vunpack.c.h.b16 %v4649
  %v5387 = vunpack.c.l.b16 %v4650
  %v5388 = vunpack.c.h.b16 %v4650
  %v5389 = vunpack.c.l.b16 %v4651
  %v5390 = vunpack.c.h.b16 %v4651
  %v5391 = vunpack.c.l.b16 %v4652
  %v5392 = vunpack.c.h.b16 %v4652
  %v5393 = vunpack.c.l.b16 %v4653
  %v5394 = vunpack.c.h.b16 %v4653
  %v5395 = vunpack.c.l.b16 %v4654
  %v5396 = vunpack.c.h.b16 %v4654
  %v5397 = vunpack.c.l.b16 %v4655
  %v5398 = vunpack.c.h.b16 %v4655
  %v5399 = vunpack.c.l.b16 %v4656
  %v5400 = vunpack.c.h.b16 %v4656
  %v5401 = vunpack.c.l.b16 %v4657
  %v5402 = vunpack.c.h.b16 %v4657
  %v5403 = vunpack.c.l.b16 %v4658
  %v5404 = vunpack.c.h.b16 %v4658
  %v5405 = vunpack.c.l.b16 %v4659
  %v5406 = vunpack.c.h.b16 %v4659
  %v5407 = vunpack.c.l.b16 %v4660
  %v5408 = vunpack.c.h.b16 %v4660
  %v5409 = vunpack.c.l.b16 %v4661
  %v5410 = vunpack.c.h.b16 %v4661
  %v5411 = vunpack.c.l.b16 %v4662
  %v5412 = vunpack.c.h.b16 %v4662
  %v5413 = vunpack.c.l.b16 %v4663
  %v5414 = vunpack.c.h.b16 %v4663
  %v5415 = vunpack.c.l.b16 %v4664
  %v5416 = vunpack.c.h.b16 %v4664
  %v5417 = vunpack.c.l.b16 %v4665
  %v5418 = vunpack.c.h.b16 %v4665
  %v5419 = vunpack.c.l.b16 %v4666
  %v5420 = vunpack.c.h.b16 %v4666
  %v5421 = vunpack.c.l.b16 %v4667
  %v5422 = vunpack.c.h.b16 %v4667
  %v5423 = vunpack.c.l.b16 %v4668
  %v5424 = vunpack.c.h.b16 %v4668
  %v5425 = vunpack.c.l.b16 %v4669
  %v5426 = vunpack.c.h.b16 %v4669
  %v5427 = vunpack.c.l.b16 %v4670
  %v5428 = vunpack.c.h.b16 %v4670
  %v5429 = vunpack.c.l.b16 %v4671
  %v5430 = vunpack.c.h.b16 %v4671
  %v5431 = vunpack.c.l.b16 %v4672
  %v5432 = vunpack.c.h.b16 %v4672
  %v5433 = vunpack.c.l.b16 %v4673
  %v5434 = vunpack.c.h.b16 %v4673
  %v5435 = vunpack.c.l.b16 %v4674
  %v5436 = vunpack.c.h.b16 %v4674
  %v5437 = vunpack.c.l.b16 %v4675
  %v5438 = vunpack.c.h.b16 %v4675
  %v5439 = vunpack.c.l.b16 %v4676
  %v5440 = vunpack.c.h.b16 %v4676
  %v5441 = vunpack.c.l.b16 %v4677
  %v5442 = vunpack.c.h.b16 %v4677
  %v5443 = vunpack.c.l.b16 %v4678
  %v5444 = vunpack.c.h.b16 %v4678
  %v5445 = vunpack.c.l.b16 %v4679
  %v5446 = vunpack.c.h.b16 %v4679
  %v5447 = vunpack.c.l.b16 %v4680
  %v5448 = vunpack.c.h.b16 %v4680
  %v5449 = vpack.c.b16 %v4945, %v4937
  %v5450 = vpack.c.b16 %v4946, %v4938
  %v5451 = vpack.c.b16 %v4947, %v4939
  %v5452 = vpack.c.b16 %v4948, %v4940
  %v5453 = vpack.c.b16 %v4949, %v4941
  %v5454 = vpack.c.b16 %v4950, %v4942
  %v5455 = vpack.c.b16 %v4951, %v4943
  %v5456 = vpack.c.b16 %v4952, %v4944
  %v5457 = vpack.c.b16 %v4961, %v4953
  %v5458 = vpack.c.b16 %v4962, %v4954
  %v5459 = vpack.c.b16 %v4963, %v4955
  %v5460 = vpack.c.b16 %v4964, %v4956
  %v5461 = vpack.c.b16 %v4965, %v4957
  %v5462 = vpack.c.b16 %v4966, %v4958
  %v5463 = vpack.c.b16 %v4967, %v4959
  %v5464 = vpack.c.b16 %v4968, %v4960
  %v5465 = vpack.c.b16 %v4977, %v4969
  %v5466 = vpack.c.b16 %v4978, %v4970
  %v5467 = vpack.c.b16 %v4979, %v4971
  %v5468 = vpack.c.b16 %v4980, %v4972
  %v5469 = vpack.c.b16 %v4981, %v4973
  %v5470 = vpack.c.b16 %v4982, %v4974
  %v5471 = vpack.c.b16 %v4983, %v4975
  %v5472 = vpack.c.b16 %v4984, %v4976
  %v5473 = vpack.c.b16 %v4993, %v4985
  %v5474 = vpack.c.b16 %v4994, %v4986
  %v5475 = vpack.c.b16 %v4995, %v4987
  %v5476 = vpack.c.b16 %v4996, %v4988
  %v5477 = vpack.c.b16 %v4997, %v4989
  %v5478 = vpack.c.b16 %v4998, %v4990
  %v5479 = vpack.c.b16 %v4999, %v4991
  %v5480 = vpack.c.b16 %v5000, %v4992
  %v5481 = vpack.c.b16 %v5009, %v5001
  %v5482 = vpack.c.b16 %v5010, %v5002
  %v5483 = vpack.c.b16 %v5011, %v5003
  %v5484 = vpack.c.b16 %v5012, %v5004
  %v5485 = vpack.c.b16 %v5013, %v5005
  %v5486 = vpack.c.b16 %v5014, %v5006
  %v5487 = vpack.c.b16 %v5015, %v5007
  %v5488 = vpack.c.b16 %v5016, %v5008
  %v5489 = vpack.c.b16 %v5025, %v5017
  %v5490 = vpack.c.b16 %v5026, %v5018
  %v5491 = vpack.c.b16 %v5027, %v5019
  %v5492 = vpack.c.b16 %v5028, %v5020
  %v5493 = vpack.c.b16 %v5029, %v5021
  %v5494 = vpack.c.b16 %v5030, %v5022
  %v5495 = vpack.c.b16 %v5031, %v5023
  %v5496 = vpack.c.b16 %v5032, %v5024
  %v5497 = vpack.c.b16 %v5041, %v5033
  %v5498 = vpack.c.b16 %v5042, %v5034
  %v5499 = vpack.c.b16 %v5043, %v5035
  %v5500 = vpack.c.b16 %v5044, %v5036
  %v5501 = vpack.c.b16 %v5045, %v5037
  %v5502 = vpack.c.b16 %v5046, %v5038
  %v5503 = vpack.c.b16 %v5047, %v5039
  %v5504 = vpack.c.b16 %v5048, %v5040
  %v5505 = vpack.c.b16 %v5057, %v5049
  %v5506 = vpack.c.b16 %v5058, %v5050
  %v5507 = vpack.c.b16 %v5059, %v5051
  %v5508 = vpack.c.b16 %v5060, %v5052
  %v5509 = vpack.c.b16 %v5061, %v5053
  %v5510 = vpack.c.b16 %v5062, %v5054
  %v5511 = vpack.c.b16 %v5063, %v5055
  %v5512 = vpack.c.b16 %v5064, %v5056
  %v5513 = vpack.c.b16 %v5073, %v5065
  %v5514 = vpack.c.b16 %v5074, %v5066
  %v5515 = vpack.c.b16 %v5075, %v5067
  %v5516 = vpack.c.b16 %v5076, %v5068
  %v5517 = vpack.c.b16 %v5077, %v5069
  %v5518 = vpack.c.b16 %v5078, %v5070
  %v5519 = vpack.c.b16 %v5079, %v5071
  %v5520 = vpack.c.b16 %v5080, %v5072
  %v5521 = vpack.c.b16 %v5089, %v5081
  %v5522 = vpack.c.b16 %v5090, %v5082
  %v5523 = vpack.c.b16 %v5091, %v5083
  %v5524 = vpack.c.b16 %v5092, %v5084
  %v5525 = vpack.c.b16 %v5093, %v5085
  %v5526 = vpack.c.b16 %v5094, %v5086
  %v5527 = vpack.c.b16 %v5095, %v5087
  %v5528 = vpack.c.b16 %v5096, %v5088
  %v5529 = vpack.c.b16 %v5105, %v5097
  %v5530 = vpack.c.b16 %v5106, %v5098
  %v5531 = vpack.c.b16 %v5107, %v5099
  %v5532 = vpack.c.b16 %v5108, %v5100
  %v5533 = vpack.c.b16 %v5109, %v5101
  %v5534 = vpack.c.b16 %v5110, %v5102
  %v5535 = vpack.c.b16 %v5111, %v5103
  %v5536 = vpack.c.b16 %v5112, %v5104
  %v5537 = vpack.c.b16 %v5121, %v5113
  %v5538 = vpack.c.b16 %v5122, %v5114
  %v5539 = vpack.c.b16 %v5123, %v5115
  %v5540 = vpack.c.b16 %v5124, %v5116
  %v5541 = vpack.c.b16 %v5125, %v5117
  %v5542 = vpack.c.b16 %v5126, %v5118
  %v5543 = vpack.c.b16 %v5127, %v5119
  %v5544 = vpack.c.b16 %v5128, %v5120
  %v5545 = vpack.c.b16 %v5137, %v5129
  %v5546 = vpack.c.b16 %v5138, %v5130
  %v5547 = vpack.c.b16 %v5139, %v5131
  %v5548 = vpack.c.b16 %v5140, %v5132
  %v5549 = vpack.c.b16 %v5141, %v5133
  %v5550 = vpack.c.b16 %v5142, %v5134
  %v5551 = vpack.c.b16 %v5143, %v5135
  %v5552 = vpack.c.b16 %v5144, %v5136
  %v5553 = vpack.c.b16 %v5153, %v5145
  %v5554 = vpack.c.b16 %v5154, %v5146
  %v5555 = vpack.c.b16 %v5155, %v5147
  %v5556 = vpack.c.b16 %v5156, %v5148
  %v5557 = vpack.c.b16 %v5157, %v5149
  %v5558 = vpack.c.b16 %v5158, %v5150
  %v5559 = vpack.c.b16 %v5159, %v5151
  %v5560 = vpack.c.b16 %v5160, %v5152
  %v5561 = vpack.c.b16 %v5169, %v5161
  %v5562 = vpack.c.b16 %v5170, %v5162
  %v5563 = vpack.c.b16 %v5171, %v5163
  %v5564 = vpack.c.b16 %v5172, %v5164
  %v5565 = vpack.c.b16 %v5173, %v5165
  %v5566 = vpack.c.b16 %v5174, %v5166
  %v5567 = vpack.c.b16 %v5175, %v5167
  %v5568 = vpack.c.b16 %v5176, %v5168
  %v5569 = vpack.c.b16 %v5185, %v5177
  %v5570 = vpack.c.b16 %v5186, %v5178
  %v5571 = vpack.c.b16 %v5187, %v5179
  %v5572 = vpack.c.b16 %v5188, %v5180
  %v5573 = vpack.c.b16 %v5189, %v5181
  %v5574 = vpack.c.b16 %v5190, %v5182
  %v5575 = vpack.c.b16 %v5191, %v5183
  %v5576 = vpack.c.b16 %v5192, %v5184
  %v5577 = vpack.c.b16 %v5201, %v5193
  %v5578 = vpack.c.b16 %v5202, %v5194
  %v5579 = vpack.c.b16 %v5203, %v5195
  %v5580 = vpack.c.b16 %v5204, %v5196
  %v5581 = vpack.c.b16 %v5205, %v5197
  %v5582 = vpack.c.b16 %v5206, %v5198
  %v5583 = vpack.c.b16 %v5207, %v5199
  %v5584 = vpack.c.b16 %v5208, %v5200
  %v5585 = vpack.c.b16 %v5217, %v5209
  %v5586 = vpack.c.b16 %v5218, %v5210
  %v5587 = vpack.c.b16 %v5219, %v5211
  %v5588 = vpack.c.b16 %v5220, %v5212
  %v5589 = vpack.c.b16 %v5221, %v5213
  %v5590 = vpack.c.b16 %v5222, %v5214
  %v5591 = vpack.c.b16 %v5223, %v5215
  %v5592 = vpack.c.b16 %v5224, %v5216
  %v5593 = vpack.c.b16 %v5233, %v5225
  %v5594 = vpack.c.b16 %v5234, %v5226
  %v5595 = vpack.c.b16 %v5235, %v5227
  %v5596 = vpack.c.b16 %v5236, %v5228
  %v5597 = vpack.c.b16 %v5237, %v5229
  %v5598 = vpack.c.b16 %v5238, %v5230
  %v5599 = vpack.c.b16 %v5239, %v5231
  %v5600 = vpack.c.b16 %v5240, %v5232
  %v5601 = vpack.c.b16 %v5249, %v5241
  %v5602 = vpack.c.b16 %v5250, %v5242
  %v5603 = vpack.c.b16 %v5251, %v5243
  %v5604 = vpack.c.b16 %v5252, %v5244
  %v5605 = vpack.c.b16 %v5253, %v5245
  %v5606 = vpack.c.b16 %v5254, %v5246
  %v5607 = vpack.c.b16 %v5255, %v5247
  %v5608 = vpack.c.b16 %v5256, %v5248
  %v5609 = vpack.c.b16 %v5265, %v5257
  %v5610 = vpack.c.b16 %v5266, %v5258
  %v5611 = vpack.c.b16 %v5267, %v5259
  %v5612 = vpack.c.b16 %v5268, %v5260
  %v5613 = vpack.c.b16 %v5269, %v5261
  %v5614 = vpack.c.b16 %v5270, %v5262
  %v5615 = vpack.c.b16 %v5271, %v5263
  %v5616 = vpack.c.b16 %v5272, %v5264
  %v5617 = vpack.c.b16 %v5281, %v5273
  %v5618 = vpack.c.b16 %v5282, %v5274
  %v5619 = vpack.c.b16 %v5283, %v5275
  %v5620 = vpack.c.b16 %v5284, %v5276
  %v5621 = vpack.c.b16 %v5285, %v5277
  %v5622 = vpack.c.b16 %v5286, %v5278
  %v5623 = vpack.c.b16 %v5287, %v5279
  %v5624 = vpack.c.b16 %v5288, %v5280
  %v5625 = vpack.c.b16 %v5297, %v5289
  %v5626 = vpack.c.b16 %v5298, %v5290
  %v5627 = vpack.c.b16 %v5299, %v5291
  %v5628 = vpack.c.b16 %v5300, %v5292
  %v5629 = vpack.c.b16 %v5301, %v5293
  %v5630 = vpack.c.b16 %v5302, %v5294
  %v5631 = vpack.c.b16 %v5303, %v5295
  %v5632 = vpack.c.b16 %v5304, %v5296
  %v5633 = vpack.c.b16 %v5313, %v5305
  %v5634 = vpack.c.b16 %v5314, %v5306
  %v5635 = vpack.c.b16 %v5315, %v5307
  %v5636 = vpack.c.b16 %v5316, %v5308
  %v5637 = vpack.c.b16 %v5317, %v5309
  %v5638 = vpack.c.b16 %v5318, %v5310
  %v5639 = vpack.c.b16 %v5319, %v5311
  %v5640 = vpack.c.b16 %v5320, %v5312
  %v5641 = vpack.c.b16 %v5329, %v5321
  %v5642 = vpack.c.b16 %v5330, %v5322
  %v5643 = vpack.c.b16 %v5331, %v5323
  %v5644 = vpack.c.b16 %v5332, %v5324
  %v5645 = vpack.c.b16 %v5333, %v5325
  %v5646 = vpack.c.b16 %v5334, %v5326
  %v5647 = vpack.c.b16 %v5335, %v5327
  %v5648 = vpack.c.b16 %v5336, %v5328
  %v5649 = vpack.c.b16 %v5345, %v5337
  %v5650 = vpack.c.b16 %v5346, %v5338
  %v5651 = vpack.c.b16 %v5347, %v5339
  %v5652 = vpack.c.b16 %v5348, %v5340
  %v5653 = vpack.c.b16 %v5349, %v5341
  %v5654 = vpack.c.b16 %v5350, %v5342
  %v5655 = vpack.c.b16 %v5351, %v5343
  %v5656 = vpack.c.b16 %v5352, %v5344
  %v5657 = vpack.c.b16 %v5361, %v5353
  %v5658 = vpack.c.b16 %v5362, %v5354
  %v5659 = vpack.c.b16 %v5363, %v5355
  %v5660 = vpack.c.b16 %v5364, %v5356
  %v5661 = vpack.c.b16 %v5365, %v5357
  %v5662 = vpack.c.b16 %v5366, %v5358
  %v5663 = vpack.c.b16 %v5367, %v5359
  %v5664 = vpack.c.b16 %v5368, %v5360
  %v5665 = vpack.c.b16 %v5377, %v5369
  %v5666 = vpack.c.b16 %v5378, %v5370
  %v5667 = vpack.c.b16 %v5379, %v5371
  %v5668 = vpack.c.b16 %v5380, %v5372
  %v5669 = vpack.c.b16 %v5381, %v5373
  %v5670 = vpack.c.b16 %v5382, %v5374
  %v5671 = vpack.c.b16 %v5383, %v5375
  %v5672 = vpack.c.b16 %v5384, %v5376
  %v5673 = vpack.c.b16 %v5393, %v5385
  %v5674 = vpack.c.b16 %v5394, %v5386
  %v5675 = vpack.c.b16 %v5395, %v5387
  %v5676 = vpack.c.b16 %v5396, %v5388
  %v5677 = vpack.c.b16 %v5397, %v5389
  %v5678 = vpack.c.b16 %v5398, %v5390
  %v5679 = vpack.c.b16 %v5399, %v5391
  %v5680 = vpack.c.b16 %v5400, %v5392
  %v5681 = vpack.c.b16 %v5409, %v5401
  %v5682 = vpack.c.b16 %v5410, %v5402
  %v5683 = vpack.c.b16 %v5411, %v5403
  %v5684 = vpack.c.b16 %v5412, %v5404
  %v5685 = vpack.c.b16 %v5413, %v5405
  %v5686 = vpack.c.b16 %v5414, %v5406
  %v5687 = vpack.c.b16 %v5415, %v5407
  %v5688 = vpack.c.b16 %v5416, %v5408
  %v5689 = vpack.c.b16 %v5425, %v5417
  %v5690 = vpack.c.b16 %v5426, %v5418
  %v5691 = vpack.c.b16 %v5427, %v5419
  %v5692 = vpack.c.b16 %v5428, %v5420
  %v5693 = vpack.c.b16 %v5429, %v5421
  %v5694 = vpack.c.b16 %v5430, %v5422
  %v5695 = vpack.c.b16 %v5431, %v5423
  %v5696 = vpack.c.b16 %v5432, %v5424
  %v5697 = vpack.c.b16 %v5441, %v5433
  %v5698 = vpack.c.b16 %v5442, %v5434
  %v5699 = vpack.c.b16 %v5443, %v5435
  %v5700 = vpack.c.b16 %v5444, %v5436
  %v5701 = vpack.c.b16 %v5445, %v5437
  %v5702 = vpack.c.b16 %v5446, %v5438
  %v5703 = vpack.c.b16 %v5447, %v5439
  %v5704 = vpack.c.b16 %v5448, %v5440
  %5961 = vmatprep.subr.bf16.mxu0 %v5450
  %5962 = vmatpush1.bf16.msra.mxu0 %v5449
  %5963 = vmatprep.subr.bf16.mxu0 %v5458
  %5964 = vmatpush1.bf16.msra.mxu0 %v5457
  %5965 = vmatprep.subr.bf16.mxu0 %v5466
  %5966 = vmatpush1.bf16.msra.mxu0 %v5465
  %5967 = vmatprep.subr.bf16.mxu0 %v5474
  %5968 = vmatpush1.bf16.msra.mxu0 %v5473
  %5969 = vmatprep.subr.bf16.mxu0 %v5482
  %5970 = vmatpush1.bf16.msra.mxu0 %v5481
  %5971 = vmatprep.subr.bf16.mxu0 %v5490
  %5972 = vmatpush1.bf16.msra.mxu0 %v5489
  %5973 = vmatprep.subr.bf16.mxu0 %v5498
  %5974 = vmatpush1.bf16.msra.mxu0 %v5497
  %5975 = vmatprep.subr.bf16.mxu0 %v5506
  %5976 = vmatpush1.bf16.msra.mxu0 %v5505
  %5977 = vmatprep.subr.bf16.mxu0 %v5514
  %5978 = vmatpush1.bf16.msra.mxu0 %v5513
  %5979 = vmatprep.subr.bf16.mxu0 %v5522
  %5980 = vmatpush1.bf16.msra.mxu0 %v5521
  %5981 = vmatprep.subr.bf16.mxu0 %v5530
  %5982 = vmatpush1.bf16.msra.mxu0 %v5529
  %5983 = vmatprep.subr.bf16.mxu0 %v5538
  %5984 = vmatpush1.bf16.msra.mxu0 %v5537
  %5985 = vmatprep.subr.bf16.mxu0 %v5546
  %5986 = vmatpush1.bf16.msra.mxu0 %v5545
  %5987 = vmatprep.subr.bf16.mxu0 %v5554
  %5988 = vmatpush1.bf16.msra.mxu0 %v5553
  %5989 = vmatprep.subr.bf16.mxu0 %v5562
  %5990 = vmatpush1.bf16.msra.mxu0 %v5561
  %5991 = vmatprep.subr.bf16.mxu0 %v5570
  %5992 = vmatpush1.bf16.msra.mxu0 %v5569
  %5993 = vmatprep.mubr.bf16.mxu0 %v2530
  %5994 = vmatmul.mubr.bf16.gmra.mrb[0].mxu0 %v2529
  %v5995 = vpop.f32.mrb[0].mxu0
  %v5996 = vadd.f32 0.0, %v5995
  %v5997 = vpop.f32.mrb[0].mxu0
  %v5998 = vadd.f32 0.0, %v5997
  %v5999 = vpop.f32.mrb[0].mxu0
  %v6000 = vadd.f32 0.0, %v5999
  %v6001 = vpop.f32.mrb[0].mxu0
  %v6002 = vadd.f32 0.0, %v6001
  %6003 = vmatprep.mubr.bf16.mxu0 %v2534
  %6004 = vmatmul.mubr.bf16.gmra.mrb[0].mxu0 %v2533
  %v6005 = vpop.f32.mrb[0].mxu0
  %v6006 = vadd.f32 0.0, %v6005
  %v6007 = vpop.f32.mrb[0].mxu0
  %v6008 = vadd.f32 0.0, %v6007
  %v6009 = vpop.f32.mrb[0].mxu0
  %v6010 = vadd.f32 0.0, %v6009
  %v6011 = vpop.f32.mrb[0].mxu0
  %v6012 = vadd.f32 0.0, %v6011
  %6013 = vmatprep.mubr.bf16.mxu0 %v2538
  %6014 = vmatmul.mubr.bf16.gmra.mrb[0].mxu0 %v2537
  %v6015 = vpop.f32.mrb[0].mxu0
  %v6016 = vadd.f32 0.0, %v6015
  %v6017 = vpop.f32.mrb[0].mxu0
  %v6018 = vadd.f32 0.0, %v6017
  %v6019 = vpop.f32.mrb[0].mxu0
  %v6020 = vadd.f32 0.0, %v6019
  %v6021 = vpop.f32.mrb[0].mxu0
  %v6022 = vadd.f32 0.0, %v6021
  %6023 = vmatprep.mubr.bf16.mxu0 %v2542
  %6024 = vmatmul.mubr.bf16.gmra.mrb[0].mxu0 %v2541
  %v6025 = vpop.f32.mrb[0].mxu0
  %v6026 = vadd.f32 0.0, %v6025
  %v6027 = vpop.f32.mrb[0].mxu0
  %v6028 = vadd.f32 0.0, %v6027
  %v6029 = vpop.f32.mrb[0].mxu0
  %v6030 = vadd.f32 0.0, %v6029
  %v6031 = vpop.f32.mrb[0].mxu0
  %v6032 = vadd.f32 0.0, %v6031
  %6033 = vdwg.mxu0
  %6034 = vmatprep.subr.bf16.mxu0 %v5578
  %6035 = vmatpush1.bf16.msra.mxu0 %v5577
  %6036 = vmatprep.subr.bf16.mxu0 %v5586
  %6037 = vmatpush1.bf16.msra.mxu0 %v5585
  %6038 = vmatprep.subr.bf16.mxu0 %v5594
  %6039 = vmatpush1.bf16.msra.mxu0 %v5593
  %6040 = vmatprep.subr.bf16.mxu0 %v5602
  %6041 = vmatpush1.bf16.msra.mxu0 %v5601
  %6042 = vmatprep.subr.bf16.mxu0 %v5610
  %6043 = vmatpush1.bf16.msra.mxu0 %v5609
  %6044 = vmatprep.subr.bf16.mxu0 %v5618
  %6045 = vmatpush1.bf16.msra.mxu0 %v5617
  %6046 = vmatprep.subr.bf16.mxu0 %v5626
  %6047 = vmatpush1.bf16.msra.mxu0 %v5625
  %6048 = vmatprep.subr.bf16.mxu0 %v5634
  %6049 = vmatpush1.bf16.msra.mxu0 %v5633
  %6050 = vmatprep.subr.bf16.mxu0 %v5642
  %6051 = vmatpush1.bf16.msra.mxu0 %v5641
  %6052 = vmatprep.subr.bf16.mxu0 %v5650
  %6053 = vmatpush1.bf16.msra.mxu0 %v5649
  %6054 = vmatprep.subr.bf16.mxu0 %v5658
  %6055 = vmatpush1.bf16.msra.mxu0 %v5657
  %6056 = vmatprep.subr.bf16.mxu0 %v5666
  %6057 = vmatpush1.bf16.msra.mxu0 %v5665
  %6058 = vmatprep.subr.bf16.mxu0 %v5674
  %6059 = vmatpush1.bf16.msra.mxu0 %v5673
  %6060 = vmatprep.subr.bf16.mxu0 %v5682
  %6061 = vmatpush1.bf16.msra.mxu0 %v5681
  %6062 = vmatprep.subr.bf16.mxu0 %v5690
  %6063 = vmatpush1.bf16.msra.mxu0 %v5689
  %6064 = vmatprep.subr.bf16.mxu0 %v5698
  %6065 = vmatpush1.bf16.msra.mxu0 %v5697
  %6066 = vmatprep.mubr.bf16.mxu0 %v2532
  %6067 = vmatmul.mubr.bf16.gmra.mrb[0].mxu0 %v2531
  %v6068 = vpop.f32.mrb[0].mxu0
  %v6069 = vadd.f32 %v5996, %v6068
  %v6070 = vpop.f32.mrb[0].mxu0
  %v6071 = vadd.f32 %v5998, %v6070
  %v6072 = vpop.f32.mrb[0].mxu0
  %v6073 = vadd.f32 %v6000, %v6072
  %v6074 = vpop.f32.mrb[0].mxu0
  %v6075 = vadd.f32 %v6002, %v6074
  %6076 = vmatprep.mubr.bf16.mxu0 %v2536
  %6077 = vmatmul.mubr.bf16.gmra.mrb[0].mxu0 %v2535
  %v6078 = vpop.f32.mrb[0].mxu0
  %v6079 = vadd.f32 %v6006, %v6078
  %v6080 = vpop.f32.mrb[0].mxu0
  %v6081 = vadd.f32 %v6008, %v6080
  %v6082 = vpop.f32.mrb[0].mxu0
  %v6083 = vadd.f32 %v6010, %v6082
  %v6084 = vpop.f32.mrb[0].mxu0
  %v6085 = vadd.f32 %v6012, %v6084
  %6086 = vmatprep.mubr.bf16.mxu0 %v2540
  %6087 = vmatmul.mubr.bf16.gmra.mrb[0].mxu0 %v2539
  %v6088 = vpop.f32.mrb[0].mxu0
  %v6089 = vadd.f32 %v6016, %v6088
  %v6090 = vpop.f32.mrb[0].mxu0
  %v6091 = vadd.f32 %v6018, %v6090
  %v6092 = vpop.f32.mrb[0].mxu0
  %v6093 = vadd.f32 %v6020, %v6092
  %v6094 = vpop.f32.mrb[0].mxu0
  %v6095 = vadd.f32 %v6022, %v6094
  %6096 = vmatprep.mubr.bf16.mxu0 %v2544
  %6097 = vmatmul.mubr.bf16.gmra.mrb[0].mxu0 %v2543
  %v6098 = vpop.f32.mrb[0].mxu0
  %v6099 = vadd.f32 %v6026, %v6098
  %v6100 = vpop.f32.mrb[0].mxu0
  %v6101 = vadd.f32 %v6028, %v6100
  %v6102 = vpop.f32.mrb[0].mxu0
  %v6103 = vadd.f32 %v6030, %v6102
  %v6104 = vpop.f32.mrb[0].mxu0
  %v6105 = vadd.f32 %v6032, %v6104
  %6106 = vdwg.mxu0
  %6107 = vmatprep.subr.bf16.mxu0 %v5452
  %6108 = vmatpush1.bf16.msra.mxu0 %v5451
  %6109 = vmatprep.subr.bf16.mxu0 %v5460
  %6110 = vmatpush1.bf16.msra.mxu0 %v5459
  %6111 = vmatprep.subr.bf16.mxu0 %v5468
  %6112 = vmatpush1.bf16.msra.mxu0 %v5467
  %6113 = vmatprep.subr.bf16.mxu0 %v5476
  %6114 = vmatpush1.bf16.msra.mxu0 %v5475
  %6115 = vmatprep.subr.bf16.mxu0 %v5484
  %6116 = vmatpush1.bf16.msra.mxu0 %v5483
  %6117 = vmatprep.subr.bf16.mxu0 %v5492
  %6118 = vmatpush1.bf16.msra.mxu0 %v5491
  %6119 = vmatprep.subr.bf16.mxu0 %v5500
  %6120 = vmatpush1.bf16.msra.mxu0 %v5499
  %6121 = vmatprep.subr.bf16.mxu0 %v5508
  %6122 = vmatpush1.bf16.msra.mxu0 %v5507
  %6123 = vmatprep.subr.bf16.mxu0 %v5516
  %6124 = vmatpush1.bf16.msra.mxu0 %v5515
  %6125 = vmatprep.subr.bf16.mxu0 %v5524
  %6126 = vmatpush1.bf16.msra.mxu0 %v5523
  %6127 = vmatprep.subr.bf16.mxu0 %v5532
  %6128 = vmatpush1.bf16.msra.mxu0 %v5531
  %6129 = vmatprep.subr.bf16.mxu0 %v5540
  %6130 = vmatpush1.bf16.msra.mxu0 %v5539
  %6131 = vmatprep.subr.bf16.mxu0 %v5548
  %6132 = vmatpush1.bf16.msra.mxu0 %v5547
  %6133 = vmatprep.subr.bf16.mxu0 %v5556
  %6134 = vmatpush1.bf16.msra.mxu0 %v5555
  %6135 = vmatprep.subr.bf16.mxu0 %v5564
  %6136 = vmatpush1.bf16.msra.mxu0 %v5563
  %6137 = vmatprep.subr.bf16.mxu0 %v5572
  %6138 = vmatpush1.bf16.msra.mxu0 %v5571
  %6139 = vmatprep.mubr.bf16.mxu0 %v2530
  %6140 = vmatmul.mubr.bf16.gmra.mrb[0].mxu0 %v2529
  %v6141 = vpop.f32.mrb[0].mxu0
  %v6142 = vadd.f32 0.0, %v6141
  %v6143 = vpop.f32.mrb[0].mxu0
  %v6144 = vadd.f32 0.0, %v6143
  %v6145 = vpop.f32.mrb[0].mxu0
  %v6146 = vadd.f32 0.0, %v6145
  %v6147 = vpop.f32.mrb[0].mxu0
  %v6148 = vadd.f32 0.0, %v6147
  %6149 = vmatprep.mubr.bf16.mxu0 %v2534
  %6150 = vmatmul.mubr.bf16.gmra.mrb[0].mxu0 %v2533
  %v6151 = vpop.f32.mrb[0].mxu0
  %v6152 = vadd.f32 0.0, %v6151
  %v6153 = vpop.f32.mrb[0].mxu0
  %v6154 = vadd.f32 0.0, %v6153
  %v6155 = vpop.f32.mrb[0].mxu0
  %v6156 = vadd.f32 0.0, %v6155
  %v6157 = vpop.f32.mrb[0].mxu0
  %v6158 = vadd.f32 0.0, %v6157
  %6159 = vmatprep.mubr.bf16.mxu0 %v2538
  %6160 = vmatmul.mubr.bf16.gmra.mrb[0].mxu0 %v2537
  %v6161 = vpop.f32.mrb[0].mxu0
  %v6162 = vadd.f32 0.0, %v6161
  %v6163 = vpop.f32.mrb[0].mxu0
  %v6164 = vadd.f32 0.0, %v6163
  %v6165 = vpop.f32.mrb[0].mxu0
  %v6166 = vadd.f32 0.0, %v6165
  %v6167 = vpop.f32.mrb[0].mxu0
  %v6168 = vadd.f32 0.0, %v6167
  %6169 = vmatprep.mubr.bf16.mxu0 %v2542
  %6170 = vmatmul.mubr.bf16.gmra.mrb[0].mxu0 %v2541
  %v6171 = vpop.f32.mrb[0].mxu0
  %v6172 = vadd.f32 0.0, %v6171
  %v6173 = vpop.f32.mrb[0].mxu0
  %v6174 = vadd.f32 0.0, %v6173
  %v6175 = vpop.f32.mrb[0].mxu0
  %v6176 = vadd.f32 0.0, %v6175
  %v6177 = vpop.f32.mrb[0].mxu0
  %v6178 = vadd.f32 0.0, %v6177
  %6179 = vdwg.mxu0
  %6180 = vmatprep.subr.bf16.mxu0 %v5580
  %6181 = vmatpush1.bf16.msra.mxu0 %v5579
  %6182 = vmatprep.subr.bf16.mxu0 %v5588
  %6183 = vmatpush1.bf16.msra.mxu0 %v5587
  %6184 = vmatprep.subr.bf16.mxu0 %v5596
  %6185 = vmatpush1.bf16.msra.mxu0 %v5595
  %6186 = vmatprep.subr.bf16.mxu0 %v5604
  %6187 = vmatpush1.bf16.msra.mxu0 %v5603
  %6188 = vmatprep.subr.bf16.mxu0 %v5612
  %6189 = vmatpush1.bf16.msra.mxu0 %v5611
  %6190 = vmatprep.subr.bf16.mxu0 %v5620
  %6191 = vmatpush1.bf16.msra.mxu0 %v5619
  %6192 = vmatprep.subr.bf16.mxu0 %v5628
  %6193 = vmatpush1.bf16.msra.mxu0 %v5627
  %6194 = vmatprep.subr.bf16.mxu0 %v5636
  %6195 = vmatpush1.bf16.msra.mxu0 %v5635
  %6196 = vmatprep.subr.bf16.mxu0 %v5644
  %6197 = vmatpush1.bf16.msra.mxu0 %v5643
  %6198 = vmatprep.subr.bf16.mxu0 %v5652
  %6199 = vmatpush1.bf16.msra.mxu0 %v5651
  %6200 = vmatprep.subr.bf16.mxu0 %v5660
  %6201 = vmatpush1.bf16.msra.mxu0 %v5659
  %6202 = vmatprep.subr.bf16.mxu0 %v5668
  %6203 = vmatpush1.bf16.msra.mxu0 %v5667
  %6204 = vmatprep.subr.bf16.mxu0 %v5676
  %6205 = vmatpush1.bf16.msra.mxu0 %v5675
  %6206 = vmatprep.subr.bf16.mxu0 %v5684
  %6207 = vmatpush1.bf16.msra.mxu0 %v5683
  %6208 = vmatprep.subr.bf16.mxu0 %v5692
  %6209 = vmatpush1.bf16.msra.mxu0 %v5691
  %6210 = vmatprep.subr.bf16.mxu0 %v5700
  %6211 = vmatpush1.bf16.msra.mxu0 %v5699
  %6212 = vmatprep.mubr.bf16.mxu0 %v2532
  %6213 = vmatmul.mubr.bf16.gmra.mrb[0].mxu0 %v2531
  %v6214 = vpop.f32.mrb[0].mxu0
  %v6215 = vadd.f32 %v6142, %v6214
  %v6216 = vpop.f32.mrb[0].mxu0
  %v6217 = vadd.f32 %v6144, %v6216
  %v6218 = vpop.f32.mrb[0].mxu0
  %v6219 = vadd.f32 %v6146, %v6218
  %v6220 = vpop.f32.mrb[0].mxu0
  %v6221 = vadd.f32 %v6148, %v6220
  %6222 = vmatprep.mubr.bf16.mxu0 %v2536
  %6223 = vmatmul.mubr.bf16.gmra.mrb[0].mxu0 %v2535
  %v6224 = vpop.f32.mrb[0].mxu0
  %v6225 = vadd.f32 %v6152, %v6224
  %v6226 = vpop.f32.mrb[0].mxu0
  %v6227 = vadd.f32 %v6154, %v6226
  %v6228 = vpop.f32.mrb[0].mxu0
  %v6229 = vadd.f32 %v6156, %v6228
  %v6230 = vpop.f32.mrb[0].mxu0
  %v6231 = vadd.f32 %v6158, %v6230
  %6232 = vmatprep.mubr.bf16.mxu0 %v2540
  %6233 = vmatmul.mubr.bf16.gmra.mrb[0].mxu0 %v2539
  %v6234 = vpop.f32.mrb[0].mxu0
  %v6235 = vadd.f32 %v6162, %v6234
  %v6236 = vpop.f32.mrb[0].mxu0
  %v6237 = vadd.f32 %v6164, %v6236
  %v6238 = vpop.f32.mrb[0].mxu0
  %v6239 = vadd.f32 %v6166, %v6238
  %v6240 = vpop.f32.mrb[0].mxu0
  %v6241 = vadd.f32 %v6168, %v6240
  %6242 = vmatprep.mubr.bf16.mxu0 %v2544
  %6243 = vmatmul.mubr.bf16.gmra.mrb[0].mxu0 %v2543
  %v6244 = vpop.f32.mrb[0].mxu0
  %v6245 = vadd.f32 %v6172, %v6244
  %v6246 = vpop.f32.mrb[0].mxu0
  %v6247 = vadd.f32 %v6174, %v6246
  %v6248 = vpop.f32.mrb[0].mxu0
  %v6249 = vadd.f32 %v6176, %v6248
  %v6250 = vpop.f32.mrb[0].mxu0
  %v6251 = vadd.f32 %v6178, %v6250
  %6252 = vdwg.mxu0
  %6253 = vmatprep.subr.bf16.mxu0 %v5454
  %6254 = vmatpush1.bf16.msra.mxu0 %v5453
  %6255 = vmatprep.subr.bf16.mxu0 %v5462
  %6256 = vmatpush1.bf16.msra.mxu0 %v5461
  %6257 = vmatprep.subr.bf16.mxu0 %v5470
  %6258 = vmatpush1.bf16.msra.mxu0 %v5469
  %6259 = vmatprep.subr.bf16.mxu0 %v5478
  %6260 = vmatpush1.bf16.msra.mxu0 %v5477
  %6261 = vmatprep.subr.bf16.mxu0 %v5486
  %6262 = vmatpush1.bf16.msra.mxu0 %v5485
  %6263 = vmatprep.subr.bf16.mxu0 %v5494
  %6264 = vmatpush1.bf16.msra.mxu0 %v5493
  %6265 = vmatprep.subr.bf16.mxu0 %v5502
  %6266 = vmatpush1.bf16.msra.mxu0 %v5501
  %6267 = vmatprep.subr.bf16.mxu0 %v5510
  %6268 = vmatpush1.bf16.msra.mxu0 %v5509
  %6269 = vmatprep.subr.bf16.mxu0 %v5518
  %6270 = vmatpush1.bf16.msra.mxu0 %v5517
  %6271 = vmatprep.subr.bf16.mxu0 %v5526
  %6272 = vmatpush1.bf16.msra.mxu0 %v5525
  %6273 = vmatprep.subr.bf16.mxu0 %v5534
  %6274 = vmatpush1.bf16.msra.mxu0 %v5533
  %6275 = vmatprep.subr.bf16.mxu0 %v5542
  %6276 = vmatpush1.bf16.msra.mxu0 %v5541
  %6277 = vmatprep.subr.bf16.mxu0 %v5550
  %6278 = vmatpush1.bf16.msra.mxu0 %v5549
  %6279 = vmatprep.subr.bf16.mxu0 %v5558
  %6280 = vmatpush1.bf16.msra.mxu0 %v5557
  %6281 = vmatprep.subr.bf16.mxu0 %v5566
  %6282 = vmatpush1.bf16.msra.mxu0 %v5565
  %6283 = vmatprep.subr.bf16.mxu0 %v5574
  %6284 = vmatpush1.bf16.msra.mxu0 %v5573
  %6285 = vmatprep.mubr.bf16.mxu0 %v2530
  %6286 = vmatmul.mubr.bf16.gmra.mrb[0].mxu0 %v2529
  %v6287 = vpop.f32.mrb[0].mxu0
  %v6288 = vadd.f32 0.0, %v6287
  %v6289 = vpop.f32.mrb[0].mxu0
  %v6290 = vadd.f32 0.0, %v6289
  %v6291 = vpop.f32.mrb[0].mxu0
  %v6292 = vadd.f32 0.0, %v6291
  %v6293 = vpop.f32.mrb[0].mxu0
  %v6294 = vadd.f32 0.0, %v6293
  %6295 = vmatprep.mubr.bf16.mxu0 %v2534
  %6296 = vmatmul.mubr.bf16.gmra.mrb[0].mxu0 %v2533
  %v6297 = vpop.f32.mrb[0].mxu0
  %v6298 = vadd.f32 0.0, %v6297
  %v6299 = vpop.f32.mrb[0].mxu0
  %v6300 = vadd.f32 0.0, %v6299
  %v6301 = vpop.f32.mrb[0].mxu0
  %v6302 = vadd.f32 0.0, %v6301
  %v6303 = vpop.f32.mrb[0].mxu0
  %v6304 = vadd.f32 0.0, %v6303
  %6305 = vmatprep.mubr.bf16.mxu0 %v2538
  %6306 = vmatmul.mubr.bf16.gmra.mrb[0].mxu0 %v2537
  %v6307 = vpop.f32.mrb[0].mxu0
  %v6308 = vadd.f32 0.0, %v6307
  %v6309 = vpop.f32.mrb[0].mxu0
  %v6310 = vadd.f32 0.0, %v6309
  %v6311 = vpop.f32.mrb[0].mxu0
  %v6312 = vadd.f32 0.0, %v6311
  %v6313 = vpop.f32.mrb[0].mxu0
  %v6314 = vadd.f32 0.0, %v6313
  %6315 = vmatprep.mubr.bf16.mxu0 %v2542
  %6316 = vmatmul.mubr.bf16.gmra.mrb[0].mxu0 %v2541
  %v6317 = vpop.f32.mrb[0].mxu0
  %v6318 = vadd.f32 0.0, %v6317
  %v6319 = vpop.f32.mrb[0].mxu0
  %v6320 = vadd.f32 0.0, %v6319
  %v6321 = vpop.f32.mrb[0].mxu0
  %v6322 = vadd.f32 0.0, %v6321
  %v6323 = vpop.f32.mrb[0].mxu0
  %v6324 = vadd.f32 0.0, %v6323
  %6325 = vdwg.mxu0
  %6326 = vmatprep.subr.bf16.mxu0 %v5582
  %6327 = vmatpush1.bf16.msra.mxu0 %v5581
  %6328 = vmatprep.subr.bf16.mxu0 %v5590
  %6329 = vmatpush1.bf16.msra.mxu0 %v5589
  %6330 = vmatprep.subr.bf16.mxu0 %v5598
  %6331 = vmatpush1.bf16.msra.mxu0 %v5597
  %6332 = vmatprep.subr.bf16.mxu0 %v5606
  %6333 = vmatpush1.bf16.msra.mxu0 %v5605
  %6334 = vmatprep.subr.bf16.mxu0 %v5614
  %6335 = vmatpush1.bf16.msra.mxu0 %v5613
  %6336 = vmatprep.subr.bf16.mxu0 %v5622
  %6337 = vmatpush1.bf16.msra.mxu0 %v5621
  %6338 = vmatprep.subr.bf16.mxu0 %v5630
  %6339 = vmatpush1.bf16.msra.mxu0 %v5629
  %6340 = vmatprep.subr.bf16.mxu0 %v5638
  %6341 = vmatpush1.bf16.msra.mxu0 %v5637
  %6342 = vmatprep.subr.bf16.mxu0 %v5646
  %6343 = vmatpush1.bf16.msra.mxu0 %v5645
  %6344 = vmatprep.subr.bf16.mxu0 %v5654
  %6345 = vmatpush1.bf16.msra.mxu0 %v5653
  %6346 = vmatprep.subr.bf16.mxu0 %v5662
  %6347 = vmatpush1.bf16.msra.mxu0 %v5661
  %6348 = vmatprep.subr.bf16.mxu0 %v5670
  %6349 = vmatpush1.bf16.msra.mxu0 %v5669
  %6350 = vmatprep.subr.bf16.mxu0 %v5678
  %6351 = vmatpush1.bf16.msra.mxu0 %v5677
  %6352 = vmatprep.subr.bf16.mxu0 %v5686
  %6353 = vmatpush1.bf16.msra.mxu0 %v5685
  %6354 = vmatprep.subr.bf16.mxu0 %v5694
  %6355 = vmatpush1.bf16.msra.mxu0 %v5693
  %6356 = vmatprep.subr.bf16.mxu0 %v5702
  %6357 = vmatpush1.bf16.msra.mxu0 %v5701
  %6358 = vmatprep.mubr.bf16.mxu0 %v2532
  %6359 = vmatmul.mubr.bf16.gmra.mrb[0].mxu0 %v2531
  %v6360 = vpop.f32.mrb[0].mxu0
  %v6361 = vadd.f32 %v6288, %v6360
  %v6362 = vpop.f32.mrb[0].mxu0
  %v6363 = vadd.f32 %v6290, %v6362
  %v6364 = vpop.f32.mrb[0].mxu0
  %v6365 = vadd.f32 %v6292, %v6364
  %v6366 = vpop.f32.mrb[0].mxu0
  %v6367 = vadd.f32 %v6294, %v6366
  %6368 = vmatprep.mubr.bf16.mxu0 %v2536
  %6369 = vmatmul.mubr.bf16.gmra.mrb[0].mxu0 %v2535
  %v6370 = vpop.f32.mrb[0].mxu0
  %v6371 = vadd.f32 %v6298, %v6370
  %v6372 = vpop.f32.mrb[0].mxu0
  %v6373 = vadd.f32 %v6300, %v6372
  %v6374 = vpop.f32.mrb[0].mxu0
  %v6375 = vadd.f32 %v6302, %v6374
  %v6376 = vpop.f32.mrb[0].mxu0
  %v6377 = vadd.f32 %v6304, %v6376
  %6378 = vmatprep.mubr.bf16.mxu0 %v2540
  %6379 = vmatmul.mubr.bf16.gmra.mrb[0].mxu0 %v2539
  %v6380 = vpop.f32.mrb[0].mxu0
  %v6381 = vadd.f32 %v6308, %v6380
  %v6382 = vpop.f32.mrb[0].mxu0
  %v6383 = vadd.f32 %v6310, %v6382
  %v6384 = vpop.f32.mrb[0].mxu0
  %v6385 = vadd.f32 %v6312, %v6384
  %v6386 = vpop.f32.mrb[0].mxu0
  %v6387 = vadd.f32 %v6314, %v6386
  %6388 = vmatprep.mubr.bf16.mxu0 %v2544
  %6389 = vmatmul.mubr.bf16.gmra.mrb[0].mxu0 %v2543
  %v6390 = vpop.f32.mrb[0].mxu0
  %v6391 = vadd.f32 %v6318, %v6390
  %v6392 = vpop.f32.mrb[0].mxu0
  %v6393 = vadd.f32 %v6320, %v6392
  %v6394 = vpop.f32.mrb[0].mxu0
  %v6395 = vadd.f32 %v6322, %v6394
  %v6396 = vpop.f32.mrb[0].mxu0
  %v6397 = vadd.f32 %v6324, %v6396
  %6398 = vdwg.mxu0
  %6399 = vmatprep.subr.bf16.mxu0 %v5456
  %6400 = vmatpush1.bf16.msra.mxu0 %v5455
  %6401 = vmatprep.subr.bf16.mxu0 %v5464
  %6402 = vmatpush1.bf16.msra.mxu0 %v5463
  %6403 = vmatprep.subr.bf16.mxu0 %v5472
  %6404 = vmatpush1.bf16.msra.mxu0 %v5471
  %6405 = vmatprep.subr.bf16.mxu0 %v5480
  %6406 = vmatpush1.bf16.msra.mxu0 %v5479
  %6407 = vmatprep.subr.bf16.mxu0 %v5488
  %6408 = vmatpush1.bf16.msra.mxu0 %v5487
  %6409 = vmatprep.subr.bf16.mxu0 %v5496
  %6410 = vmatpush1.bf16.msra.mxu0 %v5495
  %6411 = vmatprep.subr.bf16.mxu0 %v5504
  %6412 = vmatpush1.bf16.msra.mxu0 %v5503
  %6413 = vmatprep.subr.bf16.mxu0 %v5512
  %6414 = vmatpush1.bf16.msra.mxu0 %v5511
  %6415 = vmatprep.subr.bf16.mxu0 %v5520
  %6416 = vmatpush1.bf16.msra.mxu0 %v5519
  %6417 = vmatprep.subr.bf16.mxu0 %v5528
  %6418 = vmatpush1.bf16.msra.mxu0 %v5527
  %6419 = vmatprep.subr.bf16.mxu0 %v5536
  %6420 = vmatpush1.bf16.msra.mxu0 %v5535
  %6421 = vmatprep.subr.bf16.mxu0 %v5544
  %6422 = vmatpush1.bf16.msra.mxu0 %v5543
  %6423 = vmatprep.subr.bf16.mxu0 %v5552
  %6424 = vmatpush1.bf16.msra.mxu0 %v5551
  %6425 = vmatprep.subr.bf16.mxu0 %v5560
  %6426 = vmatpush1.bf16.msra.mxu0 %v5559
  %6427 = vmatprep.subr.bf16.mxu0 %v5568
  %6428 = vmatpush1.bf16.msra.mxu0 %v5567
  %6429 = vmatprep.subr.bf16.mxu0 %v5576
  %6430 = vmatpush1.bf16.msra.mxu0 %v5575
  %6431 = vmatprep.mubr.bf16.mxu0 %v2530
  %6432 = vmatmul.mubr.bf16.gmra.mrb[0].mxu0 %v2529
  %v6433 = vpop.f32.mrb[0].mxu0
  %v6434 = vadd.f32 0.0, %v6433
  %v6435 = vpop.f32.mrb[0].mxu0
  %v6436 = vadd.f32 0.0, %v6435
  %v6437 = vpop.f32.mrb[0].mxu0
  %v6438 = vadd.f32 0.0, %v6437
  %v6439 = vpop.f32.mrb[0].mxu0
  %v6440 = vadd.f32 0.0, %v6439
  %6441 = vmatprep.mubr.bf16.mxu0 %v2534
  %6442 = vmatmul.mubr.bf16.gmra.mrb[0].mxu0 %v2533
  %v6443 = vpop.f32.mrb[0].mxu0
  %v6444 = vadd.f32 0.0, %v6443
  %v6445 = vpop.f32.mrb[0].mxu0
  %v6446 = vadd.f32 0.0, %v6445
  %v6447 = vpop.f32.mrb[0].mxu0
  %v6448 = vadd.f32 0.0, %v6447
  %v6449 = vpop.f32.mrb[0].mxu0
  %v6450 = vadd.f32 0.0, %v6449
  %6451 = vmatprep.mubr.bf16.mxu0 %v2538
  %6452 = vmatmul.mubr.bf16.gmra.mrb[0].mxu0 %v2537
  %v6453 = vpop.f32.mrb[0].mxu0
  %v6454 = vadd.f32 0.0, %v6453
  %v6455 = vpop.f32.mrb[0].mxu0
  %v6456 = vadd.f32 0.0, %v6455
  %v6457 = vpop.f32.mrb[0].mxu0
  %v6458 = vadd.f32 0.0, %v6457
  %v6459 = vpop.f32.mrb[0].mxu0
  %v6460 = vadd.f32 0.0, %v6459
  %6461 = vmatprep.mubr.bf16.mxu0 %v2542
  %6462 = vmatmul.mubr.bf16.gmra.mrb[0].mxu0 %v2541
  %v6463 = vpop.f32.mrb[0].mxu0
  %v6464 = vadd.f32 0.0, %v6463
  %v6465 = vpop.f32.mrb[0].mxu0
  %v6466 = vadd.f32 0.0, %v6465
  %v6467 = vpop.f32.mrb[0].mxu0
  %v6468 = vadd.f32 0.0, %v6467
  %v6469 = vpop.f32.mrb[0].mxu0
  %v6470 = vadd.f32 0.0, %v6469
  %6471 = vdwg.mxu0
  %6472 = vmatprep.subr.bf16.mxu0 %v5584
  %6473 = vmatpush1.bf16.msra.mxu0 %v5583
  %6474 = vmatprep.subr.bf16.mxu0 %v5592
  %6475 = vmatpush1.bf16.msra.mxu0 %v5591
  %6476 = vmatprep.subr.bf16.mxu0 %v5600
  %6477 = vmatpush1.bf16.msra.mxu0 %v5599
  %6478 = vmatprep.subr.bf16.mxu0 %v5608
  %6479 = vmatpush1.bf16.msra.mxu0 %v5607
  %6480 = vmatprep.subr.bf16.mxu0 %v5616
  %6481 = vmatpush1.bf16.msra.mxu0 %v5615
  %6482 = vmatprep.subr.bf16.mxu0 %v5624
  %6483 = vmatpush1.bf16.msra.mxu0 %v5623
  %6484 = vmatprep.subr.bf16.mxu0 %v5632
  %6485 = vmatpush1.bf16.msra.mxu0 %v5631
  %6486 = vmatprep.subr.bf16.mxu0 %v5640
  %6487 = vmatpush1.bf16.msra.mxu0 %v5639
  %6488 = vmatprep.subr.bf16.mxu0 %v5648
  %6489 = vmatpush1.bf16.msra.mxu0 %v5647
  %6490 = vmatprep.subr.bf16.mxu0 %v5656
  %6491 = vmatpush1.bf16.msra.mxu0 %v5655
  %6492 = vmatprep.subr.bf16.mxu0 %v5664
  %6493 = vmatpush1.bf16.msra.mxu0 %v5663
  %6494 = vmatprep.subr.bf16.mxu0 %v5672
  %6495 = vmatpush1.bf16.msra.mxu0 %v5671
  %6496 = vmatprep.subr.bf16.mxu0 %v5680
  %6497 = vmatpush1.bf16.msra.mxu0 %v5679
  %6498 = vmatprep.subr.bf16.mxu0 %v5688
  %6499 = vmatpush1.bf16.msra.mxu0 %v5687
  %6500 = vmatprep.subr.bf16.mxu0 %v5696
  %6501 = vmatpush1.bf16.msra.mxu0 %v5695
  %6502 = vmatprep.subr.bf16.mxu0 %v5704
  %6503 = vmatpush1.bf16.msra.mxu0 %v5703
  %6504 = vmatprep.mubr.bf16.mxu0 %v2532
  %6505 = vmatmul.mubr.bf16.gmra.mrb[0].mxu0 %v2531
  %v6506 = vpop.f32.mrb[0].mxu0
  %v6507 = vadd.f32 %v6434, %v6506
  %v6508 = vpop.f32.mrb[0].mxu0
  %v6509 = vadd.f32 %v6436, %v6508
  %v6510 = vpop.f32.mrb[0].mxu0
  %v6511 = vadd.f32 %v6438, %v6510
  %v6512 = vpop.f32.mrb[0].mxu0
  %v6513 = vadd.f32 %v6440, %v6512
  %6514 = vmatprep.mubr.bf16.mxu0 %v2536
  %6515 = vmatmul.mubr.bf16.gmra.mrb[0].mxu0 %v2535
  %v6516 = vpop.f32.mrb[0].mxu0
  %v6517 = vadd.f32 %v6444, %v6516
  %v6518 = vpop.f32.mrb[0].mxu0
  %v6519 = vadd.f32 %v6446, %v6518
  %v6520 = vpop.f32.mrb[0].mxu0
  %v6521 = vadd.f32 %v6448, %v6520
  %v6522 = vpop.f32.mrb[0].mxu0
  %v6523 = vadd.f32 %v6450, %v6522
  %6524 = vmatprep.mubr.bf16.mxu0 %v2540
  %6525 = vmatmul.mubr.bf16.gmra.mrb[0].mxu0 %v2539
  %v6526 = vpop.f32.mrb[0].mxu0
  %v6527 = vadd.f32 %v6454, %v6526
  %v6528 = vpop.f32.mrb[0].mxu0
  %v6529 = vadd.f32 %v6456, %v6528
  %v6530 = vpop.f32.mrb[0].mxu0
  %v6531 = vadd.f32 %v6458, %v6530
  %v6532 = vpop.f32.mrb[0].mxu0
  %v6533 = vadd.f32 %v6460, %v6532
  %6534 = vmatprep.mubr.bf16.mxu0 %v2544
  %6535 = vmatmul.mubr.bf16.gmra.mrb[0].mxu0 %v2543
  %v6536 = vpop.f32.mrb[0].mxu0
  %v6537 = vadd.f32 %v6464, %v6536
  %v6538 = vpop.f32.mrb[0].mxu0
  %v6539 = vadd.f32 %v6466, %v6538
  %v6540 = vpop.f32.mrb[0].mxu0
  %v6541 = vadd.f32 %v6468, %v6540
  %v6542 = vpop.f32.mrb[0].mxu0
  %v6543 = vadd.f32 %v6470, %v6542
  %6544 = vdwg.mxu0
  %v6609 = vrot.slane %v6069, 1
  %v6610 = vrot.slane %v6071, 1
  %v6611 = vrot.slane %v6215, 1
  %v6612 = vrot.slane %v6217, 1
  %v6613 = vrot.slane %v6361, 1
  %v6614 = vrot.slane %v6363, 1
  %v6615 = vrot.slane %v6507, 1
  %v6616 = vrot.slane %v6509, 1
  %v6617 = vrot.slane %v6073, 1
  %v6618 = vrot.slane %v6075, 1
  %v6619 = vrot.slane %v6219, 1
  %v6620 = vrot.slane %v6221, 1
  %v6621 = vrot.slane %v6365, 1
  %v6622 = vrot.slane %v6367, 1
  %v6623 = vrot.slane %v6511, 1
  %v6624 = vrot.slane %v6513, 1
  %v6625 = vrot.slane %v6079, 1
  %v6626 = vrot.slane %v6081, 1
  %v6627 = vrot.slane %v6225, 1
  %v6628 = vrot.slane %v6227, 1
  %v6629 = vrot.slane %v6371, 1
  %v6630 = vrot.slane %v6373, 1
  %v6631 = vrot.slane %v6517, 1
  %v6632 = vrot.slane %v6519, 1
  %v6633 = vrot.slane %v6083, 1
  %v6634 = vrot.slane %v6085, 1
  %v6635 = vrot.slane %v6229, 1
  %v6636 = vrot.slane %v6231, 1
  %v6637 = vrot.slane %v6375, 1
  %v6638 = vrot.slane %v6377, 1
  %v6639 = vrot.slane %v6521, 1
  %v6640 = vrot.slane %v6523, 1
  %v6641 = vrot.slane %v6089, 1
  %v6642 = vrot.slane %v6091, 1
  %v6643 = vrot.slane %v6235, 1
  %v6644 = vrot.slane %v6237, 1
  %v6645 = vrot.slane %v6381, 1
  %v6646 = vrot.slane %v6383, 1
  %v6647 = vrot.slane %v6527, 1
  %v6648 = vrot.slane %v6529, 1
  %v6649 = vrot.slane %v6093, 1
  %v6650 = vrot.slane %v6095, 1
  %v6651 = vrot.slane %v6239, 1
  %v6652 = vrot.slane %v6241, 1
  %v6653 = vrot.slane %v6385, 1
  %v6654 = vrot.slane %v6387, 1
  %v6655 = vrot.slane %v6531, 1
  %v6656 = vrot.slane %v6533, 1
  %v6657 = vrot.slane %v6099, 1
  %v6658 = vrot.slane %v6101, 1
  %v6659 = vrot.slane %v6245, 1
  %v6660 = vrot.slane %v6247, 1
  %v6661 = vrot.slane %v6391, 1
  %v6662 = vrot.slane %v6393, 1
  %v6663 = vrot.slane %v6537, 1
  %v6664 = vrot.slane %v6539, 1
  %v6665 = vrot.slane %v6103, 1
  %v6666 = vrot.slane %v6105, 1
  %v6667 = vrot.slane %v6249, 1
  %v6668 = vrot.slane %v6251, 1
  %v6669 = vrot.slane %v6395, 1
  %v6670 = vrot.slane %v6397, 1
  %v6671 = vrot.slane %v6541, 1
  %v6672 = vrot.slane %v6543, 1
  %v6737 = vadd.f32 %v3949, %v6609
  %v6738 = vadd.f32 %v3951, %v6610
  %v6739 = vadd.f32 %v4095, %v6611
  %v6740 = vadd.f32 %v4097, %v6612
  %v6741 = vadd.f32 %v4241, %v6613
  %v6742 = vadd.f32 %v4243, %v6614
  %v6743 = vadd.f32 %v4387, %v6615
  %v6744 = vadd.f32 %v4389, %v6616
  %v6745 = vadd.f32 %v3953, %v6617
  %v6746 = vadd.f32 %v3955, %v6618
  %v6747 = vadd.f32 %v4099, %v6619
  %v6748 = vadd.f32 %v4101, %v6620
  %v6749 = vadd.f32 %v4245, %v6621
  %v6750 = vadd.f32 %v4247, %v6622
  %v6751 = vadd.f32 %v4391, %v6623
  %v6752 = vadd.f32 %v4393, %v6624
  %v6753 = vadd.f32 %v3959, %v6625
  %v6754 = vadd.f32 %v3961, %v6626
  %v6755 = vadd.f32 %v4105, %v6627
  %v6756 = vadd.f32 %v4107, %v6628
  %v6757 = vadd.f32 %v4251, %v6629
  %v6758 = vadd.f32 %v4253, %v6630
  %v6759 = vadd.f32 %v4397, %v6631
  %v6760 = vadd.f32 %v4399, %v6632
  %v6761 = vadd.f32 %v3963, %v6633
  %v6762 = vadd.f32 %v3965, %v6634
  %v6763 = vadd.f32 %v4109, %v6635
  %v6764 = vadd.f32 %v4111, %v6636
  %v6765 = vadd.f32 %v4255, %v6637
  %v6766 = vadd.f32 %v4257, %v6638
  %v6767 = vadd.f32 %v4401, %v6639
  %v6768 = vadd.f32 %v4403, %v6640
  %v6769 = vadd.f32 %v3969, %v6641
  %v6770 = vadd.f32 %v3971, %v6642
  %v6771 = vadd.f32 %v4115, %v6643
  %v6772 = vadd.f32 %v4117, %v6644
  %v6773 = vadd.f32 %v4261, %v6645
  %v6774 = vadd.f32 %v4263, %v6646
  %v6775 = vadd.f32 %v4407, %v6647
  %v6776 = vadd.f32 %v4409, %v6648
  %v6777 = vadd.f32 %v3973, %v6649
  %v6778 = vadd.f32 %v3975, %v6650
  %v6779 = vadd.f32 %v4119, %v6651
  %v6780 = vadd.f32 %v4121, %v6652
  %v6781 = vadd.f32 %v4265, %v6653
  %v6782 = vadd.f32 %v4267, %v6654
  %v6783 = vadd.f32 %v4411, %v6655
  %v6784 = vadd.f32 %v4413, %v6656
  %v6785 = vadd.f32 %v3979, %v6657
  %v6786 = vadd.f32 %v3981, %v6658
  %v6787 = vadd.f32 %v4125, %v6659
  %v6788 = vadd.f32 %v4127, %v6660
  %v6789 = vadd.f32 %v4271, %v6661
  %v6790 = vadd.f32 %v4273, %v6662
  %v6791 = vadd.f32 %v4417, %v6663
  %v6792 = vadd.f32 %v4419, %v6664
  %v6793 = vadd.f32 %v3983, %v6665
  %v6794 = vadd.f32 %v3985, %v6666
  %v6795 = vadd.f32 %v4129, %v6667
  %v6796 = vadd.f32 %v4131, %v6668
  %v6797 = vadd.f32 %v4275, %v6669
  %v6798 = vadd.f32 %v4277, %v6670
  %v6799 = vadd.f32 %v4421, %v6671
  %v6800 = vadd.f32 %v4423, %v6672
  %v6801 = vld [vmem:[%s6] sm:$0xff]
  %v6803 = vlaneseq
  %v6804 = vshrl.u32 %v6803, 7
  %v6805 = vsub.s32 0, %v6804
  %v6806 = vrot.slane %v6801, %v6805
  %v6807 = vlaneseq
  %v6808 = vshrl.u32 %v6807, 7
  %v6809 = vsub.s32 1, %v6808
  %v6810 = vrot.slane %v6801, %v6809
  %v6811 = vlaneseq
  %v6812 = vshrl.u32 %v6811, 7
  %v6813 = vsub.s32 2, %v6812
  %v6814 = vrot.slane %v6801, %v6813
  %v6815 = vlaneseq
  %v6816 = vshrl.u32 %v6815, 7
  %v6817 = vsub.s32 3, %v6816
  %v6818 = vrot.slane %v6801, %v6817
  %v6819 = vlaneseq
  %v6820 = vshrl.u32 %v6819, 7
  %v6821 = vsub.s32 4, %v6820
  %v6822 = vrot.slane %v6801, %v6821
  %v6823 = vlaneseq
  %v6824 = vshrl.u32 %v6823, 7
  %v6825 = vsub.s32 5, %v6824
  %v6826 = vrot.slane %v6801, %v6825
  %v6827 = vlaneseq
  %v6828 = vshrl.u32 %v6827, 7
  %v6829 = vsub.s32 6, %v6828
  %v6830 = vrot.slane %v6801, %v6829
  %v6831 = vlaneseq
  %v6832 = vshrl.u32 %v6831, 7
  %v6833 = vsub.s32 7, %v6832
  %v6834 = vrot.slane %v6801, %v6833
  %v6843 = vadd.f32 %v6737, %v6806
  %v6844 = vadd.f32 %v6738, %v6810
  %v6845 = vadd.f32 %v6739, %v6814
  %v6846 = vadd.f32 %v6740, %v6818
  %v6847 = vadd.f32 %v6741, %v6822
  %v6848 = vadd.f32 %v6742, %v6826
  %v6849 = vadd.f32 %v6743, %v6830
  %v6850 = vadd.f32 %v6744, %v6834
  %v6851 = vadd.f32 %v6745, %v6806
  %v6852 = vadd.f32 %v6746, %v6810
  %v6853 = vadd.f32 %v6747, %v6814
  %v6854 = vadd.f32 %v6748, %v6818
  %v6855 = vadd.f32 %v6749, %v6822
  %v6856 = vadd.f32 %v6750, %v6826
  %v6857 = vadd.f32 %v6751, %v6830
  %v6858 = vadd.f32 %v6752, %v6834
  %v6859 = vadd.f32 %v6753, %v6806
  %v6860 = vadd.f32 %v6754, %v6810
  %v6861 = vadd.f32 %v6755, %v6814
  %v6862 = vadd.f32 %v6756, %v6818
  %v6863 = vadd.f32 %v6757, %v6822
  %v6864 = vadd.f32 %v6758, %v6826
  %v6865 = vadd.f32 %v6759, %v6830
  %v6866 = vadd.f32 %v6760, %v6834
  %v6867 = vadd.f32 %v6761, %v6806
  %v6868 = vadd.f32 %v6762, %v6810
  %v6869 = vadd.f32 %v6763, %v6814
  %v6870 = vadd.f32 %v6764, %v6818
  %v6871 = vadd.f32 %v6765, %v6822
  %v6872 = vadd.f32 %v6766, %v6826
  %v6873 = vadd.f32 %v6767, %v6830
  %v6874 = vadd.f32 %v6768, %v6834
  %v6875 = vadd.f32 %v6769, %v6806
  %v6876 = vadd.f32 %v6770, %v6810
  %v6877 = vadd.f32 %v6771, %v6814
  %v6878 = vadd.f32 %v6772, %v6818
  %v6879 = vadd.f32 %v6773, %v6822
  %v6880 = vadd.f32 %v6774, %v6826
  %v6881 = vadd.f32 %v6775, %v6830
  %v6882 = vadd.f32 %v6776, %v6834
  %v6883 = vadd.f32 %v6777, %v6806
  %v6884 = vadd.f32 %v6778, %v6810
  %v6885 = vadd.f32 %v6779, %v6814
  %v6886 = vadd.f32 %v6780, %v6818
  %v6887 = vadd.f32 %v6781, %v6822
  %v6888 = vadd.f32 %v6782, %v6826
  %v6889 = vadd.f32 %v6783, %v6830
  %v6890 = vadd.f32 %v6784, %v6834
  %v6891 = vadd.f32 %v6785, %v6806
  %v6892 = vadd.f32 %v6786, %v6810
  %v6893 = vadd.f32 %v6787, %v6814
  %v6894 = vadd.f32 %v6788, %v6818
  %v6895 = vadd.f32 %v6789, %v6822
  %v6896 = vadd.f32 %v6790, %v6826
  %v6897 = vadd.f32 %v6791, %v6830
  %v6898 = vadd.f32 %v6792, %v6834
  %v6899 = vadd.f32 %v6793, %v6806
  %v6900 = vadd.f32 %v6794, %v6810
  %v6901 = vadd.f32 %v6795, %v6814
  %v6902 = vadd.f32 %v6796, %v6818
  %v6903 = vadd.f32 %v6797, %v6822
  %v6904 = vadd.f32 %v6798, %v6826
  %v6905 = vadd.f32 %v6799, %v6830
  %v6906 = vadd.f32 %v6800, %v6834
  %v6907 = vmax.f32 %v6843, 0.0
  %v6908 = vmax.f32 %v6844, 0.0
  %v6909 = vmax.f32 %v6845, 0.0
  %v6910 = vmax.f32 %v6846, 0.0
  %v6911 = vmax.f32 %v6847, 0.0
  %v6912 = vmax.f32 %v6848, 0.0
  %v6913 = vmax.f32 %v6849, 0.0
  %v6914 = vmax.f32 %v6850, 0.0
  %v6915 = vmax.f32 %v6851, 0.0
  %v6916 = vmax.f32 %v6852, 0.0
  %v6917 = vmax.f32 %v6853, 0.0
  %v6918 = vmax.f32 %v6854, 0.0
  %v6919 = vmax.f32 %v6855, 0.0
  %v6920 = vmax.f32 %v6856, 0.0
  %v6921 = vmax.f32 %v6857, 0.0
  %v6922 = vmax.f32 %v6858, 0.0
  %v6923 = vmax.f32 %v6859, 0.0
  %v6924 = vmax.f32 %v6860, 0.0
  %v6925 = vmax.f32 %v6861, 0.0
  %v6926 = vmax.f32 %v6862, 0.0
  %v6927 = vmax.f32 %v6863, 0.0
  %v6928 = vmax.f32 %v6864, 0.0
  %v6929 = vmax.f32 %v6865, 0.0
  %v6930 = vmax.f32 %v6866, 0.0
  %v6931 = vmax.f32 %v6867, 0.0
  %v6932 = vmax.f32 %v6868, 0.0
  %v6933 = vmax.f32 %v6869, 0.0
  %v6934 = vmax.f32 %v6870, 0.0
  %v6935 = vmax.f32 %v6871, 0.0
  %v6936 = vmax.f32 %v6872, 0.0
  %v6937 = vmax.f32 %v6873, 0.0
  %v6938 = vmax.f32 %v6874, 0.0
  %v6939 = vmax.f32 %v6875, 0.0
  %v6940 = vmax.f32 %v6876, 0.0
  %v6941 = vmax.f32 %v6877, 0.0
  %v6942 = vmax.f32 %v6878, 0.0
  %v6943 = vmax.f32 %v6879, 0.0
  %v6944 = vmax.f32 %v6880, 0.0
  %v6945 = vmax.f32 %v6881, 0.0
  %v6946 = vmax.f32 %v6882, 0.0
  %v6947 = vmax.f32 %v6883, 0.0
  %v6948 = vmax.f32 %v6884, 0.0
  %v6949 = vmax.f32 %v6885, 0.0
  %v6950 = vmax.f32 %v6886, 0.0
  %v6951 = vmax.f32 %v6887, 0.0
  %v6952 = vmax.f32 %v6888, 0.0
  %v6953 = vmax.f32 %v6889, 0.0
  %v6954 = vmax.f32 %v6890, 0.0
  %v6955 = vmax.f32 %v6891, 0.0
  %v6956 = vmax.f32 %v6892, 0.0
  %v6957 = vmax.f32 %v6893, 0.0
  %v6958 = vmax.f32 %v6894, 0.0
  %v6959 = vmax.f32 %v6895, 0.0
  %v6960 = vmax.f32 %v6896, 0.0
  %v6961 = vmax.f32 %v6897, 0.0
  %v6962 = vmax.f32 %v6898, 0.0
  %v6963 = vmax.f32 %v6899, 0.0
  %v6964 = vmax.f32 %v6900, 0.0
  %v6965 = vmax.f32 %v6901, 0.0
  %v6966 = vmax.f32 %v6902, 0.0
  %v6967 = vmax.f32 %v6903, 0.0
  %v6968 = vmax.f32 %v6904, 0.0
  %v6969 = vmax.f32 %v6905, 0.0
  %v6970 = vmax.f32 %v6906, 0.0
  %v6971 = vmax.f32 %v6907, %v6909
  %v6972 = vmax.f32 %v6908, %v6910
  %v6973 = vmax.f32 %v6915, %v6917
  %v6974 = vmax.f32 %v6916, %v6918
  %v6975 = vmax.f32 %v6923, %v6925
  %v6976 = vmax.f32 %v6924, %v6926
  %v6977 = vmax.f32 %v6931, %v6933
  %v6978 = vmax.f32 %v6932, %v6934
  %v6979 = vmax.f32 %v6939, %v6941
  %v6980 = vmax.f32 %v6940, %v6942
  %v6981 = vmax.f32 %v6947, %v6949
  %v6982 = vmax.f32 %v6948, %v6950
  %v6983 = vmax.f32 %v6955, %v6957
  %v6984 = vmax.f32 %v6956, %v6958
  %v6985 = vmax.f32 %v6963, %v6965
  %v6986 = vmax.f32 %v6964, %v6966
  %v6987 = vmax.f32 %v6911, %v6913
  %v6988 = vmax.f32 %v6912, %v6914
  %v6989 = vmax.f32 %v6919, %v6921
  %v6990 = vmax.f32 %v6920, %v6922
  %v6991 = vmax.f32 %v6927, %v6929
  %v6992 = vmax.f32 %v6928, %v6930
  %v6993 = vmax.f32 %v6935, %v6937
  %v6994 = vmax.f32 %v6936, %v6938
  %v6995 = vmax.f32 %v6943, %v6945
  %v6996 = vmax.f32 %v6944, %v6946
  %v6997 = vmax.f32 %v6951, %v6953
  %v6998 = vmax.f32 %v6952, %v6954
  %v6999 = vmax.f32 %v6959, %v6961
  %v7000 = vmax.f32 %v6960, %v6962
  %v7001 = vmax.f32 %v6967, %v6969
  %v7002 = vmax.f32 %v6968, %v6970
  %v7003 = vmax.f32 %v6971, %v6987
  %v7004 = vmax.f32 %v6972, %v6988
  %v7005 = vmax.f32 %v6973, %v6989
  %v7006 = vmax.f32 %v6974, %v6990
  %v7007 = vmax.f32 %v6975, %v6991
  %v7008 = vmax.f32 %v6976, %v6992
  %v7009 = vmax.f32 %v6977, %v6993
  %v7010 = vmax.f32 %v6978, %v6994
  %v7011 = vmax.f32 %v6979, %v6995
  %v7012 = vmax.f32 %v6980, %v6996
  %v7013 = vmax.f32 %v6981, %v6997
  %v7014 = vmax.f32 %v6982, %v6998
  %v7015 = vmax.f32 %v6983, %v6999
  %v7016 = vmax.f32 %v6984, %v7000
  %v7017 = vmax.f32 %v6985, %v7001
  %v7018 = vmax.f32 %v6986, %v7002
  %v7035 = vrot.slane %v7005, 7
  %vm7036 = vcmask 1041409
  %v7037 = vsel %vm7036, %v7035, %v7003
  %v7038 = vrot.slane %v7007, 6
  %vm7039 = vcmask 1042434
  %v7040 = vsel %vm7039, %v7038, %v7037
  %v7041 = vrot.slane %v7009, 5
  %vm7042 = vcmask 1043459
  %v7043 = vsel %vm7042, %v7041, %v7040
  %v7044 = vrot.slane %v7011, 4
  %vm7045 = vcmask 1044484
  %v7046 = vsel %vm7045, %v7044, %v7043
  %v7047 = vrot.slane %v7013, 3
  %vm7048 = vcmask 1045509
  %v7049 = vsel %vm7048, %v7047, %v7046
  %v7050 = vrot.slane %v7015, 2
  %vm7051 = vcmask 1046534
  %v7052 = vsel %vm7051, %v7050, %v7049
  %v7053 = vrot.slane %v7017, 1
  %vm7054 = vcmask 1047559
  %v7055 = vsel %vm7054, %v7053, %v7052
  %v7056 = vrot.slane %v7006, 7
  %v7057 = vsel %vm7036, %v7056, %v7004
  %v7058 = vrot.slane %v7008, 6
  %v7059 = vsel %vm7039, %v7058, %v7057
  %v7060 = vrot.slane %v7010, 5
  %v7061 = vsel %vm7042, %v7060, %v7059
  %v7062 = vrot.slane %v7012, 4
  %v7063 = vsel %vm7045, %v7062, %v7061
  %v7064 = vrot.slane %v7014, 3
  %v7065 = vsel %vm7048, %v7064, %v7063
  %v7066 = vrot.slane %v7016, 2
  %v7067 = vsel %vm7051, %v7066, %v7065
  %v7068 = vrot.slane %v7018, 1
  %v7069 = vsel %vm7054, %v7068, %v7067
  %v7072 = vrot.slane %v7003, 1
  %v7073 = vsel %vm7036, %v7005, %v7072
  %v7074 = vrot.slane %v7007, 7
  %v7075 = vsel %vm7039, %v7074, %v7073
  %v7076 = vrot.slane %v7009, 6
  %v7077 = vsel %vm7042, %v7076, %v7075
  %v7078 = vrot.slane %v7011, 5
  %v7079 = vsel %vm7045, %v7078, %v7077
  %v7080 = vrot.slane %v7013, 4
  %v7081 = vsel %vm7048, %v7080, %v7079
  %v7082 = vrot.slane %v7015, 3
  %v7083 = vsel %vm7051, %v7082, %v7081
  %v7084 = vrot.slane %v7017, 2
  %v7085 = vsel %vm7054, %v7084, %v7083
  %v7086 = vrot.slane %v7004, 1
  %v7087 = vsel %vm7036, %v7006, %v7086
  %v7088 = vrot.slane %v7008, 7
  %v7089 = vsel %vm7039, %v7088, %v7087
  %v7090 = vrot.slane %v7010, 6
  %v7091 = vsel %vm7042, %v7090, %v7089
  %v7092 = vrot.slane %v7012, 5
  %v7093 = vsel %vm7045, %v7092, %v7091
  %v7094 = vrot.slane %v7014, 4
  %v7095 = vsel %vm7048, %v7094, %v7093
  %v7096 = vrot.slane %v7016, 3
  %v7097 = vsel %vm7051, %v7096, %v7095
  %v7098 = vrot.slane %v7018, 2
  %v7099 = vsel %vm7054, %v7098, %v7097
  %v7102 = vrot.slane %v7003, 2
  %v7103 = vrot.slane %v7005, 1
  %v7104 = vsel %vm7036, %v7103, %v7102
  %v7105 = vsel %vm7039, %v7007, %v7104
  %v7106 = vrot.slane %v7009, 7
  %v7107 = vsel %vm7042, %v7106, %v7105
  %v7108 = vrot.slane %v7011, 6
  %v7109 = vsel %vm7045, %v7108, %v7107
  %v7110 = vrot.slane %v7013, 5
  %v7111 = vsel %vm7048, %v7110, %v7109
  %v7112 = vrot.slane %v7015, 4
  %v7113 = vsel %vm7051, %v7112, %v7111
  %v7114 = vrot.slane %v7017, 3
  %v7115 = vsel %vm7054, %v7114, %v7113
  %v7116 = vrot.slane %v7004, 2
  %v7117 = vrot.slane %v7006, 1
  %v7118 = vsel %vm7036, %v7117, %v7116
  %v7119 = vsel %vm7039, %v7008, %v7118
  %v7120 = vrot.slane %v7010, 7
  %v7121 = vsel %vm7042, %v7120, %v7119
  %v7122 = vrot.slane %v7012, 6
  %v7123 = vsel %vm7045, %v7122, %v7121
  %v7124 = vrot.slane %v7014, 5
  %v7125 = vsel %vm7048, %v7124, %v7123
  %v7126 = vrot.slane %v7016, 4
  %v7127 = vsel %vm7051, %v7126, %v7125
  %v7128 = vrot.slane %v7018, 3
  %v7129 = vsel %vm7054, %v7128, %v7127
  %v7132 = vrot.slane %v7003, 3
  %v7133 = vrot.slane %v7005, 2
  %v7134 = vsel %vm7036, %v7133, %v7132
  %v7135 = vrot.slane %v7007, 1
  %v7136 = vsel %vm7039, %v7135, %v7134
  %v7137 = vsel %vm7042, %v7009, %v7136
  %v7138 = vrot.slane %v7011, 7
  %v7139 = vsel %vm7045, %v7138, %v7137
  %v7140 = vrot.slane %v7013, 6
  %v7141 = vsel %vm7048, %v7140, %v7139
  %v7142 = vrot.slane %v7015, 5
  %v7143 = vsel %vm7051, %v7142, %v7141
  %v7144 = vrot.slane %v7017, 4
  %v7145 = vsel %vm7054, %v7144, %v7143
  %v7146 = vrot.slane %v7004, 3
  %v7147 = vrot.slane %v7006, 2
  %v7148 = vsel %vm7036, %v7147, %v7146
  %v7149 = vrot.slane %v7008, 1
  %v7150 = vsel %vm7039, %v7149, %v7148
  %v7151 = vsel %vm7042, %v7010, %v7150
  %v7152 = vrot.slane %v7012, 7
  %v7153 = vsel %vm7045, %v7152, %v7151
  %v7154 = vrot.slane %v7014, 6
  %v7155 = vsel %vm7048, %v7154, %v7153
  %v7156 = vrot.slane %v7016, 5
  %v7157 = vsel %vm7051, %v7156, %v7155
  %v7158 = vrot.slane %v7018, 4
  %v7159 = vsel %vm7054, %v7158, %v7157
  %v7162 = vrot.slane %v7003, 4
  %v7163 = vrot.slane %v7005, 3
  %v7164 = vsel %vm7036, %v7163, %v7162
  %v7165 = vrot.slane %v7007, 2
  %v7166 = vsel %vm7039, %v7165, %v7164
  %v7167 = vrot.slane %v7009, 1
  %v7168 = vsel %vm7042, %v7167, %v7166
  %v7169 = vsel %vm7045, %v7011, %v7168
  %v7170 = vrot.slane %v7013, 7
  %v7171 = vsel %vm7048, %v7170, %v7169
  %v7172 = vrot.slane %v7015, 6
  %v7173 = vsel %vm7051, %v7172, %v7171
  %v7174 = vrot.slane %v7017, 5
  %v7175 = vsel %vm7054, %v7174, %v7173
  %v7176 = vrot.slane %v7004, 4
  %v7177 = vrot.slane %v7006, 3
  %v7178 = vsel %vm7036, %v7177, %v7176
  %v7179 = vrot.slane %v7008, 2
  %v7180 = vsel %vm7039, %v7179, %v7178
  %v7181 = vrot.slane %v7010, 1
  %v7182 = vsel %vm7042, %v7181, %v7180
  %v7183 = vsel %vm7045, %v7012, %v7182
  %v7184 = vrot.slane %v7014, 7
  %v7185 = vsel %vm7048, %v7184, %v7183
  %v7186 = vrot.slane %v7016, 6
  %v7187 = vsel %vm7051, %v7186, %v7185
  %v7188 = vrot.slane %v7018, 5
  %v7189 = vsel %vm7054, %v7188, %v7187
  %v7192 = vrot.slane %v7003, 5
  %v7193 = vrot.slane %v7005, 4
  %v7194 = vsel %vm7036, %v7193, %v7192
  %v7195 = vrot.slane %v7007, 3
  %v7196 = vsel %vm7039, %v7195, %v7194
  %v7197 = vrot.slane %v7009, 2
  %v7198 = vsel %vm7042, %v7197, %v7196
  %v7199 = vrot.slane %v7011, 1
  %v7200 = vsel %vm7045, %v7199, %v7198
  %v7201 = vsel %vm7048, %v7013, %v7200
  %v7202 = vrot.slane %v7015, 7
  %v7203 = vsel %vm7051, %v7202, %v7201
  %v7204 = vrot.slane %v7017, 6
  %v7205 = vsel %vm7054, %v7204, %v7203
  %v7206 = vrot.slane %v7004, 5
  %v7207 = vrot.slane %v7006, 4
  %v7208 = vsel %vm7036, %v7207, %v7206
  %v7209 = vrot.slane %v7008, 3
  %v7210 = vsel %vm7039, %v7209, %v7208
  %v7211 = vrot.slane %v7010, 2
  %v7212 = vsel %vm7042, %v7211, %v7210
  %v7213 = vrot.slane %v7012, 1
  %v7214 = vsel %vm7045, %v7213, %v7212
  %v7215 = vsel %vm7048, %v7014, %v7214
  %v7216 = vrot.slane %v7016, 7
  %v7217 = vsel %vm7051, %v7216, %v7215
  %v7218 = vrot.slane %v7018, 6
  %v7219 = vsel %vm7054, %v7218, %v7217
  %v7222 = vrot.slane %v7003, 6
  %v7223 = vrot.slane %v7005, 5
  %v7224 = vsel %vm7036, %v7223, %v7222
  %v7225 = vrot.slane %v7007, 4
  %v7226 = vsel %vm7039, %v7225, %v7224
  %v7227 = vrot.slane %v7009, 3
  %v7228 = vsel %vm7042, %v7227, %v7226
  %v7229 = vrot.slane %v7011, 2
  %v7230 = vsel %vm7045, %v7229, %v7228
  %v7231 = vrot.slane %v7013, 1
  %v7232 = vsel %vm7048, %v7231, %v7230
  %v7233 = vsel %vm7051, %v7015, %v7232
  %v7234 = vrot.slane %v7017, 7
  %v7235 = vsel %vm7054, %v7234, %v7233
  %v7236 = vrot.slane %v7004, 6
  %v7237 = vrot.slane %v7006, 5
  %v7238 = vsel %vm7036, %v7237, %v7236
  %v7239 = vrot.slane %v7008, 4
  %v7240 = vsel %vm7039, %v7239, %v7238
  %v7241 = vrot.slane %v7010, 3
  %v7242 = vsel %vm7042, %v7241, %v7240
  %v7243 = vrot.slane %v7012, 2
  %v7244 = vsel %vm7045, %v7243, %v7242
  %v7245 = vrot.slane %v7014, 1
  %v7246 = vsel %vm7048, %v7245, %v7244
  %v7247 = vsel %vm7051, %v7016, %v7246
  %v7248 = vrot.slane %v7018, 7
  %v7249 = vsel %vm7054, %v7248, %v7247
  %v7252 = vpack.c.bf16 %v7055, %v7055
  %v7253 = vpack.c.bf16 %v7069, %v7069
  %v7254 = vpack.c.bf16 %v7085, %v7085
  %v7255 = vpack.c.bf16 %v7099, %v7099
  %v7256 = vpack.c.bf16 %v7115, %v7115
  %v7257 = vpack.c.bf16 %v7129, %v7129
  %v7258 = vpack.c.bf16 %v7145, %v7145
  %v7259 = vpack.c.bf16 %v7159, %v7159
  %v7260 = vpack.c.bf16 %v7175, %v7175
  %v7261 = vpack.c.bf16 %v7189, %v7189
  %v7262 = vpack.c.bf16 %v7205, %v7205
  %v7263 = vpack.c.bf16 %v7219, %v7219
  %v7264 = vpack.c.bf16 %v7235, %v7235
  %v7265 = vpack.c.bf16 %v7249, %v7249
  %v7266 = vld [vmem:[%s7] sm:$0xf]
  %v7267 = vld [vmem:[%s7 + $0x4] sm:$0xf]
  %v7268 = vld [vmem:[%s7 + $0x8] sm:$0xf]
  %v7269 = vld [vmem:[%s7 + $0xc] sm:$0xf]
  %v7270 = vld [vmem:[%s7 + $0x10] sm:$0xf]
  %v7271 = vld [vmem:[%s7 + $0x14] sm:$0xf]
  %v7272 = vld [vmem:[%s7 + $0x18] sm:$0xf]
  %v7273 = vld [vmem:[%s7 + $0x1c] sm:$0xf]
  %v7274 = vld [vmem:[%s7 + $0x20] sm:$0xf]
  %v7275 = vld [vmem:[%s7 + $0x24] sm:$0xf]
  %v7276 = vld [vmem:[%s7 + $0x28] sm:$0xf]
  %v7277 = vld [vmem:[%s7 + $0x2c] sm:$0xf]
  %v7278 = vld [vmem:[%s7 + $0x30] sm:$0xf]
  %v7279 = vld [vmem:[%s7 + $0x34] sm:$0xf]
  %v7280 = vld [vmem:[%s7 + $0x38] sm:$0xf]
  %v7281 = vld [vmem:[%s7 + $0x3c] sm:$0xf]
  %v7282 = vld [vmem:[%s7 + $0x40] sm:$0xf]
  %v7283 = vld [vmem:[%s7 + $0x44] sm:$0xf]
  %v7284 = vld [vmem:[%s7 + $0x48] sm:$0xf]
  %v7285 = vld [vmem:[%s7 + $0x4c] sm:$0xf]
  %v7286 = vld [vmem:[%s7 + $0x50] sm:$0xf]
  %v7287 = vld [vmem:[%s7 + $0x54] sm:$0xf]
  %v7288 = vld [vmem:[%s7 + $0x58] sm:$0xf]
  %v7289 = vld [vmem:[%s7 + $0x5c] sm:$0xf]
  %v7290 = vld [vmem:[%s7 + $0x60] sm:$0xf]
  %v7291 = vld [vmem:[%s7 + $0x64] sm:$0xf]
  %v7292 = vld [vmem:[%s7 + $0x68] sm:$0xf]
  %v7293 = vld [vmem:[%s7 + $0x6c] sm:$0xf]
  %v7294 = vld [vmem:[%s7 + $0x70] sm:$0xf]
  %v7295 = vld [vmem:[%s7 + $0x74] sm:$0xf]
  %v7296 = vld [vmem:[%s7 + $0x78] sm:$0xf]
  %v7297 = vld [vmem:[%s7 + $0x7c] sm:$0xf]
  %v7298 = vld [vmem:[%s7 + $0x80] sm:$0xf]
  %v7299 = vld [vmem:[%s7 + $0x84] sm:$0xf]
  %v7300 = vld [vmem:[%s7 + $0x88] sm:$0xf]
  %v7301 = vld [vmem:[%s7 + $0x8c] sm:$0xf]
  %v7302 = vld [vmem:[%s7 + $0x90] sm:$0xf]
  %v7303 = vld [vmem:[%s7 + $0x94] sm:$0xf]
  %v7304 = vld [vmem:[%s7 + $0x98] sm:$0xf]
  %v7305 = vld [vmem:[%s7 + $0x9c] sm:$0xf]
  %v7306 = vld [vmem:[%s7 + $0xa0] sm:$0xf]
  %v7307 = vld [vmem:[%s7 + $0xa4] sm:$0xf]
  %v7308 = vld [vmem:[%s7 + $0xa8] sm:$0xf]
  %v7309 = vld [vmem:[%s7 + $0xac] sm:$0xf]
  %v7310 = vld [vmem:[%s7 + $0xb0] sm:$0xf]
  %v7311 = vld [vmem:[%s7 + $0xb4] sm:$0xf]
  %v7312 = vld [vmem:[%s7 + $0xb8] sm:$0xf]
  %v7313 = vld [vmem:[%s7 + $0xbc] sm:$0xf]
  %v7314 = vld [vmem:[%s7 + $0xc0] sm:$0xf]
  %v7315 = vld [vmem:[%s7 + $0xc4] sm:$0xf]
  %v7316 = vld [vmem:[%s7 + $0xc8] sm:$0xf]
  %v7317 = vld [vmem:[%s7 + $0xcc] sm:$0xf]
  %v7318 = vld [vmem:[%s7 + $0xd0] sm:$0xf]
  %v7319 = vld [vmem:[%s7 + $0xd4] sm:$0xf]
  %v7320 = vld [vmem:[%s7 + $0xd8] sm:$0xf]
  %v7321 = vld [vmem:[%s7 + $0xdc] sm:$0xf]
  %v7322 = vld [vmem:[%s7 + $0xe0] sm:$0xf]
  %v7323 = vld [vmem:[%s7 + $0xe4] sm:$0xf]
  %v7324 = vld [vmem:[%s7 + $0xe8] sm:$0xf]
  %v7325 = vld [vmem:[%s7 + $0xec] sm:$0xf]
  %v7326 = vld [vmem:[%s7 + $0xf0] sm:$0xf]
  %v7327 = vld [vmem:[%s7 + $0xf4] sm:$0xf]
  %v7328 = vld [vmem:[%s7 + $0xf8] sm:$0xf]
  %v7329 = vld [vmem:[%s7 + $0xfc] sm:$0xf]
  %v7330 = vld [vmem:[%s7 + $0x100] sm:$0xf]
  %v7331 = vld [vmem:[%s7 + $0x104] sm:$0xf]
  %v7332 = vld [vmem:[%s7 + $0x108] sm:$0xf]
  %v7333 = vld [vmem:[%s7 + $0x10c] sm:$0xf]
  %v7334 = vld [vmem:[%s7 + $0x110] sm:$0xf]
  %v7335 = vld [vmem:[%s7 + $0x114] sm:$0xf]
  %v7336 = vld [vmem:[%s7 + $0x118] sm:$0xf]
  %v7337 = vld [vmem:[%s7 + $0x11c] sm:$0xf]
  %v7338 = vld [vmem:[%s7 + $0x120] sm:$0xf]
  %v7339 = vld [vmem:[%s7 + $0x124] sm:$0xf]
  %v7340 = vld [vmem:[%s7 + $0x128] sm:$0xf]
  %v7341 = vld [vmem:[%s7 + $0x12c] sm:$0xf]
  %v7342 = vld [vmem:[%s7 + $0x130] sm:$0xf]
  %v7343 = vld [vmem:[%s7 + $0x134] sm:$0xf]
  %v7344 = vld [vmem:[%s7 + $0x138] sm:$0xf]
  %v7345 = vld [vmem:[%s7 + $0x13c] sm:$0xf]
  %v7346 = vld [vmem:[%s7 + $0x140] sm:$0xf]
  %v7347 = vld [vmem:[%s7 + $0x144] sm:$0xf]
  %v7348 = vld [vmem:[%s7 + $0x148] sm:$0xf]
  %v7349 = vld [vmem:[%s7 + $0x14c] sm:$0xf]
  %v7350 = vld [vmem:[%s7 + $0x150] sm:$0xf]
  %v7351 = vld [vmem:[%s7 + $0x154] sm:$0xf]
  %v7352 = vld [vmem:[%s7 + $0x158] sm:$0xf]
  %v7353 = vld [vmem:[%s7 + $0x15c] sm:$0xf]
  %v7354 = vld [vmem:[%s7 + $0x160] sm:$0xf]
  %v7355 = vld [vmem:[%s7 + $0x164] sm:$0xf]
  %v7356 = vld [vmem:[%s7 + $0x168] sm:$0xf]
  %v7357 = vld [vmem:[%s7 + $0x16c] sm:$0xf]
  %v7358 = vld [vmem:[%s7 + $0x170] sm:$0xf]
  %v7359 = vld [vmem:[%s7 + $0x174] sm:$0xf]
  %v7360 = vld [vmem:[%s7 + $0x178] sm:$0xf]
  %v7361 = vld [vmem:[%s7 + $0x17c] sm:$0xf]
  %v7362 = vld [vmem:[%s7 + $0x180] sm:$0xf]
  %v7363 = vld [vmem:[%s7 + $0x184] sm:$0xf]
  %v7364 = vld [vmem:[%s7 + $0x188] sm:$0xf]
  %v7365 = vld [vmem:[%s7 + $0x18c] sm:$0xf]
  %v7366 = vld [vmem:[%s7 + $0x190] sm:$0xf]
  %v7367 = vld [vmem:[%s7 + $0x194] sm:$0xf]
  %v7368 = vld [vmem:[%s7 + $0x198] sm:$0xf]
  %v7369 = vld [vmem:[%s7 + $0x19c] sm:$0xf]
  %v7370 = vld [vmem:[%s7 + $0x1a0] sm:$0xf]
  %v7371 = vld [vmem:[%s7 + $0x1a4] sm:$0xf]
  %v7372 = vld [vmem:[%s7 + $0x1a8] sm:$0xf]
  %v7373 = vld [vmem:[%s7 + $0x1ac] sm:$0xf]
  %v7374 = vld [vmem:[%s7 + $0x1b0] sm:$0xf]
  %v7375 = vld [vmem:[%s7 + $0x1b4] sm:$0xf]
  %v7376 = vld [vmem:[%s7 + $0x1b8] sm:$0xf]
  %v7377 = vld [vmem:[%s7 + $0x1bc] sm:$0xf]
  %v7378 = vld [vmem:[%s7 + $0x1c0] sm:$0xf]
  %v7379 = vld [vmem:[%s7 + $0x1c4] sm:$0xf]
  %v7380 = vld [vmem:[%s7 + $0x1c8] sm:$0xf]
  %v7381 = vld [vmem:[%s7 + $0x1cc] sm:$0xf]
  %v7382 = vld [vmem:[%s7 + $0x1d0] sm:$0xf]
  %v7383 = vld [vmem:[%s7 + $0x1d4] sm:$0xf]
  %v7384 = vld [vmem:[%s7 + $0x1d8] sm:$0xf]
  %v7385 = vld [vmem:[%s7 + $0x1dc] sm:$0xf]
  %v7386 = vld [vmem:[%s7 + $0x1e0] sm:$0xf]
  %v7387 = vld [vmem:[%s7 + $0x1e4] sm:$0xf]
  %v7388 = vld [vmem:[%s7 + $0x1e8] sm:$0xf]
  %v7389 = vld [vmem:[%s7 + $0x1ec] sm:$0xf]
  %v7390 = vld [vmem:[%s7 + $0x1f0] sm:$0xf]
  %v7391 = vld [vmem:[%s7 + $0x1f4] sm:$0xf]
  %v7392 = vld [vmem:[%s7 + $0x1f8] sm:$0xf]
  %v7393 = vld [vmem:[%s7 + $0x1fc] sm:$0xf]
  %v7394 = vld [vmem:[%s7 + $0x200] sm:$0xf]
  %v7395 = vld [vmem:[%s7 + $0x204] sm:$0xf]
  %v7396 = vld [vmem:[%s7 + $0x208] sm:$0xf]
  %v7397 = vld [vmem:[%s7 + $0x20c] sm:$0xf]
  %v7398 = vld [vmem:[%s7 + $0x210] sm:$0xf]
  %v7399 = vld [vmem:[%s7 + $0x214] sm:$0xf]
  %v7400 = vld [vmem:[%s7 + $0x218] sm:$0xf]
  %v7401 = vld [vmem:[%s7 + $0x21c] sm:$0xf]
  %v7402 = vld [vmem:[%s7 + $0x220] sm:$0xf]
  %v7403 = vld [vmem:[%s7 + $0x224] sm:$0xf]
  %v7404 = vld [vmem:[%s7 + $0x228] sm:$0xf]
  %v7405 = vld [vmem:[%s7 + $0x22c] sm:$0xf]
  %v7406 = vld [vmem:[%s7 + $0x230] sm:$0xf]
  %v7407 = vld [vmem:[%s7 + $0x234] sm:$0xf]
  %v7408 = vld [vmem:[%s7 + $0x238] sm:$0xf]
  %v7409 = vld [vmem:[%s7 + $0x23c] sm:$0xf]
  %v7410 = vld [vmem:[%s7 + $0x240] sm:$0xf]
  %v7411 = vld [vmem:[%s7 + $0x244] sm:$0xf]
  %v7412 = vld [vmem:[%s7 + $0x248] sm:$0xf]
  %v7413 = vld [vmem:[%s7 + $0x24c] sm:$0xf]
  %v7414 = vld [vmem:[%s7 + $0x250] sm:$0xf]
  %v7415 = vld [vmem:[%s7 + $0x254] sm:$0xf]
  %v7416 = vld [vmem:[%s7 + $0x258] sm:$0xf]
  %v7417 = vld [vmem:[%s7 + $0x25c] sm:$0xf]
  %v7418 = vld [vmem:[%s7 + $0x260] sm:$0xf]
  %v7419 = vld [vmem:[%s7 + $0x264] sm:$0xf]
  %v7420 = vld [vmem:[%s7 + $0x268] sm:$0xf]
  %v7421 = vld [vmem:[%s7 + $0x26c] sm:$0xf]
  %v7422 = vld [vmem:[%s7 + $0x270] sm:$0xf]
  %v7423 = vld [vmem:[%s7 + $0x274] sm:$0xf]
  %v7424 = vld [vmem:[%s7 + $0x278] sm:$0xf]
  %v7425 = vld [vmem:[%s7 + $0x27c] sm:$0xf]
  %v7426 = vld [vmem:[%s7 + $0x280] sm:$0xf]
  %v7427 = vld [vmem:[%s7 + $0x284] sm:$0xf]
  %v7428 = vld [vmem:[%s7 + $0x288] sm:$0xf]
  %v7429 = vld [vmem:[%s7 + $0x28c] sm:$0xf]
  %v7430 = vld [vmem:[%s7 + $0x290] sm:$0xf]
  %v7431 = vld [vmem:[%s7 + $0x294] sm:$0xf]
  %v7432 = vld [vmem:[%s7 + $0x298] sm:$0xf]
  %v7433 = vld [vmem:[%s7 + $0x29c] sm:$0xf]
  %v7434 = vld [vmem:[%s7 + $0x2a0] sm:$0xf]
  %v7435 = vld [vmem:[%s7 + $0x2a4] sm:$0xf]
  %v7436 = vld [vmem:[%s7 + $0x2a8] sm:$0xf]
  %v7437 = vld [vmem:[%s7 + $0x2ac] sm:$0xf]
  %v7438 = vld [vmem:[%s7 + $0x2b0] sm:$0xf]
  %v7439 = vld [vmem:[%s7 + $0x2b4] sm:$0xf]
  %v7440 = vld [vmem:[%s7 + $0x2b8] sm:$0xf]
  %v7441 = vld [vmem:[%s7 + $0x2bc] sm:$0xf]
  %v7442 = vld [vmem:[%s7 + $0x2c0] sm:$0xf]
  %v7443 = vld [vmem:[%s7 + $0x2c4] sm:$0xf]
  %v7444 = vld [vmem:[%s7 + $0x2c8] sm:$0xf]
  %v7445 = vld [vmem:[%s7 + $0x2cc] sm:$0xf]
  %v7446 = vld [vmem:[%s7 + $0x2d0] sm:$0xf]
  %v7447 = vld [vmem:[%s7 + $0x2d4] sm:$0xf]
  %v7448 = vld [vmem:[%s7 + $0x2d8] sm:$0xf]
  %v7449 = vld [vmem:[%s7 + $0x2dc] sm:$0xf]
  %v7450 = vld [vmem:[%s7 + $0x2e0] sm:$0xf]
  %v7451 = vld [vmem:[%s7 + $0x2e4] sm:$0xf]
  %v7452 = vld [vmem:[%s7 + $0x2e8] sm:$0xf]
  %v7453 = vld [vmem:[%s7 + $0x2ec] sm:$0xf]
  %v7454 = vld [vmem:[%s7 + $0x2f0] sm:$0xf]
  %v7455 = vld [vmem:[%s7 + $0x2f4] sm:$0xf]
  %v7456 = vld [vmem:[%s7 + $0x2f8] sm:$0xf]
  %v7457 = vld [vmem:[%s7 + $0x2fc] sm:$0xf]
  %v7458 = vld [vmem:[%s7 + $0x300] sm:$0xf]
  %v7459 = vld [vmem:[%s7 + $0x304] sm:$0xf]
  %v7460 = vld [vmem:[%s7 + $0x308] sm:$0xf]
  %v7461 = vld [vmem:[%s7 + $0x30c] sm:$0xf]
  %v7462 = vld [vmem:[%s7 + $0x310] sm:$0xf]
  %v7463 = vld [vmem:[%s7 + $0x314] sm:$0xf]
  %v7464 = vld [vmem:[%s7 + $0x318] sm:$0xf]
  %v7465 = vld [vmem:[%s7 + $0x31c] sm:$0xf]
  %v7466 = vld [vmem:[%s7 + $0x320] sm:$0xf]
  %v7467 = vld [vmem:[%s7 + $0x324] sm:$0xf]
  %v7468 = vld [vmem:[%s7 + $0x328] sm:$0xf]
  %v7469 = vld [vmem:[%s7 + $0x32c] sm:$0xf]
  %v7470 = vld [vmem:[%s7 + $0x330] sm:$0xf]
  %v7471 = vld [vmem:[%s7 + $0x334] sm:$0xf]
  %v7472 = vld [vmem:[%s7 + $0x338] sm:$0xf]
  %v7473 = vld [vmem:[%s7 + $0x33c] sm:$0xf]
  %v7474 = vld [vmem:[%s7 + $0x340] sm:$0xf]
  %v7475 = vld [vmem:[%s7 + $0x344] sm:$0xf]
  %v7476 = vld [vmem:[%s7 + $0x348] sm:$0xf]
  %v7477 = vld [vmem:[%s7 + $0x34c] sm:$0xf]
  %v7478 = vld [vmem:[%s7 + $0x350] sm:$0xf]
  %v7479 = vld [vmem:[%s7 + $0x354] sm:$0xf]
  %v7480 = vld [vmem:[%s7 + $0x358] sm:$0xf]
  %v7481 = vld [vmem:[%s7 + $0x35c] sm:$0xf]
  %v7482 = vld [vmem:[%s7 + $0x360] sm:$0xf]
  %v7483 = vld [vmem:[%s7 + $0x364] sm:$0xf]
  %v7484 = vld [vmem:[%s7 + $0x368] sm:$0xf]
  %v7485 = vld [vmem:[%s7 + $0x36c] sm:$0xf]
  %v7486 = vld [vmem:[%s7 + $0x370] sm:$0xf]
  %v7487 = vld [vmem:[%s7 + $0x374] sm:$0xf]
  %v7488 = vld [vmem:[%s7 + $0x378] sm:$0xf]
  %v7489 = vld [vmem:[%s7 + $0x37c] sm:$0xf]
  %v7490 = vld [vmem:[%s8] sm:$0x1]
  %v7492 = vlaneseq
  %v7493 = vshrl.u32 %v7492, 7
  %v7494 = vsub.s32 0, %v7493
  %v7495 = vrot.slane %v7490, %v7494
  %v7721 = vunpack.c.l.b16 %v7266
  %v7722 = vunpack.c.l.b16 %v7267
  %v7723 = vunpack.c.l.b16 %v7268
  %v7724 = vunpack.c.l.b16 %v7269
  %v7725 = vunpack.c.l.b16 %v7270
  %v7726 = vunpack.c.l.b16 %v7271
  %v7727 = vunpack.c.l.b16 %v7272
  %v7728 = vunpack.c.l.b16 %v7273
  %v7729 = vunpack.c.l.b16 %v7274
  %v7730 = vunpack.c.l.b16 %v7275
  %v7731 = vunpack.c.l.b16 %v7276
  %v7732 = vunpack.c.l.b16 %v7277
  %v7733 = vunpack.c.l.b16 %v7278
  %v7734 = vunpack.c.l.b16 %v7279
  %v7735 = vunpack.c.l.b16 %v7280
  %v7736 = vunpack.c.l.b16 %v7281
  %v7737 = vunpack.c.l.b16 %v7282
  %v7738 = vunpack.c.l.b16 %v7283
  %v7739 = vunpack.c.l.b16 %v7284
  %v7740 = vunpack.c.l.b16 %v7285
  %v7741 = vunpack.c.l.b16 %v7286
  %v7742 = vunpack.c.l.b16 %v7287
  %v7743 = vunpack.c.l.b16 %v7288
  %v7744 = vunpack.c.l.b16 %v7289
  %v7745 = vunpack.c.l.b16 %v7290
  %v7746 = vunpack.c.l.b16 %v7291
  %v7747 = vunpack.c.l.b16 %v7292
  %v7748 = vunpack.c.l.b16 %v7293
  %v7749 = vunpack.c.l.b16 %v7294
  %v7750 = vunpack.c.l.b16 %v7295
  %v7751 = vunpack.c.l.b16 %v7296
  %v7752 = vunpack.c.l.b16 %v7297
  %v7753 = vunpack.c.l.b16 %v7298
  %v7754 = vunpack.c.l.b16 %v7299
  %v7755 = vunpack.c.l.b16 %v7300
  %v7756 = vunpack.c.l.b16 %v7301
  %v7757 = vunpack.c.l.b16 %v7302
  %v7758 = vunpack.c.l.b16 %v7303
  %v7759 = vunpack.c.l.b16 %v7304
  %v7760 = vunpack.c.l.b16 %v7305
  %v7761 = vunpack.c.l.b16 %v7306
  %v7762 = vunpack.c.l.b16 %v7307
  %v7763 = vunpack.c.l.b16 %v7308
  %v7764 = vunpack.c.l.b16 %v7309
  %v7765 = vunpack.c.l.b16 %v7310
  %v7766 = vunpack.c.l.b16 %v7311
  %v7767 = vunpack.c.l.b16 %v7312
  %v7768 = vunpack.c.l.b16 %v7313
  %v7769 = vunpack.c.l.b16 %v7314
  %v7770 = vunpack.c.l.b16 %v7315
  %v7771 = vunpack.c.l.b16 %v7316
  %v7772 = vunpack.c.l.b16 %v7317
  %v7773 = vunpack.c.l.b16 %v7318
  %v7774 = vunpack.c.l.b16 %v7319
  %v7775 = vunpack.c.l.b16 %v7320
  %v7776 = vunpack.c.l.b16 %v7321
  %v7777 = vunpack.c.l.b16 %v7322
  %v7778 = vunpack.c.l.b16 %v7323
  %v7779 = vunpack.c.l.b16 %v7324
  %v7780 = vunpack.c.l.b16 %v7325
  %v7781 = vunpack.c.l.b16 %v7326
  %v7782 = vunpack.c.l.b16 %v7327
  %v7783 = vunpack.c.l.b16 %v7328
  %v7784 = vunpack.c.l.b16 %v7329
  %v7785 = vunpack.c.l.b16 %v7330
  %v7786 = vunpack.c.l.b16 %v7331
  %v7787 = vunpack.c.l.b16 %v7332
  %v7788 = vunpack.c.l.b16 %v7333
  %v7789 = vunpack.c.l.b16 %v7334
  %v7790 = vunpack.c.l.b16 %v7335
  %v7791 = vunpack.c.l.b16 %v7336
  %v7792 = vunpack.c.l.b16 %v7337
  %v7793 = vunpack.c.l.b16 %v7338
  %v7794 = vunpack.c.l.b16 %v7339
  %v7795 = vunpack.c.l.b16 %v7340
  %v7796 = vunpack.c.l.b16 %v7341
  %v7797 = vunpack.c.l.b16 %v7342
  %v7798 = vunpack.c.l.b16 %v7343
  %v7799 = vunpack.c.l.b16 %v7344
  %v7800 = vunpack.c.l.b16 %v7345
  %v7801 = vunpack.c.l.b16 %v7346
  %v7802 = vunpack.c.l.b16 %v7347
  %v7803 = vunpack.c.l.b16 %v7348
  %v7804 = vunpack.c.l.b16 %v7349
  %v7805 = vunpack.c.l.b16 %v7350
  %v7806 = vunpack.c.l.b16 %v7351
  %v7807 = vunpack.c.l.b16 %v7352
  %v7808 = vunpack.c.l.b16 %v7353
  %v7809 = vunpack.c.l.b16 %v7354
  %v7810 = vunpack.c.l.b16 %v7355
  %v7811 = vunpack.c.l.b16 %v7356
  %v7812 = vunpack.c.l.b16 %v7357
  %v7813 = vunpack.c.l.b16 %v7358
  %v7814 = vunpack.c.l.b16 %v7359
  %v7815 = vunpack.c.l.b16 %v7360
  %v7816 = vunpack.c.l.b16 %v7361
  %v7817 = vunpack.c.l.b16 %v7362
  %v7818 = vunpack.c.l.b16 %v7363
  %v7819 = vunpack.c.l.b16 %v7364
  %v7820 = vunpack.c.l.b16 %v7365
  %v7821 = vunpack.c.l.b16 %v7366
  %v7822 = vunpack.c.l.b16 %v7367
  %v7823 = vunpack.c.l.b16 %v7368
  %v7824 = vunpack.c.l.b16 %v7369
  %v7825 = vunpack.c.l.b16 %v7370
  %v7826 = vunpack.c.l.b16 %v7371
  %v7827 = vunpack.c.l.b16 %v7372
  %v7828 = vunpack.c.l.b16 %v7373
  %v7829 = vunpack.c.l.b16 %v7374
  %v7830 = vunpack.c.l.b16 %v7375
  %v7831 = vunpack.c.l.b16 %v7376
  %v7832 = vunpack.c.l.b16 %v7377
  %v7833 = vunpack.c.l.b16 %v7378
  %v7834 = vunpack.c.l.b16 %v7379
  %v7835 = vunpack.c.l.b16 %v7380
  %v7836 = vunpack.c.l.b16 %v7381
  %v7837 = vunpack.c.l.b16 %v7382
  %v7838 = vunpack.c.l.b16 %v7383
  %v7839 = vunpack.c.l.b16 %v7384
  %v7840 = vunpack.c.l.b16 %v7385
  %v7841 = vunpack.c.l.b16 %v7386
  %v7842 = vunpack.c.l.b16 %v7387
  %v7843 = vunpack.c.l.b16 %v7388
  %v7844 = vunpack.c.l.b16 %v7389
  %v7845 = vunpack.c.l.b16 %v7390
  %v7846 = vunpack.c.l.b16 %v7391
  %v7847 = vunpack.c.l.b16 %v7392
  %v7848 = vunpack.c.l.b16 %v7393
  %v7849 = vunpack.c.l.b16 %v7394
  %v7850 = vunpack.c.l.b16 %v7395
  %v7851 = vunpack.c.l.b16 %v7396
  %v7852 = vunpack.c.l.b16 %v7397
  %v7853 = vunpack.c.l.b16 %v7398
  %v7854 = vunpack.c.l.b16 %v7399
  %v7855 = vunpack.c.l.b16 %v7400
  %v7856 = vunpack.c.l.b16 %v7401
  %v7857 = vunpack.c.l.b16 %v7402
  %v7858 = vunpack.c.l.b16 %v7403
  %v7859 = vunpack.c.l.b16 %v7404
  %v7860 = vunpack.c.l.b16 %v7405
  %v7861 = vunpack.c.l.b16 %v7406
  %v7862 = vunpack.c.l.b16 %v7407
  %v7863 = vunpack.c.l.b16 %v7408
  %v7864 = vunpack.c.l.b16 %v7409
  %v7865 = vunpack.c.l.b16 %v7410
  %v7866 = vunpack.c.l.b16 %v7411
  %v7867 = vunpack.c.l.b16 %v7412
  %v7868 = vunpack.c.l.b16 %v7413
  %v7869 = vunpack.c.l.b16 %v7414
  %v7870 = vunpack.c.l.b16 %v7415
  %v7871 = vunpack.c.l.b16 %v7416
  %v7872 = vunpack.c.l.b16 %v7417
  %v7873 = vunpack.c.l.b16 %v7418
  %v7874 = vunpack.c.l.b16 %v7419
  %v7875 = vunpack.c.l.b16 %v7420
  %v7876 = vunpack.c.l.b16 %v7421
  %v7877 = vunpack.c.l.b16 %v7422
  %v7878 = vunpack.c.l.b16 %v7423
  %v7879 = vunpack.c.l.b16 %v7424
  %v7880 = vunpack.c.l.b16 %v7425
  %v7881 = vunpack.c.l.b16 %v7426
  %v7882 = vunpack.c.l.b16 %v7427
  %v7883 = vunpack.c.l.b16 %v7428
  %v7884 = vunpack.c.l.b16 %v7429
  %v7885 = vunpack.c.l.b16 %v7430
  %v7886 = vunpack.c.l.b16 %v7431
  %v7887 = vunpack.c.l.b16 %v7432
  %v7888 = vunpack.c.l.b16 %v7433
  %v7889 = vunpack.c.l.b16 %v7434
  %v7890 = vunpack.c.l.b16 %v7435
  %v7891 = vunpack.c.l.b16 %v7436
  %v7892 = vunpack.c.l.b16 %v7437
  %v7893 = vunpack.c.l.b16 %v7438
  %v7894 = vunpack.c.l.b16 %v7439
  %v7895 = vunpack.c.l.b16 %v7440
  %v7896 = vunpack.c.l.b16 %v7441
  %v7897 = vunpack.c.l.b16 %v7442
  %v7898 = vunpack.c.l.b16 %v7443
  %v7899 = vunpack.c.l.b16 %v7444
  %v7900 = vunpack.c.l.b16 %v7445
  %v7901 = vunpack.c.l.b16 %v7446
  %v7902 = vunpack.c.l.b16 %v7447
  %v7903 = vunpack.c.l.b16 %v7448
  %v7904 = vunpack.c.l.b16 %v7449
  %v7905 = vunpack.c.l.b16 %v7450
  %v7906 = vunpack.c.l.b16 %v7451
  %v7907 = vunpack.c.l.b16 %v7452
  %v7908 = vunpack.c.l.b16 %v7453
  %v7909 = vunpack.c.l.b16 %v7454
  %v7910 = vunpack.c.l.b16 %v7455
  %v7911 = vunpack.c.l.b16 %v7456
  %v7912 = vunpack.c.l.b16 %v7457
  %v7913 = vunpack.c.l.b16 %v7458
  %v7914 = vunpack.c.l.b16 %v7459
  %v7915 = vunpack.c.l.b16 %v7460
  %v7916 = vunpack.c.l.b16 %v7461
  %v7917 = vunpack.c.l.b16 %v7462
  %v7918 = vunpack.c.l.b16 %v7463
  %v7919 = vunpack.c.l.b16 %v7464
  %v7920 = vunpack.c.l.b16 %v7465
  %v7921 = vunpack.c.l.b16 %v7466
  %v7922 = vunpack.c.l.b16 %v7467
  %v7923 = vunpack.c.l.b16 %v7468
  %v7924 = vunpack.c.l.b16 %v7469
  %v7925 = vunpack.c.l.b16 %v7470
  %v7926 = vunpack.c.l.b16 %v7471
  %v7927 = vunpack.c.l.b16 %v7472
  %v7928 = vunpack.c.l.b16 %v7473
  %v7929 = vunpack.c.l.b16 %v7474
  %v7930 = vunpack.c.l.b16 %v7475
  %v7931 = vunpack.c.l.b16 %v7476
  %v7932 = vunpack.c.l.b16 %v7477
  %v7933 = vunpack.c.l.b16 %v7478
  %v7934 = vunpack.c.l.b16 %v7479
  %v7935 = vunpack.c.l.b16 %v7480
  %v7936 = vunpack.c.l.b16 %v7481
  %v7937 = vunpack.c.l.b16 %v7482
  %v7938 = vunpack.c.l.b16 %v7483
  %v7939 = vunpack.c.l.b16 %v7484
  %v7940 = vunpack.c.l.b16 %v7485
  %v7941 = vunpack.c.l.b16 %v7486
  %v7942 = vunpack.c.l.b16 %v7487
  %v7943 = vunpack.c.l.b16 %v7488
  %v7944 = vunpack.c.l.b16 %v7489
  %v7945 = vpack.c.b16 %v7722, %v7721
  %v7946 = vpack.c.b16 %v7724, %v7723
  %v7947 = vpack.c.b16 %v7726, %v7725
  %v7948 = vpack.c.b16 %v7728, %v7727
  %v7949 = vpack.c.b16 %v7730, %v7729
  %v7950 = vpack.c.b16 %v7732, %v7731
  %v7951 = vpack.c.b16 %v7734, %v7733
  %v7952 = vpack.c.b16 %v7736, %v7735
  %v7953 = vpack.c.b16 %v7738, %v7737
  %v7954 = vpack.c.b16 %v7740, %v7739
  %v7955 = vpack.c.b16 %v7742, %v7741
  %v7956 = vpack.c.b16 %v7744, %v7743
  %v7957 = vpack.c.b16 %v7746, %v7745
  %v7958 = vpack.c.b16 %v7748, %v7747
  %v7959 = vpack.c.b16 %v7750, %v7749
  %v7960 = vpack.c.b16 %v7752, %v7751
  %v7961 = vpack.c.b16 %v7754, %v7753
  %v7962 = vpack.c.b16 %v7756, %v7755
  %v7963 = vpack.c.b16 %v7758, %v7757
  %v7964 = vpack.c.b16 %v7760, %v7759
  %v7965 = vpack.c.b16 %v7762, %v7761
  %v7966 = vpack.c.b16 %v7764, %v7763
  %v7967 = vpack.c.b16 %v7766, %v7765
  %v7968 = vpack.c.b16 %v7768, %v7767
  %v7969 = vpack.c.b16 %v7770, %v7769
  %v7970 = vpack.c.b16 %v7772, %v7771
  %v7971 = vpack.c.b16 %v7774, %v7773
  %v7972 = vpack.c.b16 %v7776, %v7775
  %v7973 = vpack.c.b16 %v7778, %v7777
  %v7974 = vpack.c.b16 %v7780, %v7779
  %v7975 = vpack.c.b16 %v7782, %v7781
  %v7976 = vpack.c.b16 %v7784, %v7783
  %v7977 = vpack.c.b16 %v7786, %v7785
  %v7978 = vpack.c.b16 %v7788, %v7787
  %v7979 = vpack.c.b16 %v7790, %v7789
  %v7980 = vpack.c.b16 %v7792, %v7791
  %v7981 = vpack.c.b16 %v7794, %v7793
  %v7982 = vpack.c.b16 %v7796, %v7795
  %v7983 = vpack.c.b16 %v7798, %v7797
  %v7984 = vpack.c.b16 %v7800, %v7799
  %v7985 = vpack.c.b16 %v7802, %v7801
  %v7986 = vpack.c.b16 %v7804, %v7803
  %v7987 = vpack.c.b16 %v7806, %v7805
  %v7988 = vpack.c.b16 %v7808, %v7807
  %v7989 = vpack.c.b16 %v7810, %v7809
  %v7990 = vpack.c.b16 %v7812, %v7811
  %v7991 = vpack.c.b16 %v7814, %v7813
  %v7992 = vpack.c.b16 %v7816, %v7815
  %v7993 = vpack.c.b16 %v7818, %v7817
  %v7994 = vpack.c.b16 %v7820, %v7819
  %v7995 = vpack.c.b16 %v7822, %v7821
  %v7996 = vpack.c.b16 %v7824, %v7823
  %v7997 = vpack.c.b16 %v7826, %v7825
  %v7998 = vpack.c.b16 %v7828, %v7827
  %v7999 = vpack.c.b16 %v7830, %v7829
  %v8000 = vpack.c.b16 %v7832, %v7831
  %v8001 = vpack.c.b16 %v7834, %v7833
  %v8002 = vpack.c.b16 %v7836, %v7835
  %v8003 = vpack.c.b16 %v7838, %v7837
  %v8004 = vpack.c.b16 %v7840, %v7839
  %v8005 = vpack.c.b16 %v7842, %v7841
  %v8006 = vpack.c.b16 %v7844, %v7843
  %v8007 = vpack.c.b16 %v7846, %v7845
  %v8008 = vpack.c.b16 %v7848, %v7847
  %v8009 = vpack.c.b16 %v7850, %v7849
  %v8010 = vpack.c.b16 %v7852, %v7851
  %v8011 = vpack.c.b16 %v7854, %v7853
  %v8012 = vpack.c.b16 %v7856, %v7855
  %v8013 = vpack.c.b16 %v7858, %v7857
  %v8014 = vpack.c.b16 %v7860, %v7859
  %v8015 = vpack.c.b16 %v7862, %v7861
  %v8016 = vpack.c.b16 %v7864, %v7863
  %v8017 = vpack.c.b16 %v7866, %v7865
  %v8018 = vpack.c.b16 %v7868, %v7867
  %v8019 = vpack.c.b16 %v7870, %v7869
  %v8020 = vpack.c.b16 %v7872, %v7871
  %v8021 = vpack.c.b16 %v7874, %v7873
  %v8022 = vpack.c.b16 %v7876, %v7875
  %v8023 = vpack.c.b16 %v7878, %v7877
  %v8024 = vpack.c.b16 %v7880, %v7879
  %v8025 = vpack.c.b16 %v7882, %v7881
  %v8026 = vpack.c.b16 %v7884, %v7883
  %v8027 = vpack.c.b16 %v7886, %v7885
  %v8028 = vpack.c.b16 %v7888, %v7887
  %v8029 = vpack.c.b16 %v7890, %v7889
  %v8030 = vpack.c.b16 %v7892, %v7891
  %v8031 = vpack.c.b16 %v7894, %v7893
  %v8032 = vpack.c.b16 %v7896, %v7895
  %v8033 = vpack.c.b16 %v7898, %v7897
  %v8034 = vpack.c.b16 %v7900, %v7899
  %v8035 = vpack.c.b16 %v7902, %v7901
  %v8036 = vpack.c.b16 %v7904, %v7903
  %v8037 = vpack.c.b16 %v7906, %v7905
  %v8038 = vpack.c.b16 %v7908, %v7907
  %v8039 = vpack.c.b16 %v7910, %v7909
  %v8040 = vpack.c.b16 %v7912, %v7911
  %v8041 = vpack.c.b16 %v7914, %v7913
  %v8042 = vpack.c.b16 %v7916, %v7915
  %v8043 = vpack.c.b16 %v7918, %v7917
  %v8044 = vpack.c.b16 %v7920, %v7919
  %v8045 = vpack.c.b16 %v7922, %v7921
  %v8046 = vpack.c.b16 %v7924, %v7923
  %v8047 = vpack.c.b16 %v7926, %v7925
  %v8048 = vpack.c.b16 %v7928, %v7927
  %v8049 = vpack.c.b16 %v7930, %v7929
  %v8050 = vpack.c.b16 %v7932, %v7931
  %v8051 = vpack.c.b16 %v7934, %v7933
  %v8052 = vpack.c.b16 %v7936, %v7935
  %v8053 = vpack.c.b16 %v7938, %v7937
  %v8054 = vpack.c.b16 %v7940, %v7939
  %v8055 = vpack.c.b16 %v7942, %v7941
  %v8056 = vpack.c.b16 %v7944, %v7943
  %8169 = vmatprep.subr.bf16.mxu0 0
  %8170 = vmatpush1.bf16.msra.mxu0 %v7945
  %8171 = vmatprep.subr.bf16.mxu0 0
  %8172 = vmatpush1.bf16.msra.mxu0 %v7946
  %8173 = vmatprep.subr.bf16.mxu0 0
  %8174 = vmatpush1.bf16.msra.mxu0 %v7947
  %8175 = vmatprep.subr.bf16.mxu0 0
  %8176 = vmatpush1.bf16.msra.mxu0 %v7948
  %8177 = vmatprep.subr.bf16.mxu0 0
  %8178 = vmatpush1.bf16.msra.mxu0 %v7949
  %8179 = vmatprep.subr.bf16.mxu0 0
  %8180 = vmatpush1.bf16.msra.mxu0 %v7950
  %8181 = vmatprep.subr.bf16.mxu0 0
  %8182 = vmatpush1.bf16.msra.mxu0 %v7951
  %8183 = vmatprep.subr.bf16.mxu0 0
  %8184 = vmatpush1.bf16.msra.mxu0 %v7952
  %8185 = vmatprep.subr.bf16.mxu0 0
  %8186 = vmatpush1.bf16.msra.mxu0 %v7953
  %8187 = vmatprep.subr.bf16.mxu0 0
  %8188 = vmatpush1.bf16.msra.mxu0 %v7954
  %8189 = vmatprep.subr.bf16.mxu0 0
  %8190 = vmatpush1.bf16.msra.mxu0 %v7955
  %8191 = vmatprep.subr.bf16.mxu0 0
  %8192 = vmatpush1.bf16.msra.mxu0 %v7956
  %8193 = vmatprep.subr.bf16.mxu0 0
  %8194 = vmatpush1.bf16.msra.mxu0 %v7957
  %8195 = vmatprep.subr.bf16.mxu0 0
  %8196 = vmatpush1.bf16.msra.mxu0 %v7958
  %8197 = vmatprep.subr.bf16.mxu0 0
  %8198 = vmatpush1.bf16.msra.mxu0 %v7959
  %8199 = vmatprep.subr.bf16.mxu0 0
  %8200 = vmatpush1.bf16.msra.mxu0 %v7960
  %8201 = vmatprep.mubr.bf16.mxu0 %v7253
  %8202 = vmatmul.mubr.bf16.gmra.mrb[0].mxu0 %v7252
  %v8203 = vpop.f32.mrb[0].mxu0
  %v8204 = vadd.f32 %v7495, %v8203
  %v8205 = vpop.f32.mrb[0].mxu0
  %v8206 = vpop.f32.mrb[0].mxu0
  %v8207 = vpop.f32.mrb[0].mxu0
  %8208 = vdwg.mxu0
  %8209 = vmatprep.subr.bf16.mxu0 0
  %8210 = vmatpush1.bf16.msra.mxu0 %v7961
  %8211 = vmatprep.subr.bf16.mxu0 0
  %8212 = vmatpush1.bf16.msra.mxu0 %v7962
  %8213 = vmatprep.subr.bf16.mxu0 0
  %8214 = vmatpush1.bf16.msra.mxu0 %v7963
  %8215 = vmatprep.subr.bf16.mxu0 0
  %8216 = vmatpush1.bf16.msra.mxu0 %v7964
  %8217 = vmatprep.subr.bf16.mxu0 0
  %8218 = vmatpush1.bf16.msra.mxu0 %v7965
  %8219 = vmatprep.subr.bf16.mxu0 0
  %8220 = vmatpush1.bf16.msra.mxu0 %v7966
  %8221 = vmatprep.subr.bf16.mxu0 0
  %8222 = vmatpush1.bf16.msra.mxu0 %v7967
  %8223 = vmatprep.subr.bf16.mxu0 0
  %8224 = vmatpush1.bf16.msra.mxu0 %v7968
  %8225 = vmatprep.subr.bf16.mxu0 0
  %8226 = vmatpush1.bf16.msra.mxu0 %v7969
  %8227 = vmatprep.subr.bf16.mxu0 0
  %8228 = vmatpush1.bf16.msra.mxu0 %v7970
  %8229 = vmatprep.subr.bf16.mxu0 0
  %8230 = vmatpush1.bf16.msra.mxu0 %v7971
  %8231 = vmatprep.subr.bf16.mxu0 0
  %8232 = vmatpush1.bf16.msra.mxu0 %v7972
  %8233 = vmatprep.subr.bf16.mxu0 0
  %8234 = vmatpush1.bf16.msra.mxu0 %v7973
  %8235 = vmatprep.subr.bf16.mxu0 0
  %8236 = vmatpush1.bf16.msra.mxu0 %v7974
  %8237 = vmatprep.subr.bf16.mxu0 0
  %8238 = vmatpush1.bf16.msra.mxu0 %v7975
  %8239 = vmatprep.subr.bf16.mxu0 0
  %8240 = vmatpush1.bf16.msra.mxu0 %v7976
  %8241 = vmatprep.mubr.bf16.mxu0 %v7255
  %8242 = vmatmul.mubr.bf16.gmra.mrb[0].mxu0 %v7254
  %v8243 = vpop.f32.mrb[0].mxu0
  %v8244 = vadd.f32 %v8204, %v8243
  %v8245 = vpop.f32.mrb[0].mxu0
  %v8246 = vpop.f32.mrb[0].mxu0
  %v8247 = vpop.f32.mrb[0].mxu0
  %8248 = vdwg.mxu0
  %8249 = vmatprep.subr.bf16.mxu0 0
  %8250 = vmatpush1.bf16.msra.mxu0 %v7977
  %8251 = vmatprep.subr.bf16.mxu0 0
  %8252 = vmatpush1.bf16.msra.mxu0 %v7978
  %8253 = vmatprep.subr.bf16.mxu0 0
  %8254 = vmatpush1.bf16.msra.mxu0 %v7979
  %8255 = vmatprep.subr.bf16.mxu0 0
  %8256 = vmatpush1.bf16.msra.mxu0 %v7980
  %8257 = vmatprep.subr.bf16.mxu0 0
  %8258 = vmatpush1.bf16.msra.mxu0 %v7981
  %8259 = vmatprep.subr.bf16.mxu0 0
  %8260 = vmatpush1.bf16.msra.mxu0 %v7982
  %8261 = vmatprep.subr.bf16.mxu0 0
  %8262 = vmatpush1.bf16.msra.mxu0 %v7983
  %8263 = vmatprep.subr.bf16.mxu0 0
  %8264 = vmatpush1.bf16.msra.mxu0 %v7984
  %8265 = vmatprep.subr.bf16.mxu0 0
  %8266 = vmatpush1.bf16.msra.mxu0 %v7985
  %8267 = vmatprep.subr.bf16.mxu0 0
  %8268 = vmatpush1.bf16.msra.mxu0 %v7986
  %8269 = vmatprep.subr.bf16.mxu0 0
  %8270 = vmatpush1.bf16.msra.mxu0 %v7987
  %8271 = vmatprep.subr.bf16.mxu0 0
  %8272 = vmatpush1.bf16.msra.mxu0 %v7988
  %8273 = vmatprep.subr.bf16.mxu0 0
  %8274 = vmatpush1.bf16.msra.mxu0 %v7989
  %8275 = vmatprep.subr.bf16.mxu0 0
  %8276 = vmatpush1.bf16.msra.mxu0 %v7990
  %8277 = vmatprep.subr.bf16.mxu0 0
  %8278 = vmatpush1.bf16.msra.mxu0 %v7991
  %8279 = vmatprep.subr.bf16.mxu0 0
  %8280 = vmatpush1.bf16.msra.mxu0 %v7992
  %8281 = vmatprep.mubr.bf16.mxu0 %v7257
  %8282 = vmatmul.mubr.bf16.gmra.mrb[0].mxu0 %v7256
  %v8283 = vpop.f32.mrb[0].mxu0
  %v8284 = vadd.f32 %v8244, %v8283
  %v8285 = vpop.f32.mrb[0].mxu0
  %v8286 = vpop.f32.mrb[0].mxu0
  %v8287 = vpop.f32.mrb[0].mxu0
  %8288 = vdwg.mxu0
  %8289 = vmatprep.subr.bf16.mxu0 0
  %8290 = vmatpush1.bf16.msra.mxu0 %v7993
  %8291 = vmatprep.subr.bf16.mxu0 0
  %8292 = vmatpush1.bf16.msra.mxu0 %v7994
  %8293 = vmatprep.subr.bf16.mxu0 0
  %8294 = vmatpush1.bf16.msra.mxu0 %v7995
  %8295 = vmatprep.subr.bf16.mxu0 0
  %8296 = vmatpush1.bf16.msra.mxu0 %v7996
  %8297 = vmatprep.subr.bf16.mxu0 0
  %8298 = vmatpush1.bf16.msra.mxu0 %v7997
  %8299 = vmatprep.subr.bf16.mxu0 0
  %8300 = vmatpush1.bf16.msra.mxu0 %v7998
  %8301 = vmatprep.subr.bf16.mxu0 0
  %8302 = vmatpush1.bf16.msra.mxu0 %v7999
  %8303 = vmatprep.subr.bf16.mxu0 0
  %8304 = vmatpush1.bf16.msra.mxu0 %v8000
  %8305 = vmatprep.subr.bf16.mxu0 0
  %8306 = vmatpush1.bf16.msra.mxu0 %v8001
  %8307 = vmatprep.subr.bf16.mxu0 0
  %8308 = vmatpush1.bf16.msra.mxu0 %v8002
  %8309 = vmatprep.subr.bf16.mxu0 0
  %8310 = vmatpush1.bf16.msra.mxu0 %v8003
  %8311 = vmatprep.subr.bf16.mxu0 0
  %8312 = vmatpush1.bf16.msra.mxu0 %v8004
  %8313 = vmatprep.subr.bf16.mxu0 0
  %8314 = vmatpush1.bf16.msra.mxu0 %v8005
  %8315 = vmatprep.subr.bf16.mxu0 0
  %8316 = vmatpush1.bf16.msra.mxu0 %v8006
  %8317 = vmatprep.subr.bf16.mxu0 0
  %8318 = vmatpush1.bf16.msra.mxu0 %v8007
  %8319 = vmatprep.subr.bf16.mxu0 0
  %8320 = vmatpush1.bf16.msra.mxu0 %v8008
  %8321 = vmatprep.mubr.bf16.mxu0 %v7259
  %8322 = vmatmul.mubr.bf16.gmra.mrb[0].mxu0 %v7258
  %v8323 = vpop.f32.mrb[0].mxu0
  %v8324 = vadd.f32 %v8284, %v8323
  %v8325 = vpop.f32.mrb[0].mxu0
  %v8326 = vpop.f32.mrb[0].mxu0
  %v8327 = vpop.f32.mrb[0].mxu0
  %8328 = vdwg.mxu0
  %8329 = vmatprep.subr.bf16.mxu0 0
  %8330 = vmatpush1.bf16.msra.mxu0 %v8009
  %8331 = vmatprep.subr.bf16.mxu0 0
  %8332 = vmatpush1.bf16.msra.mxu0 %v8010
  %8333 = vmatprep.subr.bf16.mxu0 0
  %8334 = vmatpush1.bf16.msra.mxu0 %v8011
  %8335 = vmatprep.subr.bf16.mxu0 0
  %8336 = vmatpush1.bf16.msra.mxu0 %v8012
  %8337 = vmatprep.subr.bf16.mxu0 0
  %8338 = vmatpush1.bf16.msra.mxu0 %v8013
  %8339 = vmatprep.subr.bf16.mxu0 0
  %8340 = vmatpush1.bf16.msra.mxu0 %v8014
  %8341 = vmatprep.subr.bf16.mxu0 0
  %8342 = vmatpush1.bf16.msra.mxu0 %v8015
  %8343 = vmatprep.subr.bf16.mxu0 0
  %8344 = vmatpush1.bf16.msra.mxu0 %v8016
  %8345 = vmatprep.subr.bf16.mxu0 0
  %8346 = vmatpush1.bf16.msra.mxu0 %v8017
  %8347 = vmatprep.subr.bf16.mxu0 0
  %8348 = vmatpush1.bf16.msra.mxu0 %v8018
  %8349 = vmatprep.subr.bf16.mxu0 0
  %8350 = vmatpush1.bf16.msra.mxu0 %v8019
  %8351 = vmatprep.subr.bf16.mxu0 0
  %8352 = vmatpush1.bf16.msra.mxu0 %v8020
  %8353 = vmatprep.subr.bf16.mxu0 0
  %8354 = vmatpush1.bf16.msra.mxu0 %v8021
  %8355 = vmatprep.subr.bf16.mxu0 0
  %8356 = vmatpush1.bf16.msra.mxu0 %v8022
  %8357 = vmatprep.subr.bf16.mxu0 0
  %8358 = vmatpush1.bf16.msra.mxu0 %v8023
  %8359 = vmatprep.subr.bf16.mxu0 0
  %8360 = vmatpush1.bf16.msra.mxu0 %v8024
  %8361 = vmatprep.mubr.bf16.mxu0 %v7261
  %8362 = vmatmul.mubr.bf16.gmra.mrb[0].mxu0 %v7260
  %v8363 = vpop.f32.mrb[0].mxu0
  %v8364 = vadd.f32 %v8324, %v8363
  %v8365 = vpop.f32.mrb[0].mxu0
  %v8366 = vpop.f32.mrb[0].mxu0
  %v8367 = vpop.f32.mrb[0].mxu0
  %8368 = vdwg.mxu0
  %8369 = vmatprep.subr.bf16.mxu0 0
  %8370 = vmatpush1.bf16.msra.mxu0 %v8025
  %8371 = vmatprep.subr.bf16.mxu0 0
  %8372 = vmatpush1.bf16.msra.mxu0 %v8026
  %8373 = vmatprep.subr.bf16.mxu0 0
  %8374 = vmatpush1.bf16.msra.mxu0 %v8027
  %8375 = vmatprep.subr.bf16.mxu0 0
  %8376 = vmatpush1.bf16.msra.mxu0 %v8028
  %8377 = vmatprep.subr.bf16.mxu0 0
  %8378 = vmatpush1.bf16.msra.mxu0 %v8029
  %8379 = vmatprep.subr.bf16.mxu0 0
  %8380 = vmatpush1.bf16.msra.mxu0 %v8030
  %8381 = vmatprep.subr.bf16.mxu0 0
  %8382 = vmatpush1.bf16.msra.mxu0 %v8031
  %8383 = vmatprep.subr.bf16.mxu0 0
  %8384 = vmatpush1.bf16.msra.mxu0 %v8032
  %8385 = vmatprep.subr.bf16.mxu0 0
  %8386 = vmatpush1.bf16.msra.mxu0 %v8033
  %8387 = vmatprep.subr.bf16.mxu0 0
  %8388 = vmatpush1.bf16.msra.mxu0 %v8034
  %8389 = vmatprep.subr.bf16.mxu0 0
  %8390 = vmatpush1.bf16.msra.mxu0 %v8035
  %8391 = vmatprep.subr.bf16.mxu0 0
  %8392 = vmatpush1.bf16.msra.mxu0 %v8036
  %8393 = vmatprep.subr.bf16.mxu0 0
  %8394 = vmatpush1.bf16.msra.mxu0 %v8037
  %8395 = vmatprep.subr.bf16.mxu0 0
  %8396 = vmatpush1.bf16.msra.mxu0 %v8038
  %8397 = vmatprep.subr.bf16.mxu0 0
  %8398 = vmatpush1.bf16.msra.mxu0 %v8039
  %8399 = vmatprep.subr.bf16.mxu0 0
  %8400 = vmatpush1.bf16.msra.mxu0 %v8040
  %8401 = vmatprep.mubr.bf16.mxu0 %v7263
  %8402 = vmatmul.mubr.bf16.gmra.mrb[0].mxu0 %v7262
  %v8403 = vpop.f32.mrb[0].mxu0
  %v8404 = vadd.f32 %v8364, %v8403
  %v8405 = vpop.f32.mrb[0].mxu0
  %v8406 = vpop.f32.mrb[0].mxu0
  %v8407 = vpop.f32.mrb[0].mxu0
  %8408 = vdwg.mxu0
  %8409 = vmatprep.subr.bf16.mxu0 0
  %8410 = vmatpush1.bf16.msra.mxu0 %v8041
  %8411 = vmatprep.subr.bf16.mxu0 0
  %8412 = vmatpush1.bf16.msra.mxu0 %v8042
  %8413 = vmatprep.subr.bf16.mxu0 0
  %8414 = vmatpush1.bf16.msra.mxu0 %v8043
  %8415 = vmatprep.subr.bf16.mxu0 0
  %8416 = vmatpush1.bf16.msra.mxu0 %v8044
  %8417 = vmatprep.subr.bf16.mxu0 0
  %8418 = vmatpush1.bf16.msra.mxu0 %v8045
  %8419 = vmatprep.subr.bf16.mxu0 0
  %8420 = vmatpush1.bf16.msra.mxu0 %v8046
  %8421 = vmatprep.subr.bf16.mxu0 0
  %8422 = vmatpush1.bf16.msra.mxu0 %v8047
  %8423 = vmatprep.subr.bf16.mxu0 0
  %8424 = vmatpush1.bf16.msra.mxu0 %v8048
  %8425 = vmatprep.subr.bf16.mxu0 0
  %8426 = vmatpush1.bf16.msra.mxu0 %v8049
  %8427 = vmatprep.subr.bf16.mxu0 0
  %8428 = vmatpush1.bf16.msra.mxu0 %v8050
  %8429 = vmatprep.subr.bf16.mxu0 0
  %8430 = vmatpush1.bf16.msra.mxu0 %v8051
  %8431 = vmatprep.subr.bf16.mxu0 0
  %8432 = vmatpush1.bf16.msra.mxu0 %v8052
  %8433 = vmatprep.subr.bf16.mxu0 0
  %8434 = vmatpush1.bf16.msra.mxu0 %v8053
  %8435 = vmatprep.subr.bf16.mxu0 0
  %8436 = vmatpush1.bf16.msra.mxu0 %v8054
  %8437 = vmatprep.subr.bf16.mxu0 0
  %8438 = vmatpush1.bf16.msra.mxu0 %v8055
  %8439 = vmatprep.subr.bf16.mxu0 0
  %8440 = vmatpush1.bf16.msra.mxu0 %v8056
  %8441 = vmatprep.mubr.bf16.mxu0 %v7265
  %8442 = vmatmul.mubr.bf16.gmra.mrb[0].mxu0 %v7264
  %v8443 = vpop.f32.mrb[0].mxu0
  %v8444 = vadd.f32 %v8404, %v8443
  %v8445 = vpop.f32.mrb[0].mxu0
  %v8446 = vpop.f32.mrb[0].mxu0
  %v8447 = vpop.f32.mrb[0].mxu0
  %8448 = vdwg.mxu0
  %v8449 = vmax.f32 %v8444, 0.0
  %v8450 = vld [vmem:[%s9] sm:$0xff]
  %v8451 = vld [vmem:[%s9 + $0x8] sm:$0xff]
  %v8452 = vld [vmem:[%s9 + $0x10] sm:$0xff]
  %v8453 = vld [vmem:[%s9 + $0x18] sm:$0xff]
  %v8454 = vld [vmem:[%s9 + $0x20] sm:$0xff]
  %v8455 = vld [vmem:[%s9 + $0x28] sm:$0xff]
  %v8456 = vld [vmem:[%s9 + $0x30] sm:$0xff]
  %v8457 = vld [vmem:[%s9 + $0x38] sm:$0xff]
  %v8458 = vld [vmem:[%s10] sm:$0x1]
  %v8460 = vlaneseq
  %v8461 = vshrl.u32 %v8460, 7
  %v8462 = vsub.s32 0, %v8461
  %v8463 = vrot.slane %v8458, %v8462
  %vm8465 = vcmask 523264
  %v8467 = vsel %vm8465, %v8449, 0
  %8469 = vmatprep.subr.mxu0 0.0
  %8470 = vmatpush1.msra.mxu0 %v8450
  %8471 = vmatprep.subr.mxu0 0.0
  %8472 = vmatpush1.msra.mxu0 %v8451
  %8473 = vmatprep.subr.mxu0 0.0
  %8474 = vmatpush1.msra.mxu0 %v8452
  %8475 = vmatprep.subr.mxu0 0.0
  %8476 = vmatpush1.msra.mxu0 %v8453
  %8477 = vmatprep.subr.mxu0 0.0
  %8478 = vmatpush1.msra.mxu0 %v8454
  %8479 = vmatprep.subr.mxu0 0.0
  %8480 = vmatpush1.msra.mxu0 %v8455
  %8481 = vmatprep.subr.mxu0 0.0
  %8482 = vmatpush1.msra.mxu0 %v8456
  %8483 = vmatprep.subr.mxu0 0.0
  %8484 = vmatpush1.msra.mxu0 %v8457
  %8485 = vmatprep.subr.mxu0 0.0
  %8486 = vmatpush1.msra.mxu0 0.0
  %8487 = vmatprep.subr.mxu0 0.0
  %8488 = vmatpush1.msra.mxu0 0.0
  %8489 = vmatprep.subr.mxu0 0.0
  %8490 = vmatpush1.msra.mxu0 0.0
  %8491 = vmatprep.subr.mxu0 0.0
  %8492 = vmatpush1.msra.mxu0 0.0
  %8493 = vmatprep.subr.mxu0 0.0
  %8494 = vmatpush1.msra.mxu0 0.0
  %8495 = vmatprep.subr.mxu0 0.0
  %8496 = vmatpush1.msra.mxu0 0.0
  %8497 = vmatprep.subr.mxu0 0.0
  %8498 = vmatpush1.msra.mxu0 0.0
  %8499 = vmatprep.subr.mxu0 0.0
  %8500 = vmatpush1.msra.mxu0 0.0
  %8501 = vmatprep.subr.mxu0 0.0
  %8502 = vmatpush1.msra.mxu0 0.0
  %8503 = vmatprep.subr.mxu0 0.0
  %8504 = vmatpush1.msra.mxu0 0.0
  %8505 = vmatprep.subr.mxu0 0.0
  %8506 = vmatpush1.msra.mxu0 0.0
  %8507 = vmatprep.subr.mxu0 0.0
  %8508 = vmatpush1.msra.mxu0 0.0
  %8509 = vmatprep.subr.mxu0 0.0
  %8510 = vmatpush1.msra.mxu0 0.0
  %8511 = vmatprep.subr.mxu0 0.0
  %8512 = vmatpush1.msra.mxu0 0.0
  %8513 = vmatprep.subr.mxu0 0.0
  %8514 = vmatpush1.msra.mxu0 0.0
  %8515 = vmatprep.subr.mxu0 0.0
  %8516 = vmatpush1.msra.mxu0 0.0
  %8517 = vmatprep.subr.mxu0 0.0
  %8518 = vmatpush1.msra.mxu0 0.0
  %8519 = vmatprep.subr.mxu0 0.0
  %8520 = vmatpush1.msra.mxu0 0.0
  %8521 = vmatprep.subr.mxu0 0.0
  %8522 = vmatpush1.msra.mxu0 0.0
  %8523 = vmatprep.subr.mxu0 0.0
  %8524 = vmatpush1.msra.mxu0 0.0
  %8525 = vmatprep.subr.mxu0 0.0
  %8526 = vmatpush1.msra.mxu0 0.0
  %8527 = vmatprep.subr.mxu0 0.0
  %8528 = vmatpush1.msra.mxu0 0.0
  %8529 = vmatprep.subr.mxu0 0.0
  %8530 = vmatpush1.msra.mxu0 0.0
  %8531 = vmatprep.subr.mxu0 0.0
  %8532 = vmatpush1.msra.mxu0 0.0
  %8533 = vmatprep.mubr.f32.mxu0 0.0
  %8534 = vmatmul.mubr.f32.gmra.mrb[0].mxu0 %v8467
  %v8535 = vpop.f32.mrb[0].mxu0
  %v8536 = vadd.f32 %v8463, %v8535
  %v8537 = vpop.f32.mrb[0].mxu0
  %8538 = vdwg.mxu0
  %vm8539 = vcmask 80896
  %v8540 = vsel %vm8539, %v8536, -inf
  %8541 = vmax.xlane.f32.xlu0 %v8540
  %v8542 = vpop.xlane.xlu0 %8541
  %v8543 = vsub.f32 %v8536, %v8542
  %v8544 = vmul.f32 %v8543, 1.442695
  %v8545 = vpow.pop %v8544
  %v8546 = vsel %vm8539, %v8545, 0.0
  %8547 = vadd.xlane.f32.xlu0 %v8546
  %v8548 = vpop.xlane.xlu0 %8547
  %v8549 = vrcp.pop %v8548
  %v8550 = vmul.f32 %v8545, %v8549
  %8551 = vst.msk [vmem:[%s11] sm:$0xff] %vm8539, %v8550
  // Predicated region
  $region46: #{convnet_forward.1} parent=0 // pred_check
    _
  $region47: #{convnet_forward.1} parent=0 // pred_check_branch
    %8553 = sbr.rel (0) target = $region49
  $region48: #{convnet_forward.1} parent=0 // pred_region
    _
  $region49: #{convnet_forward.1} parent=0 // pred_fallthru
    _
  // Predicated region
  $region50: #{convnet_forward.1} parent=0 // pred_check
    _
  $region51: #{convnet_forward.1} parent=0 // pred_check_branch
    %8555 = sbr.rel (0) target = $region53
  $region52: #{convnet_forward.1} parent=0 // pred_region
    _
  $region53: #{convnet_forward.1} parent=0 // pred_fallthru
    _

</llo_original>
